<compile_context>
chip_gen: v7x
topology: tpu7x:2x2x1
jax: 0.10.0
libtpu: 0.0.40
codegen_flags: <defaults>
</compile_context>

<pallas_src>
import functools

import jax
import jax.numpy as jnp
import numpy as np
from jax.experimental import pallas as pl
from jax.experimental.pallas import tpu as pltpu

CP = 128  # lane-dense padded channel width


# ----------------------- fused conv + bias + ReLU + pool -------------------- #

def _conv_pool_kernel(x_ref, we_ref, wo_ref, b_ref, o_ref, *, th, whp, cp2, coutp):
    """One batch element, one tile of `th` conv rows -> th//2 pooled rows.

    x_ref : (1, H+2, whp+1, 2*CP)  column-pair packed, spatially padded input
    we_ref: (6, 2*CP, coutp)       packed taps for even output columns
    wo_ref: (6, 2*CP, coutp)       packed taps for odd  output columns
    b_ref : (1, coutp)
    o_ref : (1, th//2, whp, coutp) pooled output tile (lane-dense)
    """
    r = pl.program_id(1)
    row0 = pl.multiple_of(r * th, th)
    m = th * whp

    acc_e = jnp.zeros((m, coutp), jnp.float32)
    acc_o = jnp.zeros((m, coutp), jnp.float32)
    for dh in range(3):           # kernel row taps (static unroll)
        for j in range(2):        # packed-column taps (static unroll)
            xs = x_ref[0, pl.ds(row0 + dh, th), pl.ds(j, whp), :]   # (th, whp, 2CP)
            xs = xs.reshape(m, cp2)        # whp is a multiple of 8 -> layout no-op
            t = dh * 2 + j
            acc_e = acc_e + jnp.dot(xs, we_ref[t], preferred_element_type=jnp.float32)
            acc_o = acc_o + jnp.dot(xs, wo_ref[t], preferred_element_type=jnp.float32)

    bias = b_ref[...]                                    # (1, coutp)
    ye = jnp.maximum(acc_e + bias, 0.0)                  # even columns, ReLU'ed
    yo = jnp.maximum(acc_o + bias, 0.0)                  # odd  columns, ReLU'ed
    ym = jnp.maximum(ye, yo)                             # pool over column pairs (VPU)
    ym = ym.reshape(th // 2, 2, whp, coutp)              # split major dim only
    o_ref[0] = jnp.max(ym, axis=1)                       # pool over row pairs (VPU)


def pack_conv_params(w_oihw, b, cinp=CP, coutp=CP):
    """OIHW conv weights -> column-pair packed tap matrices (lane/channel padded)."""
    cout, cin = int(w_oihw.shape[0]), int(w_oihw.shape[1])
    w = jnp.zeros((3, 3, cinp, coutp), jnp.float32)
    w = w.at[:, :, :cin, :cout].set(
        jnp.transpose(w_oihw, (2, 3, 1, 0)).astype(jnp.float32))
    zero = jnp.zeros((cinp, coutp), jnp.float32)
    we, wo = [], []
    for dh in range(3):
        # even output col 2q: taps at cols 2q (W0), 2q+1 (W1), 2q+2 (W2)
        we.append(jnp.concatenate([w[dh, 0], w[dh, 1]], axis=0))   # j = 0
        wo.append(jnp.concatenate([zero,     w[dh, 0]], axis=0))
        we.append(jnp.concatenate([w[dh, 2], zero    ], axis=0))   # j = 1
        wo.append(jnp.concatenate([w[dh, 1], w[dh, 2]], axis=0))
        # odd output col 2q+1: taps at cols 2q+1 (W0), 2q+2 (W1), 2q+3 (W2)
    we = jnp.stack(we)    # (6, 2*cinp, coutp), index = dh*2 + j
    wo = jnp.stack(wo)
    bp = jnp.zeros((1, coutp), jnp.float32).at[0, :cout].set(b.astype(jnp.float32))
    return we, wo, bp


def conv3x3_relu_pool2x2(x, we, wo, bp):
    """Fused conv3x3(pad=1) + bias + ReLU + maxpool2x2.

    x: (N, H, W, CP) NHWC, channels zero-padded to CP.  Returns (N, H//2, W//2, CP).
    """
    n, h, w, cp = x.shape
    assert cp == CP and h % 2 == 0 and w % 2 == 0
    wh = w // 2
    whp = max(8, ((wh + 7) // 8) * 8)        # packed width, kept 8-aligned
    coutp = we.shape[-1]

    # Glue (cheap, once per layer): halo pad + right-pad width, then a *free*
    # row-major reshape packing adjacent column pairs into the channel/lane dim.
    wpad = 2 * whp + 2
    xp = jnp.pad(x, ((0, 0), (1, 1), (1, wpad - w - 1), (0, 0)))
    xp = xp.reshape(n, h + 2, whp + 1, 2 * cp)

    th = min(h, 8)                           # conv-row tile (even, divides H)
    assert h % th == 0 and th % 2 == 0

    kernel = functools.partial(_conv_pool_kernel, th=th, whp=whp,
                               cp2=2 * cp, coutp=coutp)
    out = pl.pallas_call(
        kernel,
        out_shape=jax.ShapeDtypeStruct((n, h // 2, whp, coutp), jnp.float32),
        grid=(n, h // th),
        in_specs=[
            # whole padded image per batch element, resident across row tiles
            pl.BlockSpec((1, h + 2, whp + 1, 2 * cp), lambda b, r: (b, 0, 0, 0)),
            pl.BlockSpec((6, 2 * cp, coutp), lambda b, r: (0, 0, 0)),
            pl.BlockSpec((6, 2 * cp, coutp), lambda b, r: (0, 0, 0)),
            pl.BlockSpec((1, coutp), lambda b, r: (0, 0)),
        ],
        out_specs=pl.BlockSpec((1, th // 2, whp, coutp), lambda b, r: (b, r, 0, 0)),
        compiler_params=pltpu.CompilerParams(
            dimension_semantics=("parallel", "arbitrary"),
            vmem_limit_bytes=32 * 1024 * 1024),
    )(xp, we, wo, bp)
    return out[:, :, :wh, :]                 # drop right-padding junk columns


# --------------------------- fused FC tail (fc1+fc2) ------------------------ #

def _fc_tail_kernel(x_ref, w1_ref, b1_ref, w2_ref, b2_ref, o_ref, acc_ref):
    k = pl.program_id(0)

    @pl.when(k == 0)
    def _init():
        acc_ref[...] = jnp.zeros_like(acc_ref)

    acc_ref[...] += jnp.dot(x_ref[...], w1_ref[...],
                            preferred_element_type=jnp.float32)

    @pl.when(k == pl.num_programs(0) - 1)
    def _finalize():
        h = jnp.maximum(acc_ref[...] + b1_ref[...], 0.0)          # fc1 + ReLU
        y = jnp.dot(h, w2_ref[...], preferred_element_type=jnp.float32) + b2_ref[...]
        o_ref[...] = y.astype(o_ref.dtype)                        # fc2


def fc_tail(x, w1, b1, w2, b2, *, tk=256):
    """Fused fc1 + ReLU + fc2 with a K-tiled contraction and VMEM accumulator."""
    m, k = x.shape
    n1 = w1.shape[1]
    n2p = w2.shape[1]
    if k % tk != 0:
        tk = k
    return pl.pallas_call(
        _fc_tail_kernel,
        out_shape=jax.ShapeDtypeStruct((m, n2p), jnp.float32),
        grid=(k // tk,),
        in_specs=[
            pl.BlockSpec((m, tk), lambda kk: (0, kk)),
            pl.BlockSpec((tk, n1), lambda kk: (kk, 0)),
            pl.BlockSpec((1, n1), lambda kk: (0, 0)),
            pl.BlockSpec((n1, n2p), lambda kk: (0, 0)),
            pl.BlockSpec((1, n2p), lambda kk: (0, 0)),
        ],
        out_specs=pl.BlockSpec((m, n2p), lambda kk: (0, 0)),
        scratch_shapes=[pltpu.VMEM((m, n1), jnp.float32)],
        compiler_params=pltpu.CompilerParams(
            dimension_semantics=("arbitrary",),
            vmem_limit_bytes=32 * 1024 * 1024),
    )(x, w1, b1, w2, b2)


# ------------------------------ model & params ------------------------------ #

def init_params(key, spatial):
    ks = jax.random.split(key, 10)

    def norm(k, shape, scale=0.05):
        return (scale * jax.random.normal(k, shape)).astype(jnp.float32)

    s = spatial // 8                     # three 2x2 pools
    fc1_in = 128 * s * s                 # = 128*125*125 for 1000x1000 inputs
    return {
        "conv1_w": norm(ks[0], (32, 4, 3, 3)),   "conv1_b": norm(ks[1], (32,)),
        "conv2_w": norm(ks[2], (64, 32, 3, 3)),  "conv2_b": norm(ks[3], (64,)),
        "conv3_w": norm(ks[4], (128, 64, 3, 3)), "conv3_b": norm(ks[5], (128,)),
        "fc1_w": norm(ks[6], (256, fc1_in)),     "fc1_b": norm(ks[7], (256,)),
        "fc2_w": norm(ks[8], (2, 256)),          "fc2_b": norm(ks[9], (2,)),
    }


@jax.jit
def eye_diameter_net(params, x_nchw):
    n, c, _, _ = x_nchw.shape
    # NCHW -> NHWC, channels zero-padded to 128 lanes (lane-dense layout).
    x = jnp.transpose(x_nchw, (0, 2, 3, 1)).astype(jnp.float32)
    x = jnp.pad(x, ((0, 0), (0, 0), (0, 0), (0, CP - c)))

    for name in ("conv1", "conv2", "conv3"):
        we, wo, bp = pack_conv_params(params[name + "_w"], params[name + "_b"])
        x = conv3x3_relu_pool2x2(x, we, wo, bp)

    # PyTorch flattens NCHW -> (N, C*H*W); conv3 has exactly 128 real channels.
    x = jnp.transpose(x, (0, 3, 1, 2)).reshape(n, -1)

    w1 = params["fc1_w"].T                                  # (fc1_in, 256)
    b1 = params["fc1_b"].reshape(1, -1)
    w2 = jnp.zeros((256, CP), jnp.float32).at[:, :2].set(params["fc2_w"].T)
    b2 = jnp.zeros((1, CP), jnp.float32).at[0, :2].set(params["fc2_b"])
    y = fc_tail(x, w1, b1, w2, b2)                          # lane-dense output
    return y[:, :2]


# ---------------------------- pure-JAX reference ---------------------------- #

def reference_forward(params, x_nchw):
    x = jnp.transpose(x_nchw, (0, 2, 3, 1)).astype(jnp.float32)

    def conv_relu(x, w_oihw, b):
        w_hwio = jnp.transpose(w_oihw, (2, 3, 1, 0))
        y = jax.lax.conv_general_dilated(
            x, w_hwio, window_strides=(1, 1), padding="SAME",
            dimension_numbers=("NHWC", "HWIO", "NHWC"))
        return jnp.maximum(y + b, 0.0)

    def pool(x):
        return jax.lax.reduce_window(
            x, -jnp.inf, jax.lax.max, (1, 2, 2, 1), (1, 2, 2, 1), "VALID")

    x = pool(conv_relu(x, params["conv1_w"], params["conv1_b"]))
    x = pool(conv_relu(x, params["conv2_w"], params["conv2_b"]))
    x = pool(conv_relu(x, params["conv3_w"], params["conv3_b"]))
    n = x.shape[0]
    x = jnp.transpose(x, (0, 3, 1, 2)).reshape(n, -1)
    x = jnp.maximum(x @ params["fc1_w"].T + params["fc1_b"], 0.0)
    return x @ params["fc2_w"].T + params["fc2_b"]


# ----------------------------------- main ----------------------------------- #

if __name__ == "__main__":
    key = jax.random.PRNGKey(0)
    k_param, k_x = jax.random.split(key)

    batch, channels, spatial = 2, 4, 16
    params = init_params(k_param, spatial)
    x = jax.random.normal(k_x, (batch, channels, spatial, spatial), dtype=jnp.float32)

    out = jax.block_until_ready(eye_diameter_net(params, x))
    assert out.shape == (batch, 2)

    ref = jax.block_until_ready(reference_forward(params, x))
    np.testing.assert_allclose(np.asarray(out), np.asarray(ref), rtol=5e-2, atol=5e-3)

    print("KERNEL_OK")
</pallas_src>

<mosaic_0001>
module attributes {stable_mosaic.version = 11 : i64} {
  func.func @_conv_pool_kernel(%arg0: i32, %arg1: i32, %arg2: memref<1x18x9x256xf32, #tpu.memory_space<vmem>>, %arg3: memref<6x256x128xf32, #tpu.memory_space<vmem>>, %arg4: memref<6x256x128xf32, #tpu.memory_space<vmem>>, %arg5: memref<1x128xf32, #tpu.memory_space<vmem>>, %arg6: memref<1x4x8x128xf32, #tpu.memory_space<vmem>>) attributes {dimension_semantics = [#tpu.dimension_semantics<parallel>, #tpu.dimension_semantics<arbitrary>], iteration_bounds = array<i64: 2, 2>, scalar_prefetch = 0 : i64, scratch_operands = 0 : i64, tpu.core_type = #tpu.core_type<tc>, window_params = [{transform_indices = @transform_0, window_bounds = array<i64: 1, 18, 9, 256>}, {pipeline_mode = #tpu.pipeline_mode<synchronous>, transform_indices = @transform_1, window_bounds = array<i64: 6, 256, 128>}, {pipeline_mode = #tpu.pipeline_mode<synchronous>, transform_indices = @transform_2, window_bounds = array<i64: 6, 256, 128>}, {pipeline_mode = #tpu.pipeline_mode<synchronous>, transform_indices = @transform_3, window_bounds = array<i64: 1, 128>}, {transform_indices = @transform_4, window_bounds = array<i64: 1, 4, 8, 128>}]} {
    %c8_i32 = arith.constant 8 : i32
    %0 = arith.muli %arg1, %c8_i32 : i32
    %1 = tpu.assume_multiple %0, 8 : i32
    %cst = arith.constant 0.000000e+00 : f32
    %2 = vector.broadcast %cst : f32 to vector<64x128xf32>
    %cst_0 = arith.constant 0.000000e+00 : f32
    %3 = vector.broadcast %cst_0 : f32 to vector<64x128xf32>
    %c0_i32 = arith.constant 0 : i32
    %4 = arith.addi %1, %c0_i32 : i32
    %c0 = arith.constant 0 : index
    %5 = arith.index_cast %4 : i32 to index
    %c0_1 = arith.constant 0 : index
    %c0_2 = arith.constant 0 : index
    %6 = vector.load %arg2[%c0, %5, %c0_1, %c0_2] : memref<1x18x9x256xf32, #tpu.memory_space<vmem>>, vector<1x8x8x256xf32>
    %7 = vector.shape_cast %6 : vector<1x8x8x256xf32> to vector<8x8x256xf32>
    %8 = vector.shape_cast %7 : vector<8x8x256xf32> to vector<64x256xf32>
    %c0_3 = arith.constant 0 : index
    %c0_4 = arith.constant 0 : index
    %c0_5 = arith.constant 0 : index
    %9 = vector.load %arg3[%c0_3, %c0_4, %c0_5] : memref<6x256x128xf32, #tpu.memory_space<vmem>>, vector<1x256x128xf32>
    %10 = vector.shape_cast %9 : vector<1x256x128xf32> to vector<256x128xf32>
    %cst_6 = arith.constant dense<0.000000e+00> : vector<64x128xf32>
    %11 = tpu.matmul %8, %10, %cst_6 {dimension_numbers = #tpu.dot_dimension_numbers<[1], [0], [0], [1], [0, 0, 1, 1], [], []>} : vector<64x256xf32>, vector<256x128xf32>, vector<64x128xf32> -> vector<64x128xf32>
    %12 = arith.addf %2, %11 : vector<64x128xf32>
    %c0_7 = arith.constant 0 : index
    %c0_8 = arith.constant 0 : index
    %c0_9 = arith.constant 0 : index
    %13 = vector.load %arg4[%c0_7, %c0_8, %c0_9] : memref<6x256x128xf32, #tpu.memory_space<vmem>>, vector<1x256x128xf32>
    %14 = vector.shape_cast %13 : vector<1x256x128xf32> to vector<256x128xf32>
    %cst_10 = arith.constant dense<0.000000e+00> : vector<64x128xf32>
    %15 = tpu.matmul %8, %14, %cst_10 {dimension_numbers = #tpu.dot_dimension_numbers<[1], [0], [0], [1], [0, 0, 1, 1], [], []>} : vector<64x256xf32>, vector<256x128xf32>, vector<64x128xf32> -> vector<64x128xf32>
    %16 = arith.addf %3, %15 : vector<64x128xf32>
    %c0_i32_11 = arith.constant 0 : i32
    %17 = arith.addi %1, %c0_i32_11 : i32
    %c0_12 = arith.constant 0 : index
    %18 = arith.index_cast %17 : i32 to index
    %c1 = arith.constant 1 : index
    %c0_13 = arith.constant 0 : index
    %19 = vector.load %arg2[%c0_12, %18, %c1, %c0_13] : memref<1x18x9x256xf32, #tpu.memory_space<vmem>>, vector<1x8x8x256xf32>
    %20 = vector.shape_cast %19 : vector<1x8x8x256xf32> to vector<8x8x256xf32>
    %21 = vector.shape_cast %20 : vector<8x8x256xf32> to vector<64x256xf32>
    %c1_14 = arith.constant 1 : index
    %c0_15 = arith.constant 0 : index
    %c0_16 = arith.constant 0 : index
    %22 = vector.load %arg3[%c1_14, %c0_15, %c0_16] : memref<6x256x128xf32, #tpu.memory_space<vmem>>, vector<1x256x128xf32>
    %23 = vector.shape_cast %22 : vector<1x256x128xf32> to vector<256x128xf32>
    %cst_17 = arith.constant dense<0.000000e+00> : vector<64x128xf32>
    %24 = tpu.matmul %21, %23, %cst_17 {dimension_numbers = #tpu.dot_dimension_numbers<[1], [0], [0], [1], [0, 0, 1, 1], [], []>} : vector<64x256xf32>, vector<256x128xf32>, vector<64x128xf32> -> vector<64x128xf32>
    %25 = arith.addf %12, %24 : vector<64x128xf32>
    %c1_18 = arith.constant 1 : index
    %c0_19 = arith.constant 0 : index
    %c0_20 = arith.constant 0 : index
    %26 = vector.load %arg4[%c1_18, %c0_19, %c0_20] : memref<6x256x128xf32, #tpu.memory_space<vmem>>, vector<1x256x128xf32>
    %27 = vector.shape_cast %26 : vector<1x256x128xf32> to vector<256x128xf32>
    %cst_21 = arith.constant dense<0.000000e+00> : vector<64x128xf32>
    %28 = tpu.matmul %21, %27, %cst_21 {dimension_numbers = #tpu.dot_dimension_numbers<[1], [0], [0], [1], [0, 0, 1, 1], [], []>} : vector<64x256xf32>, vector<256x128xf32>, vector<64x128xf32> -> vector<64x128xf32>
    %29 = arith.addf %16, %28 : vector<64x128xf32>
    %c1_i32 = arith.constant 1 : i32
    %30 = arith.addi %1, %c1_i32 : i32
    %c0_22 = arith.constant 0 : index
    %31 = arith.index_cast %30 : i32 to index
    %c0_23 = arith.constant 0 : index
    %c0_24 = arith.constant 0 : index
    %32 = vector.load %arg2[%c0_22, %31, %c0_23, %c0_24] : memref<1x18x9x256xf32, #tpu.memory_space<vmem>>, vector<1x8x8x256xf32>
    %33 = vector.shape_cast %32 : vector<1x8x8x256xf32> to vector<8x8x256xf32>
    %34 = vector.shape_cast %33 : vector<8x8x256xf32> to vector<64x256xf32>
    %c2 = arith.constant 2 : index
    %c0_25 = arith.constant 0 : index
    %c0_26 = arith.constant 0 : index
    %35 = vector.load %arg3[%c2, %c0_25, %c0_26] : memref<6x256x128xf32, #tpu.memory_space<vmem>>, vector<1x256x128xf32>
    %36 = vector.shape_cast %35 : vector<1x256x128xf32> to vector<256x128xf32>
    %cst_27 = arith.constant dense<0.000000e+00> : vector<64x128xf32>
    %37 = tpu.matmul %34, %36, %cst_27 {dimension_numbers = #tpu.dot_dimension_numbers<[1], [0], [0], [1], [0, 0, 1, 1], [], []>} : vector<64x256xf32>, vector<256x128xf32>, vector<64x128xf32> -> vector<64x128xf32>
    %38 = arith.addf %25, %37 : vector<64x128xf32>
    %c2_28 = arith.constant 2 : index
    %c0_29 = arith.constant 0 : index
    %c0_30 = arith.constant 0 : index
    %39 = vector.load %arg4[%c2_28, %c0_29, %c0_30] : memref<6x256x128xf32, #tpu.memory_space<vmem>>, vector<1x256x128xf32>
    %40 = vector.shape_cast %39 : vector<1x256x128xf32> to vector<256x128xf32>
    %cst_31 = arith.constant dense<0.000000e+00> : vector<64x128xf32>
    %41 = tpu.matmul %34, %40, %cst_31 {dimension_numbers = #tpu.dot_dimension_numbers<[1], [0], [0], [1], [0, 0, 1, 1], [], []>} : vector<64x256xf32>, vector<256x128xf32>, vector<64x128xf32> -> vector<64x128xf32>
    %42 = arith.addf %29, %41 : vector<64x128xf32>
    %c1_i32_32 = arith.constant 1 : i32
    %43 = arith.addi %1, %c1_i32_32 : i32
    %c0_33 = arith.constant 0 : index
    %44 = arith.index_cast %43 : i32 to index
    %c1_34 = arith.constant 1 : index
    %c0_35 = arith.constant 0 : index
    %45 = vector.load %arg2[%c0_33, %44, %c1_34, %c0_35] : memref<1x18x9x256xf32, #tpu.memory_space<vmem>>, vector<1x8x8x256xf32>
    %46 = vector.shape_cast %45 : vector<1x8x8x256xf32> to vector<8x8x256xf32>
    %47 = vector.shape_cast %46 : vector<8x8x256xf32> to vector<64x256xf32>
    %c3 = arith.constant 3 : index
    %c0_36 = arith.constant 0 : index
    %c0_37 = arith.constant 0 : index
    %48 = vector.load %arg3[%c3, %c0_36, %c0_37] : memref<6x256x128xf32, #tpu.memory_space<vmem>>, vector<1x256x128xf32>
    %49 = vector.shape_cast %48 : vector<1x256x128xf32> to vector<256x128xf32>
    %cst_38 = arith.constant dense<0.000000e+00> : vector<64x128xf32>
    %50 = tpu.matmul %47, %49, %cst_38 {dimension_numbers = #tpu.dot_dimension_numbers<[1], [0], [0], [1], [0, 0, 1, 1], [], []>} : vector<64x256xf32>, vector<256x128xf32>, vector<64x128xf32> -> vector<64x128xf32>
    %51 = arith.addf %38, %50 : vector<64x128xf32>
    %c3_39 = arith.constant 3 : index
    %c0_40 = arith.constant 0 : index
    %c0_41 = arith.constant 0 : index
    %52 = vector.load %arg4[%c3_39, %c0_40, %c0_41] : memref<6x256x128xf32, #tpu.memory_space<vmem>>, vector<1x256x128xf32>
    %53 = vector.shape_cast %52 : vector<1x256x128xf32> to vector<256x128xf32>
    %cst_42 = arith.constant dense<0.000000e+00> : vector<64x128xf32>
    %54 = tpu.matmul %47, %53, %cst_42 {dimension_numbers = #tpu.dot_dimension_numbers<[1], [0], [0], [1], [0, 0, 1, 1], [], []>} : vector<64x256xf32>, vector<256x128xf32>, vector<64x128xf32> -> vector<64x128xf32>
    %55 = arith.addf %42, %54 : vector<64x128xf32>
    %c2_i32 = arith.constant 2 : i32
    %56 = arith.addi %1, %c2_i32 : i32
    %c0_43 = arith.constant 0 : index
    %57 = arith.index_cast %56 : i32 to index
    %c0_44 = arith.constant 0 : index
    %c0_45 = arith.constant 0 : index
    %58 = vector.load %arg2[%c0_43, %57, %c0_44, %c0_45] : memref<1x18x9x256xf32, #tpu.memory_space<vmem>>, vector<1x8x8x256xf32>
    %59 = vector.shape_cast %58 : vector<1x8x8x256xf32> to vector<8x8x256xf32>
    %60 = vector.shape_cast %59 : vector<8x8x256xf32> to vector<64x256xf32>
    %c4 = arith.constant 4 : index
    %c0_46 = arith.constant 0 : index
    %c0_47 = arith.constant 0 : index
    %61 = vector.load %arg3[%c4, %c0_46, %c0_47] : memref<6x256x128xf32, #tpu.memory_space<vmem>>, vector<1x256x128xf32>
    %62 = vector.shape_cast %61 : vector<1x256x128xf32> to vector<256x128xf32>
    %cst_48 = arith.constant dense<0.000000e+00> : vector<64x128xf32>
    %63 = tpu.matmul %60, %62, %cst_48 {dimension_numbers = #tpu.dot_dimension_numbers<[1], [0], [0], [1], [0, 0, 1, 1], [], []>} : vector<64x256xf32>, vector<256x128xf32>, vector<64x128xf32> -> vector<64x128xf32>
    %64 = arith.addf %51, %63 : vector<64x128xf32>
    %c4_49 = arith.constant 4 : index
    %c0_50 = arith.constant 0 : index
    %c0_51 = arith.constant 0 : index
    %65 = vector.load %arg4[%c4_49, %c0_50, %c0_51] : memref<6x256x128xf32, #tpu.memory_space<vmem>>, vector<1x256x128xf32>
    %66 = vector.shape_cast %65 : vector<1x256x128xf32> to vector<256x128xf32>
    %cst_52 = arith.constant dense<0.000000e+00> : vector<64x128xf32>
    %67 = tpu.matmul %60, %66, %cst_52 {dimension_numbers = #tpu.dot_dimension_numbers<[1], [0], [0], [1], [0, 0, 1, 1], [], []>} : vector<64x256xf32>, vector<256x128xf32>, vector<64x128xf32> -> vector<64x128xf32>
    %68 = arith.addf %55, %67 : vector<64x128xf32>
    %c2_i32_53 = arith.constant 2 : i32
    %69 = arith.addi %1, %c2_i32_53 : i32
    %c0_54 = arith.constant 0 : index
    %70 = arith.index_cast %69 : i32 to index
    %c1_55 = arith.constant 1 : index
    %c0_56 = arith.constant 0 : index
    %71 = vector.load %arg2[%c0_54, %70, %c1_55, %c0_56] : memref<1x18x9x256xf32, #tpu.memory_space<vmem>>, vector<1x8x8x256xf32>
    %72 = vector.shape_cast %71 : vector<1x8x8x256xf32> to vector<8x8x256xf32>
    %73 = vector.shape_cast %72 : vector<8x8x256xf32> to vector<64x256xf32>
    %c5 = arith.constant 5 : index
    %c0_57 = arith.constant 0 : index
    %c0_58 = arith.constant 0 : index
    %74 = vector.load %arg3[%c5, %c0_57, %c0_58] : memref<6x256x128xf32, #tpu.memory_space<vmem>>, vector<1x256x128xf32>
    %75 = vector.shape_cast %74 : vector<1x256x128xf32> to vector<256x128xf32>
    %cst_59 = arith.constant dense<0.000000e+00> : vector<64x128xf32>
    %76 = tpu.matmul %73, %75, %cst_59 {dimension_numbers = #tpu.dot_dimension_numbers<[1], [0], [0], [1], [0, 0, 1, 1], [], []>} : vector<64x256xf32>, vector<256x128xf32>, vector<64x128xf32> -> vector<64x128xf32>
    %77 = arith.addf %64, %76 : vector<64x128xf32>
    %c5_60 = arith.constant 5 : index
    %c0_61 = arith.constant 0 : index
    %c0_62 = arith.constant 0 : index
    %78 = vector.load %arg4[%c5_60, %c0_61, %c0_62] : memref<6x256x128xf32, #tpu.memory_space<vmem>>, vector<1x256x128xf32>
    %79 = vector.shape_cast %78 : vector<1x256x128xf32> to vector<256x128xf32>
    %cst_63 = arith.constant dense<0.000000e+00> : vector<64x128xf32>
    %80 = tpu.matmul %73, %79, %cst_63 {dimension_numbers = #tpu.dot_dimension_numbers<[1], [0], [0], [1], [0, 0, 1, 1], [], []>} : vector<64x256xf32>, vector<256x128xf32>, vector<64x128xf32> -> vector<64x128xf32>
    %81 = arith.addf %68, %80 : vector<64x128xf32>
    %c0_64 = arith.constant 0 : index
    %c0_65 = arith.constant 0 : index
    %82 = vector.load %arg5[%c0_64, %c0_65] : memref<1x128xf32, #tpu.memory_space<vmem>>, vector<1x128xf32>
    %83 = vector.broadcast %82 : vector<1x128xf32> to vector<64x128xf32>
    %84 = arith.addf %77, %83 : vector<64x128xf32>
    %cst_66 = arith.constant 0.000000e+00 : f32
    %85 = vector.broadcast %cst_66 : f32 to vector<64x128xf32>
    %86 = arith.maximumf %84, %85 : vector<64x128xf32>
    %87 = vector.broadcast %82 : vector<1x128xf32> to vector<64x128xf32>
    %88 = arith.addf %81, %87 : vector<64x128xf32>
    %cst_67 = arith.constant 0.000000e+00 : f32
    %89 = vector.broadcast %cst_67 : f32 to vector<64x128xf32>
    %90 = arith.maximumf %88, %89 : vector<64x128xf32>
    %91 = arith.maximumf %86, %90 : vector<64x128xf32>
    %92 = vector.shape_cast %91 : vector<64x128xf32> to vector<4x2x8x128xf32>
    %cst_68 = arith.constant dense<0xFF800000> : vector<4x8x128xf32>
    %93 = vector.multi_reduction <maximumf>, %92, %cst_68 [1] : vector<4x2x8x128xf32> to vector<4x8x128xf32>
    %c0_69 = arith.constant 0 : index
    %c0_70 = arith.constant 0 : index
    %c0_71 = arith.constant 0 : index
    %c0_72 = arith.constant 0 : index
    %94 = vector.load %arg6[%c0_69, %c0_70, %c0_71, %c0_72] : memref<1x4x8x128xf32, #tpu.memory_space<vmem>>, vector<1x4x8x128xf32>
    %95 = vector.shape_cast %94 : vector<1x4x8x128xf32> to vector<4x8x128xf32>
    %96 = vector.shape_cast %93 : vector<4x8x128xf32> to vector<1x4x8x128xf32>
    tpu.vector_store %arg6[%c0_69, %c0_70, %c0_71, %c0_72], %96 {strides = array<i32>} : memref<1x4x8x128xf32, #tpu.memory_space<vmem>>, vector<1x4x8x128xf32>,
    return
  }
  func.func @transform_0(%arg0: i32, %arg1: i32) -> (i32, i32, i32, i32) {
    %c0_i32 = arith.constant 0 : i32
    %c0_i32_0 = arith.constant 0 : i32
    %c0_i32_1 = arith.constant 0 : i32
    %c0_i32_2 = arith.constant 0 : i32
    return %arg0, %c0_i32, %c0_i32_0, %c0_i32_1 : i32, i32, i32, i32
  }
  func.func @transform_1(%arg0: i32, %arg1: i32) -> (i32, i32, i32) {
    %c0_i32 = arith.constant 0 : i32
    %c0_i32_0 = arith.constant 0 : i32
    %c0_i32_1 = arith.constant 0 : i32
    %c0_i32_2 = arith.constant 0 : i32
    return %c0_i32, %c0_i32_0, %c0_i32_1 : i32, i32, i32
  }
  func.func @transform_2(%arg0: i32, %arg1: i32) -> (i32, i32, i32) {
    %c0_i32 = arith.constant 0 : i32
    %c0_i32_0 = arith.constant 0 : i32
    %c0_i32_1 = arith.constant 0 : i32
    %c0_i32_2 = arith.constant 0 : i32
    return %c0_i32, %c0_i32_0, %c0_i32_1 : i32, i32, i32
  }
  func.func @transform_3(%arg0: i32, %arg1: i32) -> (i32, i32) {
    %c0_i32 = arith.constant 0 : i32
    %c0_i32_0 = arith.constant 0 : i32
    %c0_i32_1 = arith.constant 0 : i32
    return %c0_i32, %c0_i32_0 : i32, i32
  }
  func.func @transform_4(%arg0: i32, %arg1: i32) -> (i32, i32, i32, i32) {
    %c0_i32 = arith.constant 0 : i32
    %c0_i32_0 = arith.constant 0 : i32
    %c0_i32_1 = arith.constant 0 : i32
    return %arg0, %arg1, %c0_i32, %c0_i32_0 : i32, i32, i32, i32
  }
}

module attributes {stable_mosaic.version = 11 : i64} {
  func.func @_conv_pool_kernel(%arg0: i32, %arg1: i32, %arg2: memref<1x10x9x256xf32, #tpu.memory_space<vmem>>, %arg3: memref<6x256x128xf32, #tpu.memory_space<vmem>>, %arg4: memref<6x256x128xf32, #tpu.memory_space<vmem>>, %arg5: memref<1x128xf32, #tpu.memory_space<vmem>>, %arg6: memref<1x4x8x128xf32, #tpu.memory_space<vmem>>) attributes {dimension_semantics = [#tpu.dimension_semantics<parallel>, #tpu.dimension_semantics<arbitrary>], iteration_bounds = array<i64: 2, 1>, scalar_prefetch = 0 : i64, scratch_operands = 0 : i64, tpu.core_type = #tpu.core_type<tc>, window_params = [{transform_indices = @transform_0, window_bounds = array<i64: 1, 10, 9, 256>}, {pipeline_mode = #tpu.pipeline_mode<synchronous>, transform_indices = @transform_1, window_bounds = array<i64: 6, 256, 128>}, {pipeline_mode = #tpu.pipeline_mode<synchronous>, transform_indices = @transform_2, window_bounds = array<i64: 6, 256, 128>}, {pipeline_mode = #tpu.pipeline_mode<synchronous>, transform_indices = @transform_3, window_bounds = array<i64: 1, 128>}, {transform_indices = @transform_4, window_bounds = array<i64: 1, 4, 8, 128>}]} {
    %c8_i32 = arith.constant 8 : i32
    %0 = arith.muli %arg1, %c8_i32 : i32
    %1 = tpu.assume_multiple %0, 8 : i32
    %cst = arith.constant 0.000000e+00 : f32
    %2 = vector.broadcast %cst : f32 to vector<64x128xf32>
    %cst_0 = arith.constant 0.000000e+00 : f32
    %3 = vector.broadcast %cst_0 : f32 to vector<64x128xf32>
    %c0_i32 = arith.constant 0 : i32
    %4 = arith.addi %1, %c0_i32 : i32
    %c0 = arith.constant 0 : index
    %5 = arith.index_cast %4 : i32 to index
    %c0_1 = arith.constant 0 : index
    %c0_2 = arith.constant 0 : index
    %6 = vector.load %arg2[%c0, %5, %c0_1, %c0_2] : memref<1x10x9x256xf32, #tpu.memory_space<vmem>>, vector<1x8x8x256xf32>
    %7 = vector.shape_cast %6 : vector<1x8x8x256xf32> to vector<8x8x256xf32>
    %8 = vector.shape_cast %7 : vector<8x8x256xf32> to vector<64x256xf32>
    %c0_3 = arith.constant 0 : index
    %c0_4 = arith.constant 0 : index
    %c0_5 = arith.constant 0 : index
    %9 = vector.load %arg3[%c0_3, %c0_4, %c0_5] : memref<6x256x128xf32, #tpu.memory_space<vmem>>, vector<1x256x128xf32>
    %10 = vector.shape_cast %9 : vector<1x256x128xf32> to vector<256x128xf32>
    %cst_6 = arith.constant dense<0.000000e+00> : vector<64x128xf32>
    %11 = tpu.matmul %8, %10, %cst_6 {dimension_numbers = #tpu.dot_dimension_numbers<[1], [0], [0], [1], [0, 0, 1, 1], [], []>} : vector<64x256xf32>, vector<256x128xf32>, vector<64x128xf32> -> vector<64x128xf32>
    %12 = arith.addf %2, %11 : vector<64x128xf32>
    %c0_7 = arith.constant 0 : index
    %c0_8 = arith.constant 0 : index
    %c0_9 = arith.constant 0 : index
    %13 = vector.load %arg4[%c0_7, %c0_8, %c0_9] : memref<6x256x128xf32, #tpu.memory_space<vmem>>, vector<1x256x128xf32>
    %14 = vector.shape_cast %13 : vector<1x256x128xf32> to vector<256x128xf32>
    %cst_10 = arith.constant dense<0.000000e+00> : vector<64x128xf32>
    %15 = tpu.matmul %8, %14, %cst_10 {dimension_numbers = #tpu.dot_dimension_numbers<[1], [0], [0], [1], [0, 0, 1, 1], [], []>} : vector<64x256xf32>, vector<256x128xf32>, vector<64x128xf32> -> vector<64x128xf32>
    %16 = arith.addf %3, %15 : vector<64x128xf32>
    %c0_i32_11 = arith.constant 0 : i32
    %17 = arith.addi %1, %c0_i32_11 : i32
    %c0_12 = arith.constant 0 : index
    %18 = arith.index_cast %17 : i32 to index
    %c1 = arith.constant 1 : index
    %c0_13 = arith.constant 0 : index
    %19 = vector.load %arg2[%c0_12, %18, %c1, %c0_13] : memref<1x10x9x256xf32, #tpu.memory_space<vmem>>, vector<1x8x8x256xf32>
    %20 = vector.shape_cast %19 : vector<1x8x8x256xf32> to vector<8x8x256xf32>
    %21 = vector.shape_cast %20 : vector<8x8x256xf32> to vector<64x256xf32>
    %c1_14 = arith.constant 1 : index
    %c0_15 = arith.constant 0 : index
    %c0_16 = arith.constant 0 : index
    %22 = vector.load %arg3[%c1_14, %c0_15, %c0_16] : memref<6x256x128xf32, #tpu.memory_space<vmem>>, vector<1x256x128xf32>
    %23 = vector.shape_cast %22 : vector<1x256x128xf32> to vector<256x128xf32>
    %cst_17 = arith.constant dense<0.000000e+00> : vector<64x128xf32>
    %24 = tpu.matmul %21, %23, %cst_17 {dimension_numbers = #tpu.dot_dimension_numbers<[1], [0], [0], [1], [0, 0, 1, 1], [], []>} : vector<64x256xf32>, vector<256x128xf32>, vector<64x128xf32> -> vector<64x128xf32>
    %25 = arith.addf %12, %24 : vector<64x128xf32>
    %c1_18 = arith.constant 1 : index
    %c0_19 = arith.constant 0 : index
    %c0_20 = arith.constant 0 : index
    %26 = vector.load %arg4[%c1_18, %c0_19, %c0_20] : memref<6x256x128xf32, #tpu.memory_space<vmem>>, vector<1x256x128xf32>
    %27 = vector.shape_cast %26 : vector<1x256x128xf32> to vector<256x128xf32>
    %cst_21 = arith.constant dense<0.000000e+00> : vector<64x128xf32>
    %28 = tpu.matmul %21, %27, %cst_21 {dimension_numbers = #tpu.dot_dimension_numbers<[1], [0], [0], [1], [0, 0, 1, 1], [], []>} : vector<64x256xf32>, vector<256x128xf32>, vector<64x128xf32> -> vector<64x128xf32>
    %29 = arith.addf %16, %28 : vector<64x128xf32>
    %c1_i32 = arith.constant 1 : i32
    %30 = arith.addi %1, %c1_i32 : i32
    %c0_22 = arith.constant 0 : index
    %31 = arith.index_cast %30 : i32 to index
    %c0_23 = arith.constant 0 : index
    %c0_24 = arith.constant 0 : index
    %32 = vector.load %arg2[%c0_22, %31, %c0_23, %c0_24] : memref<1x10x9x256xf32, #tpu.memory_space<vmem>>, vector<1x8x8x256xf32>
    %33 = vector.shape_cast %32 : vector<1x8x8x256xf32> to vector<8x8x256xf32>
    %34 = vector.shape_cast %33 : vector<8x8x256xf32> to vector<64x256xf32>
    %c2 = arith.constant 2 : index
    %c0_25 = arith.constant 0 : index
    %c0_26 = arith.constant 0 : index
    %35 = vector.load %arg3[%c2, %c0_25, %c0_26] : memref<6x256x128xf32, #tpu.memory_space<vmem>>, vector<1x256x128xf32>
    %36 = vector.shape_cast %35 : vector<1x256x128xf32> to vector<256x128xf32>
    %cst_27 = arith.constant dense<0.000000e+00> : vector<64x128xf32>
    %37 = tpu.matmul %34, %36, %cst_27 {dimension_numbers = #tpu.dot_dimension_numbers<[1], [0], [0], [1], [0, 0, 1, 1], [], []>} : vector<64x256xf32>, vector<256x128xf32>, vector<64x128xf32> -> vector<64x128xf32>
    %38 = arith.addf %25, %37 : vector<64x128xf32>
    %c2_28 = arith.constant 2 : index
    %c0_29 = arith.constant 0 : index
    %c0_30 = arith.constant 0 : index
    %39 = vector.load %arg4[%c2_28, %c0_29, %c0_30] : memref<6x256x128xf32, #tpu.memory_space<vmem>>, vector<1x256x128xf32>
    %40 = vector.shape_cast %39 : vector<1x256x128xf32> to vector<256x128xf32>
    %cst_31 = arith.constant dense<0.000000e+00> : vector<64x128xf32>
    %41 = tpu.matmul %34, %40, %cst_31 {dimension_numbers = #tpu.dot_dimension_numbers<[1], [0], [0], [1], [0, 0, 1, 1], [], []>} : vector<64x256xf32>, vector<256x128xf32>, vector<64x128xf32> -> vector<64x128xf32>
    %42 = arith.addf %29, %41 : vector<64x128xf32>
    %c1_i32_32 = arith.constant 1 : i32
    %43 = arith.addi %1, %c1_i32_32 : i32
    %c0_33 = arith.constant 0 : index
    %44 = arith.index_cast %43 : i32 to index
    %c1_34 = arith.constant 1 : index
    %c0_35 = arith.constant 0 : index
    %45 = vector.load %arg2[%c0_33, %44, %c1_34, %c0_35] : memref<1x10x9x256xf32, #tpu.memory_space<vmem>>, vector<1x8x8x256xf32>
    %46 = vector.shape_cast %45 : vector<1x8x8x256xf32> to vector<8x8x256xf32>
    %47 = vector.shape_cast %46 : vector<8x8x256xf32> to vector<64x256xf32>
    %c3 = arith.constant 3 : index
    %c0_36 = arith.constant 0 : index
    %c0_37 = arith.constant 0 : index
    %48 = vector.load %arg3[%c3, %c0_36, %c0_37] : memref<6x256x128xf32, #tpu.memory_space<vmem>>, vector<1x256x128xf32>
    %49 = vector.shape_cast %48 : vector<1x256x128xf32> to vector<256x128xf32>
    %cst_38 = arith.constant dense<0.000000e+00> : vector<64x128xf32>
    %50 = tpu.matmul %47, %49, %cst_38 {dimension_numbers = #tpu.dot_dimension_numbers<[1], [0], [0], [1], [0, 0, 1, 1], [], []>} : vector<64x256xf32>, vector<256x128xf32>, vector<64x128xf32> -> vector<64x128xf32>
    %51 = arith.addf %38, %50 : vector<64x128xf32>
    %c3_39 = arith.constant 3 : index
    %c0_40 = arith.constant 0 : index
    %c0_41 = arith.constant 0 : index
    %52 = vector.load %arg4[%c3_39, %c0_40, %c0_41] : memref<6x256x128xf32, #tpu.memory_space<vmem>>, vector<1x256x128xf32>
    %53 = vector.shape_cast %52 : vector<1x256x128xf32> to vector<256x128xf32>
    %cst_42 = arith.constant dense<0.000000e+00> : vector<64x128xf32>
    %54 = tpu.matmul %47, %53, %cst_42 {dimension_numbers = #tpu.dot_dimension_numbers<[1], [0], [0], [1], [0, 0, 1, 1], [], []>} : vector<64x256xf32>, vector<256x128xf32>, vector<64x128xf32> -> vector<64x128xf32>
    %55 = arith.addf %42, %54 : vector<64x128xf32>
    %c2_i32 = arith.constant 2 : i32
    %56 = arith.addi %1, %c2_i32 : i32
    %c0_43 = arith.constant 0 : index
    %57 = arith.index_cast %56 : i32 to index
    %c0_44 = arith.constant 0 : index
    %c0_45 = arith.constant 0 : index
    %58 = vector.load %arg2[%c0_43, %57, %c0_44, %c0_45] : memref<1x10x9x256xf32, #tpu.memory_space<vmem>>, vector<1x8x8x256xf32>
    %59 = vector.shape_cast %58 : vector<1x8x8x256xf32> to vector<8x8x256xf32>
    %60 = vector.shape_cast %59 : vector<8x8x256xf32> to vector<64x256xf32>
    %c4 = arith.constant 4 : index
    %c0_46 = arith.constant 0 : index
    %c0_47 = arith.constant 0 : index
    %61 = vector.load %arg3[%c4, %c0_46, %c0_47] : memref<6x256x128xf32, #tpu.memory_space<vmem>>, vector<1x256x128xf32>
    %62 = vector.shape_cast %61 : vector<1x256x128xf32> to vector<256x128xf32>
    %cst_48 = arith.constant dense<0.000000e+00> : vector<64x128xf32>
    %63 = tpu.matmul %60, %62, %cst_48 {dimension_numbers = #tpu.dot_dimension_numbers<[1], [0], [0], [1], [0, 0, 1, 1], [], []>} : vector<64x256xf32>, vector<256x128xf32>, vector<64x128xf32> -> vector<64x128xf32>
    %64 = arith.addf %51, %63 : vector<64x128xf32>
    %c4_49 = arith.constant 4 : index
    %c0_50 = arith.constant 0 : index
    %c0_51 = arith.constant 0 : index
    %65 = vector.load %arg4[%c4_49, %c0_50, %c0_51] : memref<6x256x128xf32, #tpu.memory_space<vmem>>, vector<1x256x128xf32>
    %66 = vector.shape_cast %65 : vector<1x256x128xf32> to vector<256x128xf32>
    %cst_52 = arith.constant dense<0.000000e+00> : vector<64x128xf32>
    %67 = tpu.matmul %60, %66, %cst_52 {dimension_numbers = #tpu.dot_dimension_numbers<[1], [0], [0], [1], [0, 0, 1, 1], [], []>} : vector<64x256xf32>, vector<256x128xf32>, vector<64x128xf32> -> vector<64x128xf32>
    %68 = arith.addf %55, %67 : vector<64x128xf32>
    %c2_i32_53 = arith.constant 2 : i32
    %69 = arith.addi %1, %c2_i32_53 : i32
    %c0_54 = arith.constant 0 : index
    %70 = arith.index_cast %69 : i32 to index
    %c1_55 = arith.constant 1 : index
    %c0_56 = arith.constant 0 : index
    %71 = vector.load %arg2[%c0_54, %70, %c1_55, %c0_56] : memref<1x10x9x256xf32, #tpu.memory_space<vmem>>, vector<1x8x8x256xf32>
    %72 = vector.shape_cast %71 : vector<1x8x8x256xf32> to vector<8x8x256xf32>
    %73 = vector.shape_cast %72 : vector<8x8x256xf32> to vector<64x256xf32>
    %c5 = arith.constant 5 : index
    %c0_57 = arith.constant 0 : index
    %c0_58 = arith.constant 0 : index
    %74 = vector.load %arg3[%c5, %c0_57, %c0_58] : memref<6x256x128xf32, #tpu.memory_space<vmem>>, vector<1x256x128xf32>
    %75 = vector.shape_cast %74 : vector<1x256x128xf32> to vector<256x128xf32>
    %cst_59 = arith.constant dense<0.000000e+00> : vector<64x128xf32>
    %76 = tpu.matmul %73, %75, %cst_59 {dimension_numbers = #tpu.dot_dimension_numbers<[1], [0], [0], [1], [0, 0, 1, 1], [], []>} : vector<64x256xf32>, vector<256x128xf32>, vector<64x128xf32> -> vector<64x128xf32>
    %77 = arith.addf %64, %76 : vector<64x128xf32>
    %c5_60 = arith.constant 5 : index
    %c0_61 = arith.constant 0 : index
    %c0_62 = arith.constant 0 : index
    %78 = vector.load %arg4[%c5_60, %c0_61, %c0_62] : memref<6x256x128xf32, #tpu.memory_space<vmem>>, vector<1x256x128xf32>
    %79 = vector.shape_cast %78 : vector<1x256x128xf32> to vector<256x128xf32>
    %cst_63 = arith.constant dense<0.000000e+00> : vector<64x128xf32>
    %80 = tpu.matmul %73, %79, %cst_63 {dimension_numbers = #tpu.dot_dimension_numbers<[1], [0], [0], [1], [0, 0, 1, 1], [], []>} : vector<64x256xf32>, vector<256x128xf32>, vector<64x128xf32> -> vector<64x128xf32>
    %81 = arith.addf %68, %80 : vector<64x128xf32>
    %c0_64 = arith.constant 0 : index
    %c0_65 = arith.constant 0 : index
    %82 = vector.load %arg5[%c0_64, %c0_65] : memref<1x128xf32, #tpu.memory_space<vmem>>, vector<1x128xf32>
    %83 = vector.broadcast %82 : vector<1x128xf32> to vector<64x128xf32>
    %84 = arith.addf %77, %83 : vector<64x128xf32>
    %cst_66 = arith.constant 0.000000e+00 : f32
    %85 = vector.broadcast %cst_66 : f32 to vector<64x128xf32>
    %86 = arith.maximumf %84, %85 : vector<64x128xf32>
    %87 = vector.broadcast %82 : vector<1x128xf32> to vector<64x128xf32>
    %88 = arith.addf %81, %87 : vector<64x128xf32>
    %cst_67 = arith.constant 0.000000e+00 : f32
    %89 = vector.broadcast %cst_67 : f32 to vector<64x128xf32>
    %90 = arith.maximumf %88, %89 : vector<64x128xf32>
    %91 = arith.maximumf %86, %90 : vector<64x128xf32>
    %92 = vector.shape_cast %91 : vector<64x128xf32> to vector<4x2x8x128xf32>
    %cst_68 = arith.constant dense<0xFF800000> : vector<4x8x128xf32>
    %93 = vector.multi_reduction <maximumf>, %92, %cst_68 [1] : vector<4x2x8x128xf32> to vector<4x8x128xf32>
    %c0_69 = arith.constant 0 : index
    %c0_70 = arith.constant 0 : index
    %c0_71 = arith.constant 0 : index
    %c0_72 = arith.constant 0 : index
    %94 = vector.load %arg6[%c0_69, %c0_70, %c0_71, %c0_72] : memref<1x4x8x128xf32, #tpu.memory_space<vmem>>, vector<1x4x8x128xf32>
    %95 = vector.shape_cast %94 : vector<1x4x8x128xf32> to vector<4x8x128xf32>
    %96 = vector.shape_cast %93 : vector<4x8x128xf32> to vector<1x4x8x128xf32>
    tpu.vector_store %arg6[%c0_69, %c0_70, %c0_71, %c0_72], %96 {strides = array<i32>} : memref<1x4x8x128xf32, #tpu.memory_space<vmem>>, vector<1x4x8x128xf32>,
    return
  }
  func.func @transform_0(%arg0: i32, %arg1: i32) -> (i32, i32, i32, i32) {
    %c0_i32 = arith.constant 0 : i32
    %c0_i32_0 = arith.constant 0 : i32
    %c0_i32_1 = arith.constant 0 : i32
    %c0_i32_2 = arith.constant 0 : i32
    return %arg0, %c0_i32, %c0_i32_0, %c0_i32_1 : i32, i32, i32, i32
  }
  func.func @transform_1(%arg0: i32, %arg1: i32) -> (i32, i32, i32) {
    %c0_i32 = arith.constant 0 : i32
    %c0_i32_0 = arith.constant 0 : i32
    %c0_i32_1 = arith.constant 0 : i32
    %c0_i32_2 = arith.constant 0 : i32
    return %c0_i32, %c0_i32_0, %c0_i32_1 : i32, i32, i32
  }
  func.func @transform_2(%arg0: i32, %arg1: i32) -> (i32, i32, i32) {
    %c0_i32 = arith.constant 0 : i32
    %c0_i32_0 = arith.constant 0 : i32
    %c0_i32_1 = arith.constant 0 : i32
    %c0_i32_2 = arith.constant 0 : i32
    return %c0_i32, %c0_i32_0, %c0_i32_1 : i32, i32, i32
  }
  func.func @transform_3(%arg0: i32, %arg1: i32) -> (i32, i32) {
    %c0_i32 = arith.constant 0 : i32
    %c0_i32_0 = arith.constant 0 : i32
    %c0_i32_1 = arith.constant 0 : i32
    return %c0_i32, %c0_i32_0 : i32, i32
  }
  func.func @transform_4(%arg0: i32, %arg1: i32) -> (i32, i32, i32, i32) {
    %c0_i32 = arith.constant 0 : i32
    %c0_i32_0 = arith.constant 0 : i32
    %c0_i32_1 = arith.constant 0 : i32
    return %arg0, %arg1, %c0_i32, %c0_i32_0 : i32, i32, i32, i32
  }
}

module attributes {stable_mosaic.version = 11 : i64} {
  func.func @_conv_pool_kernel(%arg0: i32, %arg1: i32, %arg2: memref<1x6x9x256xf32, #tpu.memory_space<vmem>>, %arg3: memref<6x256x128xf32, #tpu.memory_space<vmem>>, %arg4: memref<6x256x128xf32, #tpu.memory_space<vmem>>, %arg5: memref<1x128xf32, #tpu.memory_space<vmem>>, %arg6: memref<1x2x8x128xf32, #tpu.memory_space<vmem>>) attributes {dimension_semantics = [#tpu.dimension_semantics<parallel>, #tpu.dimension_semantics<arbitrary>], iteration_bounds = array<i64: 2, 1>, scalar_prefetch = 0 : i64, scratch_operands = 0 : i64, tpu.core_type = #tpu.core_type<tc>, window_params = [{transform_indices = @transform_0, window_bounds = array<i64: 1, 6, 9, 256>}, {pipeline_mode = #tpu.pipeline_mode<synchronous>, transform_indices = @transform_1, window_bounds = array<i64: 6, 256, 128>}, {pipeline_mode = #tpu.pipeline_mode<synchronous>, transform_indices = @transform_2, window_bounds = array<i64: 6, 256, 128>}, {pipeline_mode = #tpu.pipeline_mode<synchronous>, transform_indices = @transform_3, window_bounds = array<i64: 1, 128>}, {transform_indices = @transform_4, window_bounds = array<i64: 1, 2, 8, 128>}]} {
    %c4_i32 = arith.constant 4 : i32
    %0 = arith.muli %arg1, %c4_i32 : i32
    %1 = tpu.assume_multiple %0, 4 : i32
    %cst = arith.constant 0.000000e+00 : f32
    %2 = vector.broadcast %cst : f32 to vector<32x128xf32>
    %cst_0 = arith.constant 0.000000e+00 : f32
    %3 = vector.broadcast %cst_0 : f32 to vector<32x128xf32>
    %c0_i32 = arith.constant 0 : i32
    %4 = arith.addi %1, %c0_i32 : i32
    %c0 = arith.constant 0 : index
    %5 = arith.index_cast %4 : i32 to index
    %c0_1 = arith.constant 0 : index
    %c0_2 = arith.constant 0 : index
    %6 = vector.load %arg2[%c0, %5, %c0_1, %c0_2] : memref<1x6x9x256xf32, #tpu.memory_space<vmem>>, vector<1x4x8x256xf32>
    %7 = vector.shape_cast %6 : vector<1x4x8x256xf32> to vector<4x8x256xf32>
    %8 = vector.shape_cast %7 : vector<4x8x256xf32> to vector<32x256xf32>
    %c0_3 = arith.constant 0 : index
    %c0_4 = arith.constant 0 : index
    %c0_5 = arith.constant 0 : index
    %9 = vector.load %arg3[%c0_3, %c0_4, %c0_5] : memref<6x256x128xf32, #tpu.memory_space<vmem>>, vector<1x256x128xf32>
    %10 = vector.shape_cast %9 : vector<1x256x128xf32> to vector<256x128xf32>
    %cst_6 = arith.constant dense<0.000000e+00> : vector<32x128xf32>
    %11 = tpu.matmul %8, %10, %cst_6 {dimension_numbers = #tpu.dot_dimension_numbers<[1], [0], [0], [1], [0, 0, 1, 1], [], []>} : vector<32x256xf32>, vector<256x128xf32>, vector<32x128xf32> -> vector<32x128xf32>
    %12 = arith.addf %2, %11 : vector<32x128xf32>
    %c0_7 = arith.constant 0 : index
    %c0_8 = arith.constant 0 : index
    %c0_9 = arith.constant 0 : index
    %13 = vector.load %arg4[%c0_7, %c0_8, %c0_9] : memref<6x256x128xf32, #tpu.memory_space<vmem>>, vector<1x256x128xf32>
    %14 = vector.shape_cast %13 : vector<1x256x128xf32> to vector<256x128xf32>
    %cst_10 = arith.constant dense<0.000000e+00> : vector<32x128xf32>
    %15 = tpu.matmul %8, %14, %cst_10 {dimension_numbers = #tpu.dot_dimension_numbers<[1], [0], [0], [1], [0, 0, 1, 1], [], []>} : vector<32x256xf32>, vector<256x128xf32>, vector<32x128xf32> -> vector<32x128xf32>
    %16 = arith.addf %3, %15 : vector<32x128xf32>
    %c0_i32_11 = arith.constant 0 : i32
    %17 = arith.addi %1, %c0_i32_11 : i32
    %c0_12 = arith.constant 0 : index
    %18 = arith.index_cast %17 : i32 to index
    %c1 = arith.constant 1 : index
    %c0_13 = arith.constant 0 : index
    %19 = vector.load %arg2[%c0_12, %18, %c1, %c0_13] : memref<1x6x9x256xf32, #tpu.memory_space<vmem>>, vector<1x4x8x256xf32>
    %20 = vector.shape_cast %19 : vector<1x4x8x256xf32> to vector<4x8x256xf32>
    %21 = vector.shape_cast %20 : vector<4x8x256xf32> to vector<32x256xf32>
    %c1_14 = arith.constant 1 : index
    %c0_15 = arith.constant 0 : index
    %c0_16 = arith.constant 0 : index
    %22 = vector.load %arg3[%c1_14, %c0_15, %c0_16] : memref<6x256x128xf32, #tpu.memory_space<vmem>>, vector<1x256x128xf32>
    %23 = vector.shape_cast %22 : vector<1x256x128xf32> to vector<256x128xf32>
    %cst_17 = arith.constant dense<0.000000e+00> : vector<32x128xf32>
    %24 = tpu.matmul %21, %23, %cst_17 {dimension_numbers = #tpu.dot_dimension_numbers<[1], [0], [0], [1], [0, 0, 1, 1], [], []>} : vector<32x256xf32>, vector<256x128xf32>, vector<32x128xf32> -> vector<32x128xf32>
    %25 = arith.addf %12, %24 : vector<32x128xf32>
    %c1_18 = arith.constant 1 : index
    %c0_19 = arith.constant 0 : index
    %c0_20 = arith.constant 0 : index
    %26 = vector.load %arg4[%c1_18, %c0_19, %c0_20] : memref<6x256x128xf32, #tpu.memory_space<vmem>>, vector<1x256x128xf32>
    %27 = vector.shape_cast %26 : vector<1x256x128xf32> to vector<256x128xf32>
    %cst_21 = arith.constant dense<0.000000e+00> : vector<32x128xf32>
    %28 = tpu.matmul %21, %27, %cst_21 {dimension_numbers = #tpu.dot_dimension_numbers<[1], [0], [0], [1], [0, 0, 1, 1], [], []>} : vector<32x256xf32>, vector<256x128xf32>, vector<32x128xf32> -> vector<32x128xf32>
    %29 = arith.addf %16, %28 : vector<32x128xf32>
    %c1_i32 = arith.constant 1 : i32
    %30 = arith.addi %1, %c1_i32 : i32
    %c0_22 = arith.constant 0 : index
    %31 = arith.index_cast %30 : i32 to index
    %c0_23 = arith.constant 0 : index
    %c0_24 = arith.constant 0 : index
    %32 = vector.load %arg2[%c0_22, %31, %c0_23, %c0_24] : memref<1x6x9x256xf32, #tpu.memory_space<vmem>>, vector<1x4x8x256xf32>
    %33 = vector.shape_cast %32 : vector<1x4x8x256xf32> to vector<4x8x256xf32>
    %34 = vector.shape_cast %33 : vector<4x8x256xf32> to vector<32x256xf32>
    %c2 = arith.constant 2 : index
    %c0_25 = arith.constant 0 : index
    %c0_26 = arith.constant 0 : index
    %35 = vector.load %arg3[%c2, %c0_25, %c0_26] : memref<6x256x128xf32, #tpu.memory_space<vmem>>, vector<1x256x128xf32>
    %36 = vector.shape_cast %35 : vector<1x256x128xf32> to vector<256x128xf32>
    %cst_27 = arith.constant dense<0.000000e+00> : vector<32x128xf32>
    %37 = tpu.matmul %34, %36, %cst_27 {dimension_numbers = #tpu.dot_dimension_numbers<[1], [0], [0], [1], [0, 0, 1, 1], [], []>} : vector<32x256xf32>, vector<256x128xf32>, vector<32x128xf32> -> vector<32x128xf32>
    %38 = arith.addf %25, %37 : vector<32x128xf32>
    %c2_28 = arith.constant 2 : index
    %c0_29 = arith.constant 0 : index
    %c0_30 = arith.constant 0 : index
    %39 = vector.load %arg4[%c2_28, %c0_29, %c0_30] : memref<6x256x128xf32, #tpu.memory_space<vmem>>, vector<1x256x128xf32>
    %40 = vector.shape_cast %39 : vector<1x256x128xf32> to vector<256x128xf32>
    %cst_31 = arith.constant dense<0.000000e+00> : vector<32x128xf32>
    %41 = tpu.matmul %34, %40, %cst_31 {dimension_numbers = #tpu.dot_dimension_numbers<[1], [0], [0], [1], [0, 0, 1, 1], [], []>} : vector<32x256xf32>, vector<256x128xf32>, vector<32x128xf32> -> vector<32x128xf32>
    %42 = arith.addf %29, %41 : vector<32x128xf32>
    %c1_i32_32 = arith.constant 1 : i32
    %43 = arith.addi %1, %c1_i32_32 : i32
    %c0_33 = arith.constant 0 : index
    %44 = arith.index_cast %43 : i32 to index
    %c1_34 = arith.constant 1 : index
    %c0_35 = arith.constant 0 : index
    %45 = vector.load %arg2[%c0_33, %44, %c1_34, %c0_35] : memref<1x6x9x256xf32, #tpu.memory_space<vmem>>, vector<1x4x8x256xf32>
    %46 = vector.shape_cast %45 : vector<1x4x8x256xf32> to vector<4x8x256xf32>
    %47 = vector.shape_cast %46 : vector<4x8x256xf32> to vector<32x256xf32>
    %c3 = arith.constant 3 : index
    %c0_36 = arith.constant 0 : index
    %c0_37 = arith.constant 0 : index
    %48 = vector.load %arg3[%c3, %c0_36, %c0_37] : memref<6x256x128xf32, #tpu.memory_space<vmem>>, vector<1x256x128xf32>
    %49 = vector.shape_cast %48 : vector<1x256x128xf32> to vector<256x128xf32>
    %cst_38 = arith.constant dense<0.000000e+00> : vector<32x128xf32>
    %50 = tpu.matmul %47, %49, %cst_38 {dimension_numbers = #tpu.dot_dimension_numbers<[1], [0], [0], [1], [0, 0, 1, 1], [], []>} : vector<32x256xf32>, vector<256x128xf32>, vector<32x128xf32> -> vector<32x128xf32>
    %51 = arith.addf %38, %50 : vector<32x128xf32>
    %c3_39 = arith.constant 3 : index
    %c0_40 = arith.constant 0 : index
    %c0_41 = arith.constant 0 : index
    %52 = vector.load %arg4[%c3_39, %c0_40, %c0_41] : memref<6x256x128xf32, #tpu.memory_space<vmem>>, vector<1x256x128xf32>
    %53 = vector.shape_cast %52 : vector<1x256x128xf32> to vector<256x128xf32>
    %cst_42 = arith.constant dense<0.000000e+00> : vector<32x128xf32>
    %54 = tpu.matmul %47, %53, %cst_42 {dimension_numbers = #tpu.dot_dimension_numbers<[1], [0], [0], [1], [0, 0, 1, 1], [], []>} : vector<32x256xf32>, vector<256x128xf32>, vector<32x128xf32> -> vector<32x128xf32>
    %55 = arith.addf %42, %54 : vector<32x128xf32>
    %c2_i32 = arith.constant 2 : i32
    %56 = arith.addi %1, %c2_i32 : i32
    %c0_43 = arith.constant 0 : index
    %57 = arith.index_cast %56 : i32 to index
    %c0_44 = arith.constant 0 : index
    %c0_45 = arith.constant 0 : index
    %58 = vector.load %arg2[%c0_43, %57, %c0_44, %c0_45] : memref<1x6x9x256xf32, #tpu.memory_space<vmem>>, vector<1x4x8x256xf32>
    %59 = vector.shape_cast %58 : vector<1x4x8x256xf32> to vector<4x8x256xf32>
    %60 = vector.shape_cast %59 : vector<4x8x256xf32> to vector<32x256xf32>
    %c4 = arith.constant 4 : index
    %c0_46 = arith.constant 0 : index
    %c0_47 = arith.constant 0 : index
    %61 = vector.load %arg3[%c4, %c0_46, %c0_47] : memref<6x256x128xf32, #tpu.memory_space<vmem>>, vector<1x256x128xf32>
    %62 = vector.shape_cast %61 : vector<1x256x128xf32> to vector<256x128xf32>
    %cst_48 = arith.constant dense<0.000000e+00> : vector<32x128xf32>
    %63 = tpu.matmul %60, %62, %cst_48 {dimension_numbers = #tpu.dot_dimension_numbers<[1], [0], [0], [1], [0, 0, 1, 1], [], []>} : vector<32x256xf32>, vector<256x128xf32>, vector<32x128xf32> -> vector<32x128xf32>
    %64 = arith.addf %51, %63 : vector<32x128xf32>
    %c4_49 = arith.constant 4 : index
    %c0_50 = arith.constant 0 : index
    %c0_51 = arith.constant 0 : index
    %65 = vector.load %arg4[%c4_49, %c0_50, %c0_51] : memref<6x256x128xf32, #tpu.memory_space<vmem>>, vector<1x256x128xf32>
    %66 = vector.shape_cast %65 : vector<1x256x128xf32> to vector<256x128xf32>
    %cst_52 = arith.constant dense<0.000000e+00> : vector<32x128xf32>
    %67 = tpu.matmul %60, %66, %cst_52 {dimension_numbers = #tpu.dot_dimension_numbers<[1], [0], [0], [1], [0, 0, 1, 1], [], []>} : vector<32x256xf32>, vector<256x128xf32>, vector<32x128xf32> -> vector<32x128xf32>
    %68 = arith.addf %55, %67 : vector<32x128xf32>
    %c2_i32_53 = arith.constant 2 : i32
    %69 = arith.addi %1, %c2_i32_53 : i32
    %c0_54 = arith.constant 0 : index
    %70 = arith.index_cast %69 : i32 to index
    %c1_55 = arith.constant 1 : index
    %c0_56 = arith.constant 0 : index
    %71 = vector.load %arg2[%c0_54, %70, %c1_55, %c0_56] : memref<1x6x9x256xf32, #tpu.memory_space<vmem>>, vector<1x4x8x256xf32>
    %72 = vector.shape_cast %71 : vector<1x4x8x256xf32> to vector<4x8x256xf32>
    %73 = vector.shape_cast %72 : vector<4x8x256xf32> to vector<32x256xf32>
    %c5 = arith.constant 5 : index
    %c0_57 = arith.constant 0 : index
    %c0_58 = arith.constant 0 : index
    %74 = vector.load %arg3[%c5, %c0_57, %c0_58] : memref<6x256x128xf32, #tpu.memory_space<vmem>>, vector<1x256x128xf32>
    %75 = vector.shape_cast %74 : vector<1x256x128xf32> to vector<256x128xf32>
    %cst_59 = arith.constant dense<0.000000e+00> : vector<32x128xf32>
    %76 = tpu.matmul %73, %75, %cst_59 {dimension_numbers = #tpu.dot_dimension_numbers<[1], [0], [0], [1], [0, 0, 1, 1], [], []>} : vector<32x256xf32>, vector<256x128xf32>, vector<32x128xf32> -> vector<32x128xf32>
    %77 = arith.addf %64, %76 : vector<32x128xf32>
    %c5_60 = arith.constant 5 : index
    %c0_61 = arith.constant 0 : index
    %c0_62 = arith.constant 0 : index
    %78 = vector.load %arg4[%c5_60, %c0_61, %c0_62] : memref<6x256x128xf32, #tpu.memory_space<vmem>>, vector<1x256x128xf32>
    %79 = vector.shape_cast %78 : vector<1x256x128xf32> to vector<256x128xf32>
    %cst_63 = arith.constant dense<0.000000e+00> : vector<32x128xf32>
    %80 = tpu.matmul %73, %79, %cst_63 {dimension_numbers = #tpu.dot_dimension_numbers<[1], [0], [0], [1], [0, 0, 1, 1], [], []>} : vector<32x256xf32>, vector<256x128xf32>, vector<32x128xf32> -> vector<32x128xf32>
    %81 = arith.addf %68, %80 : vector<32x128xf32>
    %c0_64 = arith.constant 0 : index
    %c0_65 = arith.constant 0 : index
    %82 = vector.load %arg5[%c0_64, %c0_65] : memref<1x128xf32, #tpu.memory_space<vmem>>, vector<1x128xf32>
    %83 = vector.broadcast %82 : vector<1x128xf32> to vector<32x128xf32>
    %84 = arith.addf %77, %83 : vector<32x128xf32>
    %cst_66 = arith.constant 0.000000e+00 : f32
    %85 = vector.broadcast %cst_66 : f32 to vector<32x128xf32>
    %86 = arith.maximumf %84, %85 : vector<32x128xf32>
    %87 = vector.broadcast %82 : vector<1x128xf32> to vector<32x128xf32>
    %88 = arith.addf %81, %87 : vector<32x128xf32>
    %cst_67 = arith.constant 0.000000e+00 : f32
    %89 = vector.broadcast %cst_67 : f32 to vector<32x128xf32>
    %90 = arith.maximumf %88, %89 : vector<32x128xf32>
    %91 = arith.maximumf %86, %90 : vector<32x128xf32>
    %92 = vector.shape_cast %91 : vector<32x128xf32> to vector<2x2x8x128xf32>
    %cst_68 = arith.constant dense<0xFF800000> : vector<2x8x128xf32>
    %93 = vector.multi_reduction <maximumf>, %92, %cst_68 [1] : vector<2x2x8x128xf32> to vector<2x8x128xf32>
    %c0_69 = arith.constant 0 : index
    %c0_70 = arith.constant 0 : index
    %c0_71 = arith.constant 0 : index
    %c0_72 = arith.constant 0 : index
    %94 = vector.load %arg6[%c0_69, %c0_70, %c0_71, %c0_72] : memref<1x2x8x128xf32, #tpu.memory_space<vmem>>, vector<1x2x8x128xf32>
    %95 = vector.shape_cast %94 : vector<1x2x8x128xf32> to vector<2x8x128xf32>
    %96 = vector.shape_cast %93 : vector<2x8x128xf32> to vector<1x2x8x128xf32>
    tpu.vector_store %arg6[%c0_69, %c0_70, %c0_71, %c0_72], %96 {strides = array<i32>} : memref<1x2x8x128xf32, #tpu.memory_space<vmem>>, vector<1x2x8x128xf32>,
    return
  }
  func.func @transform_0(%arg0: i32, %arg1: i32) -> (i32, i32, i32, i32) {
    %c0_i32 = arith.constant 0 : i32
    %c0_i32_0 = arith.constant 0 : i32
    %c0_i32_1 = arith.constant 0 : i32
    %c0_i32_2 = arith.constant 0 : i32
    return %arg0, %c0_i32, %c0_i32_0, %c0_i32_1 : i32, i32, i32, i32
  }
  func.func @transform_1(%arg0: i32, %arg1: i32) -> (i32, i32, i32) {
    %c0_i32 = arith.constant 0 : i32
    %c0_i32_0 = arith.constant 0 : i32
    %c0_i32_1 = arith.constant 0 : i32
    %c0_i32_2 = arith.constant 0 : i32
    return %c0_i32, %c0_i32_0, %c0_i32_1 : i32, i32, i32
  }
  func.func @transform_2(%arg0: i32, %arg1: i32) -> (i32, i32, i32) {
    %c0_i32 = arith.constant 0 : i32
    %c0_i32_0 = arith.constant 0 : i32
    %c0_i32_1 = arith.constant 0 : i32
    %c0_i32_2 = arith.constant 0 : i32
    return %c0_i32, %c0_i32_0, %c0_i32_1 : i32, i32, i32
  }
  func.func @transform_3(%arg0: i32, %arg1: i32) -> (i32, i32) {
    %c0_i32 = arith.constant 0 : i32
    %c0_i32_0 = arith.constant 0 : i32
    %c0_i32_1 = arith.constant 0 : i32
    return %c0_i32, %c0_i32_0 : i32, i32
  }
  func.func @transform_4(%arg0: i32, %arg1: i32) -> (i32, i32, i32, i32) {
    %c0_i32 = arith.constant 0 : i32
    %c0_i32_0 = arith.constant 0 : i32
    %c0_i32_1 = arith.constant 0 : i32
    return %arg0, %arg1, %c0_i32, %c0_i32_0 : i32, i32, i32, i32
  }
}

module attributes {stable_mosaic.version = 11 : i64} {
  func.func @_fc_tail_kernel(%arg0: i32, %arg1: memref<2x256xf32, #tpu.memory_space<vmem>>, %arg2: memref<256x256xf32, #tpu.memory_space<vmem>>, %arg3: memref<1x256xf32, #tpu.memory_space<vmem>>, %arg4: memref<256x128xf32, #tpu.memory_space<vmem>>, %arg5: memref<1x128xf32, #tpu.memory_space<vmem>>, %arg6: memref<2x128xf32, #tpu.memory_space<vmem>>, %arg7: memref<2x256xf32, #tpu.memory_space<vmem>>) attributes {dimension_semantics = [#tpu.dimension_semantics<arbitrary>], iteration_bounds = array<i64: 2>, scalar_prefetch = 0 : i64, scratch_operands = 1 : i64, tpu.core_type = #tpu.core_type<tc>, window_params = [{transform_indices = @transform_0, window_bounds = array<i64: 2, 256>}, {transform_indices = @transform_1, window_bounds = array<i64: 256, 256>}, {pipeline_mode = #tpu.pipeline_mode<synchronous>, transform_indices = @transform_2, window_bounds = array<i64: 1, 256>}, {pipeline_mode = #tpu.pipeline_mode<synchronous>, transform_indices = @transform_3, window_bounds = array<i64: 256, 128>}, {pipeline_mode = #tpu.pipeline_mode<synchronous>, transform_indices = @transform_4, window_bounds = array<i64: 1, 128>}, {pipeline_mode = #tpu.pipeline_mode<synchronous>, transform_indices = @transform_5, window_bounds = array<i64: 2, 128>}]} {
    %c0_i32 = arith.constant 0 : i32
    %0 = arith.cmpi eq, %arg0, %c0_i32 : i32
    %1 = arith.extui %0 : i1 to i32
    %c0_i32_0 = arith.constant 0 : i32
    %2 = arith.cmpi ne, %1, %c0_i32_0 : i32
    scf.if %2 {
      %cst_9 = arith.constant 0.000000e+00 : f32
      %12 = vector.broadcast %cst_9 : f32 to vector<2x256xf32>
      %c0_10 = arith.constant 0 : index
      %c0_11 = arith.constant 0 : index
      %13 = vector.load %arg7[%c0_10, %c0_11] : memref<2x256xf32, #tpu.memory_space<vmem>>, vector<2x256xf32>
      tpu.vector_store %arg7[%c0_10, %c0_11], %12 {strides = array<i32>} : memref<2x256xf32, #tpu.memory_space<vmem>>, vector<2x256xf32>,
    } else {
    }
    %c0 = arith.constant 0 : index
    %c0_1 = arith.constant 0 : index
    %3 = vector.load %arg7[%c0, %c0_1] : memref<2x256xf32, #tpu.memory_space<vmem>>, vector<2x256xf32>
    %c0_2 = arith.constant 0 : index
    %c0_3 = arith.constant 0 : index
    %4 = vector.load %arg1[%c0_2, %c0_3] : memref<2x256xf32, #tpu.memory_space<vmem>>, vector<2x256xf32>
    %c0_4 = arith.constant 0 : index
    %c0_5 = arith.constant 0 : index
    %5 = vector.load %arg2[%c0_4, %c0_5] : memref<256x256xf32, #tpu.memory_space<vmem>>, vector<256x256xf32>
    %cst = arith.constant dense<0.000000e+00> : vector<2x256xf32>
    %6 = tpu.matmul %4, %5, %cst {dimension_numbers = #tpu.dot_dimension_numbers<[1], [0], [0], [1], [0, 0, 1, 1], [], []>} : vector<2x256xf32>, vector<256x256xf32>, vector<2x256xf32> -> vector<2x256xf32>
    %7 = arith.addf %3, %6 : vector<2x256xf32>
    %c0_6 = arith.constant 0 : index
    %c0_7 = arith.constant 0 : index
    %8 = vector.load %arg7[%c0_6, %c0_7] : memref<2x256xf32, #tpu.memory_space<vmem>>, vector<2x256xf32>
    tpu.vector_store %arg7[%c0_6, %c0_7], %7 {strides = array<i32>} : memref<2x256xf32, #tpu.memory_space<vmem>>, vector<2x256xf32>,
    %c1_i32 = arith.constant 1 : i32
    %9 = arith.cmpi eq, %arg0, %c1_i32 : i32
    %10 = arith.extui %9 : i1 to i32
    %c0_i32_8 = arith.constant 0 : i32
    %11 = arith.cmpi ne, %10, %c0_i32_8 : i32
    scf.if %11 {
      %c0_9 = arith.constant 0 : index
      %c0_10 = arith.constant 0 : index
      %12 = vector.load %arg7[%c0_9, %c0_10] : memref<2x256xf32, #tpu.memory_space<vmem>>, vector<2x256xf32>
      %c0_11 = arith.constant 0 : index
      %c0_12 = arith.constant 0 : index
      %13 = vector.load %arg3[%c0_11, %c0_12] : memref<1x256xf32, #tpu.memory_space<vmem>>, vector<1x256xf32>
      %14 = vector.broadcast %13 : vector<1x256xf32> to vector<2x256xf32>
      %15 = arith.addf %12, %14 : vector<2x256xf32>
      %cst_13 = arith.constant 0.000000e+00 : f32
      %16 = vector.broadcast %cst_13 : f32 to vector<2x256xf32>
      %17 = arith.maximumf %15, %16 : vector<2x256xf32>
      %c0_14 = arith.constant 0 : index
      %c0_15 = arith.constant 0 : index
      %18 = vector.load %arg4[%c0_14, %c0_15] : memref<256x128xf32, #tpu.memory_space<vmem>>, vector<256x128xf32>
      %cst_16 = arith.constant dense<0.000000e+00> : vector<2x128xf32>
      %19 = tpu.matmul %17, %18, %cst_16 {dimension_numbers = #tpu.dot_dimension_numbers<[1], [0], [0], [1], [0, 0, 1, 1], [], []>} : vector<2x256xf32>, vector<256x128xf32>, vector<2x128xf32> -> vector<2x128xf32>
      %c0_17 = arith.constant 0 : index
      %c0_18 = arith.constant 0 : index
      %20 = vector.load %arg5[%c0_17, %c0_18] : memref<1x128xf32, #tpu.memory_space<vmem>>, vector<1x128xf32>
      %21 = vector.broadcast %20 : vector<1x128xf32> to vector<2x128xf32>
      %22 = arith.addf %19, %21 : vector<2x128xf32>
      %c0_19 = arith.constant 0 : index
      %c0_20 = arith.constant 0 : index
      %23 = vector.load %arg6[%c0_19, %c0_20] : memref<2x128xf32, #tpu.memory_space<vmem>>, vector<2x128xf32>
      tpu.vector_store %arg6[%c0_19, %c0_20], %22 {strides = array<i32>} : memref<2x128xf32, #tpu.memory_space<vmem>>, vector<2x128xf32>,
    } else {
    }
    return
  }
  func.func @transform_0(%arg0: i32) -> (i32, i32) {
    %c0_i32 = arith.constant 0 : i32
    %c0_i32_0 = arith.constant 0 : i32
    return %c0_i32, %arg0 : i32, i32
  }
  func.func @transform_1(%arg0: i32) -> (i32, i32) {
    %c0_i32 = arith.constant 0 : i32
    %c0_i32_0 = arith.constant 0 : i32
    return %arg0, %c0_i32 : i32, i32
  }
  func.func @transform_2(%arg0: i32) -> (i32, i32) {
    %c0_i32 = arith.constant 0 : i32
    %c0_i32_0 = arith.constant 0 : i32
    %c0_i32_1 = arith.constant 0 : i32
    return %c0_i32, %c0_i32_0 : i32, i32
  }
  func.func @transform_3(%arg0: i32) -> (i32, i32) {
    %c0_i32 = arith.constant 0 : i32
    %c0_i32_0 = arith.constant 0 : i32
    %c0_i32_1 = arith.constant 0 : i32
    return %c0_i32, %c0_i32_0 : i32, i32
  }
  func.func @transform_4(%arg0: i32) -> (i32, i32) {
    %c0_i32 = arith.constant 0 : i32
    %c0_i32_0 = arith.constant 0 : i32
    %c0_i32_1 = arith.constant 0 : i32
    return %c0_i32, %c0_i32_0 : i32, i32
  }
  func.func @transform_5(%arg0: i32) -> (i32, i32) {
    %c0_i32 = arith.constant 0 : i32
    %c0_i32_0 = arith.constant 0 : i32
    %c0_i32_1 = arith.constant 0 : i32
    return %c0_i32, %c0_i32_0 : i32, i32
  }
}

</mosaic_0001>

<llo_original>
// kernel: eye_diameter_net.4
$region0: #{eye_diameter_net.4}
  #allocation0 [shape = 'u32[]', space=smem, size = 0x4, offset = 0x4, fixed_abs, tag = 'smem constant byte address 0x4 - core index']
  #allocation1 [shape = 'u32[144,128]{1,0:T(1,128)}', space=vmem, size = 0x12000, scoped, tag = 'internal scratch']
  %s0 = inlined_call_operand.vmem [shape: f32[2,18,9,256], index: 0, kind: input, shape index: {}]
  %s1 = inlined_call_operand.vmem [shape: f32[6,256,128], index: 1, kind: input, shape index: {}]
  %s2 = inlined_call_operand.vmem [shape: f32[6,256,128], index: 2, kind: input, shape index: {}]
  %s3 = inlined_call_operand.vmem [shape: f32[1,128], index: 3, kind: input, shape index: {}]
  %s4 = inlined_call_operand.vmem [shape: f32[2,8,8,128], index: 4, kind: output, shape index: {}]
  %s5 = sld [smem:[#allocation0]]
  $region49: #{eye_diameter_net.4} parent=0
    _
  %s7 = ssub.s32 1, %s5
  %s8 = scalar_select 0, %s7, %s5
  loop: start=0, step=1, limit=6
  $region2: #{eye_diameter_net.4} parent=0 // loop_pre_header
    _
  $region3: #{eye_diameter_net.4} parent=0 // loop_header
    %s10 = sphi 0, %s14
    %p11 = scmp.ge.s32.totalorder %s10, 6
    %s17 = sphi 0, %s29
    %s18 = sphi 0, %s25
    %s19 = sphi 0, %s17
    %s20 = sphi 0, %s18
    %s21 = sphi 0, %s19
    %s22 = sphi 0, %s20
    %s32 = sphi 0, %s34
    %s35 = sphi 0, %s32
    %s36 = sphi 0, %s35
    %s52 = sphi 0, %s36
    %s56 = sphi 0, %s56
    %s58 = sphi 0, %s56
    %s59 = sphi 0, %s58
    %s73 = sphi 0, %s59
    %s77 = sphi 0, %s77
    %s79 = sphi 0, %s77
    %s80 = sphi 0, %s79
    %s94 = sphi 0, %s80
    %s98 = sphi 0, %s98
    %s100 = sphi 0, %s98
    %s101 = sphi 0, %s100
    %s115 = sphi 0, %s101
    %s123 = sphi 0, %s125
    %s126 = sphi 0, %s123
    %s127 = sphi 0, %s126
    %s143 = sphi 0, %s127
  $region4: #{eye_diameter_net.4} parent=0 // loop_header_branch
    %13 = sbr.rel (%p11) target = $region8
  $region5: #{eye_diameter_net.4} parent=0 // loop_body
    %s15 = ssub.s32 %s10, 1
    %s16 = ssub.s32 %s10, 2
    %s23 = sadd.s32 1, %s18
    %p24 = scmp.ge.s32.totalorder %s23, 2
    %s25 = scalar_select %p24, 0, %s23
    %s26 = sadd.s32 1, %s17
    %s27 = scalar_select %p24, %s26, %s17
    %p28 = scmp.ge.s32.totalorder %s27, 2
    %s29 = scalar_select %p28, 0, %s27
    %s30 = ssub.s32 %s17, %s29
    %p31 = scmp.eq.s32.totalorder %s30, 0
    %s33 = sadd.s32 %s32, 1
    %s34 = scalar_select %p31, %s32, %s33
    %p37 = pneg %p31
    %p38 = scmp.eq.s32.totalorder %s10, 3
    %p39 = por %p37, %p38
    %p40 = scmp.ne.s32.totalorder %s32, %s35
    %p41 = scmp.eq.s32.totalorder %s10, 0
    %p42 = por %p40, %p41
    %p43 = scmp.ne.s32.totalorder %s32, %s35
    %p44 = scmp.eq.s32.totalorder %s15, 3
    %p45 = por %p43, %p44
    %p46 = scmp.ne.s32.totalorder %s35, %s36
    %p47 = scmp.eq.s32.totalorder %s15, 0
    %p48 = por %p46, %p47
    %p49 = scmp.ne.s32.totalorder %s35, %s36
    %p50 = scmp.eq.s32.totalorder %s16, 3
    %p51 = por %p49, %p50
    %p53 = scmp.ne.s32.totalorder %s36, %s52
    %p54 = scmp.eq.s32.totalorder %s16, 0
    %p55 = por %p53, %p54
    %s57 = sadd.s32 %s56, 1
    %p60 = scmp.eq.s32.totalorder %s10, 3
    %p61 = scmp.ne.s32.totalorder %s56, %s58
    %p62 = scmp.eq.s32.totalorder %s10, 0
    %p63 = por %p61, %p62
    %p64 = scmp.ne.s32.totalorder %s56, %s58
    %p65 = scmp.eq.s32.totalorder %s15, 3
    %p66 = por %p64, %p65
    %p67 = scmp.ne.s32.totalorder %s58, %s59
    %p68 = scmp.eq.s32.totalorder %s15, 0
    %p69 = por %p67, %p68
    %p70 = scmp.ne.s32.totalorder %s58, %s59
    %p71 = scmp.eq.s32.totalorder %s16, 3
    %p72 = por %p70, %p71
    %p74 = scmp.ne.s32.totalorder %s59, %s73
    %p75 = scmp.eq.s32.totalorder %s16, 0
    %p76 = por %p74, %p75
    %s78 = sadd.s32 %s77, 1
    %p81 = scmp.eq.s32.totalorder %s10, 3
    %p82 = scmp.ne.s32.totalorder %s77, %s79
    %p83 = scmp.eq.s32.totalorder %s10, 0
    %p84 = por %p82, %p83
    %p85 = scmp.ne.s32.totalorder %s77, %s79
    %p86 = scmp.eq.s32.totalorder %s15, 3
    %p87 = por %p85, %p86
    %p88 = scmp.ne.s32.totalorder %s79, %s80
    %p89 = scmp.eq.s32.totalorder %s15, 0
    %p90 = por %p88, %p89
    %p91 = scmp.ne.s32.totalorder %s79, %s80
    %p92 = scmp.eq.s32.totalorder %s16, 3
    %p93 = por %p91, %p92
    %p95 = scmp.ne.s32.totalorder %s80, %s94
    %p96 = scmp.eq.s32.totalorder %s16, 0
    %p97 = por %p95, %p96
    %s99 = sadd.s32 %s98, 1
    %p102 = scmp.eq.s32.totalorder %s10, 3
    %p103 = scmp.ne.s32.totalorder %s98, %s100
    %p104 = scmp.eq.s32.totalorder %s10, 0
    %p105 = por %p103, %p104
    %p106 = scmp.ne.s32.totalorder %s98, %s100
    %p107 = scmp.eq.s32.totalorder %s15, 3
    %p108 = por %p106, %p107
    %p109 = scmp.ne.s32.totalorder %s100, %s101
    %p110 = scmp.eq.s32.totalorder %s15, 0
    %p111 = por %p109, %p110
    %p112 = scmp.ne.s32.totalorder %s100, %s101
    %p113 = scmp.eq.s32.totalorder %s16, 3
    %p114 = por %p112, %p113
    %p116 = scmp.ne.s32.totalorder %s101, %s115
    %p117 = scmp.eq.s32.totalorder %s16, 0
    %p118 = por %p116, %p117
    %s119 = ssub.s32 %s17, %s29
    %s120 = ssub.s32 %s18, %s25
    %s121 = sor.u32 %s119, %s120
    %p122 = scmp.eq.s32.totalorder %s121, 0
    %s124 = sadd.s32 %s123, 1
    %s125 = scalar_select %p122, %s123, %s124
    %p128 = pneg %p122
    %p129 = scmp.eq.s32.totalorder %s10, 3
    %p130 = por %p128, %p129
    %p131 = scmp.ne.s32.totalorder %s123, %s126
    %p132 = scmp.eq.s32.totalorder %s10, 0
    %p133 = por %p131, %p132
    %p134 = scmp.ne.s32.totalorder %s123, %s126
    %p135 = scmp.eq.s32.totalorder %s15, 3
    %p136 = por %p134, %p135
    %p137 = scmp.ne.s32.totalorder %s126, %s127
    %p138 = scmp.eq.s32.totalorder %s15, 0
    %p139 = por %p137, %p138
    %p140 = scmp.ne.s32.totalorder %s126, %s127
    %p141 = scmp.eq.s32.totalorder %s16, 3
    %p142 = por %p140, %p141
    %p144 = scmp.ne.s32.totalorder %s127, %s143
    %p145 = scmp.eq.s32.totalorder %s16, 0
    %p146 = por %p144, %p145
    %p147 = scmp.le.s32.totalorder 1, %s10
    %p148 = scmp.lt.s32.totalorder %s10, 5
    %p149 = pnand %p147, %p148
    %p150 = pneg %p149
    // Predicated region
    $region9: #{eye_diameter_net.4} parent=5 // pred_check
      _
    $region10: #{eye_diameter_net.4} parent=5 // pred_check_branch
      %152 = sbr.rel (%p149) target = $region12
    $region11: #{eye_diameter_net.4} parent=5 // pred_region
      %s153 = ssub.s32 %s10, 1
      // Predicated region
      $region13: #{eye_diameter_net.4} parent=11 // pred_check
        %p154 = pneg %p69
      $region14: #{eye_diameter_net.4} parent=11 // pred_check_branch
        %156 = sbr.rel (%p154) target = $region16
      $region15: #{eye_diameter_net.4} parent=11 // pred_region
        _
      $region16: #{eye_diameter_net.4} parent=11 // pred_fallthru
        _
      // Predicated region
      $region17: #{eye_diameter_net.4} parent=11 // pred_check
        %p157 = pneg %p90
      $region18: #{eye_diameter_net.4} parent=11 // pred_check_branch
        %159 = sbr.rel (%p157) target = $region20
      $region19: #{eye_diameter_net.4} parent=11 // pred_region
        _
      $region20: #{eye_diameter_net.4} parent=11 // pred_fallthru
        _
      // Predicated region
      $region21: #{eye_diameter_net.4} parent=11 // pred_check
        %p160 = pneg %p111
      $region22: #{eye_diameter_net.4} parent=11 // pred_check_branch
        %162 = sbr.rel (%p160) target = $region24
      $region23: #{eye_diameter_net.4} parent=11 // pred_region
        _
      $region24: #{eye_diameter_net.4} parent=11 // pred_fallthru
        _
    $region12: #{eye_diameter_net.4} parent=5 // pred_fallthru
      _
    %p163 = scmp.lt.s32.totalorder %s10, 4
    // Predicated region
    $region25: #{eye_diameter_net.4} parent=5 // pred_check
      %p164 = pneg %p163
    $region26: #{eye_diameter_net.4} parent=5 // pred_check_branch
      %166 = sbr.rel (%p164) target = $region28
    $region27: #{eye_diameter_net.4} parent=5 // pred_region
      // Predicated region
      $region29: #{eye_diameter_net.4} parent=27 // pred_check
        %p167 = pneg %p42
      $region30: #{eye_diameter_net.4} parent=27 // pred_check_branch
        %169 = sbr.rel (%p167) target = $region32
      $region31: #{eye_diameter_net.4} parent=27 // pred_region
        %p170 = scmp.lt.s32.totalorder %s17, 1
        %s171 = scalar_select %p170, %s17, 1
        %s172 = smul.addr %s171, 72
        %s173 = smul.addr %s172, 8
        %s174 = scalar_lea.vmem %s0, %s173
      $region32: #{eye_diameter_net.4} parent=27 // pred_fallthru
        _
    $region28: #{eye_diameter_net.4} parent=5 // pred_fallthru
      _
    %p175 = scmp.le.s32.totalorder 1, %s10
    %p176 = scmp.lt.s32.totalorder %s10, 5
    %p177 = pnand %p175, %p176
    %p178 = pneg %p177
    // Predicated region
    $region33: #{eye_diameter_net.4} parent=5 // pred_check
      _
    $region34: #{eye_diameter_net.4} parent=5 // pred_check_branch
      %180 = sbr.rel (%p177) target = $region36
    $region35: #{eye_diameter_net.4} parent=5 // pred_region
      %s181 = ssub.s32 %s10, 1
      %p182 = scmp.lt.s32.totalorder %s19, 1
      %s183 = scalar_select %p182, %s19, 1
      %s184 = smul.addr %s183, 72
      %s185 = smul.addr %s184, 8
      %s186 = scalar_lea.vmem %s0, %s185
      %p187 = pneg %p48
      %p188 = pneg %p45
      %p189 = pneg %p69
      %p190 = pneg %p66
      %p191 = pneg %p90
      %p192 = pneg %p87
      %p193 = pneg %p111
      %p194 = pneg %p108
      %p195 = pneg %p139
      %p196 = pneg %p136
      %s197 = smul.u32 4, %s20
      %p198 = scmp.lt.s32.totalorder %s19, 1
      %s199 = scalar_select %p198, %s19, 1
      %p200 = scmp.lt.s32.totalorder %s197, 7
      %s201 = scalar_select %p200, %s197, 7
      %s202 = smul.addr %s199, 8
      %s203 = sadd.s32 %s201, %s202
      %s204 = smul.addr %s203, 8
      %s205 = scalar_lea.vmem %s4, %s204
      %p206 = scmp.lt.s32.totalorder %s19, 1
      %s207 = scalar_select %p206, %s19, 1
      %s208 = smul.addr %s207, 72
      %s209 = smul.addr %s208, 8
      %s210 = scalar_lea.vmem %s0, %s209
      %s211 = smul.u32 4, %s20
      %p212 = scmp.lt.s32.totalorder %s19, 1
      %s213 = scalar_select %p212, %s19, 1
      %p214 = scmp.lt.s32.totalorder %s211, 7
      %s215 = scalar_select %p214, %s211, 7
      %s216 = smul.addr %s213, 8
      %s217 = sadd.s32 %s215, %s216
      %s218 = smul.addr %s217, 8
      %s219 = scalar_lea.vmem %s4, %s218
      %s220 = smul.u32 4, %s20
      %s221 = smul.u32 %s20, 8
      %s222 = smul.u32 %s221, 4
      %s223 = smul.addr %s222, 8
      %s224 = scalar_lea.vmem %s210, %s223
      %v225 = vld [vmem:[%s224] sm:$0xff]
      %v226 = vld [vmem:[%s224 + $0x8] sm:$0xff]
      %v227 = vld [vmem:[%s224 + $0x20] sm:$0xff]
      %v228 = vld [vmem:[%s224 + $0x28] sm:$0xff]
      %v229 = vld [vmem:[%s224 + $0x40] sm:$0xff]
      %v230 = vld [vmem:[%s224 + $0x48] sm:$0xff]
      %v231 = vld [vmem:[%s224 + $0x60] sm:$0xff]
      %v232 = vld [vmem:[%s224 + $0x68] sm:$0xff]
      %v233 = vld [vmem:[%s224 + $0x80] sm:$0xff]
      %v234 = vld [vmem:[%s224 + $0x88] sm:$0xff]
      %v235 = vld [vmem:[%s224 + $0xa0] sm:$0xff]
      %v236 = vld [vmem:[%s224 + $0xa8] sm:$0xff]
      %v237 = vld [vmem:[%s224 + $0xc0] sm:$0xff]
      %v238 = vld [vmem:[%s224 + $0xc8] sm:$0xff]
      %v239 = vld [vmem:[%s224 + $0xe0] sm:$0xff]
      %v240 = vld [vmem:[%s224 + $0xe8] sm:$0xff]
      %v241 = vld [vmem:[%s1] sm:$0xff]
      %v242 = vld [vmem:[%s1 + $0x8] sm:$0xff]
      %v243 = vld [vmem:[%s1 + $0x10] sm:$0xff]
      %v244 = vld [vmem:[%s1 + $0x18] sm:$0xff]
      %v245 = vld [vmem:[%s1 + $0x20] sm:$0xff]
      %v246 = vld [vmem:[%s1 + $0x28] sm:$0xff]
      %v247 = vld [vmem:[%s1 + $0x30] sm:$0xff]
      %v248 = vld [vmem:[%s1 + $0x38] sm:$0xff]
      %v249 = vld [vmem:[%s1 + $0x40] sm:$0xff]
      %v250 = vld [vmem:[%s1 + $0x48] sm:$0xff]
      %v251 = vld [vmem:[%s1 + $0x50] sm:$0xff]
      %v252 = vld [vmem:[%s1 + $0x58] sm:$0xff]
      %v253 = vld [vmem:[%s1 + $0x60] sm:$0xff]
      %v254 = vld [vmem:[%s1 + $0x68] sm:$0xff]
      %v255 = vld [vmem:[%s1 + $0x70] sm:$0xff]
      %v256 = vld [vmem:[%s1 + $0x78] sm:$0xff]
      %v257 = vld [vmem:[%s1 + $0x80] sm:$0xff]
      %v258 = vld [vmem:[%s1 + $0x88] sm:$0xff]
      %v259 = vld [vmem:[%s1 + $0x90] sm:$0xff]
      %v260 = vld [vmem:[%s1 + $0x98] sm:$0xff]
      %v261 = vld [vmem:[%s1 + $0xa0] sm:$0xff]
      %v262 = vld [vmem:[%s1 + $0xa8] sm:$0xff]
      %v263 = vld [vmem:[%s1 + $0xb0] sm:$0xff]
      %v264 = vld [vmem:[%s1 + $0xb8] sm:$0xff]
      %v265 = vld [vmem:[%s1 + $0xc0] sm:$0xff]
      %v266 = vld [vmem:[%s1 + $0xc8] sm:$0xff]
      %v267 = vld [vmem:[%s1 + $0xd0] sm:$0xff]
      %v268 = vld [vmem:[%s1 + $0xd8] sm:$0xff]
      %v269 = vld [vmem:[%s1 + $0xe0] sm:$0xff]
      %v270 = vld [vmem:[%s1 + $0xe8] sm:$0xff]
      %v271 = vld [vmem:[%s1 + $0xf0] sm:$0xff]
      %v272 = vld [vmem:[%s1 + $0xf8] sm:$0xff]
      %v273 = vld [vmem:[%s2] sm:$0xff]
      %v274 = vld [vmem:[%s2 + $0x8] sm:$0xff]
      %v275 = vld [vmem:[%s2 + $0x10] sm:$0xff]
      %v276 = vld [vmem:[%s2 + $0x18] sm:$0xff]
      %v277 = vld [vmem:[%s2 + $0x20] sm:$0xff]
      %v278 = vld [vmem:[%s2 + $0x28] sm:$0xff]
      %v279 = vld [vmem:[%s2 + $0x30] sm:$0xff]
      %v280 = vld [vmem:[%s2 + $0x38] sm:$0xff]
      %v281 = vld [vmem:[%s2 + $0x40] sm:$0xff]
      %v282 = vld [vmem:[%s2 + $0x48] sm:$0xff]
      %v283 = vld [vmem:[%s2 + $0x50] sm:$0xff]
      %v284 = vld [vmem:[%s2 + $0x58] sm:$0xff]
      %v285 = vld [vmem:[%s2 + $0x60] sm:$0xff]
      %v286 = vld [vmem:[%s2 + $0x68] sm:$0xff]
      %v287 = vld [vmem:[%s2 + $0x70] sm:$0xff]
      %v288 = vld [vmem:[%s2 + $0x78] sm:$0xff]
      %v289 = vld [vmem:[%s2 + $0x80] sm:$0xff]
      %v290 = vld [vmem:[%s2 + $0x88] sm:$0xff]
      %v291 = vld [vmem:[%s2 + $0x90] sm:$0xff]
      %v292 = vld [vmem:[%s2 + $0x98] sm:$0xff]
      %v293 = vld [vmem:[%s2 + $0xa0] sm:$0xff]
      %v294 = vld [vmem:[%s2 + $0xa8] sm:$0xff]
      %v295 = vld [vmem:[%s2 + $0xb0] sm:$0xff]
      %v296 = vld [vmem:[%s2 + $0xb8] sm:$0xff]
      %v297 = vld [vmem:[%s2 + $0xc0] sm:$0xff]
      %v298 = vld [vmem:[%s2 + $0xc8] sm:$0xff]
      %v299 = vld [vmem:[%s2 + $0xd0] sm:$0xff]
      %v300 = vld [vmem:[%s2 + $0xd8] sm:$0xff]
      %v301 = vld [vmem:[%s2 + $0xe0] sm:$0xff]
      %v302 = vld [vmem:[%s2 + $0xe8] sm:$0xff]
      %v303 = vld [vmem:[%s2 + $0xf0] sm:$0xff]
      %v304 = vld [vmem:[%s2 + $0xf8] sm:$0xff]
      %v305 = vld [vmem:[%s224] sm:$0xfe]
      %v306 = vld [vmem:[%s224 + $0x8] sm:$0xfe]
      %v307 = vld [vmem:[%s224 + $0x10] sm:$0x1]
      %v308 = vld [vmem:[%s224 + $0x18] sm:$0x1]
      %v309 = vld [vmem:[%s224 + $0x20] sm:$0xfe]
      %v310 = vld [vmem:[%s224 + $0x28] sm:$0xfe]
      %v311 = vld [vmem:[%s224 + $0x30] sm:$0x1]
      %v312 = vld [vmem:[%s224 + $0x38] sm:$0x1]
      %v313 = vld [vmem:[%s224 + $0x40] sm:$0xfe]
      %v314 = vld [vmem:[%s224 + $0x48] sm:$0xfe]
      %v315 = vld [vmem:[%s224 + $0x50] sm:$0x1]
      %v316 = vld [vmem:[%s224 + $0x58] sm:$0x1]
      %v317 = vld [vmem:[%s224 + $0x60] sm:$0xfe]
      %v318 = vld [vmem:[%s224 + $0x68] sm:$0xfe]
      %v319 = vld [vmem:[%s224 + $0x70] sm:$0x1]
      %v320 = vld [vmem:[%s224 + $0x78] sm:$0x1]
      %v321 = vld [vmem:[%s224 + $0x80] sm:$0xfe]
      %v322 = vld [vmem:[%s224 + $0x88] sm:$0xfe]
      %v323 = vld [vmem:[%s224 + $0x90] sm:$0x1]
      %v324 = vld [vmem:[%s224 + $0x98] sm:$0x1]
      %v325 = vld [vmem:[%s224 + $0xa0] sm:$0xfe]
      %v326 = vld [vmem:[%s224 + $0xa8] sm:$0xfe]
      %v327 = vld [vmem:[%s224 + $0xb0] sm:$0x1]
      %v328 = vld [vmem:[%s224 + $0xb8] sm:$0x1]
      %v329 = vld [vmem:[%s224 + $0xc0] sm:$0xfe]
      %v330 = vld [vmem:[%s224 + $0xc8] sm:$0xfe]
      %v331 = vld [vmem:[%s224 + $0xd0] sm:$0x1]
      %v332 = vld [vmem:[%s224 + $0xd8] sm:$0x1]
      %v333 = vld [vmem:[%s224 + $0xe0] sm:$0xfe]
      %v334 = vld [vmem:[%s224 + $0xe8] sm:$0xfe]
      %v335 = vld [vmem:[%s224 + $0xf0] sm:$0x1]
      %v336 = vld [vmem:[%s224 + $0xf8] sm:$0x1]
      %vm369 = vcmask 1046528
      %v370 = vrot.slane %v305, 1
      %v371 = vrot.slane %v307, 1
      %v372 = vsel %vm369, %v370, %v371
      %v373 = vrot.slane %v306, 1
      %v374 = vrot.slane %v308, 1
      %v375 = vsel %vm369, %v373, %v374
      %v376 = vrot.slane %v309, 1
      %v377 = vrot.slane %v311, 1
      %v378 = vsel %vm369, %v376, %v377
      %v379 = vrot.slane %v310, 1
      %v380 = vrot.slane %v312, 1
      %v381 = vsel %vm369, %v379, %v380
      %v382 = vrot.slane %v313, 1
      %v383 = vrot.slane %v315, 1
      %v384 = vsel %vm369, %v382, %v383
      %v385 = vrot.slane %v314, 1
      %v386 = vrot.slane %v316, 1
      %v387 = vsel %vm369, %v385, %v386
      %v388 = vrot.slane %v317, 1
      %v389 = vrot.slane %v319, 1
      %v390 = vsel %vm369, %v388, %v389
      %v391 = vrot.slane %v318, 1
      %v392 = vrot.slane %v320, 1
      %v393 = vsel %vm369, %v391, %v392
      %v394 = vrot.slane %v321, 1
      %v395 = vrot.slane %v323, 1
      %v396 = vsel %vm369, %v394, %v395
      %v397 = vrot.slane %v322, 1
      %v398 = vrot.slane %v324, 1
      %v399 = vsel %vm369, %v397, %v398
      %v400 = vrot.slane %v325, 1
      %v401 = vrot.slane %v327, 1
      %v402 = vsel %vm369, %v400, %v401
      %v403 = vrot.slane %v326, 1
      %v404 = vrot.slane %v328, 1
      %v405 = vsel %vm369, %v403, %v404
      %v406 = vrot.slane %v329, 1
      %v407 = vrot.slane %v331, 1
      %v408 = vsel %vm369, %v406, %v407
      %v409 = vrot.slane %v330, 1
      %v410 = vrot.slane %v332, 1
      %v411 = vsel %vm369, %v409, %v410
      %v412 = vrot.slane %v333, 1
      %v413 = vrot.slane %v335, 1
      %v414 = vsel %vm369, %v412, %v413
      %v415 = vrot.slane %v334, 1
      %v416 = vrot.slane %v336, 1
      %v417 = vsel %vm369, %v415, %v416
      %s434 = scalar_lea.vmem %s1, 256
      %v435 = vld [vmem:[%s434] sm:$0xff]
      %v436 = vld [vmem:[%s434 + $0x8] sm:$0xff]
      %v437 = vld [vmem:[%s434 + $0x10] sm:$0xff]
      %v438 = vld [vmem:[%s434 + $0x18] sm:$0xff]
      %v439 = vld [vmem:[%s434 + $0x20] sm:$0xff]
      %v440 = vld [vmem:[%s434 + $0x28] sm:$0xff]
      %v441 = vld [vmem:[%s434 + $0x30] sm:$0xff]
      %v442 = vld [vmem:[%s434 + $0x38] sm:$0xff]
      %v443 = vld [vmem:[%s434 + $0x40] sm:$0xff]
      %v444 = vld [vmem:[%s434 + $0x48] sm:$0xff]
      %v445 = vld [vmem:[%s434 + $0x50] sm:$0xff]
      %v446 = vld [vmem:[%s434 + $0x58] sm:$0xff]
      %v447 = vld [vmem:[%s434 + $0x60] sm:$0xff]
      %v448 = vld [vmem:[%s434 + $0x68] sm:$0xff]
      %v449 = vld [vmem:[%s434 + $0x70] sm:$0xff]
      %v450 = vld [vmem:[%s434 + $0x78] sm:$0xff]
      %v451 = vld [vmem:[%s434 + $0x80] sm:$0xff]
      %v452 = vld [vmem:[%s434 + $0x88] sm:$0xff]
      %v453 = vld [vmem:[%s434 + $0x90] sm:$0xff]
      %v454 = vld [vmem:[%s434 + $0x98] sm:$0xff]
      %v455 = vld [vmem:[%s434 + $0xa0] sm:$0xff]
      %v456 = vld [vmem:[%s434 + $0xa8] sm:$0xff]
      %v457 = vld [vmem:[%s434 + $0xb0] sm:$0xff]
      %v458 = vld [vmem:[%s434 + $0xb8] sm:$0xff]
      %v459 = vld [vmem:[%s434 + $0xc0] sm:$0xff]
      %v460 = vld [vmem:[%s434 + $0xc8] sm:$0xff]
      %v461 = vld [vmem:[%s434 + $0xd0] sm:$0xff]
      %v462 = vld [vmem:[%s434 + $0xd8] sm:$0xff]
      %v463 = vld [vmem:[%s434 + $0xe0] sm:$0xff]
      %v464 = vld [vmem:[%s434 + $0xe8] sm:$0xff]
      %v465 = vld [vmem:[%s434 + $0xf0] sm:$0xff]
      %v466 = vld [vmem:[%s434 + $0xf8] sm:$0xff]
      %467 = vmatprep.subr.mxu0 0.0
      %468 = vmatpush1.msra.mxu0 %v435
      %469 = vmatprep.subr.mxu0 0.0
      %470 = vmatpush1.msra.mxu0 %v436
      %471 = vmatprep.subr.mxu0 0.0
      %472 = vmatpush1.msra.mxu0 %v437
      %473 = vmatprep.subr.mxu0 0.0
      %474 = vmatpush1.msra.mxu0 %v438
      %475 = vmatprep.subr.mxu0 0.0
      %476 = vmatpush1.msra.mxu0 %v439
      %477 = vmatprep.subr.mxu0 0.0
      %478 = vmatpush1.msra.mxu0 %v440
      %479 = vmatprep.subr.mxu0 0.0
      %480 = vmatpush1.msra.mxu0 %v441
      %481 = vmatprep.subr.mxu0 0.0
      %482 = vmatpush1.msra.mxu0 %v442
      %483 = vmatprep.subr.mxu0 0.0
      %484 = vmatpush1.msra.mxu0 %v443
      %485 = vmatprep.subr.mxu0 0.0
      %486 = vmatpush1.msra.mxu0 %v444
      %487 = vmatprep.subr.mxu0 0.0
      %488 = vmatpush1.msra.mxu0 %v445
      %489 = vmatprep.subr.mxu0 0.0
      %490 = vmatpush1.msra.mxu0 %v446
      %491 = vmatprep.subr.mxu0 0.0
      %492 = vmatpush1.msra.mxu0 %v447
      %493 = vmatprep.subr.mxu0 0.0
      %494 = vmatpush1.msra.mxu0 %v448
      %495 = vmatprep.subr.mxu0 0.0
      %496 = vmatpush1.msra.mxu0 %v449
      %497 = vmatprep.subr.mxu0 0.0
      %498 = vmatpush1.msra.mxu0 %v450
      %499 = vmatprep.subr.mxu0 0.0
      %500 = vmatpush1.msra.mxu0 %v451
      %501 = vmatprep.subr.mxu0 0.0
      %502 = vmatpush1.msra.mxu0 %v452
      %503 = vmatprep.subr.mxu0 0.0
      %504 = vmatpush1.msra.mxu0 %v453
      %505 = vmatprep.subr.mxu0 0.0
      %506 = vmatpush1.msra.mxu0 %v454
      %507 = vmatprep.subr.mxu0 0.0
      %508 = vmatpush1.msra.mxu0 %v455
      %509 = vmatprep.subr.mxu0 0.0
      %510 = vmatpush1.msra.mxu0 %v456
      %511 = vmatprep.subr.mxu0 0.0
      %512 = vmatpush1.msra.mxu0 %v457
      %513 = vmatprep.subr.mxu0 0.0
      %514 = vmatpush1.msra.mxu0 %v458
      %515 = vmatprep.subr.mxu0 0.0
      %516 = vmatpush1.msra.mxu0 %v459
      %517 = vmatprep.subr.mxu0 0.0
      %518 = vmatpush1.msra.mxu0 %v460
      %519 = vmatprep.subr.mxu0 0.0
      %520 = vmatpush1.msra.mxu0 %v461
      %521 = vmatprep.subr.mxu0 0.0
      %522 = vmatpush1.msra.mxu0 %v462
      %523 = vmatprep.subr.mxu0 0.0
      %524 = vmatpush1.msra.mxu0 %v463
      %525 = vmatprep.subr.mxu0 0.0
      %526 = vmatpush1.msra.mxu0 %v464
      %527 = vmatprep.subr.mxu0 0.0
      %528 = vmatpush1.msra.mxu0 %v465
      %529 = vmatprep.subr.mxu0 0.0
      %530 = vmatpush1.msra.mxu0 %v466
      %531 = vmatprep.mubr.f32.mxu0 %v375
      %532 = vmatmul.mubr.f32.gmra.mrb[0].mxu0 %v372
      %v533 = vpop.f32.mrb[0].mxu0
      %v534 = vadd.f32 0.0, %v533
      %v535 = vpop.f32.mrb[0].mxu0
      %536 = vmatprep.mubr.f32.mxu0 %v381
      %537 = vmatmul.mubr.f32.gmra.mrb[0].mxu0 %v378
      %v538 = vpop.f32.mrb[0].mxu0
      %v539 = vadd.f32 0.0, %v538
      %v540 = vpop.f32.mrb[0].mxu0
      %541 = vmatprep.mubr.f32.mxu0 %v387
      %542 = vmatmul.mubr.f32.gmra.mrb[0].mxu0 %v384
      %v543 = vpop.f32.mrb[0].mxu0
      %v544 = vadd.f32 0.0, %v543
      %v545 = vpop.f32.mrb[0].mxu0
      %546 = vmatprep.mubr.f32.mxu0 %v393
      %547 = vmatmul.mubr.f32.gmra.mrb[0].mxu0 %v390
      %v548 = vpop.f32.mrb[0].mxu0
      %v549 = vadd.f32 0.0, %v548
      %v550 = vpop.f32.mrb[0].mxu0
      %551 = vmatprep.mubr.f32.mxu0 %v399
      %552 = vmatmul.mubr.f32.gmra.mrb[0].mxu0 %v396
      %v553 = vpop.f32.mrb[0].mxu0
      %v554 = vadd.f32 0.0, %v553
      %v555 = vpop.f32.mrb[0].mxu0
      %556 = vmatprep.mubr.f32.mxu0 %v405
      %557 = vmatmul.mubr.f32.gmra.mrb[0].mxu0 %v402
      %v558 = vpop.f32.mrb[0].mxu0
      %v559 = vadd.f32 0.0, %v558
      %v560 = vpop.f32.mrb[0].mxu0
      %561 = vmatprep.mubr.f32.mxu0 %v411
      %562 = vmatmul.mubr.f32.gmra.mrb[0].mxu0 %v408
      %v563 = vpop.f32.mrb[0].mxu0
      %v564 = vadd.f32 0.0, %v563
      %v565 = vpop.f32.mrb[0].mxu0
      %566 = vmatprep.mubr.f32.mxu0 %v417
      %567 = vmatmul.mubr.f32.gmra.mrb[0].mxu0 %v414
      %v568 = vpop.f32.mrb[0].mxu0
      %v569 = vadd.f32 0.0, %v568
      %v570 = vpop.f32.mrb[0].mxu0
      %571 = vdwg.mxu0
      %572 = vmatprep.subr.mxu0 0.0
      %573 = vmatpush1.msra.mxu0 %v241
      %574 = vmatprep.subr.mxu0 0.0
      %575 = vmatpush1.msra.mxu0 %v242
      %576 = vmatprep.subr.mxu0 0.0
      %577 = vmatpush1.msra.mxu0 %v243
      %578 = vmatprep.subr.mxu0 0.0
      %579 = vmatpush1.msra.mxu0 %v244
      %580 = vmatprep.subr.mxu0 0.0
      %581 = vmatpush1.msra.mxu0 %v245
      %582 = vmatprep.subr.mxu0 0.0
      %583 = vmatpush1.msra.mxu0 %v246
      %584 = vmatprep.subr.mxu0 0.0
      %585 = vmatpush1.msra.mxu0 %v247
      %586 = vmatprep.subr.mxu0 0.0
      %587 = vmatpush1.msra.mxu0 %v248
      %588 = vmatprep.subr.mxu0 0.0
      %589 = vmatpush1.msra.mxu0 %v249
      %590 = vmatprep.subr.mxu0 0.0
      %591 = vmatpush1.msra.mxu0 %v250
      %592 = vmatprep.subr.mxu0 0.0
      %593 = vmatpush1.msra.mxu0 %v251
      %594 = vmatprep.subr.mxu0 0.0
      %595 = vmatpush1.msra.mxu0 %v252
      %596 = vmatprep.subr.mxu0 0.0
      %597 = vmatpush1.msra.mxu0 %v253
      %598 = vmatprep.subr.mxu0 0.0
      %599 = vmatpush1.msra.mxu0 %v254
      %600 = vmatprep.subr.mxu0 0.0
      %601 = vmatpush1.msra.mxu0 %v255
      %602 = vmatprep.subr.mxu0 0.0
      %603 = vmatpush1.msra.mxu0 %v256
      %604 = vmatprep.subr.mxu0 0.0
      %605 = vmatpush1.msra.mxu0 %v257
      %606 = vmatprep.subr.mxu0 0.0
      %607 = vmatpush1.msra.mxu0 %v258
      %608 = vmatprep.subr.mxu0 0.0
      %609 = vmatpush1.msra.mxu0 %v259
      %610 = vmatprep.subr.mxu0 0.0
      %611 = vmatpush1.msra.mxu0 %v260
      %612 = vmatprep.subr.mxu0 0.0
      %613 = vmatpush1.msra.mxu0 %v261
      %614 = vmatprep.subr.mxu0 0.0
      %615 = vmatpush1.msra.mxu0 %v262
      %616 = vmatprep.subr.mxu0 0.0
      %617 = vmatpush1.msra.mxu0 %v263
      %618 = vmatprep.subr.mxu0 0.0
      %619 = vmatpush1.msra.mxu0 %v264
      %620 = vmatprep.subr.mxu0 0.0
      %621 = vmatpush1.msra.mxu0 %v265
      %622 = vmatprep.subr.mxu0 0.0
      %623 = vmatpush1.msra.mxu0 %v266
      %624 = vmatprep.subr.mxu0 0.0
      %625 = vmatpush1.msra.mxu0 %v267
      %626 = vmatprep.subr.mxu0 0.0
      %627 = vmatpush1.msra.mxu0 %v268
      %628 = vmatprep.subr.mxu0 0.0
      %629 = vmatpush1.msra.mxu0 %v269
      %630 = vmatprep.subr.mxu0 0.0
      %631 = vmatpush1.msra.mxu0 %v270
      %632 = vmatprep.subr.mxu0 0.0
      %633 = vmatpush1.msra.mxu0 %v271
      %634 = vmatprep.subr.mxu0 0.0
      %635 = vmatpush1.msra.mxu0 %v272
      %636 = vmatprep.mubr.f32.mxu0 %v226
      %637 = vmatmul.mubr.f32.gmra.mrb[0].mxu0 %v225
      %v638 = vpop.f32.mrb[0].mxu0
      %v639 = vadd.f32 %v534, %v638
      %v640 = vpop.f32.mrb[0].mxu0
      %641 = vmatprep.mubr.f32.mxu0 %v228
      %642 = vmatmul.mubr.f32.gmra.mrb[0].mxu0 %v227
      %v643 = vpop.f32.mrb[0].mxu0
      %v644 = vadd.f32 %v539, %v643
      %v645 = vpop.f32.mrb[0].mxu0
      %646 = vmatprep.mubr.f32.mxu0 %v230
      %647 = vmatmul.mubr.f32.gmra.mrb[0].mxu0 %v229
      %v648 = vpop.f32.mrb[0].mxu0
      %v649 = vadd.f32 %v544, %v648
      %v650 = vpop.f32.mrb[0].mxu0
      %651 = vmatprep.mubr.f32.mxu0 %v232
      %652 = vmatmul.mubr.f32.gmra.mrb[0].mxu0 %v231
      %v653 = vpop.f32.mrb[0].mxu0
      %v654 = vadd.f32 %v549, %v653
      %v655 = vpop.f32.mrb[0].mxu0
      %656 = vmatprep.mubr.f32.mxu0 %v234
      %657 = vmatmul.mubr.f32.gmra.mrb[0].mxu0 %v233
      %v658 = vpop.f32.mrb[0].mxu0
      %v659 = vadd.f32 %v554, %v658
      %v660 = vpop.f32.mrb[0].mxu0
      %661 = vmatprep.mubr.f32.mxu0 %v236
      %662 = vmatmul.mubr.f32.gmra.mrb[0].mxu0 %v235
      %v663 = vpop.f32.mrb[0].mxu0
      %v664 = vadd.f32 %v559, %v663
      %v665 = vpop.f32.mrb[0].mxu0
      %666 = vmatprep.mubr.f32.mxu0 %v238
      %667 = vmatmul.mubr.f32.gmra.mrb[0].mxu0 %v237
      %v668 = vpop.f32.mrb[0].mxu0
      %v669 = vadd.f32 %v564, %v668
      %v670 = vpop.f32.mrb[0].mxu0
      %671 = vmatprep.mubr.f32.mxu0 %v240
      %672 = vmatmul.mubr.f32.gmra.mrb[0].mxu0 %v239
      %v673 = vpop.f32.mrb[0].mxu0
      %v674 = vadd.f32 %v569, %v673
      %v675 = vpop.f32.mrb[0].mxu0
      %676 = vdwg.mxu0
      %s677 = scalar_lea.vmem %s2, 256
      %v678 = vld [vmem:[%s677] sm:$0xff]
      %v679 = vld [vmem:[%s677 + $0x8] sm:$0xff]
      %v680 = vld [vmem:[%s677 + $0x10] sm:$0xff]
      %v681 = vld [vmem:[%s677 + $0x18] sm:$0xff]
      %v682 = vld [vmem:[%s677 + $0x20] sm:$0xff]
      %v683 = vld [vmem:[%s677 + $0x28] sm:$0xff]
      %v684 = vld [vmem:[%s677 + $0x30] sm:$0xff]
      %v685 = vld [vmem:[%s677 + $0x38] sm:$0xff]
      %v686 = vld [vmem:[%s677 + $0x40] sm:$0xff]
      %v687 = vld [vmem:[%s677 + $0x48] sm:$0xff]
      %v688 = vld [vmem:[%s677 + $0x50] sm:$0xff]
      %v689 = vld [vmem:[%s677 + $0x58] sm:$0xff]
      %v690 = vld [vmem:[%s677 + $0x60] sm:$0xff]
      %v691 = vld [vmem:[%s677 + $0x68] sm:$0xff]
      %v692 = vld [vmem:[%s677 + $0x70] sm:$0xff]
      %v693 = vld [vmem:[%s677 + $0x78] sm:$0xff]
      %v694 = vld [vmem:[%s677 + $0x80] sm:$0xff]
      %v695 = vld [vmem:[%s677 + $0x88] sm:$0xff]
      %v696 = vld [vmem:[%s677 + $0x90] sm:$0xff]
      %v697 = vld [vmem:[%s677 + $0x98] sm:$0xff]
      %v698 = vld [vmem:[%s677 + $0xa0] sm:$0xff]
      %v699 = vld [vmem:[%s677 + $0xa8] sm:$0xff]
      %v700 = vld [vmem:[%s677 + $0xb0] sm:$0xff]
      %v701 = vld [vmem:[%s677 + $0xb8] sm:$0xff]
      %v702 = vld [vmem:[%s677 + $0xc0] sm:$0xff]
      %v703 = vld [vmem:[%s677 + $0xc8] sm:$0xff]
      %v704 = vld [vmem:[%s677 + $0xd0] sm:$0xff]
      %v705 = vld [vmem:[%s677 + $0xd8] sm:$0xff]
      %v706 = vld [vmem:[%s677 + $0xe0] sm:$0xff]
      %v707 = vld [vmem:[%s677 + $0xe8] sm:$0xff]
      %v708 = vld [vmem:[%s677 + $0xf0] sm:$0xff]
      %v709 = vld [vmem:[%s677 + $0xf8] sm:$0xff]
      %710 = vmatprep.subr.mxu0 0.0
      %711 = vmatpush1.msra.mxu0 %v678
      %712 = vmatprep.subr.mxu0 0.0
      %713 = vmatpush1.msra.mxu0 %v679
      %714 = vmatprep.subr.mxu0 0.0
      %715 = vmatpush1.msra.mxu0 %v680
      %716 = vmatprep.subr.mxu0 0.0
      %717 = vmatpush1.msra.mxu0 %v681
      %718 = vmatprep.subr.mxu0 0.0
      %719 = vmatpush1.msra.mxu0 %v682
      %720 = vmatprep.subr.mxu0 0.0
      %721 = vmatpush1.msra.mxu0 %v683
      %722 = vmatprep.subr.mxu0 0.0
      %723 = vmatpush1.msra.mxu0 %v684
      %724 = vmatprep.subr.mxu0 0.0
      %725 = vmatpush1.msra.mxu0 %v685
      %726 = vmatprep.subr.mxu0 0.0
      %727 = vmatpush1.msra.mxu0 %v686
      %728 = vmatprep.subr.mxu0 0.0
      %729 = vmatpush1.msra.mxu0 %v687
      %730 = vmatprep.subr.mxu0 0.0
      %731 = vmatpush1.msra.mxu0 %v688
      %732 = vmatprep.subr.mxu0 0.0
      %733 = vmatpush1.msra.mxu0 %v689
      %734 = vmatprep.subr.mxu0 0.0
      %735 = vmatpush1.msra.mxu0 %v690
      %736 = vmatprep.subr.mxu0 0.0
      %737 = vmatpush1.msra.mxu0 %v691
      %738 = vmatprep.subr.mxu0 0.0
      %739 = vmatpush1.msra.mxu0 %v692
      %740 = vmatprep.subr.mxu0 0.0
      %741 = vmatpush1.msra.mxu0 %v693
      %742 = vmatprep.subr.mxu0 0.0
      %743 = vmatpush1.msra.mxu0 %v694
      %744 = vmatprep.subr.mxu0 0.0
      %745 = vmatpush1.msra.mxu0 %v695
      %746 = vmatprep.subr.mxu0 0.0
      %747 = vmatpush1.msra.mxu0 %v696
      %748 = vmatprep.subr.mxu0 0.0
      %749 = vmatpush1.msra.mxu0 %v697
      %750 = vmatprep.subr.mxu0 0.0
      %751 = vmatpush1.msra.mxu0 %v698
      %752 = vmatprep.subr.mxu0 0.0
      %753 = vmatpush1.msra.mxu0 %v699
      %754 = vmatprep.subr.mxu0 0.0
      %755 = vmatpush1.msra.mxu0 %v700
      %756 = vmatprep.subr.mxu0 0.0
      %757 = vmatpush1.msra.mxu0 %v701
      %758 = vmatprep.subr.mxu0 0.0
      %759 = vmatpush1.msra.mxu0 %v702
      %760 = vmatprep.subr.mxu0 0.0
      %761 = vmatpush1.msra.mxu0 %v703
      %762 = vmatprep.subr.mxu0 0.0
      %763 = vmatpush1.msra.mxu0 %v704
      %764 = vmatprep.subr.mxu0 0.0
      %765 = vmatpush1.msra.mxu0 %v705
      %766 = vmatprep.subr.mxu0 0.0
      %767 = vmatpush1.msra.mxu0 %v706
      %768 = vmatprep.subr.mxu0 0.0
      %769 = vmatpush1.msra.mxu0 %v707
      %770 = vmatprep.subr.mxu0 0.0
      %771 = vmatpush1.msra.mxu0 %v708
      %772 = vmatprep.subr.mxu0 0.0
      %773 = vmatpush1.msra.mxu0 %v709
      %774 = vmatprep.mubr.f32.mxu0 %v375
      %775 = vmatmul.mubr.f32.gmra.mrb[0].mxu0 %v372
      %v776 = vpop.f32.mrb[0].mxu0
      %v777 = vadd.f32 0.0, %v776
      %v778 = vpop.f32.mrb[0].mxu0
      %779 = vmatprep.mubr.f32.mxu0 %v381
      %780 = vmatmul.mubr.f32.gmra.mrb[0].mxu0 %v378
      %v781 = vpop.f32.mrb[0].mxu0
      %v782 = vadd.f32 0.0, %v781
      %v783 = vpop.f32.mrb[0].mxu0
      %784 = vmatprep.mubr.f32.mxu0 %v387
      %785 = vmatmul.mubr.f32.gmra.mrb[0].mxu0 %v384
      %v786 = vpop.f32.mrb[0].mxu0
      %v787 = vadd.f32 0.0, %v786
      %v788 = vpop.f32.mrb[0].mxu0
      %789 = vmatprep.mubr.f32.mxu0 %v393
      %790 = vmatmul.mubr.f32.gmra.mrb[0].mxu0 %v390
      %v791 = vpop.f32.mrb[0].mxu0
      %v792 = vadd.f32 0.0, %v791
      %v793 = vpop.f32.mrb[0].mxu0
      %794 = vmatprep.mubr.f32.mxu0 %v399
      %795 = vmatmul.mubr.f32.gmra.mrb[0].mxu0 %v396
      %v796 = vpop.f32.mrb[0].mxu0
      %v797 = vadd.f32 0.0, %v796
      %v798 = vpop.f32.mrb[0].mxu0
      %799 = vmatprep.mubr.f32.mxu0 %v405
      %800 = vmatmul.mubr.f32.gmra.mrb[0].mxu0 %v402
      %v801 = vpop.f32.mrb[0].mxu0
      %v802 = vadd.f32 0.0, %v801
      %v803 = vpop.f32.mrb[0].mxu0
      %804 = vmatprep.mubr.f32.mxu0 %v411
      %805 = vmatmul.mubr.f32.gmra.mrb[0].mxu0 %v408
      %v806 = vpop.f32.mrb[0].mxu0
      %v807 = vadd.f32 0.0, %v806
      %v808 = vpop.f32.mrb[0].mxu0
      %809 = vmatprep.mubr.f32.mxu0 %v417
      %810 = vmatmul.mubr.f32.gmra.mrb[0].mxu0 %v414
      %v811 = vpop.f32.mrb[0].mxu0
      %v812 = vadd.f32 0.0, %v811
      %v813 = vpop.f32.mrb[0].mxu0
      %814 = vdwg.mxu0
      %815 = vmatprep.subr.mxu0 0.0
      %816 = vmatpush1.msra.mxu0 %v273
      %817 = vmatprep.subr.mxu0 0.0
      %818 = vmatpush1.msra.mxu0 %v274
      %819 = vmatprep.subr.mxu0 0.0
      %820 = vmatpush1.msra.mxu0 %v275
      %821 = vmatprep.subr.mxu0 0.0
      %822 = vmatpush1.msra.mxu0 %v276
      %823 = vmatprep.subr.mxu0 0.0
      %824 = vmatpush1.msra.mxu0 %v277
      %825 = vmatprep.subr.mxu0 0.0
      %826 = vmatpush1.msra.mxu0 %v278
      %827 = vmatprep.subr.mxu0 0.0
      %828 = vmatpush1.msra.mxu0 %v279
      %829 = vmatprep.subr.mxu0 0.0
      %830 = vmatpush1.msra.mxu0 %v280
      %831 = vmatprep.subr.mxu0 0.0
      %832 = vmatpush1.msra.mxu0 %v281
      %833 = vmatprep.subr.mxu0 0.0
      %834 = vmatpush1.msra.mxu0 %v282
      %835 = vmatprep.subr.mxu0 0.0
      %836 = vmatpush1.msra.mxu0 %v283
      %837 = vmatprep.subr.mxu0 0.0
      %838 = vmatpush1.msra.mxu0 %v284
      %839 = vmatprep.subr.mxu0 0.0
      %840 = vmatpush1.msra.mxu0 %v285
      %841 = vmatprep.subr.mxu0 0.0
      %842 = vmatpush1.msra.mxu0 %v286
      %843 = vmatprep.subr.mxu0 0.0
      %844 = vmatpush1.msra.mxu0 %v287
      %845 = vmatprep.subr.mxu0 0.0
      %846 = vmatpush1.msra.mxu0 %v288
      %847 = vmatprep.subr.mxu0 0.0
      %848 = vmatpush1.msra.mxu0 %v289
      %849 = vmatprep.subr.mxu0 0.0
      %850 = vmatpush1.msra.mxu0 %v290
      %851 = vmatprep.subr.mxu0 0.0
      %852 = vmatpush1.msra.mxu0 %v291
      %853 = vmatprep.subr.mxu0 0.0
      %854 = vmatpush1.msra.mxu0 %v292
      %855 = vmatprep.subr.mxu0 0.0
      %856 = vmatpush1.msra.mxu0 %v293
      %857 = vmatprep.subr.mxu0 0.0
      %858 = vmatpush1.msra.mxu0 %v294
      %859 = vmatprep.subr.mxu0 0.0
      %860 = vmatpush1.msra.mxu0 %v295
      %861 = vmatprep.subr.mxu0 0.0
      %862 = vmatpush1.msra.mxu0 %v296
      %863 = vmatprep.subr.mxu0 0.0
      %864 = vmatpush1.msra.mxu0 %v297
      %865 = vmatprep.subr.mxu0 0.0
      %866 = vmatpush1.msra.mxu0 %v298
      %867 = vmatprep.subr.mxu0 0.0
      %868 = vmatpush1.msra.mxu0 %v299
      %869 = vmatprep.subr.mxu0 0.0
      %870 = vmatpush1.msra.mxu0 %v300
      %871 = vmatprep.subr.mxu0 0.0
      %872 = vmatpush1.msra.mxu0 %v301
      %873 = vmatprep.subr.mxu0 0.0
      %874 = vmatpush1.msra.mxu0 %v302
      %875 = vmatprep.subr.mxu0 0.0
      %876 = vmatpush1.msra.mxu0 %v303
      %877 = vmatprep.subr.mxu0 0.0
      %878 = vmatpush1.msra.mxu0 %v304
      %879 = vmatprep.mubr.f32.mxu0 %v226
      %880 = vmatmul.mubr.f32.gmra.mrb[0].mxu0 %v225
      %v881 = vpop.f32.mrb[0].mxu0
      %v882 = vadd.f32 %v777, %v881
      %v883 = vpop.f32.mrb[0].mxu0
      %884 = vmatprep.mubr.f32.mxu0 %v228
      %885 = vmatmul.mubr.f32.gmra.mrb[0].mxu0 %v227
      %v886 = vpop.f32.mrb[0].mxu0
      %v887 = vadd.f32 %v782, %v886
      %v888 = vpop.f32.mrb[0].mxu0
      %889 = vmatprep.mubr.f32.mxu0 %v230
      %890 = vmatmul.mubr.f32.gmra.mrb[0].mxu0 %v229
      %v891 = vpop.f32.mrb[0].mxu0
      %v892 = vadd.f32 %v787, %v891
      %v893 = vpop.f32.mrb[0].mxu0
      %894 = vmatprep.mubr.f32.mxu0 %v232
      %895 = vmatmul.mubr.f32.gmra.mrb[0].mxu0 %v231
      %v896 = vpop.f32.mrb[0].mxu0
      %v897 = vadd.f32 %v792, %v896
      %v898 = vpop.f32.mrb[0].mxu0
      %899 = vmatprep.mubr.f32.mxu0 %v234
      %900 = vmatmul.mubr.f32.gmra.mrb[0].mxu0 %v233
      %v901 = vpop.f32.mrb[0].mxu0
      %v902 = vadd.f32 %v797, %v901
      %v903 = vpop.f32.mrb[0].mxu0
      %904 = vmatprep.mubr.f32.mxu0 %v236
      %905 = vmatmul.mubr.f32.gmra.mrb[0].mxu0 %v235
      %v906 = vpop.f32.mrb[0].mxu0
      %v907 = vadd.f32 %v802, %v906
      %v908 = vpop.f32.mrb[0].mxu0
      %909 = vmatprep.mubr.f32.mxu0 %v238
      %910 = vmatmul.mubr.f32.gmra.mrb[0].mxu0 %v237
      %v911 = vpop.f32.mrb[0].mxu0
      %v912 = vadd.f32 %v807, %v911
      %v913 = vpop.f32.mrb[0].mxu0
      %914 = vmatprep.mubr.f32.mxu0 %v240
      %915 = vmatmul.mubr.f32.gmra.mrb[0].mxu0 %v239
      %v916 = vpop.f32.mrb[0].mxu0
      %v917 = vadd.f32 %v812, %v916
      %v918 = vpop.f32.mrb[0].mxu0
      %919 = vdwg.mxu0
      %s920 = sadd.s32 %s221, 1
      %s921 = smul.u32 %s920, 4
      %s922 = smul.addr %s921, 8
      %s923 = scalar_lea.vmem %s210, %s922
      %v924 = vld [vmem:[%s923] sm:$0xff]
      %v925 = vld [vmem:[%s923 + $0x8] sm:$0xff]
      %v926 = vld [vmem:[%s923 + $0x20] sm:$0xff]
      %v927 = vld [vmem:[%s923 + $0x28] sm:$0xff]
      %v928 = vld [vmem:[%s923 + $0x40] sm:$0xff]
      %v929 = vld [vmem:[%s923 + $0x48] sm:$0xff]
      %v930 = vld [vmem:[%s923 + $0x60] sm:$0xff]
      %v931 = vld [vmem:[%s923 + $0x68] sm:$0xff]
      %v932 = vld [vmem:[%s923 + $0x80] sm:$0xff]
      %v933 = vld [vmem:[%s923 + $0x88] sm:$0xff]
      %v934 = vld [vmem:[%s923 + $0xa0] sm:$0xff]
      %v935 = vld [vmem:[%s923 + $0xa8] sm:$0xff]
      %v936 = vld [vmem:[%s923 + $0xc0] sm:$0xff]
      %v937 = vld [vmem:[%s923 + $0xc8] sm:$0xff]
      %v938 = vld [vmem:[%s923 + $0xe0] sm:$0xff]
      %v939 = vld [vmem:[%s923 + $0xe8] sm:$0xff]
      %s940 = scalar_lea.vmem %s1, 512
      %v941 = vld [vmem:[%s940] sm:$0xff]
      %v942 = vld [vmem:[%s940 + $0x8] sm:$0xff]
      %v943 = vld [vmem:[%s940 + $0x10] sm:$0xff]
      %v944 = vld [vmem:[%s940 + $0x18] sm:$0xff]
      %v945 = vld [vmem:[%s940 + $0x20] sm:$0xff]
      %v946 = vld [vmem:[%s940 + $0x28] sm:$0xff]
      %v947 = vld [vmem:[%s940 + $0x30] sm:$0xff]
      %v948 = vld [vmem:[%s940 + $0x38] sm:$0xff]
      %v949 = vld [vmem:[%s940 + $0x40] sm:$0xff]
      %v950 = vld [vmem:[%s940 + $0x48] sm:$0xff]
      %v951 = vld [vmem:[%s940 + $0x50] sm:$0xff]
      %v952 = vld [vmem:[%s940 + $0x58] sm:$0xff]
      %v953 = vld [vmem:[%s940 + $0x60] sm:$0xff]
      %v954 = vld [vmem:[%s940 + $0x68] sm:$0xff]
      %v955 = vld [vmem:[%s940 + $0x70] sm:$0xff]
      %v956 = vld [vmem:[%s940 + $0x78] sm:$0xff]
      %v957 = vld [vmem:[%s940 + $0x80] sm:$0xff]
      %v958 = vld [vmem:[%s940 + $0x88] sm:$0xff]
      %v959 = vld [vmem:[%s940 + $0x90] sm:$0xff]
      %v960 = vld [vmem:[%s940 + $0x98] sm:$0xff]
      %v961 = vld [vmem:[%s940 + $0xa0] sm:$0xff]
      %v962 = vld [vmem:[%s940 + $0xa8] sm:$0xff]
      %v963 = vld [vmem:[%s940 + $0xb0] sm:$0xff]
      %v964 = vld [vmem:[%s940 + $0xb8] sm:$0xff]
      %v965 = vld [vmem:[%s940 + $0xc0] sm:$0xff]
      %v966 = vld [vmem:[%s940 + $0xc8] sm:$0xff]
      %v967 = vld [vmem:[%s940 + $0xd0] sm:$0xff]
      %v968 = vld [vmem:[%s940 + $0xd8] sm:$0xff]
      %v969 = vld [vmem:[%s940 + $0xe0] sm:$0xff]
      %v970 = vld [vmem:[%s940 + $0xe8] sm:$0xff]
      %v971 = vld [vmem:[%s940 + $0xf0] sm:$0xff]
      %v972 = vld [vmem:[%s940 + $0xf8] sm:$0xff]
      %973 = vmatprep.subr.mxu0 0.0
      %974 = vmatpush1.msra.mxu0 %v941
      %975 = vmatprep.subr.mxu0 0.0
      %976 = vmatpush1.msra.mxu0 %v942
      %977 = vmatprep.subr.mxu0 0.0
      %978 = vmatpush1.msra.mxu0 %v943
      %979 = vmatprep.subr.mxu0 0.0
      %980 = vmatpush1.msra.mxu0 %v944
      %981 = vmatprep.subr.mxu0 0.0
      %982 = vmatpush1.msra.mxu0 %v945
      %983 = vmatprep.subr.mxu0 0.0
      %984 = vmatpush1.msra.mxu0 %v946
      %985 = vmatprep.subr.mxu0 0.0
      %986 = vmatpush1.msra.mxu0 %v947
      %987 = vmatprep.subr.mxu0 0.0
      %988 = vmatpush1.msra.mxu0 %v948
      %989 = vmatprep.subr.mxu0 0.0
      %990 = vmatpush1.msra.mxu0 %v949
      %991 = vmatprep.subr.mxu0 0.0
      %992 = vmatpush1.msra.mxu0 %v950
      %993 = vmatprep.subr.mxu0 0.0
      %994 = vmatpush1.msra.mxu0 %v951
      %995 = vmatprep.subr.mxu0 0.0
      %996 = vmatpush1.msra.mxu0 %v952
      %997 = vmatprep.subr.mxu0 0.0
      %998 = vmatpush1.msra.mxu0 %v953
      %999 = vmatprep.subr.mxu0 0.0
      %1000 = vmatpush1.msra.mxu0 %v954
      %1001 = vmatprep.subr.mxu0 0.0
      %1002 = vmatpush1.msra.mxu0 %v955
      %1003 = vmatprep.subr.mxu0 0.0
      %1004 = vmatpush1.msra.mxu0 %v956
      %1005 = vmatprep.subr.mxu0 0.0
      %1006 = vmatpush1.msra.mxu0 %v957
      %1007 = vmatprep.subr.mxu0 0.0
      %1008 = vmatpush1.msra.mxu0 %v958
      %1009 = vmatprep.subr.mxu0 0.0
      %1010 = vmatpush1.msra.mxu0 %v959
      %1011 = vmatprep.subr.mxu0 0.0
      %1012 = vmatpush1.msra.mxu0 %v960
      %1013 = vmatprep.subr.mxu0 0.0
      %1014 = vmatpush1.msra.mxu0 %v961
      %1015 = vmatprep.subr.mxu0 0.0
      %1016 = vmatpush1.msra.mxu0 %v962
      %1017 = vmatprep.subr.mxu0 0.0
      %1018 = vmatpush1.msra.mxu0 %v963
      %1019 = vmatprep.subr.mxu0 0.0
      %1020 = vmatpush1.msra.mxu0 %v964
      %1021 = vmatprep.subr.mxu0 0.0
      %1022 = vmatpush1.msra.mxu0 %v965
      %1023 = vmatprep.subr.mxu0 0.0
      %1024 = vmatpush1.msra.mxu0 %v966
      %1025 = vmatprep.subr.mxu0 0.0
      %1026 = vmatpush1.msra.mxu0 %v967
      %1027 = vmatprep.subr.mxu0 0.0
      %1028 = vmatpush1.msra.mxu0 %v968
      %1029 = vmatprep.subr.mxu0 0.0
      %1030 = vmatpush1.msra.mxu0 %v969
      %1031 = vmatprep.subr.mxu0 0.0
      %1032 = vmatpush1.msra.mxu0 %v970
      %1033 = vmatprep.subr.mxu0 0.0
      %1034 = vmatpush1.msra.mxu0 %v971
      %1035 = vmatprep.subr.mxu0 0.0
      %1036 = vmatpush1.msra.mxu0 %v972
      %1037 = vmatprep.mubr.f32.mxu0 %v925
      %1038 = vmatmul.mubr.f32.gmra.mrb[0].mxu0 %v924
      %v1039 = vpop.f32.mrb[0].mxu0
      %v1040 = vadd.f32 0.0, %v1039
      %v1041 = vpop.f32.mrb[0].mxu0
      %1042 = vmatprep.mubr.f32.mxu0 %v927
      %1043 = vmatmul.mubr.f32.gmra.mrb[0].mxu0 %v926
      %v1044 = vpop.f32.mrb[0].mxu0
      %v1045 = vadd.f32 0.0, %v1044
      %v1046 = vpop.f32.mrb[0].mxu0
      %1047 = vmatprep.mubr.f32.mxu0 %v929
      %1048 = vmatmul.mubr.f32.gmra.mrb[0].mxu0 %v928
      %v1049 = vpop.f32.mrb[0].mxu0
      %v1050 = vadd.f32 0.0, %v1049
      %v1051 = vpop.f32.mrb[0].mxu0
      %1052 = vmatprep.mubr.f32.mxu0 %v931
      %1053 = vmatmul.mubr.f32.gmra.mrb[0].mxu0 %v930
      %v1054 = vpop.f32.mrb[0].mxu0
      %v1055 = vadd.f32 0.0, %v1054
      %v1056 = vpop.f32.mrb[0].mxu0
      %1057 = vmatprep.mubr.f32.mxu0 %v933
      %1058 = vmatmul.mubr.f32.gmra.mrb[0].mxu0 %v932
      %v1059 = vpop.f32.mrb[0].mxu0
      %v1060 = vadd.f32 0.0, %v1059
      %v1061 = vpop.f32.mrb[0].mxu0
      %1062 = vmatprep.mubr.f32.mxu0 %v935
      %1063 = vmatmul.mubr.f32.gmra.mrb[0].mxu0 %v934
      %v1064 = vpop.f32.mrb[0].mxu0
      %v1065 = vadd.f32 0.0, %v1064
      %v1066 = vpop.f32.mrb[0].mxu0
      %1067 = vmatprep.mubr.f32.mxu0 %v937
      %1068 = vmatmul.mubr.f32.gmra.mrb[0].mxu0 %v936
      %v1069 = vpop.f32.mrb[0].mxu0
      %v1070 = vadd.f32 0.0, %v1069
      %v1071 = vpop.f32.mrb[0].mxu0
      %1072 = vmatprep.mubr.f32.mxu0 %v939
      %1073 = vmatmul.mubr.f32.gmra.mrb[0].mxu0 %v938
      %v1074 = vpop.f32.mrb[0].mxu0
      %v1075 = vadd.f32 0.0, %v1074
      %v1076 = vpop.f32.mrb[0].mxu0
      %1077 = vdwg.mxu0
      %v1078 = vadd.f32 %v639, %v1040
      %v1079 = vadd.f32 %v644, %v1045
      %v1080 = vadd.f32 %v649, %v1050
      %v1081 = vadd.f32 %v654, %v1055
      %v1082 = vadd.f32 %v659, %v1060
      %v1083 = vadd.f32 %v664, %v1065
      %v1084 = vadd.f32 %v669, %v1070
      %v1085 = vadd.f32 %v674, %v1075
      %s1086 = scalar_lea.vmem %s2, 512
      %v1087 = vld [vmem:[%s1086] sm:$0xff]
      %v1088 = vld [vmem:[%s1086 + $0x8] sm:$0xff]
      %v1089 = vld [vmem:[%s1086 + $0x10] sm:$0xff]
      %v1090 = vld [vmem:[%s1086 + $0x18] sm:$0xff]
      %v1091 = vld [vmem:[%s1086 + $0x20] sm:$0xff]
      %v1092 = vld [vmem:[%s1086 + $0x28] sm:$0xff]
      %v1093 = vld [vmem:[%s1086 + $0x30] sm:$0xff]
      %v1094 = vld [vmem:[%s1086 + $0x38] sm:$0xff]
      %v1095 = vld [vmem:[%s1086 + $0x40] sm:$0xff]
      %v1096 = vld [vmem:[%s1086 + $0x48] sm:$0xff]
      %v1097 = vld [vmem:[%s1086 + $0x50] sm:$0xff]
      %v1098 = vld [vmem:[%s1086 + $0x58] sm:$0xff]
      %v1099 = vld [vmem:[%s1086 + $0x60] sm:$0xff]
      %v1100 = vld [vmem:[%s1086 + $0x68] sm:$0xff]
      %v1101 = vld [vmem:[%s1086 + $0x70] sm:$0xff]
      %v1102 = vld [vmem:[%s1086 + $0x78] sm:$0xff]
      %v1103 = vld [vmem:[%s1086 + $0x80] sm:$0xff]
      %v1104 = vld [vmem:[%s1086 + $0x88] sm:$0xff]
      %v1105 = vld [vmem:[%s1086 + $0x90] sm:$0xff]
      %v1106 = vld [vmem:[%s1086 + $0x98] sm:$0xff]
      %v1107 = vld [vmem:[%s1086 + $0xa0] sm:$0xff]
      %v1108 = vld [vmem:[%s1086 + $0xa8] sm:$0xff]
      %v1109 = vld [vmem:[%s1086 + $0xb0] sm:$0xff]
      %v1110 = vld [vmem:[%s1086 + $0xb8] sm:$0xff]
      %v1111 = vld [vmem:[%s1086 + $0xc0] sm:$0xff]
      %v1112 = vld [vmem:[%s1086 + $0xc8] sm:$0xff]
      %v1113 = vld [vmem:[%s1086 + $0xd0] sm:$0xff]
      %v1114 = vld [vmem:[%s1086 + $0xd8] sm:$0xff]
      %v1115 = vld [vmem:[%s1086 + $0xe0] sm:$0xff]
      %v1116 = vld [vmem:[%s1086 + $0xe8] sm:$0xff]
      %v1117 = vld [vmem:[%s1086 + $0xf0] sm:$0xff]
      %v1118 = vld [vmem:[%s1086 + $0xf8] sm:$0xff]
      %1119 = vmatprep.subr.mxu0 0.0
      %1120 = vmatpush1.msra.mxu0 %v1087
      %1121 = vmatprep.subr.mxu0 0.0
      %1122 = vmatpush1.msra.mxu0 %v1088
      %1123 = vmatprep.subr.mxu0 0.0
      %1124 = vmatpush1.msra.mxu0 %v1089
      %1125 = vmatprep.subr.mxu0 0.0
      %1126 = vmatpush1.msra.mxu0 %v1090
      %1127 = vmatprep.subr.mxu0 0.0
      %1128 = vmatpush1.msra.mxu0 %v1091
      %1129 = vmatprep.subr.mxu0 0.0
      %1130 = vmatpush1.msra.mxu0 %v1092
      %1131 = vmatprep.subr.mxu0 0.0
      %1132 = vmatpush1.msra.mxu0 %v1093
      %1133 = vmatprep.subr.mxu0 0.0
      %1134 = vmatpush1.msra.mxu0 %v1094
      %1135 = vmatprep.subr.mxu0 0.0
      %1136 = vmatpush1.msra.mxu0 %v1095
      %1137 = vmatprep.subr.mxu0 0.0
      %1138 = vmatpush1.msra.mxu0 %v1096
      %1139 = vmatprep.subr.mxu0 0.0
      %1140 = vmatpush1.msra.mxu0 %v1097
      %1141 = vmatprep.subr.mxu0 0.0
      %1142 = vmatpush1.msra.mxu0 %v1098
      %1143 = vmatprep.subr.mxu0 0.0
      %1144 = vmatpush1.msra.mxu0 %v1099
      %1145 = vmatprep.subr.mxu0 0.0
      %1146 = vmatpush1.msra.mxu0 %v1100
      %1147 = vmatprep.subr.mxu0 0.0
      %1148 = vmatpush1.msra.mxu0 %v1101
      %1149 = vmatprep.subr.mxu0 0.0
      %1150 = vmatpush1.msra.mxu0 %v1102
      %1151 = vmatprep.subr.mxu0 0.0
      %1152 = vmatpush1.msra.mxu0 %v1103
      %1153 = vmatprep.subr.mxu0 0.0
      %1154 = vmatpush1.msra.mxu0 %v1104
      %1155 = vmatprep.subr.mxu0 0.0
      %1156 = vmatpush1.msra.mxu0 %v1105
      %1157 = vmatprep.subr.mxu0 0.0
      %1158 = vmatpush1.msra.mxu0 %v1106
      %1159 = vmatprep.subr.mxu0 0.0
      %1160 = vmatpush1.msra.mxu0 %v1107
      %1161 = vmatprep.subr.mxu0 0.0
      %1162 = vmatpush1.msra.mxu0 %v1108
      %1163 = vmatprep.subr.mxu0 0.0
      %1164 = vmatpush1.msra.mxu0 %v1109
      %1165 = vmatprep.subr.mxu0 0.0
      %1166 = vmatpush1.msra.mxu0 %v1110
      %1167 = vmatprep.subr.mxu0 0.0
      %1168 = vmatpush1.msra.mxu0 %v1111
      %1169 = vmatprep.subr.mxu0 0.0
      %1170 = vmatpush1.msra.mxu0 %v1112
      %1171 = vmatprep.subr.mxu0 0.0
      %1172 = vmatpush1.msra.mxu0 %v1113
      %1173 = vmatprep.subr.mxu0 0.0
      %1174 = vmatpush1.msra.mxu0 %v1114
      %1175 = vmatprep.subr.mxu0 0.0
      %1176 = vmatpush1.msra.mxu0 %v1115
      %1177 = vmatprep.subr.mxu0 0.0
      %1178 = vmatpush1.msra.mxu0 %v1116
      %1179 = vmatprep.subr.mxu0 0.0
      %1180 = vmatpush1.msra.mxu0 %v1117
      %1181 = vmatprep.subr.mxu0 0.0
      %1182 = vmatpush1.msra.mxu0 %v1118
      %1183 = vmatprep.mubr.f32.mxu0 %v925
      %1184 = vmatmul.mubr.f32.gmra.mrb[0].mxu0 %v924
      %v1185 = vpop.f32.mrb[0].mxu0
      %v1186 = vadd.f32 0.0, %v1185
      %v1187 = vpop.f32.mrb[0].mxu0
      %1188 = vmatprep.mubr.f32.mxu0 %v927
      %1189 = vmatmul.mubr.f32.gmra.mrb[0].mxu0 %v926
      %v1190 = vpop.f32.mrb[0].mxu0
      %v1191 = vadd.f32 0.0, %v1190
      %v1192 = vpop.f32.mrb[0].mxu0
      %1193 = vmatprep.mubr.f32.mxu0 %v929
      %1194 = vmatmul.mubr.f32.gmra.mrb[0].mxu0 %v928
      %v1195 = vpop.f32.mrb[0].mxu0
      %v1196 = vadd.f32 0.0, %v1195
      %v1197 = vpop.f32.mrb[0].mxu0
      %1198 = vmatprep.mubr.f32.mxu0 %v931
      %1199 = vmatmul.mubr.f32.gmra.mrb[0].mxu0 %v930
      %v1200 = vpop.f32.mrb[0].mxu0
      %v1201 = vadd.f32 0.0, %v1200
      %v1202 = vpop.f32.mrb[0].mxu0
      %1203 = vmatprep.mubr.f32.mxu0 %v933
      %1204 = vmatmul.mubr.f32.gmra.mrb[0].mxu0 %v932
      %v1205 = vpop.f32.mrb[0].mxu0
      %v1206 = vadd.f32 0.0, %v1205
      %v1207 = vpop.f32.mrb[0].mxu0
      %1208 = vmatprep.mubr.f32.mxu0 %v935
      %1209 = vmatmul.mubr.f32.gmra.mrb[0].mxu0 %v934
      %v1210 = vpop.f32.mrb[0].mxu0
      %v1211 = vadd.f32 0.0, %v1210
      %v1212 = vpop.f32.mrb[0].mxu0
      %1213 = vmatprep.mubr.f32.mxu0 %v937
      %1214 = vmatmul.mubr.f32.gmra.mrb[0].mxu0 %v936
      %v1215 = vpop.f32.mrb[0].mxu0
      %v1216 = vadd.f32 0.0, %v1215
      %v1217 = vpop.f32.mrb[0].mxu0
      %1218 = vmatprep.mubr.f32.mxu0 %v939
      %1219 = vmatmul.mubr.f32.gmra.mrb[0].mxu0 %v938
      %v1220 = vpop.f32.mrb[0].mxu0
      %v1221 = vadd.f32 0.0, %v1220
      %v1222 = vpop.f32.mrb[0].mxu0
      %1223 = vdwg.mxu0
      %v1224 = vadd.f32 %v882, %v1186
      %v1225 = vadd.f32 %v887, %v1191
      %v1226 = vadd.f32 %v892, %v1196
      %v1227 = vadd.f32 %v897, %v1201
      %v1228 = vadd.f32 %v902, %v1206
      %v1229 = vadd.f32 %v907, %v1211
      %v1230 = vadd.f32 %v912, %v1216
      %v1231 = vadd.f32 %v917, %v1221
      %v1232 = vld [vmem:[%s923] sm:$0xfe]
      %v1233 = vld [vmem:[%s923 + $0x8] sm:$0xfe]
      %v1234 = vld [vmem:[%s923 + $0x10] sm:$0x1]
      %v1235 = vld [vmem:[%s923 + $0x18] sm:$0x1]
      %v1236 = vld [vmem:[%s923 + $0x20] sm:$0xfe]
      %v1237 = vld [vmem:[%s923 + $0x28] sm:$0xfe]
      %v1238 = vld [vmem:[%s923 + $0x30] sm:$0x1]
      %v1239 = vld [vmem:[%s923 + $0x38] sm:$0x1]
      %v1240 = vld [vmem:[%s923 + $0x40] sm:$0xfe]
      %v1241 = vld [vmem:[%s923 + $0x48] sm:$0xfe]
      %v1242 = vld [vmem:[%s923 + $0x50] sm:$0x1]
      %v1243 = vld [vmem:[%s923 + $0x58] sm:$0x1]
      %v1244 = vld [vmem:[%s923 + $0x60] sm:$0xfe]
      %v1245 = vld [vmem:[%s923 + $0x68] sm:$0xfe]
      %v1246 = vld [vmem:[%s923 + $0x70] sm:$0x1]
      %v1247 = vld [vmem:[%s923 + $0x78] sm:$0x1]
      %v1248 = vld [vmem:[%s923 + $0x80] sm:$0xfe]
      %v1249 = vld [vmem:[%s923 + $0x88] sm:$0xfe]
      %v1250 = vld [vmem:[%s923 + $0x90] sm:$0x1]
      %v1251 = vld [vmem:[%s923 + $0x98] sm:$0x1]
      %v1252 = vld [vmem:[%s923 + $0xa0] sm:$0xfe]
      %v1253 = vld [vmem:[%s923 + $0xa8] sm:$0xfe]
      %v1254 = vld [vmem:[%s923 + $0xb0] sm:$0x1]
      %v1255 = vld [vmem:[%s923 + $0xb8] sm:$0x1]
      %v1256 = vld [vmem:[%s923 + $0xc0] sm:$0xfe]
      %v1257 = vld [vmem:[%s923 + $0xc8] sm:$0xfe]
      %v1258 = vld [vmem:[%s923 + $0xd0] sm:$0x1]
      %v1259 = vld [vmem:[%s923 + $0xd8] sm:$0x1]
      %v1260 = vld [vmem:[%s923 + $0xe0] sm:$0xfe]
      %v1261 = vld [vmem:[%s923 + $0xe8] sm:$0xfe]
      %v1262 = vld [vmem:[%s923 + $0xf0] sm:$0x1]
      %v1263 = vld [vmem:[%s923 + $0xf8] sm:$0x1]
      %v1296 = vrot.slane %v1232, 1
      %v1297 = vrot.slane %v1234, 1
      %v1298 = vsel %vm369, %v1296, %v1297
      %v1299 = vrot.slane %v1233, 1
      %v1300 = vrot.slane %v1235, 1
      %v1301 = vsel %vm369, %v1299, %v1300
      %v1302 = vrot.slane %v1236, 1
      %v1303 = vrot.slane %v1238, 1
      %v1304 = vsel %vm369, %v1302, %v1303
      %v1305 = vrot.slane %v1237, 1
      %v1306 = vrot.slane %v1239, 1
      %v1307 = vsel %vm369, %v1305, %v1306
      %v1308 = vrot.slane %v1240, 1
      %v1309 = vrot.slane %v1242, 1
      %v1310 = vsel %vm369, %v1308, %v1309
      %v1311 = vrot.slane %v1241, 1
      %v1312 = vrot.slane %v1243, 1
      %v1313 = vsel %vm369, %v1311, %v1312
      %v1314 = vrot.slane %v1244, 1
      %v1315 = vrot.slane %v1246, 1
      %v1316 = vsel %vm369, %v1314, %v1315
      %v1317 = vrot.slane %v1245, 1
      %v1318 = vrot.slane %v1247, 1
      %v1319 = vsel %vm369, %v1317, %v1318
      %v1320 = vrot.slane %v1248, 1
      %v1321 = vrot.slane %v1250, 1
      %v1322 = vsel %vm369, %v1320, %v1321
      %v1323 = vrot.slane %v1249, 1
      %v1324 = vrot.slane %v1251, 1
      %v1325 = vsel %vm369, %v1323, %v1324
      %v1326 = vrot.slane %v1252, 1
      %v1327 = vrot.slane %v1254, 1
      %v1328 = vsel %vm369, %v1326, %v1327
      %v1329 = vrot.slane %v1253, 1
      %v1330 = vrot.slane %v1255, 1
      %v1331 = vsel %vm369, %v1329, %v1330
      %v1332 = vrot.slane %v1256, 1
      %v1333 = vrot.slane %v1258, 1
      %v1334 = vsel %vm369, %v1332, %v1333
      %v1335 = vrot.slane %v1257, 1
      %v1336 = vrot.slane %v1259, 1
      %v1337 = vsel %vm369, %v1335, %v1336
      %v1338 = vrot.slane %v1260, 1
      %v1339 = vrot.slane %v1262, 1
      %v1340 = vsel %vm369, %v1338, %v1339
      %v1341 = vrot.slane %v1261, 1
      %v1342 = vrot.slane %v1263, 1
      %v1343 = vsel %vm369, %v1341, %v1342
      %s1360 = scalar_lea.vmem %s1, 768
      %v1361 = vld [vmem:[%s1360] sm:$0xff]
      %v1362 = vld [vmem:[%s1360 + $0x8] sm:$0xff]
      %v1363 = vld [vmem:[%s1360 + $0x10] sm:$0xff]
      %v1364 = vld [vmem:[%s1360 + $0x18] sm:$0xff]
      %v1365 = vld [vmem:[%s1360 + $0x20] sm:$0xff]
      %v1366 = vld [vmem:[%s1360 + $0x28] sm:$0xff]
      %v1367 = vld [vmem:[%s1360 + $0x30] sm:$0xff]
      %v1368 = vld [vmem:[%s1360 + $0x38] sm:$0xff]
      %v1369 = vld [vmem:[%s1360 + $0x40] sm:$0xff]
      %v1370 = vld [vmem:[%s1360 + $0x48] sm:$0xff]
      %v1371 = vld [vmem:[%s1360 + $0x50] sm:$0xff]
      %v1372 = vld [vmem:[%s1360 + $0x58] sm:$0xff]
      %v1373 = vld [vmem:[%s1360 + $0x60] sm:$0xff]
      %v1374 = vld [vmem:[%s1360 + $0x68] sm:$0xff]
      %v1375 = vld [vmem:[%s1360 + $0x70] sm:$0xff]
      %v1376 = vld [vmem:[%s1360 + $0x78] sm:$0xff]
      %v1377 = vld [vmem:[%s1360 + $0x80] sm:$0xff]
      %v1378 = vld [vmem:[%s1360 + $0x88] sm:$0xff]
      %v1379 = vld [vmem:[%s1360 + $0x90] sm:$0xff]
      %v1380 = vld [vmem:[%s1360 + $0x98] sm:$0xff]
      %v1381 = vld [vmem:[%s1360 + $0xa0] sm:$0xff]
      %v1382 = vld [vmem:[%s1360 + $0xa8] sm:$0xff]
      %v1383 = vld [vmem:[%s1360 + $0xb0] sm:$0xff]
      %v1384 = vld [vmem:[%s1360 + $0xb8] sm:$0xff]
      %v1385 = vld [vmem:[%s1360 + $0xc0] sm:$0xff]
      %v1386 = vld [vmem:[%s1360 + $0xc8] sm:$0xff]
      %v1387 = vld [vmem:[%s1360 + $0xd0] sm:$0xff]
      %v1388 = vld [vmem:[%s1360 + $0xd8] sm:$0xff]
      %v1389 = vld [vmem:[%s1360 + $0xe0] sm:$0xff]
      %v1390 = vld [vmem:[%s1360 + $0xe8] sm:$0xff]
      %v1391 = vld [vmem:[%s1360 + $0xf0] sm:$0xff]
      %v1392 = vld [vmem:[%s1360 + $0xf8] sm:$0xff]
      %1393 = vmatprep.subr.mxu0 0.0
      %1394 = vmatpush1.msra.mxu0 %v1361
      %1395 = vmatprep.subr.mxu0 0.0
      %1396 = vmatpush1.msra.mxu0 %v1362
      %1397 = vmatprep.subr.mxu0 0.0
      %1398 = vmatpush1.msra.mxu0 %v1363
      %1399 = vmatprep.subr.mxu0 0.0
      %1400 = vmatpush1.msra.mxu0 %v1364
      %1401 = vmatprep.subr.mxu0 0.0
      %1402 = vmatpush1.msra.mxu0 %v1365
      %1403 = vmatprep.subr.mxu0 0.0
      %1404 = vmatpush1.msra.mxu0 %v1366
      %1405 = vmatprep.subr.mxu0 0.0
      %1406 = vmatpush1.msra.mxu0 %v1367
      %1407 = vmatprep.subr.mxu0 0.0
      %1408 = vmatpush1.msra.mxu0 %v1368
      %1409 = vmatprep.subr.mxu0 0.0
      %1410 = vmatpush1.msra.mxu0 %v1369
      %1411 = vmatprep.subr.mxu0 0.0
      %1412 = vmatpush1.msra.mxu0 %v1370
      %1413 = vmatprep.subr.mxu0 0.0
      %1414 = vmatpush1.msra.mxu0 %v1371
      %1415 = vmatprep.subr.mxu0 0.0
      %1416 = vmatpush1.msra.mxu0 %v1372
      %1417 = vmatprep.subr.mxu0 0.0
      %1418 = vmatpush1.msra.mxu0 %v1373
      %1419 = vmatprep.subr.mxu0 0.0
      %1420 = vmatpush1.msra.mxu0 %v1374
      %1421 = vmatprep.subr.mxu0 0.0
      %1422 = vmatpush1.msra.mxu0 %v1375
      %1423 = vmatprep.subr.mxu0 0.0
      %1424 = vmatpush1.msra.mxu0 %v1376
      %1425 = vmatprep.subr.mxu0 0.0
      %1426 = vmatpush1.msra.mxu0 %v1377
      %1427 = vmatprep.subr.mxu0 0.0
      %1428 = vmatpush1.msra.mxu0 %v1378
      %1429 = vmatprep.subr.mxu0 0.0
      %1430 = vmatpush1.msra.mxu0 %v1379
      %1431 = vmatprep.subr.mxu0 0.0
      %1432 = vmatpush1.msra.mxu0 %v1380
      %1433 = vmatprep.subr.mxu0 0.0
      %1434 = vmatpush1.msra.mxu0 %v1381
      %1435 = vmatprep.subr.mxu0 0.0
      %1436 = vmatpush1.msra.mxu0 %v1382
      %1437 = vmatprep.subr.mxu0 0.0
      %1438 = vmatpush1.msra.mxu0 %v1383
      %1439 = vmatprep.subr.mxu0 0.0
      %1440 = vmatpush1.msra.mxu0 %v1384
      %1441 = vmatprep.subr.mxu0 0.0
      %1442 = vmatpush1.msra.mxu0 %v1385
      %1443 = vmatprep.subr.mxu0 0.0
      %1444 = vmatpush1.msra.mxu0 %v1386
      %1445 = vmatprep.subr.mxu0 0.0
      %1446 = vmatpush1.msra.mxu0 %v1387
      %1447 = vmatprep.subr.mxu0 0.0
      %1448 = vmatpush1.msra.mxu0 %v1388
      %1449 = vmatprep.subr.mxu0 0.0
      %1450 = vmatpush1.msra.mxu0 %v1389
      %1451 = vmatprep.subr.mxu0 0.0
      %1452 = vmatpush1.msra.mxu0 %v1390
      %1453 = vmatprep.subr.mxu0 0.0
      %1454 = vmatpush1.msra.mxu0 %v1391
      %1455 = vmatprep.subr.mxu0 0.0
      %1456 = vmatpush1.msra.mxu0 %v1392
      %1457 = vmatprep.mubr.f32.mxu0 %v1301
      %1458 = vmatmul.mubr.f32.gmra.mrb[0].mxu0 %v1298
      %v1459 = vpop.f32.mrb[0].mxu0
      %v1460 = vadd.f32 0.0, %v1459
      %v1461 = vpop.f32.mrb[0].mxu0
      %1462 = vmatprep.mubr.f32.mxu0 %v1307
      %1463 = vmatmul.mubr.f32.gmra.mrb[0].mxu0 %v1304
      %v1464 = vpop.f32.mrb[0].mxu0
      %v1465 = vadd.f32 0.0, %v1464
      %v1466 = vpop.f32.mrb[0].mxu0
      %1467 = vmatprep.mubr.f32.mxu0 %v1313
      %1468 = vmatmul.mubr.f32.gmra.mrb[0].mxu0 %v1310
      %v1469 = vpop.f32.mrb[0].mxu0
      %v1470 = vadd.f32 0.0, %v1469
      %v1471 = vpop.f32.mrb[0].mxu0
      %1472 = vmatprep.mubr.f32.mxu0 %v1319
      %1473 = vmatmul.mubr.f32.gmra.mrb[0].mxu0 %v1316
      %v1474 = vpop.f32.mrb[0].mxu0
      %v1475 = vadd.f32 0.0, %v1474
      %v1476 = vpop.f32.mrb[0].mxu0
      %1477 = vmatprep.mubr.f32.mxu0 %v1325
      %1478 = vmatmul.mubr.f32.gmra.mrb[0].mxu0 %v1322
      %v1479 = vpop.f32.mrb[0].mxu0
      %v1480 = vadd.f32 0.0, %v1479
      %v1481 = vpop.f32.mrb[0].mxu0
      %1482 = vmatprep.mubr.f32.mxu0 %v1331
      %1483 = vmatmul.mubr.f32.gmra.mrb[0].mxu0 %v1328
      %v1484 = vpop.f32.mrb[0].mxu0
      %v1485 = vadd.f32 0.0, %v1484
      %v1486 = vpop.f32.mrb[0].mxu0
      %1487 = vmatprep.mubr.f32.mxu0 %v1337
      %1488 = vmatmul.mubr.f32.gmra.mrb[0].mxu0 %v1334
      %v1489 = vpop.f32.mrb[0].mxu0
      %v1490 = vadd.f32 0.0, %v1489
      %v1491 = vpop.f32.mrb[0].mxu0
      %1492 = vmatprep.mubr.f32.mxu0 %v1343
      %1493 = vmatmul.mubr.f32.gmra.mrb[0].mxu0 %v1340
      %v1494 = vpop.f32.mrb[0].mxu0
      %v1495 = vadd.f32 0.0, %v1494
      %v1496 = vpop.f32.mrb[0].mxu0
      %1497 = vdwg.mxu0
      %v1498 = vadd.f32 %v1078, %v1460
      %v1499 = vadd.f32 %v1079, %v1465
      %v1500 = vadd.f32 %v1080, %v1470
      %v1501 = vadd.f32 %v1081, %v1475
      %v1502 = vadd.f32 %v1082, %v1480
      %v1503 = vadd.f32 %v1083, %v1485
      %v1504 = vadd.f32 %v1084, %v1490
      %v1505 = vadd.f32 %v1085, %v1495
      %s1506 = scalar_lea.vmem %s2, 768
      %v1507 = vld [vmem:[%s1506] sm:$0xff]
      %v1508 = vld [vmem:[%s1506 + $0x8] sm:$0xff]
      %v1509 = vld [vmem:[%s1506 + $0x10] sm:$0xff]
      %v1510 = vld [vmem:[%s1506 + $0x18] sm:$0xff]
      %v1511 = vld [vmem:[%s1506 + $0x20] sm:$0xff]
      %v1512 = vld [vmem:[%s1506 + $0x28] sm:$0xff]
      %v1513 = vld [vmem:[%s1506 + $0x30] sm:$0xff]
      %v1514 = vld [vmem:[%s1506 + $0x38] sm:$0xff]
      %v1515 = vld [vmem:[%s1506 + $0x40] sm:$0xff]
      %v1516 = vld [vmem:[%s1506 + $0x48] sm:$0xff]
      %v1517 = vld [vmem:[%s1506 + $0x50] sm:$0xff]
      %v1518 = vld [vmem:[%s1506 + $0x58] sm:$0xff]
      %v1519 = vld [vmem:[%s1506 + $0x60] sm:$0xff]
      %v1520 = vld [vmem:[%s1506 + $0x68] sm:$0xff]
      %v1521 = vld [vmem:[%s1506 + $0x70] sm:$0xff]
      %v1522 = vld [vmem:[%s1506 + $0x78] sm:$0xff]
      %v1523 = vld [vmem:[%s1506 + $0x80] sm:$0xff]
      %v1524 = vld [vmem:[%s1506 + $0x88] sm:$0xff]
      %v1525 = vld [vmem:[%s1506 + $0x90] sm:$0xff]
      %v1526 = vld [vmem:[%s1506 + $0x98] sm:$0xff]
      %v1527 = vld [vmem:[%s1506 + $0xa0] sm:$0xff]
      %v1528 = vld [vmem:[%s1506 + $0xa8] sm:$0xff]
      %v1529 = vld [vmem:[%s1506 + $0xb0] sm:$0xff]
      %v1530 = vld [vmem:[%s1506 + $0xb8] sm:$0xff]
      %v1531 = vld [vmem:[%s1506 + $0xc0] sm:$0xff]
      %v1532 = vld [vmem:[%s1506 + $0xc8] sm:$0xff]
      %v1533 = vld [vmem:[%s1506 + $0xd0] sm:$0xff]
      %v1534 = vld [vmem:[%s1506 + $0xd8] sm:$0xff]
      %v1535 = vld [vmem:[%s1506 + $0xe0] sm:$0xff]
      %v1536 = vld [vmem:[%s1506 + $0xe8] sm:$0xff]
      %v1537 = vld [vmem:[%s1506 + $0xf0] sm:$0xff]
      %v1538 = vld [vmem:[%s1506 + $0xf8] sm:$0xff]
      %1539 = vmatprep.subr.mxu0 0.0
      %1540 = vmatpush1.msra.mxu0 %v1507
      %1541 = vmatprep.subr.mxu0 0.0
      %1542 = vmatpush1.msra.mxu0 %v1508
      %1543 = vmatprep.subr.mxu0 0.0
      %1544 = vmatpush1.msra.mxu0 %v1509
      %1545 = vmatprep.subr.mxu0 0.0
      %1546 = vmatpush1.msra.mxu0 %v1510
      %1547 = vmatprep.subr.mxu0 0.0
      %1548 = vmatpush1.msra.mxu0 %v1511
      %1549 = vmatprep.subr.mxu0 0.0
      %1550 = vmatpush1.msra.mxu0 %v1512
      %1551 = vmatprep.subr.mxu0 0.0
      %1552 = vmatpush1.msra.mxu0 %v1513
      %1553 = vmatprep.subr.mxu0 0.0
      %1554 = vmatpush1.msra.mxu0 %v1514
      %1555 = vmatprep.subr.mxu0 0.0
      %1556 = vmatpush1.msra.mxu0 %v1515
      %1557 = vmatprep.subr.mxu0 0.0
      %1558 = vmatpush1.msra.mxu0 %v1516
      %1559 = vmatprep.subr.mxu0 0.0
      %1560 = vmatpush1.msra.mxu0 %v1517
      %1561 = vmatprep.subr.mxu0 0.0
      %1562 = vmatpush1.msra.mxu0 %v1518
      %1563 = vmatprep.subr.mxu0 0.0
      %1564 = vmatpush1.msra.mxu0 %v1519
      %1565 = vmatprep.subr.mxu0 0.0
      %1566 = vmatpush1.msra.mxu0 %v1520
      %1567 = vmatprep.subr.mxu0 0.0
      %1568 = vmatpush1.msra.mxu0 %v1521
      %1569 = vmatprep.subr.mxu0 0.0
      %1570 = vmatpush1.msra.mxu0 %v1522
      %1571 = vmatprep.subr.mxu0 0.0
      %1572 = vmatpush1.msra.mxu0 %v1523
      %1573 = vmatprep.subr.mxu0 0.0
      %1574 = vmatpush1.msra.mxu0 %v1524
      %1575 = vmatprep.subr.mxu0 0.0
      %1576 = vmatpush1.msra.mxu0 %v1525
      %1577 = vmatprep.subr.mxu0 0.0
      %1578 = vmatpush1.msra.mxu0 %v1526
      %1579 = vmatprep.subr.mxu0 0.0
      %1580 = vmatpush1.msra.mxu0 %v1527
      %1581 = vmatprep.subr.mxu0 0.0
      %1582 = vmatpush1.msra.mxu0 %v1528
      %1583 = vmatprep.subr.mxu0 0.0
      %1584 = vmatpush1.msra.mxu0 %v1529
      %1585 = vmatprep.subr.mxu0 0.0
      %1586 = vmatpush1.msra.mxu0 %v1530
      %1587 = vmatprep.subr.mxu0 0.0
      %1588 = vmatpush1.msra.mxu0 %v1531
      %1589 = vmatprep.subr.mxu0 0.0
      %1590 = vmatpush1.msra.mxu0 %v1532
      %1591 = vmatprep.subr.mxu0 0.0
      %1592 = vmatpush1.msra.mxu0 %v1533
      %1593 = vmatprep.subr.mxu0 0.0
      %1594 = vmatpush1.msra.mxu0 %v1534
      %1595 = vmatprep.subr.mxu0 0.0
      %1596 = vmatpush1.msra.mxu0 %v1535
      %1597 = vmatprep.subr.mxu0 0.0
      %1598 = vmatpush1.msra.mxu0 %v1536
      %1599 = vmatprep.subr.mxu0 0.0
      %1600 = vmatpush1.msra.mxu0 %v1537
      %1601 = vmatprep.subr.mxu0 0.0
      %1602 = vmatpush1.msra.mxu0 %v1538
      %1603 = vmatprep.mubr.f32.mxu0 %v1301
      %1604 = vmatmul.mubr.f32.gmra.mrb[0].mxu0 %v1298
      %v1605 = vpop.f32.mrb[0].mxu0
      %v1606 = vadd.f32 0.0, %v1605
      %v1607 = vpop.f32.mrb[0].mxu0
      %1608 = vmatprep.mubr.f32.mxu0 %v1307
      %1609 = vmatmul.mubr.f32.gmra.mrb[0].mxu0 %v1304
      %v1610 = vpop.f32.mrb[0].mxu0
      %v1611 = vadd.f32 0.0, %v1610
      %v1612 = vpop.f32.mrb[0].mxu0
      %1613 = vmatprep.mubr.f32.mxu0 %v1313
      %1614 = vmatmul.mubr.f32.gmra.mrb[0].mxu0 %v1310
      %v1615 = vpop.f32.mrb[0].mxu0
      %v1616 = vadd.f32 0.0, %v1615
      %v1617 = vpop.f32.mrb[0].mxu0
      %1618 = vmatprep.mubr.f32.mxu0 %v1319
      %1619 = vmatmul.mubr.f32.gmra.mrb[0].mxu0 %v1316
      %v1620 = vpop.f32.mrb[0].mxu0
      %v1621 = vadd.f32 0.0, %v1620
      %v1622 = vpop.f32.mrb[0].mxu0
      %1623 = vmatprep.mubr.f32.mxu0 %v1325
      %1624 = vmatmul.mubr.f32.gmra.mrb[0].mxu0 %v1322
      %v1625 = vpop.f32.mrb[0].mxu0
      %v1626 = vadd.f32 0.0, %v1625
      %v1627 = vpop.f32.mrb[0].mxu0
      %1628 = vmatprep.mubr.f32.mxu0 %v1331
      %1629 = vmatmul.mubr.f32.gmra.mrb[0].mxu0 %v1328
      %v1630 = vpop.f32.mrb[0].mxu0
      %v1631 = vadd.f32 0.0, %v1630
      %v1632 = vpop.f32.mrb[0].mxu0
      %1633 = vmatprep.mubr.f32.mxu0 %v1337
      %1634 = vmatmul.mubr.f32.gmra.mrb[0].mxu0 %v1334
      %v1635 = vpop.f32.mrb[0].mxu0
      %v1636 = vadd.f32 0.0, %v1635
      %v1637 = vpop.f32.mrb[0].mxu0
      %1638 = vmatprep.mubr.f32.mxu0 %v1343
      %1639 = vmatmul.mubr.f32.gmra.mrb[0].mxu0 %v1340
      %v1640 = vpop.f32.mrb[0].mxu0
      %v1641 = vadd.f32 0.0, %v1640
      %v1642 = vpop.f32.mrb[0].mxu0
      %1643 = vdwg.mxu0
      %v1644 = vadd.f32 %v1224, %v1606
      %v1645 = vadd.f32 %v1225, %v1611
      %v1646 = vadd.f32 %v1226, %v1616
      %v1647 = vadd.f32 %v1227, %v1621
      %v1648 = vadd.f32 %v1228, %v1626
      %v1649 = vadd.f32 %v1229, %v1631
      %v1650 = vadd.f32 %v1230, %v1636
      %v1651 = vadd.f32 %v1231, %v1641
      %s1652 = sadd.s32 %s221, 2
      %s1653 = smul.u32 %s1652, 4
      %s1654 = smul.addr %s1653, 8
      %s1655 = scalar_lea.vmem %s210, %s1654
      %v1656 = vld [vmem:[%s1655] sm:$0xff]
      %v1657 = vld [vmem:[%s1655 + $0x8] sm:$0xff]
      %v1658 = vld [vmem:[%s1655 + $0x20] sm:$0xff]
      %v1659 = vld [vmem:[%s1655 + $0x28] sm:$0xff]
      %v1660 = vld [vmem:[%s1655 + $0x40] sm:$0xff]
      %v1661 = vld [vmem:[%s1655 + $0x48] sm:$0xff]
      %v1662 = vld [vmem:[%s1655 + $0x60] sm:$0xff]
      %v1663 = vld [vmem:[%s1655 + $0x68] sm:$0xff]
      %v1664 = vld [vmem:[%s1655 + $0x80] sm:$0xff]
      %v1665 = vld [vmem:[%s1655 + $0x88] sm:$0xff]
      %v1666 = vld [vmem:[%s1655 + $0xa0] sm:$0xff]
      %v1667 = vld [vmem:[%s1655 + $0xa8] sm:$0xff]
      %v1668 = vld [vmem:[%s1655 + $0xc0] sm:$0xff]
      %v1669 = vld [vmem:[%s1655 + $0xc8] sm:$0xff]
      %v1670 = vld [vmem:[%s1655 + $0xe0] sm:$0xff]
      %v1671 = vld [vmem:[%s1655 + $0xe8] sm:$0xff]
      %s1672 = scalar_lea.vmem %s1, 1024
      %v1673 = vld [vmem:[%s1672] sm:$0xff]
      %v1674 = vld [vmem:[%s1672 + $0x8] sm:$0xff]
      %v1675 = vld [vmem:[%s1672 + $0x10] sm:$0xff]
      %v1676 = vld [vmem:[%s1672 + $0x18] sm:$0xff]
      %v1677 = vld [vmem:[%s1672 + $0x20] sm:$0xff]
      %v1678 = vld [vmem:[%s1672 + $0x28] sm:$0xff]
      %v1679 = vld [vmem:[%s1672 + $0x30] sm:$0xff]
      %v1680 = vld [vmem:[%s1672 + $0x38] sm:$0xff]
      %v1681 = vld [vmem:[%s1672 + $0x40] sm:$0xff]
      %v1682 = vld [vmem:[%s1672 + $0x48] sm:$0xff]
      %v1683 = vld [vmem:[%s1672 + $0x50] sm:$0xff]
      %v1684 = vld [vmem:[%s1672 + $0x58] sm:$0xff]
      %v1685 = vld [vmem:[%s1672 + $0x60] sm:$0xff]
      %v1686 = vld [vmem:[%s1672 + $0x68] sm:$0xff]
      %v1687 = vld [vmem:[%s1672 + $0x70] sm:$0xff]
      %v1688 = vld [vmem:[%s1672 + $0x78] sm:$0xff]
      %v1689 = vld [vmem:[%s1672 + $0x80] sm:$0xff]
      %v1690 = vld [vmem:[%s1672 + $0x88] sm:$0xff]
      %v1691 = vld [vmem:[%s1672 + $0x90] sm:$0xff]
      %v1692 = vld [vmem:[%s1672 + $0x98] sm:$0xff]
      %v1693 = vld [vmem:[%s1672 + $0xa0] sm:$0xff]
      %v1694 = vld [vmem:[%s1672 + $0xa8] sm:$0xff]
      %v1695 = vld [vmem:[%s1672 + $0xb0] sm:$0xff]
      %v1696 = vld [vmem:[%s1672 + $0xb8] sm:$0xff]
      %v1697 = vld [vmem:[%s1672 + $0xc0] sm:$0xff]
      %v1698 = vld [vmem:[%s1672 + $0xc8] sm:$0xff]
      %v1699 = vld [vmem:[%s1672 + $0xd0] sm:$0xff]
      %v1700 = vld [vmem:[%s1672 + $0xd8] sm:$0xff]
      %v1701 = vld [vmem:[%s1672 + $0xe0] sm:$0xff]
      %v1702 = vld [vmem:[%s1672 + $0xe8] sm:$0xff]
      %v1703 = vld [vmem:[%s1672 + $0xf0] sm:$0xff]
      %v1704 = vld [vmem:[%s1672 + $0xf8] sm:$0xff]
      %1705 = vmatprep.subr.mxu0 0.0
      %1706 = vmatpush1.msra.mxu0 %v1673
      %1707 = vmatprep.subr.mxu0 0.0
      %1708 = vmatpush1.msra.mxu0 %v1674
      %1709 = vmatprep.subr.mxu0 0.0
      %1710 = vmatpush1.msra.mxu0 %v1675
      %1711 = vmatprep.subr.mxu0 0.0
      %1712 = vmatpush1.msra.mxu0 %v1676
      %1713 = vmatprep.subr.mxu0 0.0
      %1714 = vmatpush1.msra.mxu0 %v1677
      %1715 = vmatprep.subr.mxu0 0.0
      %1716 = vmatpush1.msra.mxu0 %v1678
      %1717 = vmatprep.subr.mxu0 0.0
      %1718 = vmatpush1.msra.mxu0 %v1679
      %1719 = vmatprep.subr.mxu0 0.0
      %1720 = vmatpush1.msra.mxu0 %v1680
      %1721 = vmatprep.subr.mxu0 0.0
      %1722 = vmatpush1.msra.mxu0 %v1681
      %1723 = vmatprep.subr.mxu0 0.0
      %1724 = vmatpush1.msra.mxu0 %v1682
      %1725 = vmatprep.subr.mxu0 0.0
      %1726 = vmatpush1.msra.mxu0 %v1683
      %1727 = vmatprep.subr.mxu0 0.0
      %1728 = vmatpush1.msra.mxu0 %v1684
      %1729 = vmatprep.subr.mxu0 0.0
      %1730 = vmatpush1.msra.mxu0 %v1685
      %1731 = vmatprep.subr.mxu0 0.0
      %1732 = vmatpush1.msra.mxu0 %v1686
      %1733 = vmatprep.subr.mxu0 0.0
      %1734 = vmatpush1.msra.mxu0 %v1687
      %1735 = vmatprep.subr.mxu0 0.0
      %1736 = vmatpush1.msra.mxu0 %v1688
      %1737 = vmatprep.subr.mxu0 0.0
      %1738 = vmatpush1.msra.mxu0 %v1689
      %1739 = vmatprep.subr.mxu0 0.0
      %1740 = vmatpush1.msra.mxu0 %v1690
      %1741 = vmatprep.subr.mxu0 0.0
      %1742 = vmatpush1.msra.mxu0 %v1691
      %1743 = vmatprep.subr.mxu0 0.0
      %1744 = vmatpush1.msra.mxu0 %v1692
      %1745 = vmatprep.subr.mxu0 0.0
      %1746 = vmatpush1.msra.mxu0 %v1693
      %1747 = vmatprep.subr.mxu0 0.0
      %1748 = vmatpush1.msra.mxu0 %v1694
      %1749 = vmatprep.subr.mxu0 0.0
      %1750 = vmatpush1.msra.mxu0 %v1695
      %1751 = vmatprep.subr.mxu0 0.0
      %1752 = vmatpush1.msra.mxu0 %v1696
      %1753 = vmatprep.subr.mxu0 0.0
      %1754 = vmatpush1.msra.mxu0 %v1697
      %1755 = vmatprep.subr.mxu0 0.0
      %1756 = vmatpush1.msra.mxu0 %v1698
      %1757 = vmatprep.subr.mxu0 0.0
      %1758 = vmatpush1.msra.mxu0 %v1699
      %1759 = vmatprep.subr.mxu0 0.0
      %1760 = vmatpush1.msra.mxu0 %v1700
      %1761 = vmatprep.subr.mxu0 0.0
      %1762 = vmatpush1.msra.mxu0 %v1701
      %1763 = vmatprep.subr.mxu0 0.0
      %1764 = vmatpush1.msra.mxu0 %v1702
      %1765 = vmatprep.subr.mxu0 0.0
      %1766 = vmatpush1.msra.mxu0 %v1703
      %1767 = vmatprep.subr.mxu0 0.0
      %1768 = vmatpush1.msra.mxu0 %v1704
      %1769 = vmatprep.mubr.f32.mxu0 %v1657
      %1770 = vmatmul.mubr.f32.gmra.mrb[0].mxu0 %v1656
      %v1771 = vpop.f32.mrb[0].mxu0
      %v1772 = vadd.f32 0.0, %v1771
      %v1773 = vpop.f32.mrb[0].mxu0
      %1774 = vmatprep.mubr.f32.mxu0 %v1659
      %1775 = vmatmul.mubr.f32.gmra.mrb[0].mxu0 %v1658
      %v1776 = vpop.f32.mrb[0].mxu0
      %v1777 = vadd.f32 0.0, %v1776
      %v1778 = vpop.f32.mrb[0].mxu0
      %1779 = vmatprep.mubr.f32.mxu0 %v1661
      %1780 = vmatmul.mubr.f32.gmra.mrb[0].mxu0 %v1660
      %v1781 = vpop.f32.mrb[0].mxu0
      %v1782 = vadd.f32 0.0, %v1781
      %v1783 = vpop.f32.mrb[0].mxu0
      %1784 = vmatprep.mubr.f32.mxu0 %v1663
      %1785 = vmatmul.mubr.f32.gmra.mrb[0].mxu0 %v1662
      %v1786 = vpop.f32.mrb[0].mxu0
      %v1787 = vadd.f32 0.0, %v1786
      %v1788 = vpop.f32.mrb[0].mxu0
      %1789 = vmatprep.mubr.f32.mxu0 %v1665
      %1790 = vmatmul.mubr.f32.gmra.mrb[0].mxu0 %v1664
      %v1791 = vpop.f32.mrb[0].mxu0
      %v1792 = vadd.f32 0.0, %v1791
      %v1793 = vpop.f32.mrb[0].mxu0
      %1794 = vmatprep.mubr.f32.mxu0 %v1667
      %1795 = vmatmul.mubr.f32.gmra.mrb[0].mxu0 %v1666
      %v1796 = vpop.f32.mrb[0].mxu0
      %v1797 = vadd.f32 0.0, %v1796
      %v1798 = vpop.f32.mrb[0].mxu0
      %1799 = vmatprep.mubr.f32.mxu0 %v1669
      %1800 = vmatmul.mubr.f32.gmra.mrb[0].mxu0 %v1668
      %v1801 = vpop.f32.mrb[0].mxu0
      %v1802 = vadd.f32 0.0, %v1801
      %v1803 = vpop.f32.mrb[0].mxu0
      %1804 = vmatprep.mubr.f32.mxu0 %v1671
      %1805 = vmatmul.mubr.f32.gmra.mrb[0].mxu0 %v1670
      %v1806 = vpop.f32.mrb[0].mxu0
      %v1807 = vadd.f32 0.0, %v1806
      %v1808 = vpop.f32.mrb[0].mxu0
      %1809 = vdwg.mxu0
      %v1810 = vadd.f32 %v1498, %v1772
      %v1811 = vadd.f32 %v1499, %v1777
      %v1812 = vadd.f32 %v1500, %v1782
      %v1813 = vadd.f32 %v1501, %v1787
      %v1814 = vadd.f32 %v1502, %v1792
      %v1815 = vadd.f32 %v1503, %v1797
      %v1816 = vadd.f32 %v1504, %v1802
      %v1817 = vadd.f32 %v1505, %v1807
      %s1818 = scalar_lea.vmem %s2, 1024
      %v1819 = vld [vmem:[%s1818] sm:$0xff]
      %v1820 = vld [vmem:[%s1818 + $0x8] sm:$0xff]
      %v1821 = vld [vmem:[%s1818 + $0x10] sm:$0xff]
      %v1822 = vld [vmem:[%s1818 + $0x18] sm:$0xff]
      %v1823 = vld [vmem:[%s1818 + $0x20] sm:$0xff]
      %v1824 = vld [vmem:[%s1818 + $0x28] sm:$0xff]
      %v1825 = vld [vmem:[%s1818 + $0x30] sm:$0xff]
      %v1826 = vld [vmem:[%s1818 + $0x38] sm:$0xff]
      %v1827 = vld [vmem:[%s1818 + $0x40] sm:$0xff]
      %v1828 = vld [vmem:[%s1818 + $0x48] sm:$0xff]
      %v1829 = vld [vmem:[%s1818 + $0x50] sm:$0xff]
      %v1830 = vld [vmem:[%s1818 + $0x58] sm:$0xff]
      %v1831 = vld [vmem:[%s1818 + $0x60] sm:$0xff]
      %v1832 = vld [vmem:[%s1818 + $0x68] sm:$0xff]
      %v1833 = vld [vmem:[%s1818 + $0x70] sm:$0xff]
      %v1834 = vld [vmem:[%s1818 + $0x78] sm:$0xff]
      %v1835 = vld [vmem:[%s1818 + $0x80] sm:$0xff]
      %v1836 = vld [vmem:[%s1818 + $0x88] sm:$0xff]
      %v1837 = vld [vmem:[%s1818 + $0x90] sm:$0xff]
      %v1838 = vld [vmem:[%s1818 + $0x98] sm:$0xff]
      %v1839 = vld [vmem:[%s1818 + $0xa0] sm:$0xff]
      %v1840 = vld [vmem:[%s1818 + $0xa8] sm:$0xff]
      %v1841 = vld [vmem:[%s1818 + $0xb0] sm:$0xff]
      %v1842 = vld [vmem:[%s1818 + $0xb8] sm:$0xff]
      %v1843 = vld [vmem:[%s1818 + $0xc0] sm:$0xff]
      %v1844 = vld [vmem:[%s1818 + $0xc8] sm:$0xff]
      %v1845 = vld [vmem:[%s1818 + $0xd0] sm:$0xff]
      %v1846 = vld [vmem:[%s1818 + $0xd8] sm:$0xff]
      %v1847 = vld [vmem:[%s1818 + $0xe0] sm:$0xff]
      %v1848 = vld [vmem:[%s1818 + $0xe8] sm:$0xff]
      %v1849 = vld [vmem:[%s1818 + $0xf0] sm:$0xff]
      %v1850 = vld [vmem:[%s1818 + $0xf8] sm:$0xff]
      %1851 = vmatprep.subr.mxu0 0.0
      %1852 = vmatpush1.msra.mxu0 %v1819
      %1853 = vmatprep.subr.mxu0 0.0
      %1854 = vmatpush1.msra.mxu0 %v1820
      %1855 = vmatprep.subr.mxu0 0.0
      %1856 = vmatpush1.msra.mxu0 %v1821
      %1857 = vmatprep.subr.mxu0 0.0
      %1858 = vmatpush1.msra.mxu0 %v1822
      %1859 = vmatprep.subr.mxu0 0.0
      %1860 = vmatpush1.msra.mxu0 %v1823
      %1861 = vmatprep.subr.mxu0 0.0
      %1862 = vmatpush1.msra.mxu0 %v1824
      %1863 = vmatprep.subr.mxu0 0.0
      %1864 = vmatpush1.msra.mxu0 %v1825
      %1865 = vmatprep.subr.mxu0 0.0
      %1866 = vmatpush1.msra.mxu0 %v1826
      %1867 = vmatprep.subr.mxu0 0.0
      %1868 = vmatpush1.msra.mxu0 %v1827
      %1869 = vmatprep.subr.mxu0 0.0
      %1870 = vmatpush1.msra.mxu0 %v1828
      %1871 = vmatprep.subr.mxu0 0.0
      %1872 = vmatpush1.msra.mxu0 %v1829
      %1873 = vmatprep.subr.mxu0 0.0
      %1874 = vmatpush1.msra.mxu0 %v1830
      %1875 = vmatprep.subr.mxu0 0.0
      %1876 = vmatpush1.msra.mxu0 %v1831
      %1877 = vmatprep.subr.mxu0 0.0
      %1878 = vmatpush1.msra.mxu0 %v1832
      %1879 = vmatprep.subr.mxu0 0.0
      %1880 = vmatpush1.msra.mxu0 %v1833
      %1881 = vmatprep.subr.mxu0 0.0
      %1882 = vmatpush1.msra.mxu0 %v1834
      %1883 = vmatprep.subr.mxu0 0.0
      %1884 = vmatpush1.msra.mxu0 %v1835
      %1885 = vmatprep.subr.mxu0 0.0
      %1886 = vmatpush1.msra.mxu0 %v1836
      %1887 = vmatprep.subr.mxu0 0.0
      %1888 = vmatpush1.msra.mxu0 %v1837
      %1889 = vmatprep.subr.mxu0 0.0
      %1890 = vmatpush1.msra.mxu0 %v1838
      %1891 = vmatprep.subr.mxu0 0.0
      %1892 = vmatpush1.msra.mxu0 %v1839
      %1893 = vmatprep.subr.mxu0 0.0
      %1894 = vmatpush1.msra.mxu0 %v1840
      %1895 = vmatprep.subr.mxu0 0.0
      %1896 = vmatpush1.msra.mxu0 %v1841
      %1897 = vmatprep.subr.mxu0 0.0
      %1898 = vmatpush1.msra.mxu0 %v1842
      %1899 = vmatprep.subr.mxu0 0.0
      %1900 = vmatpush1.msra.mxu0 %v1843
      %1901 = vmatprep.subr.mxu0 0.0
      %1902 = vmatpush1.msra.mxu0 %v1844
      %1903 = vmatprep.subr.mxu0 0.0
      %1904 = vmatpush1.msra.mxu0 %v1845
      %1905 = vmatprep.subr.mxu0 0.0
      %1906 = vmatpush1.msra.mxu0 %v1846
      %1907 = vmatprep.subr.mxu0 0.0
      %1908 = vmatpush1.msra.mxu0 %v1847
      %1909 = vmatprep.subr.mxu0 0.0
      %1910 = vmatpush1.msra.mxu0 %v1848
      %1911 = vmatprep.subr.mxu0 0.0
      %1912 = vmatpush1.msra.mxu0 %v1849
      %1913 = vmatprep.subr.mxu0 0.0
      %1914 = vmatpush1.msra.mxu0 %v1850
      %1915 = vmatprep.mubr.f32.mxu0 %v1657
      %1916 = vmatmul.mubr.f32.gmra.mrb[0].mxu0 %v1656
      %v1917 = vpop.f32.mrb[0].mxu0
      %v1918 = vadd.f32 0.0, %v1917
      %v1919 = vpop.f32.mrb[0].mxu0
      %1920 = vmatprep.mubr.f32.mxu0 %v1659
      %1921 = vmatmul.mubr.f32.gmra.mrb[0].mxu0 %v1658
      %v1922 = vpop.f32.mrb[0].mxu0
      %v1923 = vadd.f32 0.0, %v1922
      %v1924 = vpop.f32.mrb[0].mxu0
      %1925 = vmatprep.mubr.f32.mxu0 %v1661
      %1926 = vmatmul.mubr.f32.gmra.mrb[0].mxu0 %v1660
      %v1927 = vpop.f32.mrb[0].mxu0
      %v1928 = vadd.f32 0.0, %v1927
      %v1929 = vpop.f32.mrb[0].mxu0
      %1930 = vmatprep.mubr.f32.mxu0 %v1663
      %1931 = vmatmul.mubr.f32.gmra.mrb[0].mxu0 %v1662
      %v1932 = vpop.f32.mrb[0].mxu0
      %v1933 = vadd.f32 0.0, %v1932
      %v1934 = vpop.f32.mrb[0].mxu0
      %1935 = vmatprep.mubr.f32.mxu0 %v1665
      %1936 = vmatmul.mubr.f32.gmra.mrb[0].mxu0 %v1664
      %v1937 = vpop.f32.mrb[0].mxu0
      %v1938 = vadd.f32 0.0, %v1937
      %v1939 = vpop.f32.mrb[0].mxu0
      %1940 = vmatprep.mubr.f32.mxu0 %v1667
      %1941 = vmatmul.mubr.f32.gmra.mrb[0].mxu0 %v1666
      %v1942 = vpop.f32.mrb[0].mxu0
      %v1943 = vadd.f32 0.0, %v1942
      %v1944 = vpop.f32.mrb[0].mxu0
      %1945 = vmatprep.mubr.f32.mxu0 %v1669
      %1946 = vmatmul.mubr.f32.gmra.mrb[0].mxu0 %v1668
      %v1947 = vpop.f32.mrb[0].mxu0
      %v1948 = vadd.f32 0.0, %v1947
      %v1949 = vpop.f32.mrb[0].mxu0
      %1950 = vmatprep.mubr.f32.mxu0 %v1671
      %1951 = vmatmul.mubr.f32.gmra.mrb[0].mxu0 %v1670
      %v1952 = vpop.f32.mrb[0].mxu0
      %v1953 = vadd.f32 0.0, %v1952
      %v1954 = vpop.f32.mrb[0].mxu0
      %1955 = vdwg.mxu0
      %v1956 = vadd.f32 %v1644, %v1918
      %v1957 = vadd.f32 %v1645, %v1923
      %v1958 = vadd.f32 %v1646, %v1928
      %v1959 = vadd.f32 %v1647, %v1933
      %v1960 = vadd.f32 %v1648, %v1938
      %v1961 = vadd.f32 %v1649, %v1943
      %v1962 = vadd.f32 %v1650, %v1948
      %v1963 = vadd.f32 %v1651, %v1953
      %v1964 = vld [vmem:[%s1655] sm:$0xfe]
      %v1965 = vld [vmem:[%s1655 + $0x8] sm:$0xfe]
      %v1966 = vld [vmem:[%s1655 + $0x10] sm:$0x1]
      %v1967 = vld [vmem:[%s1655 + $0x18] sm:$0x1]
      %v1968 = vld [vmem:[%s1655 + $0x20] sm:$0xfe]
      %v1969 = vld [vmem:[%s1655 + $0x28] sm:$0xfe]
      %v1970 = vld [vmem:[%s1655 + $0x30] sm:$0x1]
      %v1971 = vld [vmem:[%s1655 + $0x38] sm:$0x1]
      %v1972 = vld [vmem:[%s1655 + $0x40] sm:$0xfe]
      %v1973 = vld [vmem:[%s1655 + $0x48] sm:$0xfe]
      %v1974 = vld [vmem:[%s1655 + $0x50] sm:$0x1]
      %v1975 = vld [vmem:[%s1655 + $0x58] sm:$0x1]
      %v1976 = vld [vmem:[%s1655 + $0x60] sm:$0xfe]
      %v1977 = vld [vmem:[%s1655 + $0x68] sm:$0xfe]
      %v1978 = vld [vmem:[%s1655 + $0x70] sm:$0x1]
      %v1979 = vld [vmem:[%s1655 + $0x78] sm:$0x1]
      %v1980 = vld [vmem:[%s1655 + $0x80] sm:$0xfe]
      %v1981 = vld [vmem:[%s1655 + $0x88] sm:$0xfe]
      %v1982 = vld [vmem:[%s1655 + $0x90] sm:$0x1]
      %v1983 = vld [vmem:[%s1655 + $0x98] sm:$0x1]
      %v1984 = vld [vmem:[%s1655 + $0xa0] sm:$0xfe]
      %v1985 = vld [vmem:[%s1655 + $0xa8] sm:$0xfe]
      %v1986 = vld [vmem:[%s1655 + $0xb0] sm:$0x1]
      %v1987 = vld [vmem:[%s1655 + $0xb8] sm:$0x1]
      %v1988 = vld [vmem:[%s1655 + $0xc0] sm:$0xfe]
      %v1989 = vld [vmem:[%s1655 + $0xc8] sm:$0xfe]
      %v1990 = vld [vmem:[%s1655 + $0xd0] sm:$0x1]
      %v1991 = vld [vmem:[%s1655 + $0xd8] sm:$0x1]
      %v1992 = vld [vmem:[%s1655 + $0xe0] sm:$0xfe]
      %v1993 = vld [vmem:[%s1655 + $0xe8] sm:$0xfe]
      %v1994 = vld [vmem:[%s1655 + $0xf0] sm:$0x1]
      %v1995 = vld [vmem:[%s1655 + $0xf8] sm:$0x1]
      %v2028 = vrot.slane %v1964, 1
      %v2029 = vrot.slane %v1966, 1
      %v2030 = vsel %vm369, %v2028, %v2029
      %v2031 = vrot.slane %v1965, 1
      %v2032 = vrot.slane %v1967, 1
      %v2033 = vsel %vm369, %v2031, %v2032
      %v2034 = vrot.slane %v1968, 1
      %v2035 = vrot.slane %v1970, 1
      %v2036 = vsel %vm369, %v2034, %v2035
      %v2037 = vrot.slane %v1969, 1
      %v2038 = vrot.slane %v1971, 1
      %v2039 = vsel %vm369, %v2037, %v2038
      %v2040 = vrot.slane %v1972, 1
      %v2041 = vrot.slane %v1974, 1
      %v2042 = vsel %vm369, %v2040, %v2041
      %v2043 = vrot.slane %v1973, 1
      %v2044 = vrot.slane %v1975, 1
      %v2045 = vsel %vm369, %v2043, %v2044
      %v2046 = vrot.slane %v1976, 1
      %v2047 = vrot.slane %v1978, 1
      %v2048 = vsel %vm369, %v2046, %v2047
      %v2049 = vrot.slane %v1977, 1
      %v2050 = vrot.slane %v1979, 1
      %v2051 = vsel %vm369, %v2049, %v2050
      %v2052 = vrot.slane %v1980, 1
      %v2053 = vrot.slane %v1982, 1
      %v2054 = vsel %vm369, %v2052, %v2053
      %v2055 = vrot.slane %v1981, 1
      %v2056 = vrot.slane %v1983, 1
      %v2057 = vsel %vm369, %v2055, %v2056
      %v2058 = vrot.slane %v1984, 1
      %v2059 = vrot.slane %v1986, 1
      %v2060 = vsel %vm369, %v2058, %v2059
      %v2061 = vrot.slane %v1985, 1
      %v2062 = vrot.slane %v1987, 1
      %v2063 = vsel %vm369, %v2061, %v2062
      %v2064 = vrot.slane %v1988, 1
      %v2065 = vrot.slane %v1990, 1
      %v2066 = vsel %vm369, %v2064, %v2065
      %v2067 = vrot.slane %v1989, 1
      %v2068 = vrot.slane %v1991, 1
      %v2069 = vsel %vm369, %v2067, %v2068
      %v2070 = vrot.slane %v1992, 1
      %v2071 = vrot.slane %v1994, 1
      %v2072 = vsel %vm369, %v2070, %v2071
      %v2073 = vrot.slane %v1993, 1
      %v2074 = vrot.slane %v1995, 1
      %v2075 = vsel %vm369, %v2073, %v2074
      %s2092 = scalar_lea.vmem %s1, 1280
      %v2093 = vld [vmem:[%s2092] sm:$0xff]
      %v2094 = vld [vmem:[%s2092 + $0x8] sm:$0xff]
      %v2095 = vld [vmem:[%s2092 + $0x10] sm:$0xff]
      %v2096 = vld [vmem:[%s2092 + $0x18] sm:$0xff]
      %v2097 = vld [vmem:[%s2092 + $0x20] sm:$0xff]
      %v2098 = vld [vmem:[%s2092 + $0x28] sm:$0xff]
      %v2099 = vld [vmem:[%s2092 + $0x30] sm:$0xff]
      %v2100 = vld [vmem:[%s2092 + $0x38] sm:$0xff]
      %v2101 = vld [vmem:[%s2092 + $0x40] sm:$0xff]
      %v2102 = vld [vmem:[%s2092 + $0x48] sm:$0xff]
      %v2103 = vld [vmem:[%s2092 + $0x50] sm:$0xff]
      %v2104 = vld [vmem:[%s2092 + $0x58] sm:$0xff]
      %v2105 = vld [vmem:[%s2092 + $0x60] sm:$0xff]
      %v2106 = vld [vmem:[%s2092 + $0x68] sm:$0xff]
      %v2107 = vld [vmem:[%s2092 + $0x70] sm:$0xff]
      %v2108 = vld [vmem:[%s2092 + $0x78] sm:$0xff]
      %v2109 = vld [vmem:[%s2092 + $0x80] sm:$0xff]
      %v2110 = vld [vmem:[%s2092 + $0x88] sm:$0xff]
      %v2111 = vld [vmem:[%s2092 + $0x90] sm:$0xff]
      %v2112 = vld [vmem:[%s2092 + $0x98] sm:$0xff]
      %v2113 = vld [vmem:[%s2092 + $0xa0] sm:$0xff]
      %v2114 = vld [vmem:[%s2092 + $0xa8] sm:$0xff]
      %v2115 = vld [vmem:[%s2092 + $0xb0] sm:$0xff]
      %v2116 = vld [vmem:[%s2092 + $0xb8] sm:$0xff]
      %v2117 = vld [vmem:[%s2092 + $0xc0] sm:$0xff]
      %v2118 = vld [vmem:[%s2092 + $0xc8] sm:$0xff]
      %v2119 = vld [vmem:[%s2092 + $0xd0] sm:$0xff]
      %v2120 = vld [vmem:[%s2092 + $0xd8] sm:$0xff]
      %v2121 = vld [vmem:[%s2092 + $0xe0] sm:$0xff]
      %v2122 = vld [vmem:[%s2092 + $0xe8] sm:$0xff]
      %v2123 = vld [vmem:[%s2092 + $0xf0] sm:$0xff]
      %v2124 = vld [vmem:[%s2092 + $0xf8] sm:$0xff]
      %2125 = vmatprep.subr.mxu0 0.0
      %2126 = vmatpush1.msra.mxu0 %v2093
      %2127 = vmatprep.subr.mxu0 0.0
      %2128 = vmatpush1.msra.mxu0 %v2094
      %2129 = vmatprep.subr.mxu0 0.0
      %2130 = vmatpush1.msra.mxu0 %v2095
      %2131 = vmatprep.subr.mxu0 0.0
      %2132 = vmatpush1.msra.mxu0 %v2096
      %2133 = vmatprep.subr.mxu0 0.0
      %2134 = vmatpush1.msra.mxu0 %v2097
      %2135 = vmatprep.subr.mxu0 0.0
      %2136 = vmatpush1.msra.mxu0 %v2098
      %2137 = vmatprep.subr.mxu0 0.0
      %2138 = vmatpush1.msra.mxu0 %v2099
      %2139 = vmatprep.subr.mxu0 0.0
      %2140 = vmatpush1.msra.mxu0 %v2100
      %2141 = vmatprep.subr.mxu0 0.0
      %2142 = vmatpush1.msra.mxu0 %v2101
      %2143 = vmatprep.subr.mxu0 0.0
      %2144 = vmatpush1.msra.mxu0 %v2102
      %2145 = vmatprep.subr.mxu0 0.0
      %2146 = vmatpush1.msra.mxu0 %v2103
      %2147 = vmatprep.subr.mxu0 0.0
      %2148 = vmatpush1.msra.mxu0 %v2104
      %2149 = vmatprep.subr.mxu0 0.0
      %2150 = vmatpush1.msra.mxu0 %v2105
      %2151 = vmatprep.subr.mxu0 0.0
      %2152 = vmatpush1.msra.mxu0 %v2106
      %2153 = vmatprep.subr.mxu0 0.0
      %2154 = vmatpush1.msra.mxu0 %v2107
      %2155 = vmatprep.subr.mxu0 0.0
      %2156 = vmatpush1.msra.mxu0 %v2108
      %2157 = vmatprep.subr.mxu0 0.0
      %2158 = vmatpush1.msra.mxu0 %v2109
      %2159 = vmatprep.subr.mxu0 0.0
      %2160 = vmatpush1.msra.mxu0 %v2110
      %2161 = vmatprep.subr.mxu0 0.0
      %2162 = vmatpush1.msra.mxu0 %v2111
      %2163 = vmatprep.subr.mxu0 0.0
      %2164 = vmatpush1.msra.mxu0 %v2112
      %2165 = vmatprep.subr.mxu0 0.0
      %2166 = vmatpush1.msra.mxu0 %v2113
      %2167 = vmatprep.subr.mxu0 0.0
      %2168 = vmatpush1.msra.mxu0 %v2114
      %2169 = vmatprep.subr.mxu0 0.0
      %2170 = vmatpush1.msra.mxu0 %v2115
      %2171 = vmatprep.subr.mxu0 0.0
      %2172 = vmatpush1.msra.mxu0 %v2116
      %2173 = vmatprep.subr.mxu0 0.0
      %2174 = vmatpush1.msra.mxu0 %v2117
      %2175 = vmatprep.subr.mxu0 0.0
      %2176 = vmatpush1.msra.mxu0 %v2118
      %2177 = vmatprep.subr.mxu0 0.0
      %2178 = vmatpush1.msra.mxu0 %v2119
      %2179 = vmatprep.subr.mxu0 0.0
      %2180 = vmatpush1.msra.mxu0 %v2120
      %2181 = vmatprep.subr.mxu0 0.0
      %2182 = vmatpush1.msra.mxu0 %v2121
      %2183 = vmatprep.subr.mxu0 0.0
      %2184 = vmatpush1.msra.mxu0 %v2122
      %2185 = vmatprep.subr.mxu0 0.0
      %2186 = vmatpush1.msra.mxu0 %v2123
      %2187 = vmatprep.subr.mxu0 0.0
      %2188 = vmatpush1.msra.mxu0 %v2124
      %2189 = vmatprep.mubr.f32.mxu0 %v2033
      %2190 = vmatmul.mubr.f32.gmra.mrb[0].mxu0 %v2030
      %v2191 = vpop.f32.mrb[0].mxu0
      %v2192 = vadd.f32 0.0, %v2191
      %v2193 = vpop.f32.mrb[0].mxu0
      %2194 = vmatprep.mubr.f32.mxu0 %v2039
      %2195 = vmatmul.mubr.f32.gmra.mrb[0].mxu0 %v2036
      %v2196 = vpop.f32.mrb[0].mxu0
      %v2197 = vadd.f32 0.0, %v2196
      %v2198 = vpop.f32.mrb[0].mxu0
      %2199 = vmatprep.mubr.f32.mxu0 %v2045
      %2200 = vmatmul.mubr.f32.gmra.mrb[0].mxu0 %v2042
      %v2201 = vpop.f32.mrb[0].mxu0
      %v2202 = vadd.f32 0.0, %v2201
      %v2203 = vpop.f32.mrb[0].mxu0
      %2204 = vmatprep.mubr.f32.mxu0 %v2051
      %2205 = vmatmul.mubr.f32.gmra.mrb[0].mxu0 %v2048
      %v2206 = vpop.f32.mrb[0].mxu0
      %v2207 = vadd.f32 0.0, %v2206
      %v2208 = vpop.f32.mrb[0].mxu0
      %2209 = vmatprep.mubr.f32.mxu0 %v2057
      %2210 = vmatmul.mubr.f32.gmra.mrb[0].mxu0 %v2054
      %v2211 = vpop.f32.mrb[0].mxu0
      %v2212 = vadd.f32 0.0, %v2211
      %v2213 = vpop.f32.mrb[0].mxu0
      %2214 = vmatprep.mubr.f32.mxu0 %v2063
      %2215 = vmatmul.mubr.f32.gmra.mrb[0].mxu0 %v2060
      %v2216 = vpop.f32.mrb[0].mxu0
      %v2217 = vadd.f32 0.0, %v2216
      %v2218 = vpop.f32.mrb[0].mxu0
      %2219 = vmatprep.mubr.f32.mxu0 %v2069
      %2220 = vmatmul.mubr.f32.gmra.mrb[0].mxu0 %v2066
      %v2221 = vpop.f32.mrb[0].mxu0
      %v2222 = vadd.f32 0.0, %v2221
      %v2223 = vpop.f32.mrb[0].mxu0
      %2224 = vmatprep.mubr.f32.mxu0 %v2075
      %2225 = vmatmul.mubr.f32.gmra.mrb[0].mxu0 %v2072
      %v2226 = vpop.f32.mrb[0].mxu0
      %v2227 = vadd.f32 0.0, %v2226
      %v2228 = vpop.f32.mrb[0].mxu0
      %2229 = vdwg.mxu0
      %v2230 = vadd.f32 %v1810, %v2192
      %v2231 = vadd.f32 %v1811, %v2197
      %v2232 = vadd.f32 %v1812, %v2202
      %v2233 = vadd.f32 %v1813, %v2207
      %v2234 = vadd.f32 %v1814, %v2212
      %v2235 = vadd.f32 %v1815, %v2217
      %v2236 = vadd.f32 %v1816, %v2222
      %v2237 = vadd.f32 %v1817, %v2227
      %s2238 = scalar_lea.vmem %s2, 1280
      %v2239 = vld [vmem:[%s2238] sm:$0xff]
      %v2240 = vld [vmem:[%s2238 + $0x8] sm:$0xff]
      %v2241 = vld [vmem:[%s2238 + $0x10] sm:$0xff]
      %v2242 = vld [vmem:[%s2238 + $0x18] sm:$0xff]
      %v2243 = vld [vmem:[%s2238 + $0x20] sm:$0xff]
      %v2244 = vld [vmem:[%s2238 + $0x28] sm:$0xff]
      %v2245 = vld [vmem:[%s2238 + $0x30] sm:$0xff]
      %v2246 = vld [vmem:[%s2238 + $0x38] sm:$0xff]
      %v2247 = vld [vmem:[%s2238 + $0x40] sm:$0xff]
      %v2248 = vld [vmem:[%s2238 + $0x48] sm:$0xff]
      %v2249 = vld [vmem:[%s2238 + $0x50] sm:$0xff]
      %v2250 = vld [vmem:[%s2238 + $0x58] sm:$0xff]
      %v2251 = vld [vmem:[%s2238 + $0x60] sm:$0xff]
      %v2252 = vld [vmem:[%s2238 + $0x68] sm:$0xff]
      %v2253 = vld [vmem:[%s2238 + $0x70] sm:$0xff]
      %v2254 = vld [vmem:[%s2238 + $0x78] sm:$0xff]
      %v2255 = vld [vmem:[%s2238 + $0x80] sm:$0xff]
      %v2256 = vld [vmem:[%s2238 + $0x88] sm:$0xff]
      %v2257 = vld [vmem:[%s2238 + $0x90] sm:$0xff]
      %v2258 = vld [vmem:[%s2238 + $0x98] sm:$0xff]
      %v2259 = vld [vmem:[%s2238 + $0xa0] sm:$0xff]
      %v2260 = vld [vmem:[%s2238 + $0xa8] sm:$0xff]
      %v2261 = vld [vmem:[%s2238 + $0xb0] sm:$0xff]
      %v2262 = vld [vmem:[%s2238 + $0xb8] sm:$0xff]
      %v2263 = vld [vmem:[%s2238 + $0xc0] sm:$0xff]
      %v2264 = vld [vmem:[%s2238 + $0xc8] sm:$0xff]
      %v2265 = vld [vmem:[%s2238 + $0xd0] sm:$0xff]
      %v2266 = vld [vmem:[%s2238 + $0xd8] sm:$0xff]
      %v2267 = vld [vmem:[%s2238 + $0xe0] sm:$0xff]
      %v2268 = vld [vmem:[%s2238 + $0xe8] sm:$0xff]
      %v2269 = vld [vmem:[%s2238 + $0xf0] sm:$0xff]
      %v2270 = vld [vmem:[%s2238 + $0xf8] sm:$0xff]
      %2271 = vmatprep.subr.mxu0 0.0
      %2272 = vmatpush1.msra.mxu0 %v2239
      %2273 = vmatprep.subr.mxu0 0.0
      %2274 = vmatpush1.msra.mxu0 %v2240
      %2275 = vmatprep.subr.mxu0 0.0
      %2276 = vmatpush1.msra.mxu0 %v2241
      %2277 = vmatprep.subr.mxu0 0.0
      %2278 = vmatpush1.msra.mxu0 %v2242
      %2279 = vmatprep.subr.mxu0 0.0
      %2280 = vmatpush1.msra.mxu0 %v2243
      %2281 = vmatprep.subr.mxu0 0.0
      %2282 = vmatpush1.msra.mxu0 %v2244
      %2283 = vmatprep.subr.mxu0 0.0
      %2284 = vmatpush1.msra.mxu0 %v2245
      %2285 = vmatprep.subr.mxu0 0.0
      %2286 = vmatpush1.msra.mxu0 %v2246
      %2287 = vmatprep.subr.mxu0 0.0
      %2288 = vmatpush1.msra.mxu0 %v2247
      %2289 = vmatprep.subr.mxu0 0.0
      %2290 = vmatpush1.msra.mxu0 %v2248
      %2291 = vmatprep.subr.mxu0 0.0
      %2292 = vmatpush1.msra.mxu0 %v2249
      %2293 = vmatprep.subr.mxu0 0.0
      %2294 = vmatpush1.msra.mxu0 %v2250
      %2295 = vmatprep.subr.mxu0 0.0
      %2296 = vmatpush1.msra.mxu0 %v2251
      %2297 = vmatprep.subr.mxu0 0.0
      %2298 = vmatpush1.msra.mxu0 %v2252
      %2299 = vmatprep.subr.mxu0 0.0
      %2300 = vmatpush1.msra.mxu0 %v2253
      %2301 = vmatprep.subr.mxu0 0.0
      %2302 = vmatpush1.msra.mxu0 %v2254
      %2303 = vmatprep.subr.mxu0 0.0
      %2304 = vmatpush1.msra.mxu0 %v2255
      %2305 = vmatprep.subr.mxu0 0.0
      %2306 = vmatpush1.msra.mxu0 %v2256
      %2307 = vmatprep.subr.mxu0 0.0
      %2308 = vmatpush1.msra.mxu0 %v2257
      %2309 = vmatprep.subr.mxu0 0.0
      %2310 = vmatpush1.msra.mxu0 %v2258
      %2311 = vmatprep.subr.mxu0 0.0
      %2312 = vmatpush1.msra.mxu0 %v2259
      %2313 = vmatprep.subr.mxu0 0.0
      %2314 = vmatpush1.msra.mxu0 %v2260
      %2315 = vmatprep.subr.mxu0 0.0
      %2316 = vmatpush1.msra.mxu0 %v2261
      %2317 = vmatprep.subr.mxu0 0.0
      %2318 = vmatpush1.msra.mxu0 %v2262
      %2319 = vmatprep.subr.mxu0 0.0
      %2320 = vmatpush1.msra.mxu0 %v2263
      %2321 = vmatprep.subr.mxu0 0.0
      %2322 = vmatpush1.msra.mxu0 %v2264
      %2323 = vmatprep.subr.mxu0 0.0
      %2324 = vmatpush1.msra.mxu0 %v2265
      %2325 = vmatprep.subr.mxu0 0.0
      %2326 = vmatpush1.msra.mxu0 %v2266
      %2327 = vmatprep.subr.mxu0 0.0
      %2328 = vmatpush1.msra.mxu0 %v2267
      %2329 = vmatprep.subr.mxu0 0.0
      %2330 = vmatpush1.msra.mxu0 %v2268
      %2331 = vmatprep.subr.mxu0 0.0
      %2332 = vmatpush1.msra.mxu0 %v2269
      %2333 = vmatprep.subr.mxu0 0.0
      %2334 = vmatpush1.msra.mxu0 %v2270
      %2335 = vmatprep.mubr.f32.mxu0 %v2033
      %2336 = vmatmul.mubr.f32.gmra.mrb[0].mxu0 %v2030
      %v2337 = vpop.f32.mrb[0].mxu0
      %v2338 = vadd.f32 0.0, %v2337
      %v2339 = vpop.f32.mrb[0].mxu0
      %2340 = vmatprep.mubr.f32.mxu0 %v2039
      %2341 = vmatmul.mubr.f32.gmra.mrb[0].mxu0 %v2036
      %v2342 = vpop.f32.mrb[0].mxu0
      %v2343 = vadd.f32 0.0, %v2342
      %v2344 = vpop.f32.mrb[0].mxu0
      %2345 = vmatprep.mubr.f32.mxu0 %v2045
      %2346 = vmatmul.mubr.f32.gmra.mrb[0].mxu0 %v2042
      %v2347 = vpop.f32.mrb[0].mxu0
      %v2348 = vadd.f32 0.0, %v2347
      %v2349 = vpop.f32.mrb[0].mxu0
      %2350 = vmatprep.mubr.f32.mxu0 %v2051
      %2351 = vmatmul.mubr.f32.gmra.mrb[0].mxu0 %v2048
      %v2352 = vpop.f32.mrb[0].mxu0
      %v2353 = vadd.f32 0.0, %v2352
      %v2354 = vpop.f32.mrb[0].mxu0
      %2355 = vmatprep.mubr.f32.mxu0 %v2057
      %2356 = vmatmul.mubr.f32.gmra.mrb[0].mxu0 %v2054
      %v2357 = vpop.f32.mrb[0].mxu0
      %v2358 = vadd.f32 0.0, %v2357
      %v2359 = vpop.f32.mrb[0].mxu0
      %2360 = vmatprep.mubr.f32.mxu0 %v2063
      %2361 = vmatmul.mubr.f32.gmra.mrb[0].mxu0 %v2060
      %v2362 = vpop.f32.mrb[0].mxu0
      %v2363 = vadd.f32 0.0, %v2362
      %v2364 = vpop.f32.mrb[0].mxu0
      %2365 = vmatprep.mubr.f32.mxu0 %v2069
      %2366 = vmatmul.mubr.f32.gmra.mrb[0].mxu0 %v2066
      %v2367 = vpop.f32.mrb[0].mxu0
      %v2368 = vadd.f32 0.0, %v2367
      %v2369 = vpop.f32.mrb[0].mxu0
      %2370 = vmatprep.mubr.f32.mxu0 %v2075
      %2371 = vmatmul.mubr.f32.gmra.mrb[0].mxu0 %v2072
      %v2372 = vpop.f32.mrb[0].mxu0
      %v2373 = vadd.f32 0.0, %v2372
      %v2374 = vpop.f32.mrb[0].mxu0
      %2375 = vdwg.mxu0
      %v2376 = vadd.f32 %v1956, %v2338
      %v2377 = vadd.f32 %v1957, %v2343
      %v2378 = vadd.f32 %v1958, %v2348
      %v2379 = vadd.f32 %v1959, %v2353
      %v2380 = vadd.f32 %v1960, %v2358
      %v2381 = vadd.f32 %v1961, %v2363
      %v2382 = vadd.f32 %v1962, %v2368
      %v2383 = vadd.f32 %v1963, %v2373
      %v2384 = vld [vmem:[%s3] sm:$0x1]
      %v2386 = vlaneseq
      %v2387 = vshrl.u32 %v2386, 7
      %v2388 = vsub.s32 0, %v2387
      %v2389 = vrot.slane %v2384, %v2388
      %v2391 = vadd.f32 %v2230, %v2389
      %v2392 = vadd.f32 %v2231, %v2389
      %v2393 = vadd.f32 %v2232, %v2389
      %v2394 = vadd.f32 %v2233, %v2389
      %v2395 = vadd.f32 %v2234, %v2389
      %v2396 = vadd.f32 %v2235, %v2389
      %v2397 = vadd.f32 %v2236, %v2389
      %v2398 = vadd.f32 %v2237, %v2389
      %v2399 = vmax.f32 %v2391, 0.0
      %v2400 = vmax.f32 %v2392, 0.0
      %v2401 = vmax.f32 %v2393, 0.0
      %v2402 = vmax.f32 %v2394, 0.0
      %v2403 = vmax.f32 %v2395, 0.0
      %v2404 = vmax.f32 %v2396, 0.0
      %v2405 = vmax.f32 %v2397, 0.0
      %v2406 = vmax.f32 %v2398, 0.0
      %v2407 = vadd.f32 %v2376, %v2389
      %v2408 = vadd.f32 %v2377, %v2389
      %v2409 = vadd.f32 %v2378, %v2389
      %v2410 = vadd.f32 %v2379, %v2389
      %v2411 = vadd.f32 %v2380, %v2389
      %v2412 = vadd.f32 %v2381, %v2389
      %v2413 = vadd.f32 %v2382, %v2389
      %v2414 = vadd.f32 %v2383, %v2389
      %v2415 = vmax.f32 %v2407, 0.0
      %v2416 = vmax.f32 %v2408, 0.0
      %v2417 = vmax.f32 %v2409, 0.0
      %v2418 = vmax.f32 %v2410, 0.0
      %v2419 = vmax.f32 %v2411, 0.0
      %v2420 = vmax.f32 %v2412, 0.0
      %v2421 = vmax.f32 %v2413, 0.0
      %v2422 = vmax.f32 %v2414, 0.0
      %v2423 = vmax.f32 %v2399, %v2415
      %v2424 = vmax.f32 %v2400, %v2416
      %v2425 = vmax.f32 %v2401, %v2417
      %v2426 = vmax.f32 %v2402, %v2418
      %v2427 = vmax.f32 %v2403, %v2419
      %v2428 = vmax.f32 %v2404, %v2420
      %v2429 = vmax.f32 %v2405, %v2421
      %v2430 = vmax.f32 %v2406, %v2422
      %v2431 = vmax.f32 %v2423, %v2424
      %v2432 = vmax.f32 %v2425, %v2426
      %v2433 = vmax.f32 %v2427, %v2428
      %v2434 = vmax.f32 %v2429, %v2430
      %2435 = vst [vmem:[%s219] sm:$0xff] %v2431
      %2436 = vst [vmem:[%s219 + $0x8] sm:$0xff] %v2432
      %2437 = vst [vmem:[%s219 + $0x10] sm:$0xff] %v2433
      %2438 = vst [vmem:[%s219 + $0x18] sm:$0xff] %v2434
      %s2439 = smul.u32 4, %s20
      %p2440 = scmp.lt.s32.totalorder %s19, 1
      %s2441 = scalar_select %p2440, %s19, 1
      %p2442 = scmp.lt.s32.totalorder %s2439, 7
      %s2443 = scalar_select %p2442, %s2439, 7
      %s2444 = smul.addr %s2441, 8
      %s2445 = sadd.s32 %s2443, %s2444
      %s2446 = smul.addr %s2445, 8
      %s2447 = scalar_lea.vmem %s4, %s2446
      // Predicated region
      $region37: #{eye_diameter_net.4} parent=35 // pred_check
        %p2448 = pneg %p136
      $region38: #{eye_diameter_net.4} parent=35 // pred_check_branch
        %2450 = sbr.rel (%p2448) target = $region40
      $region39: #{eye_diameter_net.4} parent=35 // pred_region
        %s2451 = smul.u32 4, %s20
      $region40: #{eye_diameter_net.4} parent=35 // pred_fallthru
        _
    $region36: #{eye_diameter_net.4} parent=5 // pred_fallthru
      _
    %p2452 = scmp.le.s32.totalorder 2, %s10
    // Predicated region
    $region41: #{eye_diameter_net.4} parent=5 // pred_check
      %p2453 = pneg %p2452
    $region42: #{eye_diameter_net.4} parent=5 // pred_check_branch
      %2455 = sbr.rel (%p2453) target = $region44
    $region43: #{eye_diameter_net.4} parent=5 // pred_region
      %s2456 = ssub.s32 %s10, 2
      // Predicated region
      $region45: #{eye_diameter_net.4} parent=43 // pred_check
        %p2457 = pneg %p142
      $region46: #{eye_diameter_net.4} parent=43 // pred_check_branch
        %2459 = sbr.rel (%p2457) target = $region48
      $region47: #{eye_diameter_net.4} parent=43 // pred_region
        %s2460 = smul.u32 4, %s22
        %p2461 = scmp.lt.s32.totalorder %s21, 1
        %s2462 = scalar_select %p2461, %s21, 1
        %p2463 = scmp.lt.s32.totalorder %s2460, 7
        %s2464 = scalar_select %p2463, %s2460, 7
        %s2465 = smul.addr %s2462, 8
        %s2466 = sadd.s32 %s2464, %s2465
        %s2467 = smul.addr %s2466, 8
        %s2468 = scalar_lea.vmem %s4, %s2467
      $region48: #{eye_diameter_net.4} parent=43 // pred_fallthru
        _
    $region44: #{eye_diameter_net.4} parent=5 // pred_fallthru
      _
  $region6: #{eye_diameter_net.4} parent=0 // loop_footer
    %s14 = sadd.s32 1, %s10
  $region7: #{eye_diameter_net.4} parent=0 // loop_footer_branch
    %9 = sbr.rel target = $region3
  $region8: #{eye_diameter_net.4} parent=0 // loop_exit
    _

// kernel: eye_diameter_net.5
$region0: #{eye_diameter_net.5}
  #allocation0 [shape = 'u32[]', space=smem, size = 0x4, offset = 0x4, fixed_abs, tag = 'smem constant byte address 0x4 - core index']
  #allocation1 [shape = 'u32[144,128]{1,0:T(1,128)}', space=vmem, size = 0x12000, scoped, tag = 'internal scratch']
  %s0 = inlined_call_operand.vmem [shape: f32[2,10,9,256], index: 0, kind: input, shape index: {}]
  %s1 = inlined_call_operand.vmem [shape: f32[6,256,128], index: 1, kind: input, shape index: {}]
  %s2 = inlined_call_operand.vmem [shape: f32[6,256,128], index: 2, kind: input, shape index: {}]
  %s3 = inlined_call_operand.vmem [shape: f32[1,128], index: 3, kind: input, shape index: {}]
  %s4 = inlined_call_operand.vmem [shape: f32[2,4,8,128], index: 4, kind: output, shape index: {}]
  %s5 = sld [smem:[#allocation0]]
  $region49: #{eye_diameter_net.5} parent=0
    _
  %s7 = ssub.s32 1, %s5
  %s8 = scalar_select 0, %s7, %s5
  loop: start=0, step=1, limit=4
  $region2: #{eye_diameter_net.5} parent=0 // loop_pre_header
    _
  $region3: #{eye_diameter_net.5} parent=0 // loop_header
    %s10 = sphi 0, %s14
    %p11 = scmp.ge.s32.totalorder %s10, 4
    %s17 = sphi 0, %s29
    %s18 = sphi 0, %s25
    %s19 = sphi 0, %s17
    %s20 = sphi 0, %s18
    %s21 = sphi 0, %s19
    %s22 = sphi 0, %s20
    %s32 = sphi 0, %s34
    %s35 = sphi 0, %s32
    %s36 = sphi 0, %s35
    %s52 = sphi 0, %s36
    %s56 = sphi 0, %s56
    %s58 = sphi 0, %s56
    %s59 = sphi 0, %s58
    %s73 = sphi 0, %s59
    %s77 = sphi 0, %s77
    %s79 = sphi 0, %s77
    %s80 = sphi 0, %s79
    %s94 = sphi 0, %s80
    %s98 = sphi 0, %s98
    %s100 = sphi 0, %s98
    %s101 = sphi 0, %s100
    %s115 = sphi 0, %s101
    %s123 = sphi 0, %s125
    %s126 = sphi 0, %s123
    %s127 = sphi 0, %s126
    %s143 = sphi 0, %s127
  $region4: #{eye_diameter_net.5} parent=0 // loop_header_branch
    %13 = sbr.rel (%p11) target = $region8
  $region5: #{eye_diameter_net.5} parent=0 // loop_body
    %s15 = ssub.s32 %s10, 1
    %s16 = ssub.s32 %s10, 2
    %s23 = sadd.s32 1, %s18
    %p24 = scmp.ge.s32.totalorder %s23, 1
    %s25 = scalar_select %p24, 0, %s23
    %s26 = sadd.s32 1, %s17
    %s27 = scalar_select %p24, %s26, %s17
    %p28 = scmp.ge.s32.totalorder %s27, 2
    %s29 = scalar_select %p28, 0, %s27
    %s30 = ssub.s32 %s17, %s29
    %p31 = scmp.eq.s32.totalorder %s30, 0
    %s33 = sadd.s32 %s32, 1
    %s34 = scalar_select %p31, %s32, %s33
    %p37 = pneg %p31
    %p38 = scmp.eq.s32.totalorder %s10, 1
    %p39 = por %p37, %p38
    %p40 = scmp.ne.s32.totalorder %s32, %s35
    %p41 = scmp.eq.s32.totalorder %s10, 0
    %p42 = por %p40, %p41
    %p43 = scmp.ne.s32.totalorder %s32, %s35
    %p44 = scmp.eq.s32.totalorder %s15, 1
    %p45 = por %p43, %p44
    %p46 = scmp.ne.s32.totalorder %s35, %s36
    %p47 = scmp.eq.s32.totalorder %s15, 0
    %p48 = por %p46, %p47
    %p49 = scmp.ne.s32.totalorder %s35, %s36
    %p50 = scmp.eq.s32.totalorder %s16, 1
    %p51 = por %p49, %p50
    %p53 = scmp.ne.s32.totalorder %s36, %s52
    %p54 = scmp.eq.s32.totalorder %s16, 0
    %p55 = por %p53, %p54
    %s57 = sadd.s32 %s56, 1
    %p60 = scmp.eq.s32.totalorder %s10, 1
    %p61 = scmp.ne.s32.totalorder %s56, %s58
    %p62 = scmp.eq.s32.totalorder %s10, 0
    %p63 = por %p61, %p62
    %p64 = scmp.ne.s32.totalorder %s56, %s58
    %p65 = scmp.eq.s32.totalorder %s15, 1
    %p66 = por %p64, %p65
    %p67 = scmp.ne.s32.totalorder %s58, %s59
    %p68 = scmp.eq.s32.totalorder %s15, 0
    %p69 = por %p67, %p68
    %p70 = scmp.ne.s32.totalorder %s58, %s59
    %p71 = scmp.eq.s32.totalorder %s16, 1
    %p72 = por %p70, %p71
    %p74 = scmp.ne.s32.totalorder %s59, %s73
    %p75 = scmp.eq.s32.totalorder %s16, 0
    %p76 = por %p74, %p75
    %s78 = sadd.s32 %s77, 1
    %p81 = scmp.eq.s32.totalorder %s10, 1
    %p82 = scmp.ne.s32.totalorder %s77, %s79
    %p83 = scmp.eq.s32.totalorder %s10, 0
    %p84 = por %p82, %p83
    %p85 = scmp.ne.s32.totalorder %s77, %s79
    %p86 = scmp.eq.s32.totalorder %s15, 1
    %p87 = por %p85, %p86
    %p88 = scmp.ne.s32.totalorder %s79, %s80
    %p89 = scmp.eq.s32.totalorder %s15, 0
    %p90 = por %p88, %p89
    %p91 = scmp.ne.s32.totalorder %s79, %s80
    %p92 = scmp.eq.s32.totalorder %s16, 1
    %p93 = por %p91, %p92
    %p95 = scmp.ne.s32.totalorder %s80, %s94
    %p96 = scmp.eq.s32.totalorder %s16, 0
    %p97 = por %p95, %p96
    %s99 = sadd.s32 %s98, 1
    %p102 = scmp.eq.s32.totalorder %s10, 1
    %p103 = scmp.ne.s32.totalorder %s98, %s100
    %p104 = scmp.eq.s32.totalorder %s10, 0
    %p105 = por %p103, %p104
    %p106 = scmp.ne.s32.totalorder %s98, %s100
    %p107 = scmp.eq.s32.totalorder %s15, 1
    %p108 = por %p106, %p107
    %p109 = scmp.ne.s32.totalorder %s100, %s101
    %p110 = scmp.eq.s32.totalorder %s15, 0
    %p111 = por %p109, %p110
    %p112 = scmp.ne.s32.totalorder %s100, %s101
    %p113 = scmp.eq.s32.totalorder %s16, 1
    %p114 = por %p112, %p113
    %p116 = scmp.ne.s32.totalorder %s101, %s115
    %p117 = scmp.eq.s32.totalorder %s16, 0
    %p118 = por %p116, %p117
    %s119 = ssub.s32 %s17, %s29
    %s120 = ssub.s32 %s18, %s25
    %s121 = sor.u32 %s119, %s120
    %p122 = scmp.eq.s32.totalorder %s121, 0
    %s124 = sadd.s32 %s123, 1
    %s125 = scalar_select %p122, %s123, %s124
    %p128 = pneg %p122
    %p129 = scmp.eq.s32.totalorder %s10, 1
    %p130 = por %p128, %p129
    %p131 = scmp.ne.s32.totalorder %s123, %s126
    %p132 = scmp.eq.s32.totalorder %s10, 0
    %p133 = por %p131, %p132
    %p134 = scmp.ne.s32.totalorder %s123, %s126
    %p135 = scmp.eq.s32.totalorder %s15, 1
    %p136 = por %p134, %p135
    %p137 = scmp.ne.s32.totalorder %s126, %s127
    %p138 = scmp.eq.s32.totalorder %s15, 0
    %p139 = por %p137, %p138
    %p140 = scmp.ne.s32.totalorder %s126, %s127
    %p141 = scmp.eq.s32.totalorder %s16, 1
    %p142 = por %p140, %p141
    %p144 = scmp.ne.s32.totalorder %s127, %s143
    %p145 = scmp.eq.s32.totalorder %s16, 0
    %p146 = por %p144, %p145
    %p147 = scmp.le.s32.totalorder 1, %s10
    %p148 = scmp.lt.s32.totalorder %s10, 3
    %p149 = pnand %p147, %p148
    %p150 = pneg %p149
    // Predicated region
    $region9: #{eye_diameter_net.5} parent=5 // pred_check
      _
    $region10: #{eye_diameter_net.5} parent=5 // pred_check_branch
      %152 = sbr.rel (%p149) target = $region12
    $region11: #{eye_diameter_net.5} parent=5 // pred_region
      %s153 = ssub.s32 %s10, 1
      // Predicated region
      $region13: #{eye_diameter_net.5} parent=11 // pred_check
        %p154 = pneg %p69
      $region14: #{eye_diameter_net.5} parent=11 // pred_check_branch
        %156 = sbr.rel (%p154) target = $region16
      $region15: #{eye_diameter_net.5} parent=11 // pred_region
        _
      $region16: #{eye_diameter_net.5} parent=11 // pred_fallthru
        _
      // Predicated region
      $region17: #{eye_diameter_net.5} parent=11 // pred_check
        %p157 = pneg %p90
      $region18: #{eye_diameter_net.5} parent=11 // pred_check_branch
        %159 = sbr.rel (%p157) target = $region20
      $region19: #{eye_diameter_net.5} parent=11 // pred_region
        _
      $region20: #{eye_diameter_net.5} parent=11 // pred_fallthru
        _
      // Predicated region
      $region21: #{eye_diameter_net.5} parent=11 // pred_check
        %p160 = pneg %p111
      $region22: #{eye_diameter_net.5} parent=11 // pred_check_branch
        %162 = sbr.rel (%p160) target = $region24
      $region23: #{eye_diameter_net.5} parent=11 // pred_region
        _
      $region24: #{eye_diameter_net.5} parent=11 // pred_fallthru
        _
    $region12: #{eye_diameter_net.5} parent=5 // pred_fallthru
      _
    %p163 = scmp.lt.s32.totalorder %s10, 2
    // Predicated region
    $region25: #{eye_diameter_net.5} parent=5 // pred_check
      %p164 = pneg %p163
    $region26: #{eye_diameter_net.5} parent=5 // pred_check_branch
      %166 = sbr.rel (%p164) target = $region28
    $region27: #{eye_diameter_net.5} parent=5 // pred_region
      // Predicated region
      $region29: #{eye_diameter_net.5} parent=27 // pred_check
        %p167 = pneg %p42
      $region30: #{eye_diameter_net.5} parent=27 // pred_check_branch
        %169 = sbr.rel (%p167) target = $region32
      $region31: #{eye_diameter_net.5} parent=27 // pred_region
        %p170 = scmp.lt.s32.totalorder %s17, 1
        %s171 = scalar_select %p170, %s17, 1
        %s172 = smul.addr %s171, 40
        %s173 = smul.addr %s172, 8
        %s174 = scalar_lea.vmem %s0, %s173
      $region32: #{eye_diameter_net.5} parent=27 // pred_fallthru
        _
    $region28: #{eye_diameter_net.5} parent=5 // pred_fallthru
      _
    %p175 = scmp.le.s32.totalorder 1, %s10
    %p176 = scmp.lt.s32.totalorder %s10, 3
    %p177 = pnand %p175, %p176
    %p178 = pneg %p177
    // Predicated region
    $region33: #{eye_diameter_net.5} parent=5 // pred_check
      _
    $region34: #{eye_diameter_net.5} parent=5 // pred_check_branch
      %180 = sbr.rel (%p177) target = $region36
    $region35: #{eye_diameter_net.5} parent=5 // pred_region
      %s181 = ssub.s32 %s10, 1
      %p182 = scmp.lt.s32.totalorder %s19, 1
      %s183 = scalar_select %p182, %s19, 1
      %s184 = smul.addr %s183, 40
      %s185 = smul.addr %s184, 8
      %s186 = scalar_lea.vmem %s0, %s185
      %p187 = pneg %p48
      %p188 = pneg %p45
      %p189 = pneg %p69
      %p190 = pneg %p66
      %p191 = pneg %p90
      %p192 = pneg %p87
      %p193 = pneg %p111
      %p194 = pneg %p108
      %p195 = pneg %p139
      %p196 = pneg %p136
      %s197 = smul.u32 4, %s20
      %p198 = scmp.lt.s32.totalorder %s19, 1
      %s199 = scalar_select %p198, %s19, 1
      %p200 = scmp.lt.s32.totalorder %s197, 3
      %s201 = scalar_select %p200, %s197, 3
      %s202 = smul.addr %s199, 4
      %s203 = sadd.s32 %s201, %s202
      %s204 = smul.addr %s203, 8
      %s205 = scalar_lea.vmem %s4, %s204
      %p206 = scmp.lt.s32.totalorder %s19, 1
      %s207 = scalar_select %p206, %s19, 1
      %s208 = smul.addr %s207, 40
      %s209 = smul.addr %s208, 8
      %s210 = scalar_lea.vmem %s0, %s209
      %s211 = smul.u32 4, %s20
      %p212 = scmp.lt.s32.totalorder %s19, 1
      %s213 = scalar_select %p212, %s19, 1
      %p214 = scmp.lt.s32.totalorder %s211, 3
      %s215 = scalar_select %p214, %s211, 3
      %s216 = smul.addr %s213, 4
      %s217 = sadd.s32 %s215, %s216
      %s218 = smul.addr %s217, 8
      %s219 = scalar_lea.vmem %s4, %s218
      %s220 = smul.u32 4, %s20
      %s221 = smul.u32 %s20, 8
      %s222 = smul.u32 %s221, 4
      %s223 = smul.addr %s222, 8
      %s224 = scalar_lea.vmem %s210, %s223
      %v225 = vld [vmem:[%s224] sm:$0xff]
      %v226 = vld [vmem:[%s224 + $0x8] sm:$0xff]
      %v227 = vld [vmem:[%s224 + $0x20] sm:$0xff]
      %v228 = vld [vmem:[%s224 + $0x28] sm:$0xff]
      %v229 = vld [vmem:[%s224 + $0x40] sm:$0xff]
      %v230 = vld [vmem:[%s224 + $0x48] sm:$0xff]
      %v231 = vld [vmem:[%s224 + $0x60] sm:$0xff]
      %v232 = vld [vmem:[%s224 + $0x68] sm:$0xff]
      %v233 = vld [vmem:[%s224 + $0x80] sm:$0xff]
      %v234 = vld [vmem:[%s224 + $0x88] sm:$0xff]
      %v235 = vld [vmem:[%s224 + $0xa0] sm:$0xff]
      %v236 = vld [vmem:[%s224 + $0xa8] sm:$0xff]
      %v237 = vld [vmem:[%s224 + $0xc0] sm:$0xff]
      %v238 = vld [vmem:[%s224 + $0xc8] sm:$0xff]
      %v239 = vld [vmem:[%s224 + $0xe0] sm:$0xff]
      %v240 = vld [vmem:[%s224 + $0xe8] sm:$0xff]
      %v241 = vld [vmem:[%s1] sm:$0xff]
      %v242 = vld [vmem:[%s1 + $0x8] sm:$0xff]
      %v243 = vld [vmem:[%s1 + $0x10] sm:$0xff]
      %v244 = vld [vmem:[%s1 + $0x18] sm:$0xff]
      %v245 = vld [vmem:[%s1 + $0x20] sm:$0xff]
      %v246 = vld [vmem:[%s1 + $0x28] sm:$0xff]
      %v247 = vld [vmem:[%s1 + $0x30] sm:$0xff]
      %v248 = vld [vmem:[%s1 + $0x38] sm:$0xff]
      %v249 = vld [vmem:[%s1 + $0x40] sm:$0xff]
      %v250 = vld [vmem:[%s1 + $0x48] sm:$0xff]
      %v251 = vld [vmem:[%s1 + $0x50] sm:$0xff]
      %v252 = vld [vmem:[%s1 + $0x58] sm:$0xff]
      %v253 = vld [vmem:[%s1 + $0x60] sm:$0xff]
      %v254 = vld [vmem:[%s1 + $0x68] sm:$0xff]
      %v255 = vld [vmem:[%s1 + $0x70] sm:$0xff]
      %v256 = vld [vmem:[%s1 + $0x78] sm:$0xff]
      %v257 = vld [vmem:[%s1 + $0x80] sm:$0xff]
      %v258 = vld [vmem:[%s1 + $0x88] sm:$0xff]
      %v259 = vld [vmem:[%s1 + $0x90] sm:$0xff]
      %v260 = vld [vmem:[%s1 + $0x98] sm:$0xff]
      %v261 = vld [vmem:[%s1 + $0xa0] sm:$0xff]
      %v262 = vld [vmem:[%s1 + $0xa8] sm:$0xff]
      %v263 = vld [vmem:[%s1 + $0xb0] sm:$0xff]
      %v264 = vld [vmem:[%s1 + $0xb8] sm:$0xff]
      %v265 = vld [vmem:[%s1 + $0xc0] sm:$0xff]
      %v266 = vld [vmem:[%s1 + $0xc8] sm:$0xff]
      %v267 = vld [vmem:[%s1 + $0xd0] sm:$0xff]
      %v268 = vld [vmem:[%s1 + $0xd8] sm:$0xff]
      %v269 = vld [vmem:[%s1 + $0xe0] sm:$0xff]
      %v270 = vld [vmem:[%s1 + $0xe8] sm:$0xff]
      %v271 = vld [vmem:[%s1 + $0xf0] sm:$0xff]
      %v272 = vld [vmem:[%s1 + $0xf8] sm:$0xff]
      %v273 = vld [vmem:[%s2] sm:$0xff]
      %v274 = vld [vmem:[%s2 + $0x8] sm:$0xff]
      %v275 = vld [vmem:[%s2 + $0x10] sm:$0xff]
      %v276 = vld [vmem:[%s2 + $0x18] sm:$0xff]
      %v277 = vld [vmem:[%s2 + $0x20] sm:$0xff]
      %v278 = vld [vmem:[%s2 + $0x28] sm:$0xff]
      %v279 = vld [vmem:[%s2 + $0x30] sm:$0xff]
      %v280 = vld [vmem:[%s2 + $0x38] sm:$0xff]
      %v281 = vld [vmem:[%s2 + $0x40] sm:$0xff]
      %v282 = vld [vmem:[%s2 + $0x48] sm:$0xff]
      %v283 = vld [vmem:[%s2 + $0x50] sm:$0xff]
      %v284 = vld [vmem:[%s2 + $0x58] sm:$0xff]
      %v285 = vld [vmem:[%s2 + $0x60] sm:$0xff]
      %v286 = vld [vmem:[%s2 + $0x68] sm:$0xff]
      %v287 = vld [vmem:[%s2 + $0x70] sm:$0xff]
      %v288 = vld [vmem:[%s2 + $0x78] sm:$0xff]
      %v289 = vld [vmem:[%s2 + $0x80] sm:$0xff]
      %v290 = vld [vmem:[%s2 + $0x88] sm:$0xff]
      %v291 = vld [vmem:[%s2 + $0x90] sm:$0xff]
      %v292 = vld [vmem:[%s2 + $0x98] sm:$0xff]
      %v293 = vld [vmem:[%s2 + $0xa0] sm:$0xff]
      %v294 = vld [vmem:[%s2 + $0xa8] sm:$0xff]
      %v295 = vld [vmem:[%s2 + $0xb0] sm:$0xff]
      %v296 = vld [vmem:[%s2 + $0xb8] sm:$0xff]
      %v297 = vld [vmem:[%s2 + $0xc0] sm:$0xff]
      %v298 = vld [vmem:[%s2 + $0xc8] sm:$0xff]
      %v299 = vld [vmem:[%s2 + $0xd0] sm:$0xff]
      %v300 = vld [vmem:[%s2 + $0xd8] sm:$0xff]
      %v301 = vld [vmem:[%s2 + $0xe0] sm:$0xff]
      %v302 = vld [vmem:[%s2 + $0xe8] sm:$0xff]
      %v303 = vld [vmem:[%s2 + $0xf0] sm:$0xff]
      %v304 = vld [vmem:[%s2 + $0xf8] sm:$0xff]
      %v305 = vld [vmem:[%s224] sm:$0xfe]
      %v306 = vld [vmem:[%s224 + $0x8] sm:$0xfe]
      %v307 = vld [vmem:[%s224 + $0x10] sm:$0x1]
      %v308 = vld [vmem:[%s224 + $0x18] sm:$0x1]
      %v309 = vld [vmem:[%s224 + $0x20] sm:$0xfe]
      %v310 = vld [vmem:[%s224 + $0x28] sm:$0xfe]
      %v311 = vld [vmem:[%s224 + $0x30] sm:$0x1]
      %v312 = vld [vmem:[%s224 + $0x38] sm:$0x1]
      %v313 = vld [vmem:[%s224 + $0x40] sm:$0xfe]
      %v314 = vld [vmem:[%s224 + $0x48] sm:$0xfe]
      %v315 = vld [vmem:[%s224 + $0x50] sm:$0x1]
      %v316 = vld [vmem:[%s224 + $0x58] sm:$0x1]
      %v317 = vld [vmem:[%s224 + $0x60] sm:$0xfe]
      %v318 = vld [vmem:[%s224 + $0x68] sm:$0xfe]
      %v319 = vld [vmem:[%s224 + $0x70] sm:$0x1]
      %v320 = vld [vmem:[%s224 + $0x78] sm:$0x1]
      %v321 = vld [vmem:[%s224 + $0x80] sm:$0xfe]
      %v322 = vld [vmem:[%s224 + $0x88] sm:$0xfe]
      %v323 = vld [vmem:[%s224 + $0x90] sm:$0x1]
      %v324 = vld [vmem:[%s224 + $0x98] sm:$0x1]
      %v325 = vld [vmem:[%s224 + $0xa0] sm:$0xfe]
      %v326 = vld [vmem:[%s224 + $0xa8] sm:$0xfe]
      %v327 = vld [vmem:[%s224 + $0xb0] sm:$0x1]
      %v328 = vld [vmem:[%s224 + $0xb8] sm:$0x1]
      %v329 = vld [vmem:[%s224 + $0xc0] sm:$0xfe]
      %v330 = vld [vmem:[%s224 + $0xc8] sm:$0xfe]
      %v331 = vld [vmem:[%s224 + $0xd0] sm:$0x1]
      %v332 = vld [vmem:[%s224 + $0xd8] sm:$0x1]
      %v333 = vld [vmem:[%s224 + $0xe0] sm:$0xfe]
      %v334 = vld [vmem:[%s224 + $0xe8] sm:$0xfe]
      %v335 = vld [vmem:[%s224 + $0xf0] sm:$0x1]
      %v336 = vld [vmem:[%s224 + $0xf8] sm:$0x1]
      %vm369 = vcmask 1046528
      %v370 = vrot.slane %v305, 1
      %v371 = vrot.slane %v307, 1
      %v372 = vsel %vm369, %v370, %v371
      %v373 = vrot.slane %v306, 1
      %v374 = vrot.slane %v308, 1
      %v375 = vsel %vm369, %v373, %v374
      %v376 = vrot.slane %v309, 1
      %v377 = vrot.slane %v311, 1
      %v378 = vsel %vm369, %v376, %v377
      %v379 = vrot.slane %v310, 1
      %v380 = vrot.slane %v312, 1
      %v381 = vsel %vm369, %v379, %v380
      %v382 = vrot.slane %v313, 1
      %v383 = vrot.slane %v315, 1
      %v384 = vsel %vm369, %v382, %v383
      %v385 = vrot.slane %v314, 1
      %v386 = vrot.slane %v316, 1
      %v387 = vsel %vm369, %v385, %v386
      %v388 = vrot.slane %v317, 1
      %v389 = vrot.slane %v319, 1
      %v390 = vsel %vm369, %v388, %v389
      %v391 = vrot.slane %v318, 1
      %v392 = vrot.slane %v320, 1
      %v393 = vsel %vm369, %v391, %v392
      %v394 = vrot.slane %v321, 1
      %v395 = vrot.slane %v323, 1
      %v396 = vsel %vm369, %v394, %v395
      %v397 = vrot.slane %v322, 1
      %v398 = vrot.slane %v324, 1
      %v399 = vsel %vm369, %v397, %v398
      %v400 = vrot.slane %v325, 1
      %v401 = vrot.slane %v327, 1
      %v402 = vsel %vm369, %v400, %v401
      %v403 = vrot.slane %v326, 1
      %v404 = vrot.slane %v328, 1
      %v405 = vsel %vm369, %v403, %v404
      %v406 = vrot.slane %v329, 1
      %v407 = vrot.slane %v331, 1
      %v408 = vsel %vm369, %v406, %v407
      %v409 = vrot.slane %v330, 1
      %v410 = vrot.slane %v332, 1
      %v411 = vsel %vm369, %v409, %v410
      %v412 = vrot.slane %v333, 1
      %v413 = vrot.slane %v335, 1
      %v414 = vsel %vm369, %v412, %v413
      %v415 = vrot.slane %v334, 1
      %v416 = vrot.slane %v336, 1
      %v417 = vsel %vm369, %v415, %v416
      %s434 = scalar_lea.vmem %s1, 256
      %v435 = vld [vmem:[%s434] sm:$0xff]
      %v436 = vld [vmem:[%s434 + $0x8] sm:$0xff]
      %v437 = vld [vmem:[%s434 + $0x10] sm:$0xff]
      %v438 = vld [vmem:[%s434 + $0x18] sm:$0xff]
      %v439 = vld [vmem:[%s434 + $0x20] sm:$0xff]
      %v440 = vld [vmem:[%s434 + $0x28] sm:$0xff]
      %v441 = vld [vmem:[%s434 + $0x30] sm:$0xff]
      %v442 = vld [vmem:[%s434 + $0x38] sm:$0xff]
      %v443 = vld [vmem:[%s434 + $0x40] sm:$0xff]
      %v444 = vld [vmem:[%s434 + $0x48] sm:$0xff]
      %v445 = vld [vmem:[%s434 + $0x50] sm:$0xff]
      %v446 = vld [vmem:[%s434 + $0x58] sm:$0xff]
      %v447 = vld [vmem:[%s434 + $0x60] sm:$0xff]
      %v448 = vld [vmem:[%s434 + $0x68] sm:$0xff]
      %v449 = vld [vmem:[%s434 + $0x70] sm:$0xff]
      %v450 = vld [vmem:[%s434 + $0x78] sm:$0xff]
      %v451 = vld [vmem:[%s434 + $0x80] sm:$0xff]
      %v452 = vld [vmem:[%s434 + $0x88] sm:$0xff]
      %v453 = vld [vmem:[%s434 + $0x90] sm:$0xff]
      %v454 = vld [vmem:[%s434 + $0x98] sm:$0xff]
      %v455 = vld [vmem:[%s434 + $0xa0] sm:$0xff]
      %v456 = vld [vmem:[%s434 + $0xa8] sm:$0xff]
      %v457 = vld [vmem:[%s434 + $0xb0] sm:$0xff]
      %v458 = vld [vmem:[%s434 + $0xb8] sm:$0xff]
      %v459 = vld [vmem:[%s434 + $0xc0] sm:$0xff]
      %v460 = vld [vmem:[%s434 + $0xc8] sm:$0xff]
      %v461 = vld [vmem:[%s434 + $0xd0] sm:$0xff]
      %v462 = vld [vmem:[%s434 + $0xd8] sm:$0xff]
      %v463 = vld [vmem:[%s434 + $0xe0] sm:$0xff]
      %v464 = vld [vmem:[%s434 + $0xe8] sm:$0xff]
      %v465 = vld [vmem:[%s434 + $0xf0] sm:$0xff]
      %v466 = vld [vmem:[%s434 + $0xf8] sm:$0xff]
      %467 = vmatprep.subr.mxu0 0.0
      %468 = vmatpush1.msra.mxu0 %v435
      %469 = vmatprep.subr.mxu0 0.0
      %470 = vmatpush1.msra.mxu0 %v436
      %471 = vmatprep.subr.mxu0 0.0
      %472 = vmatpush1.msra.mxu0 %v437
      %473 = vmatprep.subr.mxu0 0.0
      %474 = vmatpush1.msra.mxu0 %v438
      %475 = vmatprep.subr.mxu0 0.0
      %476 = vmatpush1.msra.mxu0 %v439
      %477 = vmatprep.subr.mxu0 0.0
      %478 = vmatpush1.msra.mxu0 %v440
      %479 = vmatprep.subr.mxu0 0.0
      %480 = vmatpush1.msra.mxu0 %v441
      %481 = vmatprep.subr.mxu0 0.0
      %482 = vmatpush1.msra.mxu0 %v442
      %483 = vmatprep.subr.mxu0 0.0
      %484 = vmatpush1.msra.mxu0 %v443
      %485 = vmatprep.subr.mxu0 0.0
      %486 = vmatpush1.msra.mxu0 %v444
      %487 = vmatprep.subr.mxu0 0.0
      %488 = vmatpush1.msra.mxu0 %v445
      %489 = vmatprep.subr.mxu0 0.0
      %490 = vmatpush1.msra.mxu0 %v446
      %491 = vmatprep.subr.mxu0 0.0
      %492 = vmatpush1.msra.mxu0 %v447
      %493 = vmatprep.subr.mxu0 0.0
      %494 = vmatpush1.msra.mxu0 %v448
      %495 = vmatprep.subr.mxu0 0.0
      %496 = vmatpush1.msra.mxu0 %v449
      %497 = vmatprep.subr.mxu0 0.0
      %498 = vmatpush1.msra.mxu0 %v450
      %499 = vmatprep.subr.mxu0 0.0
      %500 = vmatpush1.msra.mxu0 %v451
      %501 = vmatprep.subr.mxu0 0.0
      %502 = vmatpush1.msra.mxu0 %v452
      %503 = vmatprep.subr.mxu0 0.0
      %504 = vmatpush1.msra.mxu0 %v453
      %505 = vmatprep.subr.mxu0 0.0
      %506 = vmatpush1.msra.mxu0 %v454
      %507 = vmatprep.subr.mxu0 0.0
      %508 = vmatpush1.msra.mxu0 %v455
      %509 = vmatprep.subr.mxu0 0.0
      %510 = vmatpush1.msra.mxu0 %v456
      %511 = vmatprep.subr.mxu0 0.0
      %512 = vmatpush1.msra.mxu0 %v457
      %513 = vmatprep.subr.mxu0 0.0
      %514 = vmatpush1.msra.mxu0 %v458
      %515 = vmatprep.subr.mxu0 0.0
      %516 = vmatpush1.msra.mxu0 %v459
      %517 = vmatprep.subr.mxu0 0.0
      %518 = vmatpush1.msra.mxu0 %v460
      %519 = vmatprep.subr.mxu0 0.0
      %520 = vmatpush1.msra.mxu0 %v461
      %521 = vmatprep.subr.mxu0 0.0
      %522 = vmatpush1.msra.mxu0 %v462
      %523 = vmatprep.subr.mxu0 0.0
      %524 = vmatpush1.msra.mxu0 %v463
      %525 = vmatprep.subr.mxu0 0.0
      %526 = vmatpush1.msra.mxu0 %v464
      %527 = vmatprep.subr.mxu0 0.0
      %528 = vmatpush1.msra.mxu0 %v465
      %529 = vmatprep.subr.mxu0 0.0
      %530 = vmatpush1.msra.mxu0 %v466
      %531 = vmatprep.mubr.f32.mxu0 %v375
      %532 = vmatmul.mubr.f32.gmra.mrb[0].mxu0 %v372
      %v533 = vpop.f32.mrb[0].mxu0
      %v534 = vadd.f32 0.0, %v533
      %v535 = vpop.f32.mrb[0].mxu0
      %536 = vmatprep.mubr.f32.mxu0 %v381
      %537 = vmatmul.mubr.f32.gmra.mrb[0].mxu0 %v378
      %v538 = vpop.f32.mrb[0].mxu0
      %v539 = vadd.f32 0.0, %v538
      %v540 = vpop.f32.mrb[0].mxu0
      %541 = vmatprep.mubr.f32.mxu0 %v387
      %542 = vmatmul.mubr.f32.gmra.mrb[0].mxu0 %v384
      %v543 = vpop.f32.mrb[0].mxu0
      %v544 = vadd.f32 0.0, %v543
      %v545 = vpop.f32.mrb[0].mxu0
      %546 = vmatprep.mubr.f32.mxu0 %v393
      %547 = vmatmul.mubr.f32.gmra.mrb[0].mxu0 %v390
      %v548 = vpop.f32.mrb[0].mxu0
      %v549 = vadd.f32 0.0, %v548
      %v550 = vpop.f32.mrb[0].mxu0
      %551 = vmatprep.mubr.f32.mxu0 %v399
      %552 = vmatmul.mubr.f32.gmra.mrb[0].mxu0 %v396
      %v553 = vpop.f32.mrb[0].mxu0
      %v554 = vadd.f32 0.0, %v553
      %v555 = vpop.f32.mrb[0].mxu0
      %556 = vmatprep.mubr.f32.mxu0 %v405
      %557 = vmatmul.mubr.f32.gmra.mrb[0].mxu0 %v402
      %v558 = vpop.f32.mrb[0].mxu0
      %v559 = vadd.f32 0.0, %v558
      %v560 = vpop.f32.mrb[0].mxu0
      %561 = vmatprep.mubr.f32.mxu0 %v411
      %562 = vmatmul.mubr.f32.gmra.mrb[0].mxu0 %v408
      %v563 = vpop.f32.mrb[0].mxu0
      %v564 = vadd.f32 0.0, %v563
      %v565 = vpop.f32.mrb[0].mxu0
      %566 = vmatprep.mubr.f32.mxu0 %v417
      %567 = vmatmul.mubr.f32.gmra.mrb[0].mxu0 %v414
      %v568 = vpop.f32.mrb[0].mxu0
      %v569 = vadd.f32 0.0, %v568
      %v570 = vpop.f32.mrb[0].mxu0
      %571 = vdwg.mxu0
      %572 = vmatprep.subr.mxu0 0.0
      %573 = vmatpush1.msra.mxu0 %v241
      %574 = vmatprep.subr.mxu0 0.0
      %575 = vmatpush1.msra.mxu0 %v242
      %576 = vmatprep.subr.mxu0 0.0
      %577 = vmatpush1.msra.mxu0 %v243
      %578 = vmatprep.subr.mxu0 0.0
      %579 = vmatpush1.msra.mxu0 %v244
      %580 = vmatprep.subr.mxu0 0.0
      %581 = vmatpush1.msra.mxu0 %v245
      %582 = vmatprep.subr.mxu0 0.0
      %583 = vmatpush1.msra.mxu0 %v246
      %584 = vmatprep.subr.mxu0 0.0
      %585 = vmatpush1.msra.mxu0 %v247
      %586 = vmatprep.subr.mxu0 0.0
      %587 = vmatpush1.msra.mxu0 %v248
      %588 = vmatprep.subr.mxu0 0.0
      %589 = vmatpush1.msra.mxu0 %v249
      %590 = vmatprep.subr.mxu0 0.0
      %591 = vmatpush1.msra.mxu0 %v250
      %592 = vmatprep.subr.mxu0 0.0
      %593 = vmatpush1.msra.mxu0 %v251
      %594 = vmatprep.subr.mxu0 0.0
      %595 = vmatpush1.msra.mxu0 %v252
      %596 = vmatprep.subr.mxu0 0.0
      %597 = vmatpush1.msra.mxu0 %v253
      %598 = vmatprep.subr.mxu0 0.0
      %599 = vmatpush1.msra.mxu0 %v254
      %600 = vmatprep.subr.mxu0 0.0
      %601 = vmatpush1.msra.mxu0 %v255
      %602 = vmatprep.subr.mxu0 0.0
      %603 = vmatpush1.msra.mxu0 %v256
      %604 = vmatprep.subr.mxu0 0.0
      %605 = vmatpush1.msra.mxu0 %v257
      %606 = vmatprep.subr.mxu0 0.0
      %607 = vmatpush1.msra.mxu0 %v258
      %608 = vmatprep.subr.mxu0 0.0
      %609 = vmatpush1.msra.mxu0 %v259
      %610 = vmatprep.subr.mxu0 0.0
      %611 = vmatpush1.msra.mxu0 %v260
      %612 = vmatprep.subr.mxu0 0.0
      %613 = vmatpush1.msra.mxu0 %v261
      %614 = vmatprep.subr.mxu0 0.0
      %615 = vmatpush1.msra.mxu0 %v262
      %616 = vmatprep.subr.mxu0 0.0
      %617 = vmatpush1.msra.mxu0 %v263
      %618 = vmatprep.subr.mxu0 0.0
      %619 = vmatpush1.msra.mxu0 %v264
      %620 = vmatprep.subr.mxu0 0.0
      %621 = vmatpush1.msra.mxu0 %v265
      %622 = vmatprep.subr.mxu0 0.0
      %623 = vmatpush1.msra.mxu0 %v266
      %624 = vmatprep.subr.mxu0 0.0
      %625 = vmatpush1.msra.mxu0 %v267
      %626 = vmatprep.subr.mxu0 0.0
      %627 = vmatpush1.msra.mxu0 %v268
      %628 = vmatprep.subr.mxu0 0.0
      %629 = vmatpush1.msra.mxu0 %v269
      %630 = vmatprep.subr.mxu0 0.0
      %631 = vmatpush1.msra.mxu0 %v270
      %632 = vmatprep.subr.mxu0 0.0
      %633 = vmatpush1.msra.mxu0 %v271
      %634 = vmatprep.subr.mxu0 0.0
      %635 = vmatpush1.msra.mxu0 %v272
      %636 = vmatprep.mubr.f32.mxu0 %v226
      %637 = vmatmul.mubr.f32.gmra.mrb[0].mxu0 %v225
      %v638 = vpop.f32.mrb[0].mxu0
      %v639 = vadd.f32 %v534, %v638
      %v640 = vpop.f32.mrb[0].mxu0
      %641 = vmatprep.mubr.f32.mxu0 %v228
      %642 = vmatmul.mubr.f32.gmra.mrb[0].mxu0 %v227
      %v643 = vpop.f32.mrb[0].mxu0
      %v644 = vadd.f32 %v539, %v643
      %v645 = vpop.f32.mrb[0].mxu0
      %646 = vmatprep.mubr.f32.mxu0 %v230
      %647 = vmatmul.mubr.f32.gmra.mrb[0].mxu0 %v229
      %v648 = vpop.f32.mrb[0].mxu0
      %v649 = vadd.f32 %v544, %v648
      %v650 = vpop.f32.mrb[0].mxu0
      %651 = vmatprep.mubr.f32.mxu0 %v232
      %652 = vmatmul.mubr.f32.gmra.mrb[0].mxu0 %v231
      %v653 = vpop.f32.mrb[0].mxu0
      %v654 = vadd.f32 %v549, %v653
      %v655 = vpop.f32.mrb[0].mxu0
      %656 = vmatprep.mubr.f32.mxu0 %v234
      %657 = vmatmul.mubr.f32.gmra.mrb[0].mxu0 %v233
      %v658 = vpop.f32.mrb[0].mxu0
      %v659 = vadd.f32 %v554, %v658
      %v660 = vpop.f32.mrb[0].mxu0
      %661 = vmatprep.mubr.f32.mxu0 %v236
      %662 = vmatmul.mubr.f32.gmra.mrb[0].mxu0 %v235
      %v663 = vpop.f32.mrb[0].mxu0
      %v664 = vadd.f32 %v559, %v663
      %v665 = vpop.f32.mrb[0].mxu0
      %666 = vmatprep.mubr.f32.mxu0 %v238
      %667 = vmatmul.mubr.f32.gmra.mrb[0].mxu0 %v237
      %v668 = vpop.f32.mrb[0].mxu0
      %v669 = vadd.f32 %v564, %v668
      %v670 = vpop.f32.mrb[0].mxu0
      %671 = vmatprep.mubr.f32.mxu0 %v240
      %672 = vmatmul.mubr.f32.gmra.mrb[0].mxu0 %v239
      %v673 = vpop.f32.mrb[0].mxu0
      %v674 = vadd.f32 %v569, %v673
      %v675 = vpop.f32.mrb[0].mxu0
      %676 = vdwg.mxu0
      %s677 = scalar_lea.vmem %s2, 256
      %v678 = vld [vmem:[%s677] sm:$0xff]
      %v679 = vld [vmem:[%s677 + $0x8] sm:$0xff]
      %v680 = vld [vmem:[%s677 + $0x10] sm:$0xff]
      %v681 = vld [vmem:[%s677 + $0x18] sm:$0xff]
      %v682 = vld [vmem:[%s677 + $0x20] sm:$0xff]
      %v683 = vld [vmem:[%s677 + $0x28] sm:$0xff]
      %v684 = vld [vmem:[%s677 + $0x30] sm:$0xff]
      %v685 = vld [vmem:[%s677 + $0x38] sm:$0xff]
      %v686 = vld [vmem:[%s677 + $0x40] sm:$0xff]
      %v687 = vld [vmem:[%s677 + $0x48] sm:$0xff]
      %v688 = vld [vmem:[%s677 + $0x50] sm:$0xff]
      %v689 = vld [vmem:[%s677 + $0x58] sm:$0xff]
      %v690 = vld [vmem:[%s677 + $0x60] sm:$0xff]
      %v691 = vld [vmem:[%s677 + $0x68] sm:$0xff]
      %v692 = vld [vmem:[%s677 + $0x70] sm:$0xff]
      %v693 = vld [vmem:[%s677 + $0x78] sm:$0xff]
      %v694 = vld [vmem:[%s677 + $0x80] sm:$0xff]
      %v695 = vld [vmem:[%s677 + $0x88] sm:$0xff]
      %v696 = vld [vmem:[%s677 + $0x90] sm:$0xff]
      %v697 = vld [vmem:[%s677 + $0x98] sm:$0xff]
      %v698 = vld [vmem:[%s677 + $0xa0] sm:$0xff]
      %v699 = vld [vmem:[%s677 + $0xa8] sm:$0xff]
      %v700 = vld [vmem:[%s677 + $0xb0] sm:$0xff]
      %v701 = vld [vmem:[%s677 + $0xb8] sm:$0xff]
      %v702 = vld [vmem:[%s677 + $0xc0] sm:$0xff]
      %v703 = vld [vmem:[%s677 + $0xc8] sm:$0xff]
      %v704 = vld [vmem:[%s677 + $0xd0] sm:$0xff]
      %v705 = vld [vmem:[%s677 + $0xd8] sm:$0xff]
      %v706 = vld [vmem:[%s677 + $0xe0] sm:$0xff]
      %v707 = vld [vmem:[%s677 + $0xe8] sm:$0xff]
      %v708 = vld [vmem:[%s677 + $0xf0] sm:$0xff]
      %v709 = vld [vmem:[%s677 + $0xf8] sm:$0xff]
      %710 = vmatprep.subr.mxu0 0.0
      %711 = vmatpush1.msra.mxu0 %v678
      %712 = vmatprep.subr.mxu0 0.0
      %713 = vmatpush1.msra.mxu0 %v679
      %714 = vmatprep.subr.mxu0 0.0
      %715 = vmatpush1.msra.mxu0 %v680
      %716 = vmatprep.subr.mxu0 0.0
      %717 = vmatpush1.msra.mxu0 %v681
      %718 = vmatprep.subr.mxu0 0.0
      %719 = vmatpush1.msra.mxu0 %v682
      %720 = vmatprep.subr.mxu0 0.0
      %721 = vmatpush1.msra.mxu0 %v683
      %722 = vmatprep.subr.mxu0 0.0
      %723 = vmatpush1.msra.mxu0 %v684
      %724 = vmatprep.subr.mxu0 0.0
      %725 = vmatpush1.msra.mxu0 %v685
      %726 = vmatprep.subr.mxu0 0.0
      %727 = vmatpush1.msra.mxu0 %v686
      %728 = vmatprep.subr.mxu0 0.0
      %729 = vmatpush1.msra.mxu0 %v687
      %730 = vmatprep.subr.mxu0 0.0
      %731 = vmatpush1.msra.mxu0 %v688
      %732 = vmatprep.subr.mxu0 0.0
      %733 = vmatpush1.msra.mxu0 %v689
      %734 = vmatprep.subr.mxu0 0.0
      %735 = vmatpush1.msra.mxu0 %v690
      %736 = vmatprep.subr.mxu0 0.0
      %737 = vmatpush1.msra.mxu0 %v691
      %738 = vmatprep.subr.mxu0 0.0
      %739 = vmatpush1.msra.mxu0 %v692
      %740 = vmatprep.subr.mxu0 0.0
      %741 = vmatpush1.msra.mxu0 %v693
      %742 = vmatprep.subr.mxu0 0.0
      %743 = vmatpush1.msra.mxu0 %v694
      %744 = vmatprep.subr.mxu0 0.0
      %745 = vmatpush1.msra.mxu0 %v695
      %746 = vmatprep.subr.mxu0 0.0
      %747 = vmatpush1.msra.mxu0 %v696
      %748 = vmatprep.subr.mxu0 0.0
      %749 = vmatpush1.msra.mxu0 %v697
      %750 = vmatprep.subr.mxu0 0.0
      %751 = vmatpush1.msra.mxu0 %v698
      %752 = vmatprep.subr.mxu0 0.0
      %753 = vmatpush1.msra.mxu0 %v699
      %754 = vmatprep.subr.mxu0 0.0
      %755 = vmatpush1.msra.mxu0 %v700
      %756 = vmatprep.subr.mxu0 0.0
      %757 = vmatpush1.msra.mxu0 %v701
      %758 = vmatprep.subr.mxu0 0.0
      %759 = vmatpush1.msra.mxu0 %v702
      %760 = vmatprep.subr.mxu0 0.0
      %761 = vmatpush1.msra.mxu0 %v703
      %762 = vmatprep.subr.mxu0 0.0
      %763 = vmatpush1.msra.mxu0 %v704
      %764 = vmatprep.subr.mxu0 0.0
      %765 = vmatpush1.msra.mxu0 %v705
      %766 = vmatprep.subr.mxu0 0.0
      %767 = vmatpush1.msra.mxu0 %v706
      %768 = vmatprep.subr.mxu0 0.0
      %769 = vmatpush1.msra.mxu0 %v707
      %770 = vmatprep.subr.mxu0 0.0
      %771 = vmatpush1.msra.mxu0 %v708
      %772 = vmatprep.subr.mxu0 0.0
      %773 = vmatpush1.msra.mxu0 %v709
      %774 = vmatprep.mubr.f32.mxu0 %v375
      %775 = vmatmul.mubr.f32.gmra.mrb[0].mxu0 %v372
      %v776 = vpop.f32.mrb[0].mxu0
      %v777 = vadd.f32 0.0, %v776
      %v778 = vpop.f32.mrb[0].mxu0
      %779 = vmatprep.mubr.f32.mxu0 %v381
      %780 = vmatmul.mubr.f32.gmra.mrb[0].mxu0 %v378
      %v781 = vpop.f32.mrb[0].mxu0
      %v782 = vadd.f32 0.0, %v781
      %v783 = vpop.f32.mrb[0].mxu0
      %784 = vmatprep.mubr.f32.mxu0 %v387
      %785 = vmatmul.mubr.f32.gmra.mrb[0].mxu0 %v384
      %v786 = vpop.f32.mrb[0].mxu0
      %v787 = vadd.f32 0.0, %v786
      %v788 = vpop.f32.mrb[0].mxu0
      %789 = vmatprep.mubr.f32.mxu0 %v393
      %790 = vmatmul.mubr.f32.gmra.mrb[0].mxu0 %v390
      %v791 = vpop.f32.mrb[0].mxu0
      %v792 = vadd.f32 0.0, %v791
      %v793 = vpop.f32.mrb[0].mxu0
      %794 = vmatprep.mubr.f32.mxu0 %v399
      %795 = vmatmul.mubr.f32.gmra.mrb[0].mxu0 %v396
      %v796 = vpop.f32.mrb[0].mxu0
      %v797 = vadd.f32 0.0, %v796
      %v798 = vpop.f32.mrb[0].mxu0
      %799 = vmatprep.mubr.f32.mxu0 %v405
      %800 = vmatmul.mubr.f32.gmra.mrb[0].mxu0 %v402
      %v801 = vpop.f32.mrb[0].mxu0
      %v802 = vadd.f32 0.0, %v801
      %v803 = vpop.f32.mrb[0].mxu0
      %804 = vmatprep.mubr.f32.mxu0 %v411
      %805 = vmatmul.mubr.f32.gmra.mrb[0].mxu0 %v408
      %v806 = vpop.f32.mrb[0].mxu0
      %v807 = vadd.f32 0.0, %v806
      %v808 = vpop.f32.mrb[0].mxu0
      %809 = vmatprep.mubr.f32.mxu0 %v417
      %810 = vmatmul.mubr.f32.gmra.mrb[0].mxu0 %v414
      %v811 = vpop.f32.mrb[0].mxu0
      %v812 = vadd.f32 0.0, %v811
      %v813 = vpop.f32.mrb[0].mxu0
      %814 = vdwg.mxu0
      %815 = vmatprep.subr.mxu0 0.0
      %816 = vmatpush1.msra.mxu0 %v273
      %817 = vmatprep.subr.mxu0 0.0
      %818 = vmatpush1.msra.mxu0 %v274
      %819 = vmatprep.subr.mxu0 0.0
      %820 = vmatpush1.msra.mxu0 %v275
      %821 = vmatprep.subr.mxu0 0.0
      %822 = vmatpush1.msra.mxu0 %v276
      %823 = vmatprep.subr.mxu0 0.0
      %824 = vmatpush1.msra.mxu0 %v277
      %825 = vmatprep.subr.mxu0 0.0
      %826 = vmatpush1.msra.mxu0 %v278
      %827 = vmatprep.subr.mxu0 0.0
      %828 = vmatpush1.msra.mxu0 %v279
      %829 = vmatprep.subr.mxu0 0.0
      %830 = vmatpush1.msra.mxu0 %v280
      %831 = vmatprep.subr.mxu0 0.0
      %832 = vmatpush1.msra.mxu0 %v281
      %833 = vmatprep.subr.mxu0 0.0
      %834 = vmatpush1.msra.mxu0 %v282
      %835 = vmatprep.subr.mxu0 0.0
      %836 = vmatpush1.msra.mxu0 %v283
      %837 = vmatprep.subr.mxu0 0.0
      %838 = vmatpush1.msra.mxu0 %v284
      %839 = vmatprep.subr.mxu0 0.0
      %840 = vmatpush1.msra.mxu0 %v285
      %841 = vmatprep.subr.mxu0 0.0
      %842 = vmatpush1.msra.mxu0 %v286
      %843 = vmatprep.subr.mxu0 0.0
      %844 = vmatpush1.msra.mxu0 %v287
      %845 = vmatprep.subr.mxu0 0.0
      %846 = vmatpush1.msra.mxu0 %v288
      %847 = vmatprep.subr.mxu0 0.0
      %848 = vmatpush1.msra.mxu0 %v289
      %849 = vmatprep.subr.mxu0 0.0
      %850 = vmatpush1.msra.mxu0 %v290
      %851 = vmatprep.subr.mxu0 0.0
      %852 = vmatpush1.msra.mxu0 %v291
      %853 = vmatprep.subr.mxu0 0.0
      %854 = vmatpush1.msra.mxu0 %v292
      %855 = vmatprep.subr.mxu0 0.0
      %856 = vmatpush1.msra.mxu0 %v293
      %857 = vmatprep.subr.mxu0 0.0
      %858 = vmatpush1.msra.mxu0 %v294
      %859 = vmatprep.subr.mxu0 0.0
      %860 = vmatpush1.msra.mxu0 %v295
      %861 = vmatprep.subr.mxu0 0.0
      %862 = vmatpush1.msra.mxu0 %v296
      %863 = vmatprep.subr.mxu0 0.0
      %864 = vmatpush1.msra.mxu0 %v297
      %865 = vmatprep.subr.mxu0 0.0
      %866 = vmatpush1.msra.mxu0 %v298
      %867 = vmatprep.subr.mxu0 0.0
      %868 = vmatpush1.msra.mxu0 %v299
      %869 = vmatprep.subr.mxu0 0.0
      %870 = vmatpush1.msra.mxu0 %v300
      %871 = vmatprep.subr.mxu0 0.0
      %872 = vmatpush1.msra.mxu0 %v301
      %873 = vmatprep.subr.mxu0 0.0
      %874 = vmatpush1.msra.mxu0 %v302
      %875 = vmatprep.subr.mxu0 0.0
      %876 = vmatpush1.msra.mxu0 %v303
      %877 = vmatprep.subr.mxu0 0.0
      %878 = vmatpush1.msra.mxu0 %v304
      %879 = vmatprep.mubr.f32.mxu0 %v226
      %880 = vmatmul.mubr.f32.gmra.mrb[0].mxu0 %v225
      %v881 = vpop.f32.mrb[0].mxu0
      %v882 = vadd.f32 %v777, %v881
      %v883 = vpop.f32.mrb[0].mxu0
      %884 = vmatprep.mubr.f32.mxu0 %v228
      %885 = vmatmul.mubr.f32.gmra.mrb[0].mxu0 %v227
      %v886 = vpop.f32.mrb[0].mxu0
      %v887 = vadd.f32 %v782, %v886
      %v888 = vpop.f32.mrb[0].mxu0
      %889 = vmatprep.mubr.f32.mxu0 %v230
      %890 = vmatmul.mubr.f32.gmra.mrb[0].mxu0 %v229
      %v891 = vpop.f32.mrb[0].mxu0
      %v892 = vadd.f32 %v787, %v891
      %v893 = vpop.f32.mrb[0].mxu0
      %894 = vmatprep.mubr.f32.mxu0 %v232
      %895 = vmatmul.mubr.f32.gmra.mrb[0].mxu0 %v231
      %v896 = vpop.f32.mrb[0].mxu0
      %v897 = vadd.f32 %v792, %v896
      %v898 = vpop.f32.mrb[0].mxu0
      %899 = vmatprep.mubr.f32.mxu0 %v234
      %900 = vmatmul.mubr.f32.gmra.mrb[0].mxu0 %v233
      %v901 = vpop.f32.mrb[0].mxu0
      %v902 = vadd.f32 %v797, %v901
      %v903 = vpop.f32.mrb[0].mxu0
      %904 = vmatprep.mubr.f32.mxu0 %v236
      %905 = vmatmul.mubr.f32.gmra.mrb[0].mxu0 %v235
      %v906 = vpop.f32.mrb[0].mxu0
      %v907 = vadd.f32 %v802, %v906
      %v908 = vpop.f32.mrb[0].mxu0
      %909 = vmatprep.mubr.f32.mxu0 %v238
      %910 = vmatmul.mubr.f32.gmra.mrb[0].mxu0 %v237
      %v911 = vpop.f32.mrb[0].mxu0
      %v912 = vadd.f32 %v807, %v911
      %v913 = vpop.f32.mrb[0].mxu0
      %914 = vmatprep.mubr.f32.mxu0 %v240
      %915 = vmatmul.mubr.f32.gmra.mrb[0].mxu0 %v239
      %v916 = vpop.f32.mrb[0].mxu0
      %v917 = vadd.f32 %v812, %v916
      %v918 = vpop.f32.mrb[0].mxu0
      %919 = vdwg.mxu0
      %s920 = sadd.s32 %s221, 1
      %s921 = smul.u32 %s920, 4
      %s922 = smul.addr %s921, 8
      %s923 = scalar_lea.vmem %s210, %s922
      %v924 = vld [vmem:[%s923] sm:$0xff]
      %v925 = vld [vmem:[%s923 + $0x8] sm:$0xff]
      %v926 = vld [vmem:[%s923 + $0x20] sm:$0xff]
      %v927 = vld [vmem:[%s923 + $0x28] sm:$0xff]
      %v928 = vld [vmem:[%s923 + $0x40] sm:$0xff]
      %v929 = vld [vmem:[%s923 + $0x48] sm:$0xff]
      %v930 = vld [vmem:[%s923 + $0x60] sm:$0xff]
      %v931 = vld [vmem:[%s923 + $0x68] sm:$0xff]
      %v932 = vld [vmem:[%s923 + $0x80] sm:$0xff]
      %v933 = vld [vmem:[%s923 + $0x88] sm:$0xff]
      %v934 = vld [vmem:[%s923 + $0xa0] sm:$0xff]
      %v935 = vld [vmem:[%s923 + $0xa8] sm:$0xff]
      %v936 = vld [vmem:[%s923 + $0xc0] sm:$0xff]
      %v937 = vld [vmem:[%s923 + $0xc8] sm:$0xff]
      %v938 = vld [vmem:[%s923 + $0xe0] sm:$0xff]
      %v939 = vld [vmem:[%s923 + $0xe8] sm:$0xff]
      %s940 = scalar_lea.vmem %s1, 512
      %v941 = vld [vmem:[%s940] sm:$0xff]
      %v942 = vld [vmem:[%s940 + $0x8] sm:$0xff]
      %v943 = vld [vmem:[%s940 + $0x10] sm:$0xff]
      %v944 = vld [vmem:[%s940 + $0x18] sm:$0xff]
      %v945 = vld [vmem:[%s940 + $0x20] sm:$0xff]
      %v946 = vld [vmem:[%s940 + $0x28] sm:$0xff]
      %v947 = vld [vmem:[%s940 + $0x30] sm:$0xff]
      %v948 = vld [vmem:[%s940 + $0x38] sm:$0xff]
      %v949 = vld [vmem:[%s940 + $0x40] sm:$0xff]
      %v950 = vld [vmem:[%s940 + $0x48] sm:$0xff]
      %v951 = vld [vmem:[%s940 + $0x50] sm:$0xff]
      %v952 = vld [vmem:[%s940 + $0x58] sm:$0xff]
      %v953 = vld [vmem:[%s940 + $0x60] sm:$0xff]
      %v954 = vld [vmem:[%s940 + $0x68] sm:$0xff]
      %v955 = vld [vmem:[%s940 + $0x70] sm:$0xff]
      %v956 = vld [vmem:[%s940 + $0x78] sm:$0xff]
      %v957 = vld [vmem:[%s940 + $0x80] sm:$0xff]
      %v958 = vld [vmem:[%s940 + $0x88] sm:$0xff]
      %v959 = vld [vmem:[%s940 + $0x90] sm:$0xff]
      %v960 = vld [vmem:[%s940 + $0x98] sm:$0xff]
      %v961 = vld [vmem:[%s940 + $0xa0] sm:$0xff]
      %v962 = vld [vmem:[%s940 + $0xa8] sm:$0xff]
      %v963 = vld [vmem:[%s940 + $0xb0] sm:$0xff]
      %v964 = vld [vmem:[%s940 + $0xb8] sm:$0xff]
      %v965 = vld [vmem:[%s940 + $0xc0] sm:$0xff]
      %v966 = vld [vmem:[%s940 + $0xc8] sm:$0xff]
      %v967 = vld [vmem:[%s940 + $0xd0] sm:$0xff]
      %v968 = vld [vmem:[%s940 + $0xd8] sm:$0xff]
      %v969 = vld [vmem:[%s940 + $0xe0] sm:$0xff]
      %v970 = vld [vmem:[%s940 + $0xe8] sm:$0xff]
      %v971 = vld [vmem:[%s940 + $0xf0] sm:$0xff]
      %v972 = vld [vmem:[%s940 + $0xf8] sm:$0xff]
      %973 = vmatprep.subr.mxu0 0.0
      %974 = vmatpush1.msra.mxu0 %v941
      %975 = vmatprep.subr.mxu0 0.0
      %976 = vmatpush1.msra.mxu0 %v942
      %977 = vmatprep.subr.mxu0 0.0
      %978 = vmatpush1.msra.mxu0 %v943
      %979 = vmatprep.subr.mxu0 0.0
      %980 = vmatpush1.msra.mxu0 %v944
      %981 = vmatprep.subr.mxu0 0.0
      %982 = vmatpush1.msra.mxu0 %v945
      %983 = vmatprep.subr.mxu0 0.0
      %984 = vmatpush1.msra.mxu0 %v946
      %985 = vmatprep.subr.mxu0 0.0
      %986 = vmatpush1.msra.mxu0 %v947
      %987 = vmatprep.subr.mxu0 0.0
      %988 = vmatpush1.msra.mxu0 %v948
      %989 = vmatprep.subr.mxu0 0.0
      %990 = vmatpush1.msra.mxu0 %v949
      %991 = vmatprep.subr.mxu0 0.0
      %992 = vmatpush1.msra.mxu0 %v950
      %993 = vmatprep.subr.mxu0 0.0
      %994 = vmatpush1.msra.mxu0 %v951
      %995 = vmatprep.subr.mxu0 0.0
      %996 = vmatpush1.msra.mxu0 %v952
      %997 = vmatprep.subr.mxu0 0.0
      %998 = vmatpush1.msra.mxu0 %v953
      %999 = vmatprep.subr.mxu0 0.0
      %1000 = vmatpush1.msra.mxu0 %v954
      %1001 = vmatprep.subr.mxu0 0.0
      %1002 = vmatpush1.msra.mxu0 %v955
      %1003 = vmatprep.subr.mxu0 0.0
      %1004 = vmatpush1.msra.mxu0 %v956
      %1005 = vmatprep.subr.mxu0 0.0
      %1006 = vmatpush1.msra.mxu0 %v957
      %1007 = vmatprep.subr.mxu0 0.0
      %1008 = vmatpush1.msra.mxu0 %v958
      %1009 = vmatprep.subr.mxu0 0.0
      %1010 = vmatpush1.msra.mxu0 %v959
      %1011 = vmatprep.subr.mxu0 0.0
      %1012 = vmatpush1.msra.mxu0 %v960
      %1013 = vmatprep.subr.mxu0 0.0
      %1014 = vmatpush1.msra.mxu0 %v961
      %1015 = vmatprep.subr.mxu0 0.0
      %1016 = vmatpush1.msra.mxu0 %v962
      %1017 = vmatprep.subr.mxu0 0.0
      %1018 = vmatpush1.msra.mxu0 %v963
      %1019 = vmatprep.subr.mxu0 0.0
      %1020 = vmatpush1.msra.mxu0 %v964
      %1021 = vmatprep.subr.mxu0 0.0
      %1022 = vmatpush1.msra.mxu0 %v965
      %1023 = vmatprep.subr.mxu0 0.0
      %1024 = vmatpush1.msra.mxu0 %v966
      %1025 = vmatprep.subr.mxu0 0.0
      %1026 = vmatpush1.msra.mxu0 %v967
      %1027 = vmatprep.subr.mxu0 0.0
      %1028 = vmatpush1.msra.mxu0 %v968
      %1029 = vmatprep.subr.mxu0 0.0
      %1030 = vmatpush1.msra.mxu0 %v969
      %1031 = vmatprep.subr.mxu0 0.0
      %1032 = vmatpush1.msra.mxu0 %v970
      %1033 = vmatprep.subr.mxu0 0.0
      %1034 = vmatpush1.msra.mxu0 %v971
      %1035 = vmatprep.subr.mxu0 0.0
      %1036 = vmatpush1.msra.mxu0 %v972
      %1037 = vmatprep.mubr.f32.mxu0 %v925
      %1038 = vmatmul.mubr.f32.gmra.mrb[0].mxu0 %v924
      %v1039 = vpop.f32.mrb[0].mxu0
      %v1040 = vadd.f32 0.0, %v1039
      %v1041 = vpop.f32.mrb[0].mxu0
      %1042 = vmatprep.mubr.f32.mxu0 %v927
      %1043 = vmatmul.mubr.f32.gmra.mrb[0].mxu0 %v926
      %v1044 = vpop.f32.mrb[0].mxu0
      %v1045 = vadd.f32 0.0, %v1044
      %v1046 = vpop.f32.mrb[0].mxu0
      %1047 = vmatprep.mubr.f32.mxu0 %v929
      %1048 = vmatmul.mubr.f32.gmra.mrb[0].mxu0 %v928
      %v1049 = vpop.f32.mrb[0].mxu0
      %v1050 = vadd.f32 0.0, %v1049
      %v1051 = vpop.f32.mrb[0].mxu0
      %1052 = vmatprep.mubr.f32.mxu0 %v931
      %1053 = vmatmul.mubr.f32.gmra.mrb[0].mxu0 %v930
      %v1054 = vpop.f32.mrb[0].mxu0
      %v1055 = vadd.f32 0.0, %v1054
      %v1056 = vpop.f32.mrb[0].mxu0
      %1057 = vmatprep.mubr.f32.mxu0 %v933
      %1058 = vmatmul.mubr.f32.gmra.mrb[0].mxu0 %v932
      %v1059 = vpop.f32.mrb[0].mxu0
      %v1060 = vadd.f32 0.0, %v1059
      %v1061 = vpop.f32.mrb[0].mxu0
      %1062 = vmatprep.mubr.f32.mxu0 %v935
      %1063 = vmatmul.mubr.f32.gmra.mrb[0].mxu0 %v934
      %v1064 = vpop.f32.mrb[0].mxu0
      %v1065 = vadd.f32 0.0, %v1064
      %v1066 = vpop.f32.mrb[0].mxu0
      %1067 = vmatprep.mubr.f32.mxu0 %v937
      %1068 = vmatmul.mubr.f32.gmra.mrb[0].mxu0 %v936
      %v1069 = vpop.f32.mrb[0].mxu0
      %v1070 = vadd.f32 0.0, %v1069
      %v1071 = vpop.f32.mrb[0].mxu0
      %1072 = vmatprep.mubr.f32.mxu0 %v939
      %1073 = vmatmul.mubr.f32.gmra.mrb[0].mxu0 %v938
      %v1074 = vpop.f32.mrb[0].mxu0
      %v1075 = vadd.f32 0.0, %v1074
      %v1076 = vpop.f32.mrb[0].mxu0
      %1077 = vdwg.mxu0
      %v1078 = vadd.f32 %v639, %v1040
      %v1079 = vadd.f32 %v644, %v1045
      %v1080 = vadd.f32 %v649, %v1050
      %v1081 = vadd.f32 %v654, %v1055
      %v1082 = vadd.f32 %v659, %v1060
      %v1083 = vadd.f32 %v664, %v1065
      %v1084 = vadd.f32 %v669, %v1070
      %v1085 = vadd.f32 %v674, %v1075
      %s1086 = scalar_lea.vmem %s2, 512
      %v1087 = vld [vmem:[%s1086] sm:$0xff]
      %v1088 = vld [vmem:[%s1086 + $0x8] sm:$0xff]
      %v1089 = vld [vmem:[%s1086 + $0x10] sm:$0xff]
      %v1090 = vld [vmem:[%s1086 + $0x18] sm:$0xff]
      %v1091 = vld [vmem:[%s1086 + $0x20] sm:$0xff]
      %v1092 = vld [vmem:[%s1086 + $0x28] sm:$0xff]
      %v1093 = vld [vmem:[%s1086 + $0x30] sm:$0xff]
      %v1094 = vld [vmem:[%s1086 + $0x38] sm:$0xff]
      %v1095 = vld [vmem:[%s1086 + $0x40] sm:$0xff]
      %v1096 = vld [vmem:[%s1086 + $0x48] sm:$0xff]
      %v1097 = vld [vmem:[%s1086 + $0x50] sm:$0xff]
      %v1098 = vld [vmem:[%s1086 + $0x58] sm:$0xff]
      %v1099 = vld [vmem:[%s1086 + $0x60] sm:$0xff]
      %v1100 = vld [vmem:[%s1086 + $0x68] sm:$0xff]
      %v1101 = vld [vmem:[%s1086 + $0x70] sm:$0xff]
      %v1102 = vld [vmem:[%s1086 + $0x78] sm:$0xff]
      %v1103 = vld [vmem:[%s1086 + $0x80] sm:$0xff]
      %v1104 = vld [vmem:[%s1086 + $0x88] sm:$0xff]
      %v1105 = vld [vmem:[%s1086 + $0x90] sm:$0xff]
      %v1106 = vld [vmem:[%s1086 + $0x98] sm:$0xff]
      %v1107 = vld [vmem:[%s1086 + $0xa0] sm:$0xff]
      %v1108 = vld [vmem:[%s1086 + $0xa8] sm:$0xff]
      %v1109 = vld [vmem:[%s1086 + $0xb0] sm:$0xff]
      %v1110 = vld [vmem:[%s1086 + $0xb8] sm:$0xff]
      %v1111 = vld [vmem:[%s1086 + $0xc0] sm:$0xff]
      %v1112 = vld [vmem:[%s1086 + $0xc8] sm:$0xff]
      %v1113 = vld [vmem:[%s1086 + $0xd0] sm:$0xff]
      %v1114 = vld [vmem:[%s1086 + $0xd8] sm:$0xff]
      %v1115 = vld [vmem:[%s1086 + $0xe0] sm:$0xff]
      %v1116 = vld [vmem:[%s1086 + $0xe8] sm:$0xff]
      %v1117 = vld [vmem:[%s1086 + $0xf0] sm:$0xff]
      %v1118 = vld [vmem:[%s1086 + $0xf8] sm:$0xff]
      %1119 = vmatprep.subr.mxu0 0.0
      %1120 = vmatpush1.msra.mxu0 %v1087
      %1121 = vmatprep.subr.mxu0 0.0
      %1122 = vmatpush1.msra.mxu0 %v1088
      %1123 = vmatprep.subr.mxu0 0.0
      %1124 = vmatpush1.msra.mxu0 %v1089
      %1125 = vmatprep.subr.mxu0 0.0
      %1126 = vmatpush1.msra.mxu0 %v1090
      %1127 = vmatprep.subr.mxu0 0.0
      %1128 = vmatpush1.msra.mxu0 %v1091
      %1129 = vmatprep.subr.mxu0 0.0
      %1130 = vmatpush1.msra.mxu0 %v1092
      %1131 = vmatprep.subr.mxu0 0.0
      %1132 = vmatpush1.msra.mxu0 %v1093
      %1133 = vmatprep.subr.mxu0 0.0
      %1134 = vmatpush1.msra.mxu0 %v1094
      %1135 = vmatprep.subr.mxu0 0.0
      %1136 = vmatpush1.msra.mxu0 %v1095
      %1137 = vmatprep.subr.mxu0 0.0
      %1138 = vmatpush1.msra.mxu0 %v1096
      %1139 = vmatprep.subr.mxu0 0.0
      %1140 = vmatpush1.msra.mxu0 %v1097
      %1141 = vmatprep.subr.mxu0 0.0
      %1142 = vmatpush1.msra.mxu0 %v1098
      %1143 = vmatprep.subr.mxu0 0.0
      %1144 = vmatpush1.msra.mxu0 %v1099
      %1145 = vmatprep.subr.mxu0 0.0
      %1146 = vmatpush1.msra.mxu0 %v1100
      %1147 = vmatprep.subr.mxu0 0.0
      %1148 = vmatpush1.msra.mxu0 %v1101
      %1149 = vmatprep.subr.mxu0 0.0
      %1150 = vmatpush1.msra.mxu0 %v1102
      %1151 = vmatprep.subr.mxu0 0.0
      %1152 = vmatpush1.msra.mxu0 %v1103
      %1153 = vmatprep.subr.mxu0 0.0
      %1154 = vmatpush1.msra.mxu0 %v1104
      %1155 = vmatprep.subr.mxu0 0.0
      %1156 = vmatpush1.msra.mxu0 %v1105
      %1157 = vmatprep.subr.mxu0 0.0
      %1158 = vmatpush1.msra.mxu0 %v1106
      %1159 = vmatprep.subr.mxu0 0.0
      %1160 = vmatpush1.msra.mxu0 %v1107
      %1161 = vmatprep.subr.mxu0 0.0
      %1162 = vmatpush1.msra.mxu0 %v1108
      %1163 = vmatprep.subr.mxu0 0.0
      %1164 = vmatpush1.msra.mxu0 %v1109
      %1165 = vmatprep.subr.mxu0 0.0
      %1166 = vmatpush1.msra.mxu0 %v1110
      %1167 = vmatprep.subr.mxu0 0.0
      %1168 = vmatpush1.msra.mxu0 %v1111
      %1169 = vmatprep.subr.mxu0 0.0
      %1170 = vmatpush1.msra.mxu0 %v1112
      %1171 = vmatprep.subr.mxu0 0.0
      %1172 = vmatpush1.msra.mxu0 %v1113
      %1173 = vmatprep.subr.mxu0 0.0
      %1174 = vmatpush1.msra.mxu0 %v1114
      %1175 = vmatprep.subr.mxu0 0.0
      %1176 = vmatpush1.msra.mxu0 %v1115
      %1177 = vmatprep.subr.mxu0 0.0
      %1178 = vmatpush1.msra.mxu0 %v1116
      %1179 = vmatprep.subr.mxu0 0.0
      %1180 = vmatpush1.msra.mxu0 %v1117
      %1181 = vmatprep.subr.mxu0 0.0
      %1182 = vmatpush1.msra.mxu0 %v1118
      %1183 = vmatprep.mubr.f32.mxu0 %v925
      %1184 = vmatmul.mubr.f32.gmra.mrb[0].mxu0 %v924
      %v1185 = vpop.f32.mrb[0].mxu0
      %v1186 = vadd.f32 0.0, %v1185
      %v1187 = vpop.f32.mrb[0].mxu0
      %1188 = vmatprep.mubr.f32.mxu0 %v927
      %1189 = vmatmul.mubr.f32.gmra.mrb[0].mxu0 %v926
      %v1190 = vpop.f32.mrb[0].mxu0
      %v1191 = vadd.f32 0.0, %v1190
      %v1192 = vpop.f32.mrb[0].mxu0
      %1193 = vmatprep.mubr.f32.mxu0 %v929
      %1194 = vmatmul.mubr.f32.gmra.mrb[0].mxu0 %v928
      %v1195 = vpop.f32.mrb[0].mxu0
      %v1196 = vadd.f32 0.0, %v1195
      %v1197 = vpop.f32.mrb[0].mxu0
      %1198 = vmatprep.mubr.f32.mxu0 %v931
      %1199 = vmatmul.mubr.f32.gmra.mrb[0].mxu0 %v930
      %v1200 = vpop.f32.mrb[0].mxu0
      %v1201 = vadd.f32 0.0, %v1200
      %v1202 = vpop.f32.mrb[0].mxu0
      %1203 = vmatprep.mubr.f32.mxu0 %v933
      %1204 = vmatmul.mubr.f32.gmra.mrb[0].mxu0 %v932
      %v1205 = vpop.f32.mrb[0].mxu0
      %v1206 = vadd.f32 0.0, %v1205
      %v1207 = vpop.f32.mrb[0].mxu0
      %1208 = vmatprep.mubr.f32.mxu0 %v935
      %1209 = vmatmul.mubr.f32.gmra.mrb[0].mxu0 %v934
      %v1210 = vpop.f32.mrb[0].mxu0
      %v1211 = vadd.f32 0.0, %v1210
      %v1212 = vpop.f32.mrb[0].mxu0
      %1213 = vmatprep.mubr.f32.mxu0 %v937
      %1214 = vmatmul.mubr.f32.gmra.mrb[0].mxu0 %v936
      %v1215 = vpop.f32.mrb[0].mxu0
      %v1216 = vadd.f32 0.0, %v1215
      %v1217 = vpop.f32.mrb[0].mxu0
      %1218 = vmatprep.mubr.f32.mxu0 %v939
      %1219 = vmatmul.mubr.f32.gmra.mrb[0].mxu0 %v938
      %v1220 = vpop.f32.mrb[0].mxu0
      %v1221 = vadd.f32 0.0, %v1220
      %v1222 = vpop.f32.mrb[0].mxu0
      %1223 = vdwg.mxu0
      %v1224 = vadd.f32 %v882, %v1186
      %v1225 = vadd.f32 %v887, %v1191
      %v1226 = vadd.f32 %v892, %v1196
      %v1227 = vadd.f32 %v897, %v1201
      %v1228 = vadd.f32 %v902, %v1206
      %v1229 = vadd.f32 %v907, %v1211
      %v1230 = vadd.f32 %v912, %v1216
      %v1231 = vadd.f32 %v917, %v1221
      %v1232 = vld [vmem:[%s923] sm:$0xfe]
      %v1233 = vld [vmem:[%s923 + $0x8] sm:$0xfe]
      %v1234 = vld [vmem:[%s923 + $0x10] sm:$0x1]
      %v1235 = vld [vmem:[%s923 + $0x18] sm:$0x1]
      %v1236 = vld [vmem:[%s923 + $0x20] sm:$0xfe]
      %v1237 = vld [vmem:[%s923 + $0x28] sm:$0xfe]
      %v1238 = vld [vmem:[%s923 + $0x30] sm:$0x1]
      %v1239 = vld [vmem:[%s923 + $0x38] sm:$0x1]
      %v1240 = vld [vmem:[%s923 + $0x40] sm:$0xfe]
      %v1241 = vld [vmem:[%s923 + $0x48] sm:$0xfe]
      %v1242 = vld [vmem:[%s923 + $0x50] sm:$0x1]
      %v1243 = vld [vmem:[%s923 + $0x58] sm:$0x1]
      %v1244 = vld [vmem:[%s923 + $0x60] sm:$0xfe]
      %v1245 = vld [vmem:[%s923 + $0x68] sm:$0xfe]
      %v1246 = vld [vmem:[%s923 + $0x70] sm:$0x1]
      %v1247 = vld [vmem:[%s923 + $0x78] sm:$0x1]
      %v1248 = vld [vmem:[%s923 + $0x80] sm:$0xfe]
      %v1249 = vld [vmem:[%s923 + $0x88] sm:$0xfe]
      %v1250 = vld [vmem:[%s923 + $0x90] sm:$0x1]
      %v1251 = vld [vmem:[%s923 + $0x98] sm:$0x1]
      %v1252 = vld [vmem:[%s923 + $0xa0] sm:$0xfe]
      %v1253 = vld [vmem:[%s923 + $0xa8] sm:$0xfe]
      %v1254 = vld [vmem:[%s923 + $0xb0] sm:$0x1]
      %v1255 = vld [vmem:[%s923 + $0xb8] sm:$0x1]
      %v1256 = vld [vmem:[%s923 + $0xc0] sm:$0xfe]
      %v1257 = vld [vmem:[%s923 + $0xc8] sm:$0xfe]
      %v1258 = vld [vmem:[%s923 + $0xd0] sm:$0x1]
      %v1259 = vld [vmem:[%s923 + $0xd8] sm:$0x1]
      %v1260 = vld [vmem:[%s923 + $0xe0] sm:$0xfe]
      %v1261 = vld [vmem:[%s923 + $0xe8] sm:$0xfe]
      %v1262 = vld [vmem:[%s923 + $0xf0] sm:$0x1]
      %v1263 = vld [vmem:[%s923 + $0xf8] sm:$0x1]
      %v1296 = vrot.slane %v1232, 1
      %v1297 = vrot.slane %v1234, 1
      %v1298 = vsel %vm369, %v1296, %v1297
      %v1299 = vrot.slane %v1233, 1
      %v1300 = vrot.slane %v1235, 1
      %v1301 = vsel %vm369, %v1299, %v1300
      %v1302 = vrot.slane %v1236, 1
      %v1303 = vrot.slane %v1238, 1
      %v1304 = vsel %vm369, %v1302, %v1303
      %v1305 = vrot.slane %v1237, 1
      %v1306 = vrot.slane %v1239, 1
      %v1307 = vsel %vm369, %v1305, %v1306
      %v1308 = vrot.slane %v1240, 1
      %v1309 = vrot.slane %v1242, 1
      %v1310 = vsel %vm369, %v1308, %v1309
      %v1311 = vrot.slane %v1241, 1
      %v1312 = vrot.slane %v1243, 1
      %v1313 = vsel %vm369, %v1311, %v1312
      %v1314 = vrot.slane %v1244, 1
      %v1315 = vrot.slane %v1246, 1
      %v1316 = vsel %vm369, %v1314, %v1315
      %v1317 = vrot.slane %v1245, 1
      %v1318 = vrot.slane %v1247, 1
      %v1319 = vsel %vm369, %v1317, %v1318
      %v1320 = vrot.slane %v1248, 1
      %v1321 = vrot.slane %v1250, 1
      %v1322 = vsel %vm369, %v1320, %v1321
      %v1323 = vrot.slane %v1249, 1
      %v1324 = vrot.slane %v1251, 1
      %v1325 = vsel %vm369, %v1323, %v1324
      %v1326 = vrot.slane %v1252, 1
      %v1327 = vrot.slane %v1254, 1
      %v1328 = vsel %vm369, %v1326, %v1327
      %v1329 = vrot.slane %v1253, 1
      %v1330 = vrot.slane %v1255, 1
      %v1331 = vsel %vm369, %v1329, %v1330
      %v1332 = vrot.slane %v1256, 1
      %v1333 = vrot.slane %v1258, 1
      %v1334 = vsel %vm369, %v1332, %v1333
      %v1335 = vrot.slane %v1257, 1
      %v1336 = vrot.slane %v1259, 1
      %v1337 = vsel %vm369, %v1335, %v1336
      %v1338 = vrot.slane %v1260, 1
      %v1339 = vrot.slane %v1262, 1
      %v1340 = vsel %vm369, %v1338, %v1339
      %v1341 = vrot.slane %v1261, 1
      %v1342 = vrot.slane %v1263, 1
      %v1343 = vsel %vm369, %v1341, %v1342
      %s1360 = scalar_lea.vmem %s1, 768
      %v1361 = vld [vmem:[%s1360] sm:$0xff]
      %v1362 = vld [vmem:[%s1360 + $0x8] sm:$0xff]
      %v1363 = vld [vmem:[%s1360 + $0x10] sm:$0xff]
      %v1364 = vld [vmem:[%s1360 + $0x18] sm:$0xff]
      %v1365 = vld [vmem:[%s1360 + $0x20] sm:$0xff]
      %v1366 = vld [vmem:[%s1360 + $0x28] sm:$0xff]
      %v1367 = vld [vmem:[%s1360 + $0x30] sm:$0xff]
      %v1368 = vld [vmem:[%s1360 + $0x38] sm:$0xff]
      %v1369 = vld [vmem:[%s1360 + $0x40] sm:$0xff]
      %v1370 = vld [vmem:[%s1360 + $0x48] sm:$0xff]
      %v1371 = vld [vmem:[%s1360 + $0x50] sm:$0xff]
      %v1372 = vld [vmem:[%s1360 + $0x58] sm:$0xff]
      %v1373 = vld [vmem:[%s1360 + $0x60] sm:$0xff]
      %v1374 = vld [vmem:[%s1360 + $0x68] sm:$0xff]
      %v1375 = vld [vmem:[%s1360 + $0x70] sm:$0xff]
      %v1376 = vld [vmem:[%s1360 + $0x78] sm:$0xff]
      %v1377 = vld [vmem:[%s1360 + $0x80] sm:$0xff]
      %v1378 = vld [vmem:[%s1360 + $0x88] sm:$0xff]
      %v1379 = vld [vmem:[%s1360 + $0x90] sm:$0xff]
      %v1380 = vld [vmem:[%s1360 + $0x98] sm:$0xff]
      %v1381 = vld [vmem:[%s1360 + $0xa0] sm:$0xff]
      %v1382 = vld [vmem:[%s1360 + $0xa8] sm:$0xff]
      %v1383 = vld [vmem:[%s1360 + $0xb0] sm:$0xff]
      %v1384 = vld [vmem:[%s1360 + $0xb8] sm:$0xff]
      %v1385 = vld [vmem:[%s1360 + $0xc0] sm:$0xff]
      %v1386 = vld [vmem:[%s1360 + $0xc8] sm:$0xff]
      %v1387 = vld [vmem:[%s1360 + $0xd0] sm:$0xff]
      %v1388 = vld [vmem:[%s1360 + $0xd8] sm:$0xff]
      %v1389 = vld [vmem:[%s1360 + $0xe0] sm:$0xff]
      %v1390 = vld [vmem:[%s1360 + $0xe8] sm:$0xff]
      %v1391 = vld [vmem:[%s1360 + $0xf0] sm:$0xff]
      %v1392 = vld [vmem:[%s1360 + $0xf8] sm:$0xff]
      %1393 = vmatprep.subr.mxu0 0.0
      %1394 = vmatpush1.msra.mxu0 %v1361
      %1395 = vmatprep.subr.mxu0 0.0
      %1396 = vmatpush1.msra.mxu0 %v1362
      %1397 = vmatprep.subr.mxu0 0.0
      %1398 = vmatpush1.msra.mxu0 %v1363
      %1399 = vmatprep.subr.mxu0 0.0
      %1400 = vmatpush1.msra.mxu0 %v1364
      %1401 = vmatprep.subr.mxu0 0.0
      %1402 = vmatpush1.msra.mxu0 %v1365
      %1403 = vmatprep.subr.mxu0 0.0
      %1404 = vmatpush1.msra.mxu0 %v1366
      %1405 = vmatprep.subr.mxu0 0.0
      %1406 = vmatpush1.msra.mxu0 %v1367
      %1407 = vmatprep.subr.mxu0 0.0
      %1408 = vmatpush1.msra.mxu0 %v1368
      %1409 = vmatprep.subr.mxu0 0.0
      %1410 = vmatpush1.msra.mxu0 %v1369
      %1411 = vmatprep.subr.mxu0 0.0
      %1412 = vmatpush1.msra.mxu0 %v1370
      %1413 = vmatprep.subr.mxu0 0.0
      %1414 = vmatpush1.msra.mxu0 %v1371
      %1415 = vmatprep.subr.mxu0 0.0
      %1416 = vmatpush1.msra.mxu0 %v1372
      %1417 = vmatprep.subr.mxu0 0.0
      %1418 = vmatpush1.msra.mxu0 %v1373
      %1419 = vmatprep.subr.mxu0 0.0
      %1420 = vmatpush1.msra.mxu0 %v1374
      %1421 = vmatprep.subr.mxu0 0.0
      %1422 = vmatpush1.msra.mxu0 %v1375
      %1423 = vmatprep.subr.mxu0 0.0
      %1424 = vmatpush1.msra.mxu0 %v1376
      %1425 = vmatprep.subr.mxu0 0.0
      %1426 = vmatpush1.msra.mxu0 %v1377
      %1427 = vmatprep.subr.mxu0 0.0
      %1428 = vmatpush1.msra.mxu0 %v1378
      %1429 = vmatprep.subr.mxu0 0.0
      %1430 = vmatpush1.msra.mxu0 %v1379
      %1431 = vmatprep.subr.mxu0 0.0
      %1432 = vmatpush1.msra.mxu0 %v1380
      %1433 = vmatprep.subr.mxu0 0.0
      %1434 = vmatpush1.msra.mxu0 %v1381
      %1435 = vmatprep.subr.mxu0 0.0
      %1436 = vmatpush1.msra.mxu0 %v1382
      %1437 = vmatprep.subr.mxu0 0.0
      %1438 = vmatpush1.msra.mxu0 %v1383
      %1439 = vmatprep.subr.mxu0 0.0
      %1440 = vmatpush1.msra.mxu0 %v1384
      %1441 = vmatprep.subr.mxu0 0.0
      %1442 = vmatpush1.msra.mxu0 %v1385
      %1443 = vmatprep.subr.mxu0 0.0
      %1444 = vmatpush1.msra.mxu0 %v1386
      %1445 = vmatprep.subr.mxu0 0.0
      %1446 = vmatpush1.msra.mxu0 %v1387
      %1447 = vmatprep.subr.mxu0 0.0
      %1448 = vmatpush1.msra.mxu0 %v1388
      %1449 = vmatprep.subr.mxu0 0.0
      %1450 = vmatpush1.msra.mxu0 %v1389
      %1451 = vmatprep.subr.mxu0 0.0
      %1452 = vmatpush1.msra.mxu0 %v1390
      %1453 = vmatprep.subr.mxu0 0.0
      %1454 = vmatpush1.msra.mxu0 %v1391
      %1455 = vmatprep.subr.mxu0 0.0
      %1456 = vmatpush1.msra.mxu0 %v1392
      %1457 = vmatprep.mubr.f32.mxu0 %v1301
      %1458 = vmatmul.mubr.f32.gmra.mrb[0].mxu0 %v1298
      %v1459 = vpop.f32.mrb[0].mxu0
      %v1460 = vadd.f32 0.0, %v1459
      %v1461 = vpop.f32.mrb[0].mxu0
      %1462 = vmatprep.mubr.f32.mxu0 %v1307
      %1463 = vmatmul.mubr.f32.gmra.mrb[0].mxu0 %v1304
      %v1464 = vpop.f32.mrb[0].mxu0
      %v1465 = vadd.f32 0.0, %v1464
      %v1466 = vpop.f32.mrb[0].mxu0
      %1467 = vmatprep.mubr.f32.mxu0 %v1313
      %1468 = vmatmul.mubr.f32.gmra.mrb[0].mxu0 %v1310
      %v1469 = vpop.f32.mrb[0].mxu0
      %v1470 = vadd.f32 0.0, %v1469
      %v1471 = vpop.f32.mrb[0].mxu0
      %1472 = vmatprep.mubr.f32.mxu0 %v1319
      %1473 = vmatmul.mubr.f32.gmra.mrb[0].mxu0 %v1316
      %v1474 = vpop.f32.mrb[0].mxu0
      %v1475 = vadd.f32 0.0, %v1474
      %v1476 = vpop.f32.mrb[0].mxu0
      %1477 = vmatprep.mubr.f32.mxu0 %v1325
      %1478 = vmatmul.mubr.f32.gmra.mrb[0].mxu0 %v1322
      %v1479 = vpop.f32.mrb[0].mxu0
      %v1480 = vadd.f32 0.0, %v1479
      %v1481 = vpop.f32.mrb[0].mxu0
      %1482 = vmatprep.mubr.f32.mxu0 %v1331
      %1483 = vmatmul.mubr.f32.gmra.mrb[0].mxu0 %v1328
      %v1484 = vpop.f32.mrb[0].mxu0
      %v1485 = vadd.f32 0.0, %v1484
      %v1486 = vpop.f32.mrb[0].mxu0
      %1487 = vmatprep.mubr.f32.mxu0 %v1337
      %1488 = vmatmul.mubr.f32.gmra.mrb[0].mxu0 %v1334
      %v1489 = vpop.f32.mrb[0].mxu0
      %v1490 = vadd.f32 0.0, %v1489
      %v1491 = vpop.f32.mrb[0].mxu0
      %1492 = vmatprep.mubr.f32.mxu0 %v1343
      %1493 = vmatmul.mubr.f32.gmra.mrb[0].mxu0 %v1340
      %v1494 = vpop.f32.mrb[0].mxu0
      %v1495 = vadd.f32 0.0, %v1494
      %v1496 = vpop.f32.mrb[0].mxu0
      %1497 = vdwg.mxu0
      %v1498 = vadd.f32 %v1078, %v1460
      %v1499 = vadd.f32 %v1079, %v1465
      %v1500 = vadd.f32 %v1080, %v1470
      %v1501 = vadd.f32 %v1081, %v1475
      %v1502 = vadd.f32 %v1082, %v1480
      %v1503 = vadd.f32 %v1083, %v1485
      %v1504 = vadd.f32 %v1084, %v1490
      %v1505 = vadd.f32 %v1085, %v1495
      %s1506 = scalar_lea.vmem %s2, 768
      %v1507 = vld [vmem:[%s1506] sm:$0xff]
      %v1508 = vld [vmem:[%s1506 + $0x8] sm:$0xff]
      %v1509 = vld [vmem:[%s1506 + $0x10] sm:$0xff]
      %v1510 = vld [vmem:[%s1506 + $0x18] sm:$0xff]
      %v1511 = vld [vmem:[%s1506 + $0x20] sm:$0xff]
      %v1512 = vld [vmem:[%s1506 + $0x28] sm:$0xff]
      %v1513 = vld [vmem:[%s1506 + $0x30] sm:$0xff]
      %v1514 = vld [vmem:[%s1506 + $0x38] sm:$0xff]
      %v1515 = vld [vmem:[%s1506 + $0x40] sm:$0xff]
      %v1516 = vld [vmem:[%s1506 + $0x48] sm:$0xff]
      %v1517 = vld [vmem:[%s1506 + $0x50] sm:$0xff]
      %v1518 = vld [vmem:[%s1506 + $0x58] sm:$0xff]
      %v1519 = vld [vmem:[%s1506 + $0x60] sm:$0xff]
      %v1520 = vld [vmem:[%s1506 + $0x68] sm:$0xff]
      %v1521 = vld [vmem:[%s1506 + $0x70] sm:$0xff]
      %v1522 = vld [vmem:[%s1506 + $0x78] sm:$0xff]
      %v1523 = vld [vmem:[%s1506 + $0x80] sm:$0xff]
      %v1524 = vld [vmem:[%s1506 + $0x88] sm:$0xff]
      %v1525 = vld [vmem:[%s1506 + $0x90] sm:$0xff]
      %v1526 = vld [vmem:[%s1506 + $0x98] sm:$0xff]
      %v1527 = vld [vmem:[%s1506 + $0xa0] sm:$0xff]
      %v1528 = vld [vmem:[%s1506 + $0xa8] sm:$0xff]
      %v1529 = vld [vmem:[%s1506 + $0xb0] sm:$0xff]
      %v1530 = vld [vmem:[%s1506 + $0xb8] sm:$0xff]
      %v1531 = vld [vmem:[%s1506 + $0xc0] sm:$0xff]
      %v1532 = vld [vmem:[%s1506 + $0xc8] sm:$0xff]
      %v1533 = vld [vmem:[%s1506 + $0xd0] sm:$0xff]
      %v1534 = vld [vmem:[%s1506 + $0xd8] sm:$0xff]
      %v1535 = vld [vmem:[%s1506 + $0xe0] sm:$0xff]
      %v1536 = vld [vmem:[%s1506 + $0xe8] sm:$0xff]
      %v1537 = vld [vmem:[%s1506 + $0xf0] sm:$0xff]
      %v1538 = vld [vmem:[%s1506 + $0xf8] sm:$0xff]
      %1539 = vmatprep.subr.mxu0 0.0
      %1540 = vmatpush1.msra.mxu0 %v1507
      %1541 = vmatprep.subr.mxu0 0.0
      %1542 = vmatpush1.msra.mxu0 %v1508
      %1543 = vmatprep.subr.mxu0 0.0
      %1544 = vmatpush1.msra.mxu0 %v1509
      %1545 = vmatprep.subr.mxu0 0.0
      %1546 = vmatpush1.msra.mxu0 %v1510
      %1547 = vmatprep.subr.mxu0 0.0
      %1548 = vmatpush1.msra.mxu0 %v1511
      %1549 = vmatprep.subr.mxu0 0.0
      %1550 = vmatpush1.msra.mxu0 %v1512
      %1551 = vmatprep.subr.mxu0 0.0
      %1552 = vmatpush1.msra.mxu0 %v1513
      %1553 = vmatprep.subr.mxu0 0.0
      %1554 = vmatpush1.msra.mxu0 %v1514
      %1555 = vmatprep.subr.mxu0 0.0
      %1556 = vmatpush1.msra.mxu0 %v1515
      %1557 = vmatprep.subr.mxu0 0.0
      %1558 = vmatpush1.msra.mxu0 %v1516
      %1559 = vmatprep.subr.mxu0 0.0
      %1560 = vmatpush1.msra.mxu0 %v1517
      %1561 = vmatprep.subr.mxu0 0.0
      %1562 = vmatpush1.msra.mxu0 %v1518
      %1563 = vmatprep.subr.mxu0 0.0
      %1564 = vmatpush1.msra.mxu0 %v1519
      %1565 = vmatprep.subr.mxu0 0.0
      %1566 = vmatpush1.msra.mxu0 %v1520
      %1567 = vmatprep.subr.mxu0 0.0
      %1568 = vmatpush1.msra.mxu0 %v1521
      %1569 = vmatprep.subr.mxu0 0.0
      %1570 = vmatpush1.msra.mxu0 %v1522
      %1571 = vmatprep.subr.mxu0 0.0
      %1572 = vmatpush1.msra.mxu0 %v1523
      %1573 = vmatprep.subr.mxu0 0.0
      %1574 = vmatpush1.msra.mxu0 %v1524
      %1575 = vmatprep.subr.mxu0 0.0
      %1576 = vmatpush1.msra.mxu0 %v1525
      %1577 = vmatprep.subr.mxu0 0.0
      %1578 = vmatpush1.msra.mxu0 %v1526
      %1579 = vmatprep.subr.mxu0 0.0
      %1580 = vmatpush1.msra.mxu0 %v1527
      %1581 = vmatprep.subr.mxu0 0.0
      %1582 = vmatpush1.msra.mxu0 %v1528
      %1583 = vmatprep.subr.mxu0 0.0
      %1584 = vmatpush1.msra.mxu0 %v1529
      %1585 = vmatprep.subr.mxu0 0.0
      %1586 = vmatpush1.msra.mxu0 %v1530
      %1587 = vmatprep.subr.mxu0 0.0
      %1588 = vmatpush1.msra.mxu0 %v1531
      %1589 = vmatprep.subr.mxu0 0.0
      %1590 = vmatpush1.msra.mxu0 %v1532
      %1591 = vmatprep.subr.mxu0 0.0
      %1592 = vmatpush1.msra.mxu0 %v1533
      %1593 = vmatprep.subr.mxu0 0.0
      %1594 = vmatpush1.msra.mxu0 %v1534
      %1595 = vmatprep.subr.mxu0 0.0
      %1596 = vmatpush1.msra.mxu0 %v1535
      %1597 = vmatprep.subr.mxu0 0.0
      %1598 = vmatpush1.msra.mxu0 %v1536
      %1599 = vmatprep.subr.mxu0 0.0
      %1600 = vmatpush1.msra.mxu0 %v1537
      %1601 = vmatprep.subr.mxu0 0.0
      %1602 = vmatpush1.msra.mxu0 %v1538
      %1603 = vmatprep.mubr.f32.mxu0 %v1301
      %1604 = vmatmul.mubr.f32.gmra.mrb[0].mxu0 %v1298
      %v1605 = vpop.f32.mrb[0].mxu0
      %v1606 = vadd.f32 0.0, %v1605
      %v1607 = vpop.f32.mrb[0].mxu0
      %1608 = vmatprep.mubr.f32.mxu0 %v1307
      %1609 = vmatmul.mubr.f32.gmra.mrb[0].mxu0 %v1304
      %v1610 = vpop.f32.mrb[0].mxu0
      %v1611 = vadd.f32 0.0, %v1610
      %v1612 = vpop.f32.mrb[0].mxu0
      %1613 = vmatprep.mubr.f32.mxu0 %v1313
      %1614 = vmatmul.mubr.f32.gmra.mrb[0].mxu0 %v1310
      %v1615 = vpop.f32.mrb[0].mxu0
      %v1616 = vadd.f32 0.0, %v1615
      %v1617 = vpop.f32.mrb[0].mxu0
      %1618 = vmatprep.mubr.f32.mxu0 %v1319
      %1619 = vmatmul.mubr.f32.gmra.mrb[0].mxu0 %v1316
      %v1620 = vpop.f32.mrb[0].mxu0
      %v1621 = vadd.f32 0.0, %v1620
      %v1622 = vpop.f32.mrb[0].mxu0
      %1623 = vmatprep.mubr.f32.mxu0 %v1325
      %1624 = vmatmul.mubr.f32.gmra.mrb[0].mxu0 %v1322
      %v1625 = vpop.f32.mrb[0].mxu0
      %v1626 = vadd.f32 0.0, %v1625
      %v1627 = vpop.f32.mrb[0].mxu0
      %1628 = vmatprep.mubr.f32.mxu0 %v1331
      %1629 = vmatmul.mubr.f32.gmra.mrb[0].mxu0 %v1328
      %v1630 = vpop.f32.mrb[0].mxu0
      %v1631 = vadd.f32 0.0, %v1630
      %v1632 = vpop.f32.mrb[0].mxu0
      %1633 = vmatprep.mubr.f32.mxu0 %v1337
      %1634 = vmatmul.mubr.f32.gmra.mrb[0].mxu0 %v1334
      %v1635 = vpop.f32.mrb[0].mxu0
      %v1636 = vadd.f32 0.0, %v1635
      %v1637 = vpop.f32.mrb[0].mxu0
      %1638 = vmatprep.mubr.f32.mxu0 %v1343
      %1639 = vmatmul.mubr.f32.gmra.mrb[0].mxu0 %v1340
      %v1640 = vpop.f32.mrb[0].mxu0
      %v1641 = vadd.f32 0.0, %v1640
      %v1642 = vpop.f32.mrb[0].mxu0
      %1643 = vdwg.mxu0
      %v1644 = vadd.f32 %v1224, %v1606
      %v1645 = vadd.f32 %v1225, %v1611
      %v1646 = vadd.f32 %v1226, %v1616
      %v1647 = vadd.f32 %v1227, %v1621
      %v1648 = vadd.f32 %v1228, %v1626
      %v1649 = vadd.f32 %v1229, %v1631
      %v1650 = vadd.f32 %v1230, %v1636
      %v1651 = vadd.f32 %v1231, %v1641
      %s1652 = sadd.s32 %s221, 2
      %s1653 = smul.u32 %s1652, 4
      %s1654 = smul.addr %s1653, 8
      %s1655 = scalar_lea.vmem %s210, %s1654
      %v1656 = vld [vmem:[%s1655] sm:$0xff]
      %v1657 = vld [vmem:[%s1655 + $0x8] sm:$0xff]
      %v1658 = vld [vmem:[%s1655 + $0x20] sm:$0xff]
      %v1659 = vld [vmem:[%s1655 + $0x28] sm:$0xff]
      %v1660 = vld [vmem:[%s1655 + $0x40] sm:$0xff]
      %v1661 = vld [vmem:[%s1655 + $0x48] sm:$0xff]
      %v1662 = vld [vmem:[%s1655 + $0x60] sm:$0xff]
      %v1663 = vld [vmem:[%s1655 + $0x68] sm:$0xff]
      %v1664 = vld [vmem:[%s1655 + $0x80] sm:$0xff]
      %v1665 = vld [vmem:[%s1655 + $0x88] sm:$0xff]
      %v1666 = vld [vmem:[%s1655 + $0xa0] sm:$0xff]
      %v1667 = vld [vmem:[%s1655 + $0xa8] sm:$0xff]
      %v1668 = vld [vmem:[%s1655 + $0xc0] sm:$0xff]
      %v1669 = vld [vmem:[%s1655 + $0xc8] sm:$0xff]
      %v1670 = vld [vmem:[%s1655 + $0xe0] sm:$0xff]
      %v1671 = vld [vmem:[%s1655 + $0xe8] sm:$0xff]
      %s1672 = scalar_lea.vmem %s1, 1024
      %v1673 = vld [vmem:[%s1672] sm:$0xff]
      %v1674 = vld [vmem:[%s1672 + $0x8] sm:$0xff]
      %v1675 = vld [vmem:[%s1672 + $0x10] sm:$0xff]
      %v1676 = vld [vmem:[%s1672 + $0x18] sm:$0xff]
      %v1677 = vld [vmem:[%s1672 + $0x20] sm:$0xff]
      %v1678 = vld [vmem:[%s1672 + $0x28] sm:$0xff]
      %v1679 = vld [vmem:[%s1672 + $0x30] sm:$0xff]
      %v1680 = vld [vmem:[%s1672 + $0x38] sm:$0xff]
      %v1681 = vld [vmem:[%s1672 + $0x40] sm:$0xff]
      %v1682 = vld [vmem:[%s1672 + $0x48] sm:$0xff]
      %v1683 = vld [vmem:[%s1672 + $0x50] sm:$0xff]
      %v1684 = vld [vmem:[%s1672 + $0x58] sm:$0xff]
      %v1685 = vld [vmem:[%s1672 + $0x60] sm:$0xff]
      %v1686 = vld [vmem:[%s1672 + $0x68] sm:$0xff]
      %v1687 = vld [vmem:[%s1672 + $0x70] sm:$0xff]
      %v1688 = vld [vmem:[%s1672 + $0x78] sm:$0xff]
      %v1689 = vld [vmem:[%s1672 + $0x80] sm:$0xff]
      %v1690 = vld [vmem:[%s1672 + $0x88] sm:$0xff]
      %v1691 = vld [vmem:[%s1672 + $0x90] sm:$0xff]
      %v1692 = vld [vmem:[%s1672 + $0x98] sm:$0xff]
      %v1693 = vld [vmem:[%s1672 + $0xa0] sm:$0xff]
      %v1694 = vld [vmem:[%s1672 + $0xa8] sm:$0xff]
      %v1695 = vld [vmem:[%s1672 + $0xb0] sm:$0xff]
      %v1696 = vld [vmem:[%s1672 + $0xb8] sm:$0xff]
      %v1697 = vld [vmem:[%s1672 + $0xc0] sm:$0xff]
      %v1698 = vld [vmem:[%s1672 + $0xc8] sm:$0xff]
      %v1699 = vld [vmem:[%s1672 + $0xd0] sm:$0xff]
      %v1700 = vld [vmem:[%s1672 + $0xd8] sm:$0xff]
      %v1701 = vld [vmem:[%s1672 + $0xe0] sm:$0xff]
      %v1702 = vld [vmem:[%s1672 + $0xe8] sm:$0xff]
      %v1703 = vld [vmem:[%s1672 + $0xf0] sm:$0xff]
      %v1704 = vld [vmem:[%s1672 + $0xf8] sm:$0xff]
      %1705 = vmatprep.subr.mxu0 0.0
      %1706 = vmatpush1.msra.mxu0 %v1673
      %1707 = vmatprep.subr.mxu0 0.0
      %1708 = vmatpush1.msra.mxu0 %v1674
      %1709 = vmatprep.subr.mxu0 0.0
      %1710 = vmatpush1.msra.mxu0 %v1675
      %1711 = vmatprep.subr.mxu0 0.0
      %1712 = vmatpush1.msra.mxu0 %v1676
      %1713 = vmatprep.subr.mxu0 0.0
      %1714 = vmatpush1.msra.mxu0 %v1677
      %1715 = vmatprep.subr.mxu0 0.0
      %1716 = vmatpush1.msra.mxu0 %v1678
      %1717 = vmatprep.subr.mxu0 0.0
      %1718 = vmatpush1.msra.mxu0 %v1679
      %1719 = vmatprep.subr.mxu0 0.0
      %1720 = vmatpush1.msra.mxu0 %v1680
      %1721 = vmatprep.subr.mxu0 0.0
      %1722 = vmatpush1.msra.mxu0 %v1681
      %1723 = vmatprep.subr.mxu0 0.0
      %1724 = vmatpush1.msra.mxu0 %v1682
      %1725 = vmatprep.subr.mxu0 0.0
      %1726 = vmatpush1.msra.mxu0 %v1683
      %1727 = vmatprep.subr.mxu0 0.0
      %1728 = vmatpush1.msra.mxu0 %v1684
      %1729 = vmatprep.subr.mxu0 0.0
      %1730 = vmatpush1.msra.mxu0 %v1685
      %1731 = vmatprep.subr.mxu0 0.0
      %1732 = vmatpush1.msra.mxu0 %v1686
      %1733 = vmatprep.subr.mxu0 0.0
      %1734 = vmatpush1.msra.mxu0 %v1687
      %1735 = vmatprep.subr.mxu0 0.0
      %1736 = vmatpush1.msra.mxu0 %v1688
      %1737 = vmatprep.subr.mxu0 0.0
      %1738 = vmatpush1.msra.mxu0 %v1689
      %1739 = vmatprep.subr.mxu0 0.0
      %1740 = vmatpush1.msra.mxu0 %v1690
      %1741 = vmatprep.subr.mxu0 0.0
      %1742 = vmatpush1.msra.mxu0 %v1691
      %1743 = vmatprep.subr.mxu0 0.0
      %1744 = vmatpush1.msra.mxu0 %v1692
      %1745 = vmatprep.subr.mxu0 0.0
      %1746 = vmatpush1.msra.mxu0 %v1693
      %1747 = vmatprep.subr.mxu0 0.0
      %1748 = vmatpush1.msra.mxu0 %v1694
      %1749 = vmatprep.subr.mxu0 0.0
      %1750 = vmatpush1.msra.mxu0 %v1695
      %1751 = vmatprep.subr.mxu0 0.0
      %1752 = vmatpush1.msra.mxu0 %v1696
      %1753 = vmatprep.subr.mxu0 0.0
      %1754 = vmatpush1.msra.mxu0 %v1697
      %1755 = vmatprep.subr.mxu0 0.0
      %1756 = vmatpush1.msra.mxu0 %v1698
      %1757 = vmatprep.subr.mxu0 0.0
      %1758 = vmatpush1.msra.mxu0 %v1699
      %1759 = vmatprep.subr.mxu0 0.0
      %1760 = vmatpush1.msra.mxu0 %v1700
      %1761 = vmatprep.subr.mxu0 0.0
      %1762 = vmatpush1.msra.mxu0 %v1701
      %1763 = vmatprep.subr.mxu0 0.0
      %1764 = vmatpush1.msra.mxu0 %v1702
      %1765 = vmatprep.subr.mxu0 0.0
      %1766 = vmatpush1.msra.mxu0 %v1703
      %1767 = vmatprep.subr.mxu0 0.0
      %1768 = vmatpush1.msra.mxu0 %v1704
      %1769 = vmatprep.mubr.f32.mxu0 %v1657
      %1770 = vmatmul.mubr.f32.gmra.mrb[0].mxu0 %v1656
      %v1771 = vpop.f32.mrb[0].mxu0
      %v1772 = vadd.f32 0.0, %v1771
      %v1773 = vpop.f32.mrb[0].mxu0
      %1774 = vmatprep.mubr.f32.mxu0 %v1659
      %1775 = vmatmul.mubr.f32.gmra.mrb[0].mxu0 %v1658
      %v1776 = vpop.f32.mrb[0].mxu0
      %v1777 = vadd.f32 0.0, %v1776
      %v1778 = vpop.f32.mrb[0].mxu0
      %1779 = vmatprep.mubr.f32.mxu0 %v1661
      %1780 = vmatmul.mubr.f32.gmra.mrb[0].mxu0 %v1660
      %v1781 = vpop.f32.mrb[0].mxu0
      %v1782 = vadd.f32 0.0, %v1781
      %v1783 = vpop.f32.mrb[0].mxu0
      %1784 = vmatprep.mubr.f32.mxu0 %v1663
      %1785 = vmatmul.mubr.f32.gmra.mrb[0].mxu0 %v1662
      %v1786 = vpop.f32.mrb[0].mxu0
      %v1787 = vadd.f32 0.0, %v1786
      %v1788 = vpop.f32.mrb[0].mxu0
      %1789 = vmatprep.mubr.f32.mxu0 %v1665
      %1790 = vmatmul.mubr.f32.gmra.mrb[0].mxu0 %v1664
      %v1791 = vpop.f32.mrb[0].mxu0
      %v1792 = vadd.f32 0.0, %v1791
      %v1793 = vpop.f32.mrb[0].mxu0
      %1794 = vmatprep.mubr.f32.mxu0 %v1667
      %1795 = vmatmul.mubr.f32.gmra.mrb[0].mxu0 %v1666
      %v1796 = vpop.f32.mrb[0].mxu0
      %v1797 = vadd.f32 0.0, %v1796
      %v1798 = vpop.f32.mrb[0].mxu0
      %1799 = vmatprep.mubr.f32.mxu0 %v1669
      %1800 = vmatmul.mubr.f32.gmra.mrb[0].mxu0 %v1668
      %v1801 = vpop.f32.mrb[0].mxu0
      %v1802 = vadd.f32 0.0, %v1801
      %v1803 = vpop.f32.mrb[0].mxu0
      %1804 = vmatprep.mubr.f32.mxu0 %v1671
      %1805 = vmatmul.mubr.f32.gmra.mrb[0].mxu0 %v1670
      %v1806 = vpop.f32.mrb[0].mxu0
      %v1807 = vadd.f32 0.0, %v1806
      %v1808 = vpop.f32.mrb[0].mxu0
      %1809 = vdwg.mxu0
      %v1810 = vadd.f32 %v1498, %v1772
      %v1811 = vadd.f32 %v1499, %v1777
      %v1812 = vadd.f32 %v1500, %v1782
      %v1813 = vadd.f32 %v1501, %v1787
      %v1814 = vadd.f32 %v1502, %v1792
      %v1815 = vadd.f32 %v1503, %v1797
      %v1816 = vadd.f32 %v1504, %v1802
      %v1817 = vadd.f32 %v1505, %v1807
      %s1818 = scalar_lea.vmem %s2, 1024
      %v1819 = vld [vmem:[%s1818] sm:$0xff]
      %v1820 = vld [vmem:[%s1818 + $0x8] sm:$0xff]
      %v1821 = vld [vmem:[%s1818 + $0x10] sm:$0xff]
      %v1822 = vld [vmem:[%s1818 + $0x18] sm:$0xff]
      %v1823 = vld [vmem:[%s1818 + $0x20] sm:$0xff]
      %v1824 = vld [vmem:[%s1818 + $0x28] sm:$0xff]
      %v1825 = vld [vmem:[%s1818 + $0x30] sm:$0xff]
      %v1826 = vld [vmem:[%s1818 + $0x38] sm:$0xff]
      %v1827 = vld [vmem:[%s1818 + $0x40] sm:$0xff]
      %v1828 = vld [vmem:[%s1818 + $0x48] sm:$0xff]
      %v1829 = vld [vmem:[%s1818 + $0x50] sm:$0xff]
      %v1830 = vld [vmem:[%s1818 + $0x58] sm:$0xff]
      %v1831 = vld [vmem:[%s1818 + $0x60] sm:$0xff]
      %v1832 = vld [vmem:[%s1818 + $0x68] sm:$0xff]
      %v1833 = vld [vmem:[%s1818 + $0x70] sm:$0xff]
      %v1834 = vld [vmem:[%s1818 + $0x78] sm:$0xff]
      %v1835 = vld [vmem:[%s1818 + $0x80] sm:$0xff]
      %v1836 = vld [vmem:[%s1818 + $0x88] sm:$0xff]
      %v1837 = vld [vmem:[%s1818 + $0x90] sm:$0xff]
      %v1838 = vld [vmem:[%s1818 + $0x98] sm:$0xff]
      %v1839 = vld [vmem:[%s1818 + $0xa0] sm:$0xff]
      %v1840 = vld [vmem:[%s1818 + $0xa8] sm:$0xff]
      %v1841 = vld [vmem:[%s1818 + $0xb0] sm:$0xff]
      %v1842 = vld [vmem:[%s1818 + $0xb8] sm:$0xff]
      %v1843 = vld [vmem:[%s1818 + $0xc0] sm:$0xff]
      %v1844 = vld [vmem:[%s1818 + $0xc8] sm:$0xff]
      %v1845 = vld [vmem:[%s1818 + $0xd0] sm:$0xff]
      %v1846 = vld [vmem:[%s1818 + $0xd8] sm:$0xff]
      %v1847 = vld [vmem:[%s1818 + $0xe0] sm:$0xff]
      %v1848 = vld [vmem:[%s1818 + $0xe8] sm:$0xff]
      %v1849 = vld [vmem:[%s1818 + $0xf0] sm:$0xff]
      %v1850 = vld [vmem:[%s1818 + $0xf8] sm:$0xff]
      %1851 = vmatprep.subr.mxu0 0.0
      %1852 = vmatpush1.msra.mxu0 %v1819
      %1853 = vmatprep.subr.mxu0 0.0
      %1854 = vmatpush1.msra.mxu0 %v1820
      %1855 = vmatprep.subr.mxu0 0.0
      %1856 = vmatpush1.msra.mxu0 %v1821
      %1857 = vmatprep.subr.mxu0 0.0
      %1858 = vmatpush1.msra.mxu0 %v1822
      %1859 = vmatprep.subr.mxu0 0.0
      %1860 = vmatpush1.msra.mxu0 %v1823
      %1861 = vmatprep.subr.mxu0 0.0
      %1862 = vmatpush1.msra.mxu0 %v1824
      %1863 = vmatprep.subr.mxu0 0.0
      %1864 = vmatpush1.msra.mxu0 %v1825
      %1865 = vmatprep.subr.mxu0 0.0
      %1866 = vmatpush1.msra.mxu0 %v1826
      %1867 = vmatprep.subr.mxu0 0.0
      %1868 = vmatpush1.msra.mxu0 %v1827
      %1869 = vmatprep.subr.mxu0 0.0
      %1870 = vmatpush1.msra.mxu0 %v1828
      %1871 = vmatprep.subr.mxu0 0.0
      %1872 = vmatpush1.msra.mxu0 %v1829
      %1873 = vmatprep.subr.mxu0 0.0
      %1874 = vmatpush1.msra.mxu0 %v1830
      %1875 = vmatprep.subr.mxu0 0.0
      %1876 = vmatpush1.msra.mxu0 %v1831
      %1877 = vmatprep.subr.mxu0 0.0
      %1878 = vmatpush1.msra.mxu0 %v1832
      %1879 = vmatprep.subr.mxu0 0.0
      %1880 = vmatpush1.msra.mxu0 %v1833
      %1881 = vmatprep.subr.mxu0 0.0
      %1882 = vmatpush1.msra.mxu0 %v1834
      %1883 = vmatprep.subr.mxu0 0.0
      %1884 = vmatpush1.msra.mxu0 %v1835
      %1885 = vmatprep.subr.mxu0 0.0
      %1886 = vmatpush1.msra.mxu0 %v1836
      %1887 = vmatprep.subr.mxu0 0.0
      %1888 = vmatpush1.msra.mxu0 %v1837
      %1889 = vmatprep.subr.mxu0 0.0
      %1890 = vmatpush1.msra.mxu0 %v1838
      %1891 = vmatprep.subr.mxu0 0.0
      %1892 = vmatpush1.msra.mxu0 %v1839
      %1893 = vmatprep.subr.mxu0 0.0
      %1894 = vmatpush1.msra.mxu0 %v1840
      %1895 = vmatprep.subr.mxu0 0.0
      %1896 = vmatpush1.msra.mxu0 %v1841
      %1897 = vmatprep.subr.mxu0 0.0
      %1898 = vmatpush1.msra.mxu0 %v1842
      %1899 = vmatprep.subr.mxu0 0.0
      %1900 = vmatpush1.msra.mxu0 %v1843
      %1901 = vmatprep.subr.mxu0 0.0
      %1902 = vmatpush1.msra.mxu0 %v1844
      %1903 = vmatprep.subr.mxu0 0.0
      %1904 = vmatpush1.msra.mxu0 %v1845
      %1905 = vmatprep.subr.mxu0 0.0
      %1906 = vmatpush1.msra.mxu0 %v1846
      %1907 = vmatprep.subr.mxu0 0.0
      %1908 = vmatpush1.msra.mxu0 %v1847
      %1909 = vmatprep.subr.mxu0 0.0
      %1910 = vmatpush1.msra.mxu0 %v1848
      %1911 = vmatprep.subr.mxu0 0.0
      %1912 = vmatpush1.msra.mxu0 %v1849
      %1913 = vmatprep.subr.mxu0 0.0
      %1914 = vmatpush1.msra.mxu0 %v1850
      %1915 = vmatprep.mubr.f32.mxu0 %v1657
      %1916 = vmatmul.mubr.f32.gmra.mrb[0].mxu0 %v1656
      %v1917 = vpop.f32.mrb[0].mxu0
      %v1918 = vadd.f32 0.0, %v1917
      %v1919 = vpop.f32.mrb[0].mxu0
      %1920 = vmatprep.mubr.f32.mxu0 %v1659
      %1921 = vmatmul.mubr.f32.gmra.mrb[0].mxu0 %v1658
      %v1922 = vpop.f32.mrb[0].mxu0
      %v1923 = vadd.f32 0.0, %v1922
      %v1924 = vpop.f32.mrb[0].mxu0
      %1925 = vmatprep.mubr.f32.mxu0 %v1661
      %1926 = vmatmul.mubr.f32.gmra.mrb[0].mxu0 %v1660
      %v1927 = vpop.f32.mrb[0].mxu0
      %v1928 = vadd.f32 0.0, %v1927
      %v1929 = vpop.f32.mrb[0].mxu0
      %1930 = vmatprep.mubr.f32.mxu0 %v1663
      %1931 = vmatmul.mubr.f32.gmra.mrb[0].mxu0 %v1662
      %v1932 = vpop.f32.mrb[0].mxu0
      %v1933 = vadd.f32 0.0, %v1932
      %v1934 = vpop.f32.mrb[0].mxu0
      %1935 = vmatprep.mubr.f32.mxu0 %v1665
      %1936 = vmatmul.mubr.f32.gmra.mrb[0].mxu0 %v1664
      %v1937 = vpop.f32.mrb[0].mxu0
      %v1938 = vadd.f32 0.0, %v1937
      %v1939 = vpop.f32.mrb[0].mxu0
      %1940 = vmatprep.mubr.f32.mxu0 %v1667
      %1941 = vmatmul.mubr.f32.gmra.mrb[0].mxu0 %v1666
      %v1942 = vpop.f32.mrb[0].mxu0
      %v1943 = vadd.f32 0.0, %v1942
      %v1944 = vpop.f32.mrb[0].mxu0
      %1945 = vmatprep.mubr.f32.mxu0 %v1669
      %1946 = vmatmul.mubr.f32.gmra.mrb[0].mxu0 %v1668
      %v1947 = vpop.f32.mrb[0].mxu0
      %v1948 = vadd.f32 0.0, %v1947
      %v1949 = vpop.f32.mrb[0].mxu0
      %1950 = vmatprep.mubr.f32.mxu0 %v1671
      %1951 = vmatmul.mubr.f32.gmra.mrb[0].mxu0 %v1670
      %v1952 = vpop.f32.mrb[0].mxu0
      %v1953 = vadd.f32 0.0, %v1952
      %v1954 = vpop.f32.mrb[0].mxu0
      %1955 = vdwg.mxu0
      %v1956 = vadd.f32 %v1644, %v1918
      %v1957 = vadd.f32 %v1645, %v1923
      %v1958 = vadd.f32 %v1646, %v1928
      %v1959 = vadd.f32 %v1647, %v1933
      %v1960 = vadd.f32 %v1648, %v1938
      %v1961 = vadd.f32 %v1649, %v1943
      %v1962 = vadd.f32 %v1650, %v1948
      %v1963 = vadd.f32 %v1651, %v1953
      %v1964 = vld [vmem:[%s1655] sm:$0xfe]
      %v1965 = vld [vmem:[%s1655 + $0x8] sm:$0xfe]
      %v1966 = vld [vmem:[%s1655 + $0x10] sm:$0x1]
      %v1967 = vld [vmem:[%s1655 + $0x18] sm:$0x1]
      %v1968 = vld [vmem:[%s1655 + $0x20] sm:$0xfe]
      %v1969 = vld [vmem:[%s1655 + $0x28] sm:$0xfe]
      %v1970 = vld [vmem:[%s1655 + $0x30] sm:$0x1]
      %v1971 = vld [vmem:[%s1655 + $0x38] sm:$0x1]
      %v1972 = vld [vmem:[%s1655 + $0x40] sm:$0xfe]
      %v1973 = vld [vmem:[%s1655 + $0x48] sm:$0xfe]
      %v1974 = vld [vmem:[%s1655 + $0x50] sm:$0x1]
      %v1975 = vld [vmem:[%s1655 + $0x58] sm:$0x1]
      %v1976 = vld [vmem:[%s1655 + $0x60] sm:$0xfe]
      %v1977 = vld [vmem:[%s1655 + $0x68] sm:$0xfe]
      %v1978 = vld [vmem:[%s1655 + $0x70] sm:$0x1]
      %v1979 = vld [vmem:[%s1655 + $0x78] sm:$0x1]
      %v1980 = vld [vmem:[%s1655 + $0x80] sm:$0xfe]
      %v1981 = vld [vmem:[%s1655 + $0x88] sm:$0xfe]
      %v1982 = vld [vmem:[%s1655 + $0x90] sm:$0x1]
      %v1983 = vld [vmem:[%s1655 + $0x98] sm:$0x1]
      %v1984 = vld [vmem:[%s1655 + $0xa0] sm:$0xfe]
      %v1985 = vld [vmem:[%s1655 + $0xa8] sm:$0xfe]
      %v1986 = vld [vmem:[%s1655 + $0xb0] sm:$0x1]
      %v1987 = vld [vmem:[%s1655 + $0xb8] sm:$0x1]
      %v1988 = vld [vmem:[%s1655 + $0xc0] sm:$0xfe]
      %v1989 = vld [vmem:[%s1655 + $0xc8] sm:$0xfe]
      %v1990 = vld [vmem:[%s1655 + $0xd0] sm:$0x1]
      %v1991 = vld [vmem:[%s1655 + $0xd8] sm:$0x1]
      %v1992 = vld [vmem:[%s1655 + $0xe0] sm:$0xfe]
      %v1993 = vld [vmem:[%s1655 + $0xe8] sm:$0xfe]
      %v1994 = vld [vmem:[%s1655 + $0xf0] sm:$0x1]
      %v1995 = vld [vmem:[%s1655 + $0xf8] sm:$0x1]
      %v2028 = vrot.slane %v1964, 1
      %v2029 = vrot.slane %v1966, 1
      %v2030 = vsel %vm369, %v2028, %v2029
      %v2031 = vrot.slane %v1965, 1
      %v2032 = vrot.slane %v1967, 1
      %v2033 = vsel %vm369, %v2031, %v2032
      %v2034 = vrot.slane %v1968, 1
      %v2035 = vrot.slane %v1970, 1
      %v2036 = vsel %vm369, %v2034, %v2035
      %v2037 = vrot.slane %v1969, 1
      %v2038 = vrot.slane %v1971, 1
      %v2039 = vsel %vm369, %v2037, %v2038
      %v2040 = vrot.slane %v1972, 1
      %v2041 = vrot.slane %v1974, 1
      %v2042 = vsel %vm369, %v2040, %v2041
      %v2043 = vrot.slane %v1973, 1
      %v2044 = vrot.slane %v1975, 1
      %v2045 = vsel %vm369, %v2043, %v2044
      %v2046 = vrot.slane %v1976, 1
      %v2047 = vrot.slane %v1978, 1
      %v2048 = vsel %vm369, %v2046, %v2047
      %v2049 = vrot.slane %v1977, 1
      %v2050 = vrot.slane %v1979, 1
      %v2051 = vsel %vm369, %v2049, %v2050
      %v2052 = vrot.slane %v1980, 1
      %v2053 = vrot.slane %v1982, 1
      %v2054 = vsel %vm369, %v2052, %v2053
      %v2055 = vrot.slane %v1981, 1
      %v2056 = vrot.slane %v1983, 1
      %v2057 = vsel %vm369, %v2055, %v2056
      %v2058 = vrot.slane %v1984, 1
      %v2059 = vrot.slane %v1986, 1
      %v2060 = vsel %vm369, %v2058, %v2059
      %v2061 = vrot.slane %v1985, 1
      %v2062 = vrot.slane %v1987, 1
      %v2063 = vsel %vm369, %v2061, %v2062
      %v2064 = vrot.slane %v1988, 1
      %v2065 = vrot.slane %v1990, 1
      %v2066 = vsel %vm369, %v2064, %v2065
      %v2067 = vrot.slane %v1989, 1
      %v2068 = vrot.slane %v1991, 1
      %v2069 = vsel %vm369, %v2067, %v2068
      %v2070 = vrot.slane %v1992, 1
      %v2071 = vrot.slane %v1994, 1
      %v2072 = vsel %vm369, %v2070, %v2071
      %v2073 = vrot.slane %v1993, 1
      %v2074 = vrot.slane %v1995, 1
      %v2075 = vsel %vm369, %v2073, %v2074
      %s2092 = scalar_lea.vmem %s1, 1280
      %v2093 = vld [vmem:[%s2092] sm:$0xff]
      %v2094 = vld [vmem:[%s2092 + $0x8] sm:$0xff]
      %v2095 = vld [vmem:[%s2092 + $0x10] sm:$0xff]
      %v2096 = vld [vmem:[%s2092 + $0x18] sm:$0xff]
      %v2097 = vld [vmem:[%s2092 + $0x20] sm:$0xff]
      %v2098 = vld [vmem:[%s2092 + $0x28] sm:$0xff]
      %v2099 = vld [vmem:[%s2092 + $0x30] sm:$0xff]
      %v2100 = vld [vmem:[%s2092 + $0x38] sm:$0xff]
      %v2101 = vld [vmem:[%s2092 + $0x40] sm:$0xff]
      %v2102 = vld [vmem:[%s2092 + $0x48] sm:$0xff]
      %v2103 = vld [vmem:[%s2092 + $0x50] sm:$0xff]
      %v2104 = vld [vmem:[%s2092 + $0x58] sm:$0xff]
      %v2105 = vld [vmem:[%s2092 + $0x60] sm:$0xff]
      %v2106 = vld [vmem:[%s2092 + $0x68] sm:$0xff]
      %v2107 = vld [vmem:[%s2092 + $0x70] sm:$0xff]
      %v2108 = vld [vmem:[%s2092 + $0x78] sm:$0xff]
      %v2109 = vld [vmem:[%s2092 + $0x80] sm:$0xff]
      %v2110 = vld [vmem:[%s2092 + $0x88] sm:$0xff]
      %v2111 = vld [vmem:[%s2092 + $0x90] sm:$0xff]
      %v2112 = vld [vmem:[%s2092 + $0x98] sm:$0xff]
      %v2113 = vld [vmem:[%s2092 + $0xa0] sm:$0xff]
      %v2114 = vld [vmem:[%s2092 + $0xa8] sm:$0xff]
      %v2115 = vld [vmem:[%s2092 + $0xb0] sm:$0xff]
      %v2116 = vld [vmem:[%s2092 + $0xb8] sm:$0xff]
      %v2117 = vld [vmem:[%s2092 + $0xc0] sm:$0xff]
      %v2118 = vld [vmem:[%s2092 + $0xc8] sm:$0xff]
      %v2119 = vld [vmem:[%s2092 + $0xd0] sm:$0xff]
      %v2120 = vld [vmem:[%s2092 + $0xd8] sm:$0xff]
      %v2121 = vld [vmem:[%s2092 + $0xe0] sm:$0xff]
      %v2122 = vld [vmem:[%s2092 + $0xe8] sm:$0xff]
      %v2123 = vld [vmem:[%s2092 + $0xf0] sm:$0xff]
      %v2124 = vld [vmem:[%s2092 + $0xf8] sm:$0xff]
      %2125 = vmatprep.subr.mxu0 0.0
      %2126 = vmatpush1.msra.mxu0 %v2093
      %2127 = vmatprep.subr.mxu0 0.0
      %2128 = vmatpush1.msra.mxu0 %v2094
      %2129 = vmatprep.subr.mxu0 0.0
      %2130 = vmatpush1.msra.mxu0 %v2095
      %2131 = vmatprep.subr.mxu0 0.0
      %2132 = vmatpush1.msra.mxu0 %v2096
      %2133 = vmatprep.subr.mxu0 0.0
      %2134 = vmatpush1.msra.mxu0 %v2097
      %2135 = vmatprep.subr.mxu0 0.0
      %2136 = vmatpush1.msra.mxu0 %v2098
      %2137 = vmatprep.subr.mxu0 0.0
      %2138 = vmatpush1.msra.mxu0 %v2099
      %2139 = vmatprep.subr.mxu0 0.0
      %2140 = vmatpush1.msra.mxu0 %v2100
      %2141 = vmatprep.subr.mxu0 0.0
      %2142 = vmatpush1.msra.mxu0 %v2101
      %2143 = vmatprep.subr.mxu0 0.0
      %2144 = vmatpush1.msra.mxu0 %v2102
      %2145 = vmatprep.subr.mxu0 0.0
      %2146 = vmatpush1.msra.mxu0 %v2103
      %2147 = vmatprep.subr.mxu0 0.0
      %2148 = vmatpush1.msra.mxu0 %v2104
      %2149 = vmatprep.subr.mxu0 0.0
      %2150 = vmatpush1.msra.mxu0 %v2105
      %2151 = vmatprep.subr.mxu0 0.0
      %2152 = vmatpush1.msra.mxu0 %v2106
      %2153 = vmatprep.subr.mxu0 0.0
      %2154 = vmatpush1.msra.mxu0 %v2107
      %2155 = vmatprep.subr.mxu0 0.0
      %2156 = vmatpush1.msra.mxu0 %v2108
      %2157 = vmatprep.subr.mxu0 0.0
      %2158 = vmatpush1.msra.mxu0 %v2109
      %2159 = vmatprep.subr.mxu0 0.0
      %2160 = vmatpush1.msra.mxu0 %v2110
      %2161 = vmatprep.subr.mxu0 0.0
      %2162 = vmatpush1.msra.mxu0 %v2111
      %2163 = vmatprep.subr.mxu0 0.0
      %2164 = vmatpush1.msra.mxu0 %v2112
      %2165 = vmatprep.subr.mxu0 0.0
      %2166 = vmatpush1.msra.mxu0 %v2113
      %2167 = vmatprep.subr.mxu0 0.0
      %2168 = vmatpush1.msra.mxu0 %v2114
      %2169 = vmatprep.subr.mxu0 0.0
      %2170 = vmatpush1.msra.mxu0 %v2115
      %2171 = vmatprep.subr.mxu0 0.0
      %2172 = vmatpush1.msra.mxu0 %v2116
      %2173 = vmatprep.subr.mxu0 0.0
      %2174 = vmatpush1.msra.mxu0 %v2117
      %2175 = vmatprep.subr.mxu0 0.0
      %2176 = vmatpush1.msra.mxu0 %v2118
      %2177 = vmatprep.subr.mxu0 0.0
      %2178 = vmatpush1.msra.mxu0 %v2119
      %2179 = vmatprep.subr.mxu0 0.0
      %2180 = vmatpush1.msra.mxu0 %v2120
      %2181 = vmatprep.subr.mxu0 0.0
      %2182 = vmatpush1.msra.mxu0 %v2121
      %2183 = vmatprep.subr.mxu0 0.0
      %2184 = vmatpush1.msra.mxu0 %v2122
      %2185 = vmatprep.subr.mxu0 0.0
      %2186 = vmatpush1.msra.mxu0 %v2123
      %2187 = vmatprep.subr.mxu0 0.0
      %2188 = vmatpush1.msra.mxu0 %v2124
      %2189 = vmatprep.mubr.f32.mxu0 %v2033
      %2190 = vmatmul.mubr.f32.gmra.mrb[0].mxu0 %v2030
      %v2191 = vpop.f32.mrb[0].mxu0
      %v2192 = vadd.f32 0.0, %v2191
      %v2193 = vpop.f32.mrb[0].mxu0
      %2194 = vmatprep.mubr.f32.mxu0 %v2039
      %2195 = vmatmul.mubr.f32.gmra.mrb[0].mxu0 %v2036
      %v2196 = vpop.f32.mrb[0].mxu0
      %v2197 = vadd.f32 0.0, %v2196
      %v2198 = vpop.f32.mrb[0].mxu0
      %2199 = vmatprep.mubr.f32.mxu0 %v2045
      %2200 = vmatmul.mubr.f32.gmra.mrb[0].mxu0 %v2042
      %v2201 = vpop.f32.mrb[0].mxu0
      %v2202 = vadd.f32 0.0, %v2201
      %v2203 = vpop.f32.mrb[0].mxu0
      %2204 = vmatprep.mubr.f32.mxu0 %v2051
      %2205 = vmatmul.mubr.f32.gmra.mrb[0].mxu0 %v2048
      %v2206 = vpop.f32.mrb[0].mxu0
      %v2207 = vadd.f32 0.0, %v2206
      %v2208 = vpop.f32.mrb[0].mxu0
      %2209 = vmatprep.mubr.f32.mxu0 %v2057
      %2210 = vmatmul.mubr.f32.gmra.mrb[0].mxu0 %v2054
      %v2211 = vpop.f32.mrb[0].mxu0
      %v2212 = vadd.f32 0.0, %v2211
      %v2213 = vpop.f32.mrb[0].mxu0
      %2214 = vmatprep.mubr.f32.mxu0 %v2063
      %2215 = vmatmul.mubr.f32.gmra.mrb[0].mxu0 %v2060
      %v2216 = vpop.f32.mrb[0].mxu0
      %v2217 = vadd.f32 0.0, %v2216
      %v2218 = vpop.f32.mrb[0].mxu0
      %2219 = vmatprep.mubr.f32.mxu0 %v2069
      %2220 = vmatmul.mubr.f32.gmra.mrb[0].mxu0 %v2066
      %v2221 = vpop.f32.mrb[0].mxu0
      %v2222 = vadd.f32 0.0, %v2221
      %v2223 = vpop.f32.mrb[0].mxu0
      %2224 = vmatprep.mubr.f32.mxu0 %v2075
      %2225 = vmatmul.mubr.f32.gmra.mrb[0].mxu0 %v2072
      %v2226 = vpop.f32.mrb[0].mxu0
      %v2227 = vadd.f32 0.0, %v2226
      %v2228 = vpop.f32.mrb[0].mxu0
      %2229 = vdwg.mxu0
      %v2230 = vadd.f32 %v1810, %v2192
      %v2231 = vadd.f32 %v1811, %v2197
      %v2232 = vadd.f32 %v1812, %v2202
      %v2233 = vadd.f32 %v1813, %v2207
      %v2234 = vadd.f32 %v1814, %v2212
      %v2235 = vadd.f32 %v1815, %v2217
      %v2236 = vadd.f32 %v1816, %v2222
      %v2237 = vadd.f32 %v1817, %v2227
      %s2238 = scalar_lea.vmem %s2, 1280
      %v2239 = vld [vmem:[%s2238] sm:$0xff]
      %v2240 = vld [vmem:[%s2238 + $0x8] sm:$0xff]
      %v2241 = vld [vmem:[%s2238 + $0x10] sm:$0xff]
      %v2242 = vld [vmem:[%s2238 + $0x18] sm:$0xff]
      %v2243 = vld [vmem:[%s2238 + $0x20] sm:$0xff]
      %v2244 = vld [vmem:[%s2238 + $0x28] sm:$0xff]
      %v2245 = vld [vmem:[%s2238 + $0x30] sm:$0xff]
      %v2246 = vld [vmem:[%s2238 + $0x38] sm:$0xff]
      %v2247 = vld [vmem:[%s2238 + $0x40] sm:$0xff]
      %v2248 = vld [vmem:[%s2238 + $0x48] sm:$0xff]
      %v2249 = vld [vmem:[%s2238 + $0x50] sm:$0xff]
      %v2250 = vld [vmem:[%s2238 + $0x58] sm:$0xff]
      %v2251 = vld [vmem:[%s2238 + $0x60] sm:$0xff]
      %v2252 = vld [vmem:[%s2238 + $0x68] sm:$0xff]
      %v2253 = vld [vmem:[%s2238 + $0x70] sm:$0xff]
      %v2254 = vld [vmem:[%s2238 + $0x78] sm:$0xff]
      %v2255 = vld [vmem:[%s2238 + $0x80] sm:$0xff]
      %v2256 = vld [vmem:[%s2238 + $0x88] sm:$0xff]
      %v2257 = vld [vmem:[%s2238 + $0x90] sm:$0xff]
      %v2258 = vld [vmem:[%s2238 + $0x98] sm:$0xff]
      %v2259 = vld [vmem:[%s2238 + $0xa0] sm:$0xff]
      %v2260 = vld [vmem:[%s2238 + $0xa8] sm:$0xff]
      %v2261 = vld [vmem:[%s2238 + $0xb0] sm:$0xff]
      %v2262 = vld [vmem:[%s2238 + $0xb8] sm:$0xff]
      %v2263 = vld [vmem:[%s2238 + $0xc0] sm:$0xff]
      %v2264 = vld [vmem:[%s2238 + $0xc8] sm:$0xff]
      %v2265 = vld [vmem:[%s2238 + $0xd0] sm:$0xff]
      %v2266 = vld [vmem:[%s2238 + $0xd8] sm:$0xff]
      %v2267 = vld [vmem:[%s2238 + $0xe0] sm:$0xff]
      %v2268 = vld [vmem:[%s2238 + $0xe8] sm:$0xff]
      %v2269 = vld [vmem:[%s2238 + $0xf0] sm:$0xff]
      %v2270 = vld [vmem:[%s2238 + $0xf8] sm:$0xff]
      %2271 = vmatprep.subr.mxu0 0.0
      %2272 = vmatpush1.msra.mxu0 %v2239
      %2273 = vmatprep.subr.mxu0 0.0
      %2274 = vmatpush1.msra.mxu0 %v2240
      %2275 = vmatprep.subr.mxu0 0.0
      %2276 = vmatpush1.msra.mxu0 %v2241
      %2277 = vmatprep.subr.mxu0 0.0
      %2278 = vmatpush1.msra.mxu0 %v2242
      %2279 = vmatprep.subr.mxu0 0.0
      %2280 = vmatpush1.msra.mxu0 %v2243
      %2281 = vmatprep.subr.mxu0 0.0
      %2282 = vmatpush1.msra.mxu0 %v2244
      %2283 = vmatprep.subr.mxu0 0.0
      %2284 = vmatpush1.msra.mxu0 %v2245
      %2285 = vmatprep.subr.mxu0 0.0
      %2286 = vmatpush1.msra.mxu0 %v2246
      %2287 = vmatprep.subr.mxu0 0.0
      %2288 = vmatpush1.msra.mxu0 %v2247
      %2289 = vmatprep.subr.mxu0 0.0
      %2290 = vmatpush1.msra.mxu0 %v2248
      %2291 = vmatprep.subr.mxu0 0.0
      %2292 = vmatpush1.msra.mxu0 %v2249
      %2293 = vmatprep.subr.mxu0 0.0
      %2294 = vmatpush1.msra.mxu0 %v2250
      %2295 = vmatprep.subr.mxu0 0.0
      %2296 = vmatpush1.msra.mxu0 %v2251
      %2297 = vmatprep.subr.mxu0 0.0
      %2298 = vmatpush1.msra.mxu0 %v2252
      %2299 = vmatprep.subr.mxu0 0.0
      %2300 = vmatpush1.msra.mxu0 %v2253
      %2301 = vmatprep.subr.mxu0 0.0
      %2302 = vmatpush1.msra.mxu0 %v2254
      %2303 = vmatprep.subr.mxu0 0.0
      %2304 = vmatpush1.msra.mxu0 %v2255
      %2305 = vmatprep.subr.mxu0 0.0
      %2306 = vmatpush1.msra.mxu0 %v2256
      %2307 = vmatprep.subr.mxu0 0.0
      %2308 = vmatpush1.msra.mxu0 %v2257
      %2309 = vmatprep.subr.mxu0 0.0
      %2310 = vmatpush1.msra.mxu0 %v2258
      %2311 = vmatprep.subr.mxu0 0.0
      %2312 = vmatpush1.msra.mxu0 %v2259
      %2313 = vmatprep.subr.mxu0 0.0
      %2314 = vmatpush1.msra.mxu0 %v2260
      %2315 = vmatprep.subr.mxu0 0.0
      %2316 = vmatpush1.msra.mxu0 %v2261
      %2317 = vmatprep.subr.mxu0 0.0
      %2318 = vmatpush1.msra.mxu0 %v2262
      %2319 = vmatprep.subr.mxu0 0.0
      %2320 = vmatpush1.msra.mxu0 %v2263
      %2321 = vmatprep.subr.mxu0 0.0
      %2322 = vmatpush1.msra.mxu0 %v2264
      %2323 = vmatprep.subr.mxu0 0.0
      %2324 = vmatpush1.msra.mxu0 %v2265
      %2325 = vmatprep.subr.mxu0 0.0
      %2326 = vmatpush1.msra.mxu0 %v2266
      %2327 = vmatprep.subr.mxu0 0.0
      %2328 = vmatpush1.msra.mxu0 %v2267
      %2329 = vmatprep.subr.mxu0 0.0
      %2330 = vmatpush1.msra.mxu0 %v2268
      %2331 = vmatprep.subr.mxu0 0.0
      %2332 = vmatpush1.msra.mxu0 %v2269
      %2333 = vmatprep.subr.mxu0 0.0
      %2334 = vmatpush1.msra.mxu0 %v2270
      %2335 = vmatprep.mubr.f32.mxu0 %v2033
      %2336 = vmatmul.mubr.f32.gmra.mrb[0].mxu0 %v2030
      %v2337 = vpop.f32.mrb[0].mxu0
      %v2338 = vadd.f32 0.0, %v2337
      %v2339 = vpop.f32.mrb[0].mxu0
      %2340 = vmatprep.mubr.f32.mxu0 %v2039
      %2341 = vmatmul.mubr.f32.gmra.mrb[0].mxu0 %v2036
      %v2342 = vpop.f32.mrb[0].mxu0
      %v2343 = vadd.f32 0.0, %v2342
      %v2344 = vpop.f32.mrb[0].mxu0
      %2345 = vmatprep.mubr.f32.mxu0 %v2045
      %2346 = vmatmul.mubr.f32.gmra.mrb[0].mxu0 %v2042
      %v2347 = vpop.f32.mrb[0].mxu0
      %v2348 = vadd.f32 0.0, %v2347
      %v2349 = vpop.f32.mrb[0].mxu0
      %2350 = vmatprep.mubr.f32.mxu0 %v2051
      %2351 = vmatmul.mubr.f32.gmra.mrb[0].mxu0 %v2048
      %v2352 = vpop.f32.mrb[0].mxu0
      %v2353 = vadd.f32 0.0, %v2352
      %v2354 = vpop.f32.mrb[0].mxu0
      %2355 = vmatprep.mubr.f32.mxu0 %v2057
      %2356 = vmatmul.mubr.f32.gmra.mrb[0].mxu0 %v2054
      %v2357 = vpop.f32.mrb[0].mxu0
      %v2358 = vadd.f32 0.0, %v2357
      %v2359 = vpop.f32.mrb[0].mxu0
      %2360 = vmatprep.mubr.f32.mxu0 %v2063
      %2361 = vmatmul.mubr.f32.gmra.mrb[0].mxu0 %v2060
      %v2362 = vpop.f32.mrb[0].mxu0
      %v2363 = vadd.f32 0.0, %v2362
      %v2364 = vpop.f32.mrb[0].mxu0
      %2365 = vmatprep.mubr.f32.mxu0 %v2069
      %2366 = vmatmul.mubr.f32.gmra.mrb[0].mxu0 %v2066
      %v2367 = vpop.f32.mrb[0].mxu0
      %v2368 = vadd.f32 0.0, %v2367
      %v2369 = vpop.f32.mrb[0].mxu0
      %2370 = vmatprep.mubr.f32.mxu0 %v2075
      %2371 = vmatmul.mubr.f32.gmra.mrb[0].mxu0 %v2072
      %v2372 = vpop.f32.mrb[0].mxu0
      %v2373 = vadd.f32 0.0, %v2372
      %v2374 = vpop.f32.mrb[0].mxu0
      %2375 = vdwg.mxu0
      %v2376 = vadd.f32 %v1956, %v2338
      %v2377 = vadd.f32 %v1957, %v2343
      %v2378 = vadd.f32 %v1958, %v2348
      %v2379 = vadd.f32 %v1959, %v2353
      %v2380 = vadd.f32 %v1960, %v2358
      %v2381 = vadd.f32 %v1961, %v2363
      %v2382 = vadd.f32 %v1962, %v2368
      %v2383 = vadd.f32 %v1963, %v2373
      %v2384 = vld [vmem:[%s3] sm:$0x1]
      %v2386 = vlaneseq
      %v2387 = vshrl.u32 %v2386, 7
      %v2388 = vsub.s32 0, %v2387
      %v2389 = vrot.slane %v2384, %v2388
      %v2391 = vadd.f32 %v2230, %v2389
      %v2392 = vadd.f32 %v2231, %v2389
      %v2393 = vadd.f32 %v2232, %v2389
      %v2394 = vadd.f32 %v2233, %v2389
      %v2395 = vadd.f32 %v2234, %v2389
      %v2396 = vadd.f32 %v2235, %v2389
      %v2397 = vadd.f32 %v2236, %v2389
      %v2398 = vadd.f32 %v2237, %v2389
      %v2399 = vmax.f32 %v2391, 0.0
      %v2400 = vmax.f32 %v2392, 0.0
      %v2401 = vmax.f32 %v2393, 0.0
      %v2402 = vmax.f32 %v2394, 0.0
      %v2403 = vmax.f32 %v2395, 0.0
      %v2404 = vmax.f32 %v2396, 0.0
      %v2405 = vmax.f32 %v2397, 0.0
      %v2406 = vmax.f32 %v2398, 0.0
      %v2407 = vadd.f32 %v2376, %v2389
      %v2408 = vadd.f32 %v2377, %v2389
      %v2409 = vadd.f32 %v2378, %v2389
      %v2410 = vadd.f32 %v2379, %v2389
      %v2411 = vadd.f32 %v2380, %v2389
      %v2412 = vadd.f32 %v2381, %v2389
      %v2413 = vadd.f32 %v2382, %v2389
      %v2414 = vadd.f32 %v2383, %v2389
      %v2415 = vmax.f32 %v2407, 0.0
      %v2416 = vmax.f32 %v2408, 0.0
      %v2417 = vmax.f32 %v2409, 0.0
      %v2418 = vmax.f32 %v2410, 0.0
      %v2419 = vmax.f32 %v2411, 0.0
      %v2420 = vmax.f32 %v2412, 0.0
      %v2421 = vmax.f32 %v2413, 0.0
      %v2422 = vmax.f32 %v2414, 0.0
      %v2423 = vmax.f32 %v2399, %v2415
      %v2424 = vmax.f32 %v2400, %v2416
      %v2425 = vmax.f32 %v2401, %v2417
      %v2426 = vmax.f32 %v2402, %v2418
      %v2427 = vmax.f32 %v2403, %v2419
      %v2428 = vmax.f32 %v2404, %v2420
      %v2429 = vmax.f32 %v2405, %v2421
      %v2430 = vmax.f32 %v2406, %v2422
      %v2431 = vmax.f32 %v2423, %v2424
      %v2432 = vmax.f32 %v2425, %v2426
      %v2433 = vmax.f32 %v2427, %v2428
      %v2434 = vmax.f32 %v2429, %v2430
      %2435 = vst [vmem:[%s219] sm:$0xff] %v2431
      %2436 = vst [vmem:[%s219 + $0x8] sm:$0xff] %v2432
      %2437 = vst [vmem:[%s219 + $0x10] sm:$0xff] %v2433
      %2438 = vst [vmem:[%s219 + $0x18] sm:$0xff] %v2434
      %s2439 = smul.u32 4, %s20
      %p2440 = scmp.lt.s32.totalorder %s19, 1
      %s2441 = scalar_select %p2440, %s19, 1
      %p2442 = scmp.lt.s32.totalorder %s2439, 3
      %s2443 = scalar_select %p2442, %s2439, 3
      %s2444 = smul.addr %s2441, 4
      %s2445 = sadd.s32 %s2443, %s2444
      %s2446 = smul.addr %s2445, 8
      %s2447 = scalar_lea.vmem %s4, %s2446
      // Predicated region
      $region37: #{eye_diameter_net.5} parent=35 // pred_check
        %p2448 = pneg %p136
      $region38: #{eye_diameter_net.5} parent=35 // pred_check_branch
        %2450 = sbr.rel (%p2448) target = $region40
      $region39: #{eye_diameter_net.5} parent=35 // pred_region
        %s2451 = smul.u32 4, %s20
      $region40: #{eye_diameter_net.5} parent=35 // pred_fallthru
        _
    $region36: #{eye_diameter_net.5} parent=5 // pred_fallthru
      _
    %p2452 = scmp.le.s32.totalorder 2, %s10
    // Predicated region
    $region41: #{eye_diameter_net.5} parent=5 // pred_check
      %p2453 = pneg %p2452
    $region42: #{eye_diameter_net.5} parent=5 // pred_check_branch
      %2455 = sbr.rel (%p2453) target = $region44
    $region43: #{eye_diameter_net.5} parent=5 // pred_region
      %s2456 = ssub.s32 %s10, 2
      // Predicated region
      $region45: #{eye_diameter_net.5} parent=43 // pred_check
        %p2457 = pneg %p142
      $region46: #{eye_diameter_net.5} parent=43 // pred_check_branch
        %2459 = sbr.rel (%p2457) target = $region48
      $region47: #{eye_diameter_net.5} parent=43 // pred_region
        %s2460 = smul.u32 4, %s22
        %p2461 = scmp.lt.s32.totalorder %s21, 1
        %s2462 = scalar_select %p2461, %s21, 1
        %p2463 = scmp.lt.s32.totalorder %s2460, 3
        %s2464 = scalar_select %p2463, %s2460, 3
        %s2465 = smul.addr %s2462, 4
        %s2466 = sadd.s32 %s2464, %s2465
        %s2467 = smul.addr %s2466, 8
        %s2468 = scalar_lea.vmem %s4, %s2467
      $region48: #{eye_diameter_net.5} parent=43 // pred_fallthru
        _
    $region44: #{eye_diameter_net.5} parent=5 // pred_fallthru
      _
  $region6: #{eye_diameter_net.5} parent=0 // loop_footer
    %s14 = sadd.s32 1, %s10
  $region7: #{eye_diameter_net.5} parent=0 // loop_footer_branch
    %9 = sbr.rel target = $region3
  $region8: #{eye_diameter_net.5} parent=0 // loop_exit
    _

// kernel: eye_diameter_net.6
$region0: #{eye_diameter_net.6}
  #allocation0 [shape = 'u32[]', space=smem, size = 0x4, offset = 0x4, fixed_abs, tag = 'smem constant byte address 0x4 - core index']
  #allocation1 [shape = 'u32[144,128]{1,0:T(1,128)}', space=vmem, size = 0x12000, scoped, tag = 'internal scratch']
  %s0 = inlined_call_operand.vmem [shape: f32[2,6,9,256], index: 0, kind: input, shape index: {}]
  %s1 = inlined_call_operand.vmem [shape: f32[6,256,128], index: 1, kind: input, shape index: {}]
  %s2 = inlined_call_operand.vmem [shape: f32[6,256,128], index: 2, kind: input, shape index: {}]
  %s3 = inlined_call_operand.vmem [shape: f32[1,128], index: 3, kind: input, shape index: {}]
  %s4 = inlined_call_operand.vmem [shape: f32[2,2,8,128], index: 4, kind: output, shape index: {}]
  %s5 = sld [smem:[#allocation0]]
  $region49: #{eye_diameter_net.6} parent=0
    _
  %s7 = ssub.s32 1, %s5
  %s8 = scalar_select 0, %s7, %s5
  loop: start=0, step=1, limit=4
  $region2: #{eye_diameter_net.6} parent=0 // loop_pre_header
    _
  $region3: #{eye_diameter_net.6} parent=0 // loop_header
    %s10 = sphi 0, %s14
    %p11 = scmp.ge.s32.totalorder %s10, 4
    %s17 = sphi 0, %s29
    %s18 = sphi 0, %s25
    %s19 = sphi 0, %s17
    %s20 = sphi 0, %s18
    %s21 = sphi 0, %s19
    %s22 = sphi 0, %s20
    %s32 = sphi 0, %s34
    %s35 = sphi 0, %s32
    %s36 = sphi 0, %s35
    %s52 = sphi 0, %s36
    %s56 = sphi 0, %s56
    %s58 = sphi 0, %s56
    %s59 = sphi 0, %s58
    %s73 = sphi 0, %s59
    %s77 = sphi 0, %s77
    %s79 = sphi 0, %s77
    %s80 = sphi 0, %s79
    %s94 = sphi 0, %s80
    %s98 = sphi 0, %s98
    %s100 = sphi 0, %s98
    %s101 = sphi 0, %s100
    %s115 = sphi 0, %s101
    %s123 = sphi 0, %s125
    %s126 = sphi 0, %s123
    %s127 = sphi 0, %s126
    %s143 = sphi 0, %s127
  $region4: #{eye_diameter_net.6} parent=0 // loop_header_branch
    %13 = sbr.rel (%p11) target = $region8
  $region5: #{eye_diameter_net.6} parent=0 // loop_body
    %s15 = ssub.s32 %s10, 1
    %s16 = ssub.s32 %s10, 2
    %s23 = sadd.s32 1, %s18
    %p24 = scmp.ge.s32.totalorder %s23, 1
    %s25 = scalar_select %p24, 0, %s23
    %s26 = sadd.s32 1, %s17
    %s27 = scalar_select %p24, %s26, %s17
    %p28 = scmp.ge.s32.totalorder %s27, 2
    %s29 = scalar_select %p28, 0, %s27
    %s30 = ssub.s32 %s17, %s29
    %p31 = scmp.eq.s32.totalorder %s30, 0
    %s33 = sadd.s32 %s32, 1
    %s34 = scalar_select %p31, %s32, %s33
    %p37 = pneg %p31
    %p38 = scmp.eq.s32.totalorder %s10, 1
    %p39 = por %p37, %p38
    %p40 = scmp.ne.s32.totalorder %s32, %s35
    %p41 = scmp.eq.s32.totalorder %s10, 0
    %p42 = por %p40, %p41
    %p43 = scmp.ne.s32.totalorder %s32, %s35
    %p44 = scmp.eq.s32.totalorder %s15, 1
    %p45 = por %p43, %p44
    %p46 = scmp.ne.s32.totalorder %s35, %s36
    %p47 = scmp.eq.s32.totalorder %s15, 0
    %p48 = por %p46, %p47
    %p49 = scmp.ne.s32.totalorder %s35, %s36
    %p50 = scmp.eq.s32.totalorder %s16, 1
    %p51 = por %p49, %p50
    %p53 = scmp.ne.s32.totalorder %s36, %s52
    %p54 = scmp.eq.s32.totalorder %s16, 0
    %p55 = por %p53, %p54
    %s57 = sadd.s32 %s56, 1
    %p60 = scmp.eq.s32.totalorder %s10, 1
    %p61 = scmp.ne.s32.totalorder %s56, %s58
    %p62 = scmp.eq.s32.totalorder %s10, 0
    %p63 = por %p61, %p62
    %p64 = scmp.ne.s32.totalorder %s56, %s58
    %p65 = scmp.eq.s32.totalorder %s15, 1
    %p66 = por %p64, %p65
    %p67 = scmp.ne.s32.totalorder %s58, %s59
    %p68 = scmp.eq.s32.totalorder %s15, 0
    %p69 = por %p67, %p68
    %p70 = scmp.ne.s32.totalorder %s58, %s59
    %p71 = scmp.eq.s32.totalorder %s16, 1
    %p72 = por %p70, %p71
    %p74 = scmp.ne.s32.totalorder %s59, %s73
    %p75 = scmp.eq.s32.totalorder %s16, 0
    %p76 = por %p74, %p75
    %s78 = sadd.s32 %s77, 1
    %p81 = scmp.eq.s32.totalorder %s10, 1
    %p82 = scmp.ne.s32.totalorder %s77, %s79
    %p83 = scmp.eq.s32.totalorder %s10, 0
    %p84 = por %p82, %p83
    %p85 = scmp.ne.s32.totalorder %s77, %s79
    %p86 = scmp.eq.s32.totalorder %s15, 1
    %p87 = por %p85, %p86
    %p88 = scmp.ne.s32.totalorder %s79, %s80
    %p89 = scmp.eq.s32.totalorder %s15, 0
    %p90 = por %p88, %p89
    %p91 = scmp.ne.s32.totalorder %s79, %s80
    %p92 = scmp.eq.s32.totalorder %s16, 1
    %p93 = por %p91, %p92
    %p95 = scmp.ne.s32.totalorder %s80, %s94
    %p96 = scmp.eq.s32.totalorder %s16, 0
    %p97 = por %p95, %p96
    %s99 = sadd.s32 %s98, 1
    %p102 = scmp.eq.s32.totalorder %s10, 1
    %p103 = scmp.ne.s32.totalorder %s98, %s100
    %p104 = scmp.eq.s32.totalorder %s10, 0
    %p105 = por %p103, %p104
    %p106 = scmp.ne.s32.totalorder %s98, %s100
    %p107 = scmp.eq.s32.totalorder %s15, 1
    %p108 = por %p106, %p107
    %p109 = scmp.ne.s32.totalorder %s100, %s101
    %p110 = scmp.eq.s32.totalorder %s15, 0
    %p111 = por %p109, %p110
    %p112 = scmp.ne.s32.totalorder %s100, %s101
    %p113 = scmp.eq.s32.totalorder %s16, 1
    %p114 = por %p112, %p113
    %p116 = scmp.ne.s32.totalorder %s101, %s115
    %p117 = scmp.eq.s32.totalorder %s16, 0
    %p118 = por %p116, %p117
    %s119 = ssub.s32 %s17, %s29
    %s120 = ssub.s32 %s18, %s25
    %s121 = sor.u32 %s119, %s120
    %p122 = scmp.eq.s32.totalorder %s121, 0
    %s124 = sadd.s32 %s123, 1
    %s125 = scalar_select %p122, %s123, %s124
    %p128 = pneg %p122
    %p129 = scmp.eq.s32.totalorder %s10, 1
    %p130 = por %p128, %p129
    %p131 = scmp.ne.s32.totalorder %s123, %s126
    %p132 = scmp.eq.s32.totalorder %s10, 0
    %p133 = por %p131, %p132
    %p134 = scmp.ne.s32.totalorder %s123, %s126
    %p135 = scmp.eq.s32.totalorder %s15, 1
    %p136 = por %p134, %p135
    %p137 = scmp.ne.s32.totalorder %s126, %s127
    %p138 = scmp.eq.s32.totalorder %s15, 0
    %p139 = por %p137, %p138
    %p140 = scmp.ne.s32.totalorder %s126, %s127
    %p141 = scmp.eq.s32.totalorder %s16, 1
    %p142 = por %p140, %p141
    %p144 = scmp.ne.s32.totalorder %s127, %s143
    %p145 = scmp.eq.s32.totalorder %s16, 0
    %p146 = por %p144, %p145
    %p147 = scmp.le.s32.totalorder 1, %s10
    %p148 = scmp.lt.s32.totalorder %s10, 3
    %p149 = pnand %p147, %p148
    %p150 = pneg %p149
    // Predicated region
    $region9: #{eye_diameter_net.6} parent=5 // pred_check
      _
    $region10: #{eye_diameter_net.6} parent=5 // pred_check_branch
      %152 = sbr.rel (%p149) target = $region12
    $region11: #{eye_diameter_net.6} parent=5 // pred_region
      %s153 = ssub.s32 %s10, 1
      // Predicated region
      $region13: #{eye_diameter_net.6} parent=11 // pred_check
        %p154 = pneg %p69
      $region14: #{eye_diameter_net.6} parent=11 // pred_check_branch
        %156 = sbr.rel (%p154) target = $region16
      $region15: #{eye_diameter_net.6} parent=11 // pred_region
        _
      $region16: #{eye_diameter_net.6} parent=11 // pred_fallthru
        _
      // Predicated region
      $region17: #{eye_diameter_net.6} parent=11 // pred_check
        %p157 = pneg %p90
      $region18: #{eye_diameter_net.6} parent=11 // pred_check_branch
        %159 = sbr.rel (%p157) target = $region20
      $region19: #{eye_diameter_net.6} parent=11 // pred_region
        _
      $region20: #{eye_diameter_net.6} parent=11 // pred_fallthru
        _
      // Predicated region
      $region21: #{eye_diameter_net.6} parent=11 // pred_check
        %p160 = pneg %p111
      $region22: #{eye_diameter_net.6} parent=11 // pred_check_branch
        %162 = sbr.rel (%p160) target = $region24
      $region23: #{eye_diameter_net.6} parent=11 // pred_region
        _
      $region24: #{eye_diameter_net.6} parent=11 // pred_fallthru
        _
    $region12: #{eye_diameter_net.6} parent=5 // pred_fallthru
      _
    %p163 = scmp.lt.s32.totalorder %s10, 2
    // Predicated region
    $region25: #{eye_diameter_net.6} parent=5 // pred_check
      %p164 = pneg %p163
    $region26: #{eye_diameter_net.6} parent=5 // pred_check_branch
      %166 = sbr.rel (%p164) target = $region28
    $region27: #{eye_diameter_net.6} parent=5 // pred_region
      // Predicated region
      $region29: #{eye_diameter_net.6} parent=27 // pred_check
        %p167 = pneg %p42
      $region30: #{eye_diameter_net.6} parent=27 // pred_check_branch
        %169 = sbr.rel (%p167) target = $region32
      $region31: #{eye_diameter_net.6} parent=27 // pred_region
        %p170 = scmp.lt.s32.totalorder %s17, 1
        %s171 = scalar_select %p170, %s17, 1
        %s172 = smul.addr %s171, 24
        %s173 = smul.addr %s172, 8
        %s174 = scalar_lea.vmem %s0, %s173
      $region32: #{eye_diameter_net.6} parent=27 // pred_fallthru
        _
    $region28: #{eye_diameter_net.6} parent=5 // pred_fallthru
      _
    %p175 = scmp.le.s32.totalorder 1, %s10
    %p176 = scmp.lt.s32.totalorder %s10, 3
    %p177 = pnand %p175, %p176
    %p178 = pneg %p177
    // Predicated region
    $region33: #{eye_diameter_net.6} parent=5 // pred_check
      _
    $region34: #{eye_diameter_net.6} parent=5 // pred_check_branch
      %180 = sbr.rel (%p177) target = $region36
    $region35: #{eye_diameter_net.6} parent=5 // pred_region
      %s181 = ssub.s32 %s10, 1
      %p182 = scmp.lt.s32.totalorder %s19, 1
      %s183 = scalar_select %p182, %s19, 1
      %s184 = smul.addr %s183, 24
      %s185 = smul.addr %s184, 8
      %s186 = scalar_lea.vmem %s0, %s185
      %p187 = pneg %p48
      %p188 = pneg %p45
      %p189 = pneg %p69
      %p190 = pneg %p66
      %p191 = pneg %p90
      %p192 = pneg %p87
      %p193 = pneg %p111
      %p194 = pneg %p108
      %p195 = pneg %p139
      %p196 = pneg %p136
      %s197 = smul.u32 2, %s20
      %p198 = scmp.lt.s32.totalorder %s19, 1
      %s199 = scalar_select %p198, %s19, 1
      %p200 = scmp.lt.s32.totalorder %s197, 1
      %s201 = scalar_select %p200, %s197, 1
      %s202 = smul.addr %s199, 2
      %s203 = sadd.s32 %s201, %s202
      %s204 = smul.addr %s203, 8
      %s205 = scalar_lea.vmem %s4, %s204
      %p206 = scmp.lt.s32.totalorder %s19, 1
      %s207 = scalar_select %p206, %s19, 1
      %s208 = smul.addr %s207, 24
      %s209 = smul.addr %s208, 8
      %s210 = scalar_lea.vmem %s0, %s209
      %s211 = smul.u32 2, %s20
      %p212 = scmp.lt.s32.totalorder %s19, 1
      %s213 = scalar_select %p212, %s19, 1
      %p214 = scmp.lt.s32.totalorder %s211, 1
      %s215 = scalar_select %p214, %s211, 1
      %s216 = smul.addr %s213, 2
      %s217 = sadd.s32 %s215, %s216
      %s218 = smul.addr %s217, 8
      %s219 = scalar_lea.vmem %s4, %s218
      %s220 = smul.u32 2, %s20
      %s221 = smul.u32 %s20, 4
      %s222 = smul.u32 %s221, 4
      %s223 = smul.addr %s222, 8
      %s224 = scalar_lea.vmem %s210, %s223
      %v225 = vld [vmem:[%s224] sm:$0xff]
      %v226 = vld [vmem:[%s224 + $0x8] sm:$0xff]
      %v227 = vld [vmem:[%s224 + $0x20] sm:$0xff]
      %v228 = vld [vmem:[%s224 + $0x28] sm:$0xff]
      %v229 = vld [vmem:[%s224 + $0x40] sm:$0xff]
      %v230 = vld [vmem:[%s224 + $0x48] sm:$0xff]
      %v231 = vld [vmem:[%s224 + $0x60] sm:$0xff]
      %v232 = vld [vmem:[%s224 + $0x68] sm:$0xff]
      %v233 = vld [vmem:[%s1] sm:$0xff]
      %v234 = vld [vmem:[%s1 + $0x8] sm:$0xff]
      %v235 = vld [vmem:[%s1 + $0x10] sm:$0xff]
      %v236 = vld [vmem:[%s1 + $0x18] sm:$0xff]
      %v237 = vld [vmem:[%s1 + $0x20] sm:$0xff]
      %v238 = vld [vmem:[%s1 + $0x28] sm:$0xff]
      %v239 = vld [vmem:[%s1 + $0x30] sm:$0xff]
      %v240 = vld [vmem:[%s1 + $0x38] sm:$0xff]
      %v241 = vld [vmem:[%s1 + $0x40] sm:$0xff]
      %v242 = vld [vmem:[%s1 + $0x48] sm:$0xff]
      %v243 = vld [vmem:[%s1 + $0x50] sm:$0xff]
      %v244 = vld [vmem:[%s1 + $0x58] sm:$0xff]
      %v245 = vld [vmem:[%s1 + $0x60] sm:$0xff]
      %v246 = vld [vmem:[%s1 + $0x68] sm:$0xff]
      %v247 = vld [vmem:[%s1 + $0x70] sm:$0xff]
      %v248 = vld [vmem:[%s1 + $0x78] sm:$0xff]
      %v249 = vld [vmem:[%s1 + $0x80] sm:$0xff]
      %v250 = vld [vmem:[%s1 + $0x88] sm:$0xff]
      %v251 = vld [vmem:[%s1 + $0x90] sm:$0xff]
      %v252 = vld [vmem:[%s1 + $0x98] sm:$0xff]
      %v253 = vld [vmem:[%s1 + $0xa0] sm:$0xff]
      %v254 = vld [vmem:[%s1 + $0xa8] sm:$0xff]
      %v255 = vld [vmem:[%s1 + $0xb0] sm:$0xff]
      %v256 = vld [vmem:[%s1 + $0xb8] sm:$0xff]
      %v257 = vld [vmem:[%s1 + $0xc0] sm:$0xff]
      %v258 = vld [vmem:[%s1 + $0xc8] sm:$0xff]
      %v259 = vld [vmem:[%s1 + $0xd0] sm:$0xff]
      %v260 = vld [vmem:[%s1 + $0xd8] sm:$0xff]
      %v261 = vld [vmem:[%s1 + $0xe0] sm:$0xff]
      %v262 = vld [vmem:[%s1 + $0xe8] sm:$0xff]
      %v263 = vld [vmem:[%s1 + $0xf0] sm:$0xff]
      %v264 = vld [vmem:[%s1 + $0xf8] sm:$0xff]
      %v265 = vld [vmem:[%s2] sm:$0xff]
      %v266 = vld [vmem:[%s2 + $0x8] sm:$0xff]
      %v267 = vld [vmem:[%s2 + $0x10] sm:$0xff]
      %v268 = vld [vmem:[%s2 + $0x18] sm:$0xff]
      %v269 = vld [vmem:[%s2 + $0x20] sm:$0xff]
      %v270 = vld [vmem:[%s2 + $0x28] sm:$0xff]
      %v271 = vld [vmem:[%s2 + $0x30] sm:$0xff]
      %v272 = vld [vmem:[%s2 + $0x38] sm:$0xff]
      %v273 = vld [vmem:[%s2 + $0x40] sm:$0xff]
      %v274 = vld [vmem:[%s2 + $0x48] sm:$0xff]
      %v275 = vld [vmem:[%s2 + $0x50] sm:$0xff]
      %v276 = vld [vmem:[%s2 + $0x58] sm:$0xff]
      %v277 = vld [vmem:[%s2 + $0x60] sm:$0xff]
      %v278 = vld [vmem:[%s2 + $0x68] sm:$0xff]
      %v279 = vld [vmem:[%s2 + $0x70] sm:$0xff]
      %v280 = vld [vmem:[%s2 + $0x78] sm:$0xff]
      %v281 = vld [vmem:[%s2 + $0x80] sm:$0xff]
      %v282 = vld [vmem:[%s2 + $0x88] sm:$0xff]
      %v283 = vld [vmem:[%s2 + $0x90] sm:$0xff]
      %v284 = vld [vmem:[%s2 + $0x98] sm:$0xff]
      %v285 = vld [vmem:[%s2 + $0xa0] sm:$0xff]
      %v286 = vld [vmem:[%s2 + $0xa8] sm:$0xff]
      %v287 = vld [vmem:[%s2 + $0xb0] sm:$0xff]
      %v288 = vld [vmem:[%s2 + $0xb8] sm:$0xff]
      %v289 = vld [vmem:[%s2 + $0xc0] sm:$0xff]
      %v290 = vld [vmem:[%s2 + $0xc8] sm:$0xff]
      %v291 = vld [vmem:[%s2 + $0xd0] sm:$0xff]
      %v292 = vld [vmem:[%s2 + $0xd8] sm:$0xff]
      %v293 = vld [vmem:[%s2 + $0xe0] sm:$0xff]
      %v294 = vld [vmem:[%s2 + $0xe8] sm:$0xff]
      %v295 = vld [vmem:[%s2 + $0xf0] sm:$0xff]
      %v296 = vld [vmem:[%s2 + $0xf8] sm:$0xff]
      %v297 = vld [vmem:[%s224] sm:$0xfe]
      %v298 = vld [vmem:[%s224 + $0x8] sm:$0xfe]
      %v299 = vld [vmem:[%s224 + $0x10] sm:$0x1]
      %v300 = vld [vmem:[%s224 + $0x18] sm:$0x1]
      %v301 = vld [vmem:[%s224 + $0x20] sm:$0xfe]
      %v302 = vld [vmem:[%s224 + $0x28] sm:$0xfe]
      %v303 = vld [vmem:[%s224 + $0x30] sm:$0x1]
      %v304 = vld [vmem:[%s224 + $0x38] sm:$0x1]
      %v305 = vld [vmem:[%s224 + $0x40] sm:$0xfe]
      %v306 = vld [vmem:[%s224 + $0x48] sm:$0xfe]
      %v307 = vld [vmem:[%s224 + $0x50] sm:$0x1]
      %v308 = vld [vmem:[%s224 + $0x58] sm:$0x1]
      %v309 = vld [vmem:[%s224 + $0x60] sm:$0xfe]
      %v310 = vld [vmem:[%s224 + $0x68] sm:$0xfe]
      %v311 = vld [vmem:[%s224 + $0x70] sm:$0x1]
      %v312 = vld [vmem:[%s224 + $0x78] sm:$0x1]
      %vm329 = vcmask 1046528
      %v330 = vrot.slane %v297, 1
      %v331 = vrot.slane %v299, 1
      %v332 = vsel %vm329, %v330, %v331
      %v333 = vrot.slane %v298, 1
      %v334 = vrot.slane %v300, 1
      %v335 = vsel %vm329, %v333, %v334
      %v336 = vrot.slane %v301, 1
      %v337 = vrot.slane %v303, 1
      %v338 = vsel %vm329, %v336, %v337
      %v339 = vrot.slane %v302, 1
      %v340 = vrot.slane %v304, 1
      %v341 = vsel %vm329, %v339, %v340
      %v342 = vrot.slane %v305, 1
      %v343 = vrot.slane %v307, 1
      %v344 = vsel %vm329, %v342, %v343
      %v345 = vrot.slane %v306, 1
      %v346 = vrot.slane %v308, 1
      %v347 = vsel %vm329, %v345, %v346
      %v348 = vrot.slane %v309, 1
      %v349 = vrot.slane %v311, 1
      %v350 = vsel %vm329, %v348, %v349
      %v351 = vrot.slane %v310, 1
      %v352 = vrot.slane %v312, 1
      %v353 = vsel %vm329, %v351, %v352
      %s362 = scalar_lea.vmem %s1, 256
      %v363 = vld [vmem:[%s362] sm:$0xff]
      %v364 = vld [vmem:[%s362 + $0x8] sm:$0xff]
      %v365 = vld [vmem:[%s362 + $0x10] sm:$0xff]
      %v366 = vld [vmem:[%s362 + $0x18] sm:$0xff]
      %v367 = vld [vmem:[%s362 + $0x20] sm:$0xff]
      %v368 = vld [vmem:[%s362 + $0x28] sm:$0xff]
      %v369 = vld [vmem:[%s362 + $0x30] sm:$0xff]
      %v370 = vld [vmem:[%s362 + $0x38] sm:$0xff]
      %v371 = vld [vmem:[%s362 + $0x40] sm:$0xff]
      %v372 = vld [vmem:[%s362 + $0x48] sm:$0xff]
      %v373 = vld [vmem:[%s362 + $0x50] sm:$0xff]
      %v374 = vld [vmem:[%s362 + $0x58] sm:$0xff]
      %v375 = vld [vmem:[%s362 + $0x60] sm:$0xff]
      %v376 = vld [vmem:[%s362 + $0x68] sm:$0xff]
      %v377 = vld [vmem:[%s362 + $0x70] sm:$0xff]
      %v378 = vld [vmem:[%s362 + $0x78] sm:$0xff]
      %v379 = vld [vmem:[%s362 + $0x80] sm:$0xff]
      %v380 = vld [vmem:[%s362 + $0x88] sm:$0xff]
      %v381 = vld [vmem:[%s362 + $0x90] sm:$0xff]
      %v382 = vld [vmem:[%s362 + $0x98] sm:$0xff]
      %v383 = vld [vmem:[%s362 + $0xa0] sm:$0xff]
      %v384 = vld [vmem:[%s362 + $0xa8] sm:$0xff]
      %v385 = vld [vmem:[%s362 + $0xb0] sm:$0xff]
      %v386 = vld [vmem:[%s362 + $0xb8] sm:$0xff]
      %v387 = vld [vmem:[%s362 + $0xc0] sm:$0xff]
      %v388 = vld [vmem:[%s362 + $0xc8] sm:$0xff]
      %v389 = vld [vmem:[%s362 + $0xd0] sm:$0xff]
      %v390 = vld [vmem:[%s362 + $0xd8] sm:$0xff]
      %v391 = vld [vmem:[%s362 + $0xe0] sm:$0xff]
      %v392 = vld [vmem:[%s362 + $0xe8] sm:$0xff]
      %v393 = vld [vmem:[%s362 + $0xf0] sm:$0xff]
      %v394 = vld [vmem:[%s362 + $0xf8] sm:$0xff]
      %395 = vmatprep.subr.mxu0 0.0
      %396 = vmatpush1.msra.mxu0 %v363
      %397 = vmatprep.subr.mxu0 0.0
      %398 = vmatpush1.msra.mxu0 %v364
      %399 = vmatprep.subr.mxu0 0.0
      %400 = vmatpush1.msra.mxu0 %v365
      %401 = vmatprep.subr.mxu0 0.0
      %402 = vmatpush1.msra.mxu0 %v366
      %403 = vmatprep.subr.mxu0 0.0
      %404 = vmatpush1.msra.mxu0 %v367
      %405 = vmatprep.subr.mxu0 0.0
      %406 = vmatpush1.msra.mxu0 %v368
      %407 = vmatprep.subr.mxu0 0.0
      %408 = vmatpush1.msra.mxu0 %v369
      %409 = vmatprep.subr.mxu0 0.0
      %410 = vmatpush1.msra.mxu0 %v370
      %411 = vmatprep.subr.mxu0 0.0
      %412 = vmatpush1.msra.mxu0 %v371
      %413 = vmatprep.subr.mxu0 0.0
      %414 = vmatpush1.msra.mxu0 %v372
      %415 = vmatprep.subr.mxu0 0.0
      %416 = vmatpush1.msra.mxu0 %v373
      %417 = vmatprep.subr.mxu0 0.0
      %418 = vmatpush1.msra.mxu0 %v374
      %419 = vmatprep.subr.mxu0 0.0
      %420 = vmatpush1.msra.mxu0 %v375
      %421 = vmatprep.subr.mxu0 0.0
      %422 = vmatpush1.msra.mxu0 %v376
      %423 = vmatprep.subr.mxu0 0.0
      %424 = vmatpush1.msra.mxu0 %v377
      %425 = vmatprep.subr.mxu0 0.0
      %426 = vmatpush1.msra.mxu0 %v378
      %427 = vmatprep.subr.mxu0 0.0
      %428 = vmatpush1.msra.mxu0 %v379
      %429 = vmatprep.subr.mxu0 0.0
      %430 = vmatpush1.msra.mxu0 %v380
      %431 = vmatprep.subr.mxu0 0.0
      %432 = vmatpush1.msra.mxu0 %v381
      %433 = vmatprep.subr.mxu0 0.0
      %434 = vmatpush1.msra.mxu0 %v382
      %435 = vmatprep.subr.mxu0 0.0
      %436 = vmatpush1.msra.mxu0 %v383
      %437 = vmatprep.subr.mxu0 0.0
      %438 = vmatpush1.msra.mxu0 %v384
      %439 = vmatprep.subr.mxu0 0.0
      %440 = vmatpush1.msra.mxu0 %v385
      %441 = vmatprep.subr.mxu0 0.0
      %442 = vmatpush1.msra.mxu0 %v386
      %443 = vmatprep.subr.mxu0 0.0
      %444 = vmatpush1.msra.mxu0 %v387
      %445 = vmatprep.subr.mxu0 0.0
      %446 = vmatpush1.msra.mxu0 %v388
      %447 = vmatprep.subr.mxu0 0.0
      %448 = vmatpush1.msra.mxu0 %v389
      %449 = vmatprep.subr.mxu0 0.0
      %450 = vmatpush1.msra.mxu0 %v390
      %451 = vmatprep.subr.mxu0 0.0
      %452 = vmatpush1.msra.mxu0 %v391
      %453 = vmatprep.subr.mxu0 0.0
      %454 = vmatpush1.msra.mxu0 %v392
      %455 = vmatprep.subr.mxu0 0.0
      %456 = vmatpush1.msra.mxu0 %v393
      %457 = vmatprep.subr.mxu0 0.0
      %458 = vmatpush1.msra.mxu0 %v394
      %459 = vmatprep.mubr.f32.mxu0 %v335
      %460 = vmatmul.mubr.f32.gmra.mrb[0].mxu0 %v332
      %v461 = vpop.f32.mrb[0].mxu0
      %v462 = vadd.f32 0.0, %v461
      %v463 = vpop.f32.mrb[0].mxu0
      %464 = vmatprep.mubr.f32.mxu0 %v341
      %465 = vmatmul.mubr.f32.gmra.mrb[0].mxu0 %v338
      %v466 = vpop.f32.mrb[0].mxu0
      %v467 = vadd.f32 0.0, %v466
      %v468 = vpop.f32.mrb[0].mxu0
      %469 = vmatprep.mubr.f32.mxu0 %v347
      %470 = vmatmul.mubr.f32.gmra.mrb[0].mxu0 %v344
      %v471 = vpop.f32.mrb[0].mxu0
      %v472 = vadd.f32 0.0, %v471
      %v473 = vpop.f32.mrb[0].mxu0
      %474 = vmatprep.mubr.f32.mxu0 %v353
      %475 = vmatmul.mubr.f32.gmra.mrb[0].mxu0 %v350
      %v476 = vpop.f32.mrb[0].mxu0
      %v477 = vadd.f32 0.0, %v476
      %v478 = vpop.f32.mrb[0].mxu0
      %479 = vdwg.mxu0
      %480 = vmatprep.subr.mxu0 0.0
      %481 = vmatpush1.msra.mxu0 %v233
      %482 = vmatprep.subr.mxu0 0.0
      %483 = vmatpush1.msra.mxu0 %v234
      %484 = vmatprep.subr.mxu0 0.0
      %485 = vmatpush1.msra.mxu0 %v235
      %486 = vmatprep.subr.mxu0 0.0
      %487 = vmatpush1.msra.mxu0 %v236
      %488 = vmatprep.subr.mxu0 0.0
      %489 = vmatpush1.msra.mxu0 %v237
      %490 = vmatprep.subr.mxu0 0.0
      %491 = vmatpush1.msra.mxu0 %v238
      %492 = vmatprep.subr.mxu0 0.0
      %493 = vmatpush1.msra.mxu0 %v239
      %494 = vmatprep.subr.mxu0 0.0
      %495 = vmatpush1.msra.mxu0 %v240
      %496 = vmatprep.subr.mxu0 0.0
      %497 = vmatpush1.msra.mxu0 %v241
      %498 = vmatprep.subr.mxu0 0.0
      %499 = vmatpush1.msra.mxu0 %v242
      %500 = vmatprep.subr.mxu0 0.0
      %501 = vmatpush1.msra.mxu0 %v243
      %502 = vmatprep.subr.mxu0 0.0
      %503 = vmatpush1.msra.mxu0 %v244
      %504 = vmatprep.subr.mxu0 0.0
      %505 = vmatpush1.msra.mxu0 %v245
      %506 = vmatprep.subr.mxu0 0.0
      %507 = vmatpush1.msra.mxu0 %v246
      %508 = vmatprep.subr.mxu0 0.0
      %509 = vmatpush1.msra.mxu0 %v247
      %510 = vmatprep.subr.mxu0 0.0
      %511 = vmatpush1.msra.mxu0 %v248
      %512 = vmatprep.subr.mxu0 0.0
      %513 = vmatpush1.msra.mxu0 %v249
      %514 = vmatprep.subr.mxu0 0.0
      %515 = vmatpush1.msra.mxu0 %v250
      %516 = vmatprep.subr.mxu0 0.0
      %517 = vmatpush1.msra.mxu0 %v251
      %518 = vmatprep.subr.mxu0 0.0
      %519 = vmatpush1.msra.mxu0 %v252
      %520 = vmatprep.subr.mxu0 0.0
      %521 = vmatpush1.msra.mxu0 %v253
      %522 = vmatprep.subr.mxu0 0.0
      %523 = vmatpush1.msra.mxu0 %v254
      %524 = vmatprep.subr.mxu0 0.0
      %525 = vmatpush1.msra.mxu0 %v255
      %526 = vmatprep.subr.mxu0 0.0
      %527 = vmatpush1.msra.mxu0 %v256
      %528 = vmatprep.subr.mxu0 0.0
      %529 = vmatpush1.msra.mxu0 %v257
      %530 = vmatprep.subr.mxu0 0.0
      %531 = vmatpush1.msra.mxu0 %v258
      %532 = vmatprep.subr.mxu0 0.0
      %533 = vmatpush1.msra.mxu0 %v259
      %534 = vmatprep.subr.mxu0 0.0
      %535 = vmatpush1.msra.mxu0 %v260
      %536 = vmatprep.subr.mxu0 0.0
      %537 = vmatpush1.msra.mxu0 %v261
      %538 = vmatprep.subr.mxu0 0.0
      %539 = vmatpush1.msra.mxu0 %v262
      %540 = vmatprep.subr.mxu0 0.0
      %541 = vmatpush1.msra.mxu0 %v263
      %542 = vmatprep.subr.mxu0 0.0
      %543 = vmatpush1.msra.mxu0 %v264
      %544 = vmatprep.mubr.f32.mxu0 %v226
      %545 = vmatmul.mubr.f32.gmra.mrb[0].mxu0 %v225
      %v546 = vpop.f32.mrb[0].mxu0
      %v547 = vadd.f32 %v462, %v546
      %v548 = vpop.f32.mrb[0].mxu0
      %549 = vmatprep.mubr.f32.mxu0 %v228
      %550 = vmatmul.mubr.f32.gmra.mrb[0].mxu0 %v227
      %v551 = vpop.f32.mrb[0].mxu0
      %v552 = vadd.f32 %v467, %v551
      %v553 = vpop.f32.mrb[0].mxu0
      %554 = vmatprep.mubr.f32.mxu0 %v230
      %555 = vmatmul.mubr.f32.gmra.mrb[0].mxu0 %v229
      %v556 = vpop.f32.mrb[0].mxu0
      %v557 = vadd.f32 %v472, %v556
      %v558 = vpop.f32.mrb[0].mxu0
      %559 = vmatprep.mubr.f32.mxu0 %v232
      %560 = vmatmul.mubr.f32.gmra.mrb[0].mxu0 %v231
      %v561 = vpop.f32.mrb[0].mxu0
      %v562 = vadd.f32 %v477, %v561
      %v563 = vpop.f32.mrb[0].mxu0
      %564 = vdwg.mxu0
      %s565 = scalar_lea.vmem %s2, 256
      %v566 = vld [vmem:[%s565] sm:$0xff]
      %v567 = vld [vmem:[%s565 + $0x8] sm:$0xff]
      %v568 = vld [vmem:[%s565 + $0x10] sm:$0xff]
      %v569 = vld [vmem:[%s565 + $0x18] sm:$0xff]
      %v570 = vld [vmem:[%s565 + $0x20] sm:$0xff]
      %v571 = vld [vmem:[%s565 + $0x28] sm:$0xff]
      %v572 = vld [vmem:[%s565 + $0x30] sm:$0xff]
      %v573 = vld [vmem:[%s565 + $0x38] sm:$0xff]
      %v574 = vld [vmem:[%s565 + $0x40] sm:$0xff]
      %v575 = vld [vmem:[%s565 + $0x48] sm:$0xff]
      %v576 = vld [vmem:[%s565 + $0x50] sm:$0xff]
      %v577 = vld [vmem:[%s565 + $0x58] sm:$0xff]
      %v578 = vld [vmem:[%s565 + $0x60] sm:$0xff]
      %v579 = vld [vmem:[%s565 + $0x68] sm:$0xff]
      %v580 = vld [vmem:[%s565 + $0x70] sm:$0xff]
      %v581 = vld [vmem:[%s565 + $0x78] sm:$0xff]
      %v582 = vld [vmem:[%s565 + $0x80] sm:$0xff]
      %v583 = vld [vmem:[%s565 + $0x88] sm:$0xff]
      %v584 = vld [vmem:[%s565 + $0x90] sm:$0xff]
      %v585 = vld [vmem:[%s565 + $0x98] sm:$0xff]
      %v586 = vld [vmem:[%s565 + $0xa0] sm:$0xff]
      %v587 = vld [vmem:[%s565 + $0xa8] sm:$0xff]
      %v588 = vld [vmem:[%s565 + $0xb0] sm:$0xff]
      %v589 = vld [vmem:[%s565 + $0xb8] sm:$0xff]
      %v590 = vld [vmem:[%s565 + $0xc0] sm:$0xff]
      %v591 = vld [vmem:[%s565 + $0xc8] sm:$0xff]
      %v592 = vld [vmem:[%s565 + $0xd0] sm:$0xff]
      %v593 = vld [vmem:[%s565 + $0xd8] sm:$0xff]
      %v594 = vld [vmem:[%s565 + $0xe0] sm:$0xff]
      %v595 = vld [vmem:[%s565 + $0xe8] sm:$0xff]
      %v596 = vld [vmem:[%s565 + $0xf0] sm:$0xff]
      %v597 = vld [vmem:[%s565 + $0xf8] sm:$0xff]
      %598 = vmatprep.subr.mxu0 0.0
      %599 = vmatpush1.msra.mxu0 %v566
      %600 = vmatprep.subr.mxu0 0.0
      %601 = vmatpush1.msra.mxu0 %v567
      %602 = vmatprep.subr.mxu0 0.0
      %603 = vmatpush1.msra.mxu0 %v568
      %604 = vmatprep.subr.mxu0 0.0
      %605 = vmatpush1.msra.mxu0 %v569
      %606 = vmatprep.subr.mxu0 0.0
      %607 = vmatpush1.msra.mxu0 %v570
      %608 = vmatprep.subr.mxu0 0.0
      %609 = vmatpush1.msra.mxu0 %v571
      %610 = vmatprep.subr.mxu0 0.0
      %611 = vmatpush1.msra.mxu0 %v572
      %612 = vmatprep.subr.mxu0 0.0
      %613 = vmatpush1.msra.mxu0 %v573
      %614 = vmatprep.subr.mxu0 0.0
      %615 = vmatpush1.msra.mxu0 %v574
      %616 = vmatprep.subr.mxu0 0.0
      %617 = vmatpush1.msra.mxu0 %v575
      %618 = vmatprep.subr.mxu0 0.0
      %619 = vmatpush1.msra.mxu0 %v576
      %620 = vmatprep.subr.mxu0 0.0
      %621 = vmatpush1.msra.mxu0 %v577
      %622 = vmatprep.subr.mxu0 0.0
      %623 = vmatpush1.msra.mxu0 %v578
      %624 = vmatprep.subr.mxu0 0.0
      %625 = vmatpush1.msra.mxu0 %v579
      %626 = vmatprep.subr.mxu0 0.0
      %627 = vmatpush1.msra.mxu0 %v580
      %628 = vmatprep.subr.mxu0 0.0
      %629 = vmatpush1.msra.mxu0 %v581
      %630 = vmatprep.subr.mxu0 0.0
      %631 = vmatpush1.msra.mxu0 %v582
      %632 = vmatprep.subr.mxu0 0.0
      %633 = vmatpush1.msra.mxu0 %v583
      %634 = vmatprep.subr.mxu0 0.0
      %635 = vmatpush1.msra.mxu0 %v584
      %636 = vmatprep.subr.mxu0 0.0
      %637 = vmatpush1.msra.mxu0 %v585
      %638 = vmatprep.subr.mxu0 0.0
      %639 = vmatpush1.msra.mxu0 %v586
      %640 = vmatprep.subr.mxu0 0.0
      %641 = vmatpush1.msra.mxu0 %v587
      %642 = vmatprep.subr.mxu0 0.0
      %643 = vmatpush1.msra.mxu0 %v588
      %644 = vmatprep.subr.mxu0 0.0
      %645 = vmatpush1.msra.mxu0 %v589
      %646 = vmatprep.subr.mxu0 0.0
      %647 = vmatpush1.msra.mxu0 %v590
      %648 = vmatprep.subr.mxu0 0.0
      %649 = vmatpush1.msra.mxu0 %v591
      %650 = vmatprep.subr.mxu0 0.0
      %651 = vmatpush1.msra.mxu0 %v592
      %652 = vmatprep.subr.mxu0 0.0
      %653 = vmatpush1.msra.mxu0 %v593
      %654 = vmatprep.subr.mxu0 0.0
      %655 = vmatpush1.msra.mxu0 %v594
      %656 = vmatprep.subr.mxu0 0.0
      %657 = vmatpush1.msra.mxu0 %v595
      %658 = vmatprep.subr.mxu0 0.0
      %659 = vmatpush1.msra.mxu0 %v596
      %660 = vmatprep.subr.mxu0 0.0
      %661 = vmatpush1.msra.mxu0 %v597
      %662 = vmatprep.mubr.f32.mxu0 %v335
      %663 = vmatmul.mubr.f32.gmra.mrb[0].mxu0 %v332
      %v664 = vpop.f32.mrb[0].mxu0
      %v665 = vadd.f32 0.0, %v664
      %v666 = vpop.f32.mrb[0].mxu0
      %667 = vmatprep.mubr.f32.mxu0 %v341
      %668 = vmatmul.mubr.f32.gmra.mrb[0].mxu0 %v338
      %v669 = vpop.f32.mrb[0].mxu0
      %v670 = vadd.f32 0.0, %v669
      %v671 = vpop.f32.mrb[0].mxu0
      %672 = vmatprep.mubr.f32.mxu0 %v347
      %673 = vmatmul.mubr.f32.gmra.mrb[0].mxu0 %v344
      %v674 = vpop.f32.mrb[0].mxu0
      %v675 = vadd.f32 0.0, %v674
      %v676 = vpop.f32.mrb[0].mxu0
      %677 = vmatprep.mubr.f32.mxu0 %v353
      %678 = vmatmul.mubr.f32.gmra.mrb[0].mxu0 %v350
      %v679 = vpop.f32.mrb[0].mxu0
      %v680 = vadd.f32 0.0, %v679
      %v681 = vpop.f32.mrb[0].mxu0
      %682 = vdwg.mxu0
      %683 = vmatprep.subr.mxu0 0.0
      %684 = vmatpush1.msra.mxu0 %v265
      %685 = vmatprep.subr.mxu0 0.0
      %686 = vmatpush1.msra.mxu0 %v266
      %687 = vmatprep.subr.mxu0 0.0
      %688 = vmatpush1.msra.mxu0 %v267
      %689 = vmatprep.subr.mxu0 0.0
      %690 = vmatpush1.msra.mxu0 %v268
      %691 = vmatprep.subr.mxu0 0.0
      %692 = vmatpush1.msra.mxu0 %v269
      %693 = vmatprep.subr.mxu0 0.0
      %694 = vmatpush1.msra.mxu0 %v270
      %695 = vmatprep.subr.mxu0 0.0
      %696 = vmatpush1.msra.mxu0 %v271
      %697 = vmatprep.subr.mxu0 0.0
      %698 = vmatpush1.msra.mxu0 %v272
      %699 = vmatprep.subr.mxu0 0.0
      %700 = vmatpush1.msra.mxu0 %v273
      %701 = vmatprep.subr.mxu0 0.0
      %702 = vmatpush1.msra.mxu0 %v274
      %703 = vmatprep.subr.mxu0 0.0
      %704 = vmatpush1.msra.mxu0 %v275
      %705 = vmatprep.subr.mxu0 0.0
      %706 = vmatpush1.msra.mxu0 %v276
      %707 = vmatprep.subr.mxu0 0.0
      %708 = vmatpush1.msra.mxu0 %v277
      %709 = vmatprep.subr.mxu0 0.0
      %710 = vmatpush1.msra.mxu0 %v278
      %711 = vmatprep.subr.mxu0 0.0
      %712 = vmatpush1.msra.mxu0 %v279
      %713 = vmatprep.subr.mxu0 0.0
      %714 = vmatpush1.msra.mxu0 %v280
      %715 = vmatprep.subr.mxu0 0.0
      %716 = vmatpush1.msra.mxu0 %v281
      %717 = vmatprep.subr.mxu0 0.0
      %718 = vmatpush1.msra.mxu0 %v282
      %719 = vmatprep.subr.mxu0 0.0
      %720 = vmatpush1.msra.mxu0 %v283
      %721 = vmatprep.subr.mxu0 0.0
      %722 = vmatpush1.msra.mxu0 %v284
      %723 = vmatprep.subr.mxu0 0.0
      %724 = vmatpush1.msra.mxu0 %v285
      %725 = vmatprep.subr.mxu0 0.0
      %726 = vmatpush1.msra.mxu0 %v286
      %727 = vmatprep.subr.mxu0 0.0
      %728 = vmatpush1.msra.mxu0 %v287
      %729 = vmatprep.subr.mxu0 0.0
      %730 = vmatpush1.msra.mxu0 %v288
      %731 = vmatprep.subr.mxu0 0.0
      %732 = vmatpush1.msra.mxu0 %v289
      %733 = vmatprep.subr.mxu0 0.0
      %734 = vmatpush1.msra.mxu0 %v290
      %735 = vmatprep.subr.mxu0 0.0
      %736 = vmatpush1.msra.mxu0 %v291
      %737 = vmatprep.subr.mxu0 0.0
      %738 = vmatpush1.msra.mxu0 %v292
      %739 = vmatprep.subr.mxu0 0.0
      %740 = vmatpush1.msra.mxu0 %v293
      %741 = vmatprep.subr.mxu0 0.0
      %742 = vmatpush1.msra.mxu0 %v294
      %743 = vmatprep.subr.mxu0 0.0
      %744 = vmatpush1.msra.mxu0 %v295
      %745 = vmatprep.subr.mxu0 0.0
      %746 = vmatpush1.msra.mxu0 %v296
      %747 = vmatprep.mubr.f32.mxu0 %v226
      %748 = vmatmul.mubr.f32.gmra.mrb[0].mxu0 %v225
      %v749 = vpop.f32.mrb[0].mxu0
      %v750 = vadd.f32 %v665, %v749
      %v751 = vpop.f32.mrb[0].mxu0
      %752 = vmatprep.mubr.f32.mxu0 %v228
      %753 = vmatmul.mubr.f32.gmra.mrb[0].mxu0 %v227
      %v754 = vpop.f32.mrb[0].mxu0
      %v755 = vadd.f32 %v670, %v754
      %v756 = vpop.f32.mrb[0].mxu0
      %757 = vmatprep.mubr.f32.mxu0 %v230
      %758 = vmatmul.mubr.f32.gmra.mrb[0].mxu0 %v229
      %v759 = vpop.f32.mrb[0].mxu0
      %v760 = vadd.f32 %v675, %v759
      %v761 = vpop.f32.mrb[0].mxu0
      %762 = vmatprep.mubr.f32.mxu0 %v232
      %763 = vmatmul.mubr.f32.gmra.mrb[0].mxu0 %v231
      %v764 = vpop.f32.mrb[0].mxu0
      %v765 = vadd.f32 %v680, %v764
      %v766 = vpop.f32.mrb[0].mxu0
      %767 = vdwg.mxu0
      %s768 = sadd.s32 %s221, 1
      %s769 = smul.u32 %s768, 4
      %s770 = smul.addr %s769, 8
      %s771 = scalar_lea.vmem %s210, %s770
      %v772 = vld [vmem:[%s771] sm:$0xff]
      %v773 = vld [vmem:[%s771 + $0x8] sm:$0xff]
      %v774 = vld [vmem:[%s771 + $0x20] sm:$0xff]
      %v775 = vld [vmem:[%s771 + $0x28] sm:$0xff]
      %v776 = vld [vmem:[%s771 + $0x40] sm:$0xff]
      %v777 = vld [vmem:[%s771 + $0x48] sm:$0xff]
      %v778 = vld [vmem:[%s771 + $0x60] sm:$0xff]
      %v779 = vld [vmem:[%s771 + $0x68] sm:$0xff]
      %s780 = scalar_lea.vmem %s1, 512
      %v781 = vld [vmem:[%s780] sm:$0xff]
      %v782 = vld [vmem:[%s780 + $0x8] sm:$0xff]
      %v783 = vld [vmem:[%s780 + $0x10] sm:$0xff]
      %v784 = vld [vmem:[%s780 + $0x18] sm:$0xff]
      %v785 = vld [vmem:[%s780 + $0x20] sm:$0xff]
      %v786 = vld [vmem:[%s780 + $0x28] sm:$0xff]
      %v787 = vld [vmem:[%s780 + $0x30] sm:$0xff]
      %v788 = vld [vmem:[%s780 + $0x38] sm:$0xff]
      %v789 = vld [vmem:[%s780 + $0x40] sm:$0xff]
      %v790 = vld [vmem:[%s780 + $0x48] sm:$0xff]
      %v791 = vld [vmem:[%s780 + $0x50] sm:$0xff]
      %v792 = vld [vmem:[%s780 + $0x58] sm:$0xff]
      %v793 = vld [vmem:[%s780 + $0x60] sm:$0xff]
      %v794 = vld [vmem:[%s780 + $0x68] sm:$0xff]
      %v795 = vld [vmem:[%s780 + $0x70] sm:$0xff]
      %v796 = vld [vmem:[%s780 + $0x78] sm:$0xff]
      %v797 = vld [vmem:[%s780 + $0x80] sm:$0xff]
      %v798 = vld [vmem:[%s780 + $0x88] sm:$0xff]
      %v799 = vld [vmem:[%s780 + $0x90] sm:$0xff]
      %v800 = vld [vmem:[%s780 + $0x98] sm:$0xff]
      %v801 = vld [vmem:[%s780 + $0xa0] sm:$0xff]
      %v802 = vld [vmem:[%s780 + $0xa8] sm:$0xff]
      %v803 = vld [vmem:[%s780 + $0xb0] sm:$0xff]
      %v804 = vld [vmem:[%s780 + $0xb8] sm:$0xff]
      %v805 = vld [vmem:[%s780 + $0xc0] sm:$0xff]
      %v806 = vld [vmem:[%s780 + $0xc8] sm:$0xff]
      %v807 = vld [vmem:[%s780 + $0xd0] sm:$0xff]
      %v808 = vld [vmem:[%s780 + $0xd8] sm:$0xff]
      %v809 = vld [vmem:[%s780 + $0xe0] sm:$0xff]
      %v810 = vld [vmem:[%s780 + $0xe8] sm:$0xff]
      %v811 = vld [vmem:[%s780 + $0xf0] sm:$0xff]
      %v812 = vld [vmem:[%s780 + $0xf8] sm:$0xff]
      %813 = vmatprep.subr.mxu0 0.0
      %814 = vmatpush1.msra.mxu0 %v781
      %815 = vmatprep.subr.mxu0 0.0
      %816 = vmatpush1.msra.mxu0 %v782
      %817 = vmatprep.subr.mxu0 0.0
      %818 = vmatpush1.msra.mxu0 %v783
      %819 = vmatprep.subr.mxu0 0.0
      %820 = vmatpush1.msra.mxu0 %v784
      %821 = vmatprep.subr.mxu0 0.0
      %822 = vmatpush1.msra.mxu0 %v785
      %823 = vmatprep.subr.mxu0 0.0
      %824 = vmatpush1.msra.mxu0 %v786
      %825 = vmatprep.subr.mxu0 0.0
      %826 = vmatpush1.msra.mxu0 %v787
      %827 = vmatprep.subr.mxu0 0.0
      %828 = vmatpush1.msra.mxu0 %v788
      %829 = vmatprep.subr.mxu0 0.0
      %830 = vmatpush1.msra.mxu0 %v789
      %831 = vmatprep.subr.mxu0 0.0
      %832 = vmatpush1.msra.mxu0 %v790
      %833 = vmatprep.subr.mxu0 0.0
      %834 = vmatpush1.msra.mxu0 %v791
      %835 = vmatprep.subr.mxu0 0.0
      %836 = vmatpush1.msra.mxu0 %v792
      %837 = vmatprep.subr.mxu0 0.0
      %838 = vmatpush1.msra.mxu0 %v793
      %839 = vmatprep.subr.mxu0 0.0
      %840 = vmatpush1.msra.mxu0 %v794
      %841 = vmatprep.subr.mxu0 0.0
      %842 = vmatpush1.msra.mxu0 %v795
      %843 = vmatprep.subr.mxu0 0.0
      %844 = vmatpush1.msra.mxu0 %v796
      %845 = vmatprep.subr.mxu0 0.0
      %846 = vmatpush1.msra.mxu0 %v797
      %847 = vmatprep.subr.mxu0 0.0
      %848 = vmatpush1.msra.mxu0 %v798
      %849 = vmatprep.subr.mxu0 0.0
      %850 = vmatpush1.msra.mxu0 %v799
      %851 = vmatprep.subr.mxu0 0.0
      %852 = vmatpush1.msra.mxu0 %v800
      %853 = vmatprep.subr.mxu0 0.0
      %854 = vmatpush1.msra.mxu0 %v801
      %855 = vmatprep.subr.mxu0 0.0
      %856 = vmatpush1.msra.mxu0 %v802
      %857 = vmatprep.subr.mxu0 0.0
      %858 = vmatpush1.msra.mxu0 %v803
      %859 = vmatprep.subr.mxu0 0.0
      %860 = vmatpush1.msra.mxu0 %v804
      %861 = vmatprep.subr.mxu0 0.0
      %862 = vmatpush1.msra.mxu0 %v805
      %863 = vmatprep.subr.mxu0 0.0
      %864 = vmatpush1.msra.mxu0 %v806
      %865 = vmatprep.subr.mxu0 0.0
      %866 = vmatpush1.msra.mxu0 %v807
      %867 = vmatprep.subr.mxu0 0.0
      %868 = vmatpush1.msra.mxu0 %v808
      %869 = vmatprep.subr.mxu0 0.0
      %870 = vmatpush1.msra.mxu0 %v809
      %871 = vmatprep.subr.mxu0 0.0
      %872 = vmatpush1.msra.mxu0 %v810
      %873 = vmatprep.subr.mxu0 0.0
      %874 = vmatpush1.msra.mxu0 %v811
      %875 = vmatprep.subr.mxu0 0.0
      %876 = vmatpush1.msra.mxu0 %v812
      %877 = vmatprep.mubr.f32.mxu0 %v773
      %878 = vmatmul.mubr.f32.gmra.mrb[0].mxu0 %v772
      %v879 = vpop.f32.mrb[0].mxu0
      %v880 = vadd.f32 0.0, %v879
      %v881 = vpop.f32.mrb[0].mxu0
      %882 = vmatprep.mubr.f32.mxu0 %v775
      %883 = vmatmul.mubr.f32.gmra.mrb[0].mxu0 %v774
      %v884 = vpop.f32.mrb[0].mxu0
      %v885 = vadd.f32 0.0, %v884
      %v886 = vpop.f32.mrb[0].mxu0
      %887 = vmatprep.mubr.f32.mxu0 %v777
      %888 = vmatmul.mubr.f32.gmra.mrb[0].mxu0 %v776
      %v889 = vpop.f32.mrb[0].mxu0
      %v890 = vadd.f32 0.0, %v889
      %v891 = vpop.f32.mrb[0].mxu0
      %892 = vmatprep.mubr.f32.mxu0 %v779
      %893 = vmatmul.mubr.f32.gmra.mrb[0].mxu0 %v778
      %v894 = vpop.f32.mrb[0].mxu0
      %v895 = vadd.f32 0.0, %v894
      %v896 = vpop.f32.mrb[0].mxu0
      %897 = vdwg.mxu0
      %v898 = vadd.f32 %v547, %v880
      %v899 = vadd.f32 %v552, %v885
      %v900 = vadd.f32 %v557, %v890
      %v901 = vadd.f32 %v562, %v895
      %s902 = scalar_lea.vmem %s2, 512
      %v903 = vld [vmem:[%s902] sm:$0xff]
      %v904 = vld [vmem:[%s902 + $0x8] sm:$0xff]
      %v905 = vld [vmem:[%s902 + $0x10] sm:$0xff]
      %v906 = vld [vmem:[%s902 + $0x18] sm:$0xff]
      %v907 = vld [vmem:[%s902 + $0x20] sm:$0xff]
      %v908 = vld [vmem:[%s902 + $0x28] sm:$0xff]
      %v909 = vld [vmem:[%s902 + $0x30] sm:$0xff]
      %v910 = vld [vmem:[%s902 + $0x38] sm:$0xff]
      %v911 = vld [vmem:[%s902 + $0x40] sm:$0xff]
      %v912 = vld [vmem:[%s902 + $0x48] sm:$0xff]
      %v913 = vld [vmem:[%s902 + $0x50] sm:$0xff]
      %v914 = vld [vmem:[%s902 + $0x58] sm:$0xff]
      %v915 = vld [vmem:[%s902 + $0x60] sm:$0xff]
      %v916 = vld [vmem:[%s902 + $0x68] sm:$0xff]
      %v917 = vld [vmem:[%s902 + $0x70] sm:$0xff]
      %v918 = vld [vmem:[%s902 + $0x78] sm:$0xff]
      %v919 = vld [vmem:[%s902 + $0x80] sm:$0xff]
      %v920 = vld [vmem:[%s902 + $0x88] sm:$0xff]
      %v921 = vld [vmem:[%s902 + $0x90] sm:$0xff]
      %v922 = vld [vmem:[%s902 + $0x98] sm:$0xff]
      %v923 = vld [vmem:[%s902 + $0xa0] sm:$0xff]
      %v924 = vld [vmem:[%s902 + $0xa8] sm:$0xff]
      %v925 = vld [vmem:[%s902 + $0xb0] sm:$0xff]
      %v926 = vld [vmem:[%s902 + $0xb8] sm:$0xff]
      %v927 = vld [vmem:[%s902 + $0xc0] sm:$0xff]
      %v928 = vld [vmem:[%s902 + $0xc8] sm:$0xff]
      %v929 = vld [vmem:[%s902 + $0xd0] sm:$0xff]
      %v930 = vld [vmem:[%s902 + $0xd8] sm:$0xff]
      %v931 = vld [vmem:[%s902 + $0xe0] sm:$0xff]
      %v932 = vld [vmem:[%s902 + $0xe8] sm:$0xff]
      %v933 = vld [vmem:[%s902 + $0xf0] sm:$0xff]
      %v934 = vld [vmem:[%s902 + $0xf8] sm:$0xff]
      %935 = vmatprep.subr.mxu0 0.0
      %936 = vmatpush1.msra.mxu0 %v903
      %937 = vmatprep.subr.mxu0 0.0
      %938 = vmatpush1.msra.mxu0 %v904
      %939 = vmatprep.subr.mxu0 0.0
      %940 = vmatpush1.msra.mxu0 %v905
      %941 = vmatprep.subr.mxu0 0.0
      %942 = vmatpush1.msra.mxu0 %v906
      %943 = vmatprep.subr.mxu0 0.0
      %944 = vmatpush1.msra.mxu0 %v907
      %945 = vmatprep.subr.mxu0 0.0
      %946 = vmatpush1.msra.mxu0 %v908
      %947 = vmatprep.subr.mxu0 0.0
      %948 = vmatpush1.msra.mxu0 %v909
      %949 = vmatprep.subr.mxu0 0.0
      %950 = vmatpush1.msra.mxu0 %v910
      %951 = vmatprep.subr.mxu0 0.0
      %952 = vmatpush1.msra.mxu0 %v911
      %953 = vmatprep.subr.mxu0 0.0
      %954 = vmatpush1.msra.mxu0 %v912
      %955 = vmatprep.subr.mxu0 0.0
      %956 = vmatpush1.msra.mxu0 %v913
      %957 = vmatprep.subr.mxu0 0.0
      %958 = vmatpush1.msra.mxu0 %v914
      %959 = vmatprep.subr.mxu0 0.0
      %960 = vmatpush1.msra.mxu0 %v915
      %961 = vmatprep.subr.mxu0 0.0
      %962 = vmatpush1.msra.mxu0 %v916
      %963 = vmatprep.subr.mxu0 0.0
      %964 = vmatpush1.msra.mxu0 %v917
      %965 = vmatprep.subr.mxu0 0.0
      %966 = vmatpush1.msra.mxu0 %v918
      %967 = vmatprep.subr.mxu0 0.0
      %968 = vmatpush1.msra.mxu0 %v919
      %969 = vmatprep.subr.mxu0 0.0
      %970 = vmatpush1.msra.mxu0 %v920
      %971 = vmatprep.subr.mxu0 0.0
      %972 = vmatpush1.msra.mxu0 %v921
      %973 = vmatprep.subr.mxu0 0.0
      %974 = vmatpush1.msra.mxu0 %v922
      %975 = vmatprep.subr.mxu0 0.0
      %976 = vmatpush1.msra.mxu0 %v923
      %977 = vmatprep.subr.mxu0 0.0
      %978 = vmatpush1.msra.mxu0 %v924
      %979 = vmatprep.subr.mxu0 0.0
      %980 = vmatpush1.msra.mxu0 %v925
      %981 = vmatprep.subr.mxu0 0.0
      %982 = vmatpush1.msra.mxu0 %v926
      %983 = vmatprep.subr.mxu0 0.0
      %984 = vmatpush1.msra.mxu0 %v927
      %985 = vmatprep.subr.mxu0 0.0
      %986 = vmatpush1.msra.mxu0 %v928
      %987 = vmatprep.subr.mxu0 0.0
      %988 = vmatpush1.msra.mxu0 %v929
      %989 = vmatprep.subr.mxu0 0.0
      %990 = vmatpush1.msra.mxu0 %v930
      %991 = vmatprep.subr.mxu0 0.0
      %992 = vmatpush1.msra.mxu0 %v931
      %993 = vmatprep.subr.mxu0 0.0
      %994 = vmatpush1.msra.mxu0 %v932
      %995 = vmatprep.subr.mxu0 0.0
      %996 = vmatpush1.msra.mxu0 %v933
      %997 = vmatprep.subr.mxu0 0.0
      %998 = vmatpush1.msra.mxu0 %v934
      %999 = vmatprep.mubr.f32.mxu0 %v773
      %1000 = vmatmul.mubr.f32.gmra.mrb[0].mxu0 %v772
      %v1001 = vpop.f32.mrb[0].mxu0
      %v1002 = vadd.f32 0.0, %v1001
      %v1003 = vpop.f32.mrb[0].mxu0
      %1004 = vmatprep.mubr.f32.mxu0 %v775
      %1005 = vmatmul.mubr.f32.gmra.mrb[0].mxu0 %v774
      %v1006 = vpop.f32.mrb[0].mxu0
      %v1007 = vadd.f32 0.0, %v1006
      %v1008 = vpop.f32.mrb[0].mxu0
      %1009 = vmatprep.mubr.f32.mxu0 %v777
      %1010 = vmatmul.mubr.f32.gmra.mrb[0].mxu0 %v776
      %v1011 = vpop.f32.mrb[0].mxu0
      %v1012 = vadd.f32 0.0, %v1011
      %v1013 = vpop.f32.mrb[0].mxu0
      %1014 = vmatprep.mubr.f32.mxu0 %v779
      %1015 = vmatmul.mubr.f32.gmra.mrb[0].mxu0 %v778
      %v1016 = vpop.f32.mrb[0].mxu0
      %v1017 = vadd.f32 0.0, %v1016
      %v1018 = vpop.f32.mrb[0].mxu0
      %1019 = vdwg.mxu0
      %v1020 = vadd.f32 %v750, %v1002
      %v1021 = vadd.f32 %v755, %v1007
      %v1022 = vadd.f32 %v760, %v1012
      %v1023 = vadd.f32 %v765, %v1017
      %v1024 = vld [vmem:[%s771] sm:$0xfe]
      %v1025 = vld [vmem:[%s771 + $0x8] sm:$0xfe]
      %v1026 = vld [vmem:[%s771 + $0x10] sm:$0x1]
      %v1027 = vld [vmem:[%s771 + $0x18] sm:$0x1]
      %v1028 = vld [vmem:[%s771 + $0x20] sm:$0xfe]
      %v1029 = vld [vmem:[%s771 + $0x28] sm:$0xfe]
      %v1030 = vld [vmem:[%s771 + $0x30] sm:$0x1]
      %v1031 = vld [vmem:[%s771 + $0x38] sm:$0x1]
      %v1032 = vld [vmem:[%s771 + $0x40] sm:$0xfe]
      %v1033 = vld [vmem:[%s771 + $0x48] sm:$0xfe]
      %v1034 = vld [vmem:[%s771 + $0x50] sm:$0x1]
      %v1035 = vld [vmem:[%s771 + $0x58] sm:$0x1]
      %v1036 = vld [vmem:[%s771 + $0x60] sm:$0xfe]
      %v1037 = vld [vmem:[%s771 + $0x68] sm:$0xfe]
      %v1038 = vld [vmem:[%s771 + $0x70] sm:$0x1]
      %v1039 = vld [vmem:[%s771 + $0x78] sm:$0x1]
      %v1056 = vrot.slane %v1024, 1
      %v1057 = vrot.slane %v1026, 1
      %v1058 = vsel %vm329, %v1056, %v1057
      %v1059 = vrot.slane %v1025, 1
      %v1060 = vrot.slane %v1027, 1
      %v1061 = vsel %vm329, %v1059, %v1060
      %v1062 = vrot.slane %v1028, 1
      %v1063 = vrot.slane %v1030, 1
      %v1064 = vsel %vm329, %v1062, %v1063
      %v1065 = vrot.slane %v1029, 1
      %v1066 = vrot.slane %v1031, 1
      %v1067 = vsel %vm329, %v1065, %v1066
      %v1068 = vrot.slane %v1032, 1
      %v1069 = vrot.slane %v1034, 1
      %v1070 = vsel %vm329, %v1068, %v1069
      %v1071 = vrot.slane %v1033, 1
      %v1072 = vrot.slane %v1035, 1
      %v1073 = vsel %vm329, %v1071, %v1072
      %v1074 = vrot.slane %v1036, 1
      %v1075 = vrot.slane %v1038, 1
      %v1076 = vsel %vm329, %v1074, %v1075
      %v1077 = vrot.slane %v1037, 1
      %v1078 = vrot.slane %v1039, 1
      %v1079 = vsel %vm329, %v1077, %v1078
      %s1088 = scalar_lea.vmem %s1, 768
      %v1089 = vld [vmem:[%s1088] sm:$0xff]
      %v1090 = vld [vmem:[%s1088 + $0x8] sm:$0xff]
      %v1091 = vld [vmem:[%s1088 + $0x10] sm:$0xff]
      %v1092 = vld [vmem:[%s1088 + $0x18] sm:$0xff]
      %v1093 = vld [vmem:[%s1088 + $0x20] sm:$0xff]
      %v1094 = vld [vmem:[%s1088 + $0x28] sm:$0xff]
      %v1095 = vld [vmem:[%s1088 + $0x30] sm:$0xff]
      %v1096 = vld [vmem:[%s1088 + $0x38] sm:$0xff]
      %v1097 = vld [vmem:[%s1088 + $0x40] sm:$0xff]
      %v1098 = vld [vmem:[%s1088 + $0x48] sm:$0xff]
      %v1099 = vld [vmem:[%s1088 + $0x50] sm:$0xff]
      %v1100 = vld [vmem:[%s1088 + $0x58] sm:$0xff]
      %v1101 = vld [vmem:[%s1088 + $0x60] sm:$0xff]
      %v1102 = vld [vmem:[%s1088 + $0x68] sm:$0xff]
      %v1103 = vld [vmem:[%s1088 + $0x70] sm:$0xff]
      %v1104 = vld [vmem:[%s1088 + $0x78] sm:$0xff]
      %v1105 = vld [vmem:[%s1088 + $0x80] sm:$0xff]
      %v1106 = vld [vmem:[%s1088 + $0x88] sm:$0xff]
      %v1107 = vld [vmem:[%s1088 + $0x90] sm:$0xff]
      %v1108 = vld [vmem:[%s1088 + $0x98] sm:$0xff]
      %v1109 = vld [vmem:[%s1088 + $0xa0] sm:$0xff]
      %v1110 = vld [vmem:[%s1088 + $0xa8] sm:$0xff]
      %v1111 = vld [vmem:[%s1088 + $0xb0] sm:$0xff]
      %v1112 = vld [vmem:[%s1088 + $0xb8] sm:$0xff]
      %v1113 = vld [vmem:[%s1088 + $0xc0] sm:$0xff]
      %v1114 = vld [vmem:[%s1088 + $0xc8] sm:$0xff]
      %v1115 = vld [vmem:[%s1088 + $0xd0] sm:$0xff]
      %v1116 = vld [vmem:[%s1088 + $0xd8] sm:$0xff]
      %v1117 = vld [vmem:[%s1088 + $0xe0] sm:$0xff]
      %v1118 = vld [vmem:[%s1088 + $0xe8] sm:$0xff]
      %v1119 = vld [vmem:[%s1088 + $0xf0] sm:$0xff]
      %v1120 = vld [vmem:[%s1088 + $0xf8] sm:$0xff]
      %1121 = vmatprep.subr.mxu0 0.0
      %1122 = vmatpush1.msra.mxu0 %v1089
      %1123 = vmatprep.subr.mxu0 0.0
      %1124 = vmatpush1.msra.mxu0 %v1090
      %1125 = vmatprep.subr.mxu0 0.0
      %1126 = vmatpush1.msra.mxu0 %v1091
      %1127 = vmatprep.subr.mxu0 0.0
      %1128 = vmatpush1.msra.mxu0 %v1092
      %1129 = vmatprep.subr.mxu0 0.0
      %1130 = vmatpush1.msra.mxu0 %v1093
      %1131 = vmatprep.subr.mxu0 0.0
      %1132 = vmatpush1.msra.mxu0 %v1094
      %1133 = vmatprep.subr.mxu0 0.0
      %1134 = vmatpush1.msra.mxu0 %v1095
      %1135 = vmatprep.subr.mxu0 0.0
      %1136 = vmatpush1.msra.mxu0 %v1096
      %1137 = vmatprep.subr.mxu0 0.0
      %1138 = vmatpush1.msra.mxu0 %v1097
      %1139 = vmatprep.subr.mxu0 0.0
      %1140 = vmatpush1.msra.mxu0 %v1098
      %1141 = vmatprep.subr.mxu0 0.0
      %1142 = vmatpush1.msra.mxu0 %v1099
      %1143 = vmatprep.subr.mxu0 0.0
      %1144 = vmatpush1.msra.mxu0 %v1100
      %1145 = vmatprep.subr.mxu0 0.0
      %1146 = vmatpush1.msra.mxu0 %v1101
      %1147 = vmatprep.subr.mxu0 0.0
      %1148 = vmatpush1.msra.mxu0 %v1102
      %1149 = vmatprep.subr.mxu0 0.0
      %1150 = vmatpush1.msra.mxu0 %v1103
      %1151 = vmatprep.subr.mxu0 0.0
      %1152 = vmatpush1.msra.mxu0 %v1104
      %1153 = vmatprep.subr.mxu0 0.0
      %1154 = vmatpush1.msra.mxu0 %v1105
      %1155 = vmatprep.subr.mxu0 0.0
      %1156 = vmatpush1.msra.mxu0 %v1106
      %1157 = vmatprep.subr.mxu0 0.0
      %1158 = vmatpush1.msra.mxu0 %v1107
      %1159 = vmatprep.subr.mxu0 0.0
      %1160 = vmatpush1.msra.mxu0 %v1108
      %1161 = vmatprep.subr.mxu0 0.0
      %1162 = vmatpush1.msra.mxu0 %v1109
      %1163 = vmatprep.subr.mxu0 0.0
      %1164 = vmatpush1.msra.mxu0 %v1110
      %1165 = vmatprep.subr.mxu0 0.0
      %1166 = vmatpush1.msra.mxu0 %v1111
      %1167 = vmatprep.subr.mxu0 0.0
      %1168 = vmatpush1.msra.mxu0 %v1112
      %1169 = vmatprep.subr.mxu0 0.0
      %1170 = vmatpush1.msra.mxu0 %v1113
      %1171 = vmatprep.subr.mxu0 0.0
      %1172 = vmatpush1.msra.mxu0 %v1114
      %1173 = vmatprep.subr.mxu0 0.0
      %1174 = vmatpush1.msra.mxu0 %v1115
      %1175 = vmatprep.subr.mxu0 0.0
      %1176 = vmatpush1.msra.mxu0 %v1116
      %1177 = vmatprep.subr.mxu0 0.0
      %1178 = vmatpush1.msra.mxu0 %v1117
      %1179 = vmatprep.subr.mxu0 0.0
      %1180 = vmatpush1.msra.mxu0 %v1118
      %1181 = vmatprep.subr.mxu0 0.0
      %1182 = vmatpush1.msra.mxu0 %v1119
      %1183 = vmatprep.subr.mxu0 0.0
      %1184 = vmatpush1.msra.mxu0 %v1120
      %1185 = vmatprep.mubr.f32.mxu0 %v1061
      %1186 = vmatmul.mubr.f32.gmra.mrb[0].mxu0 %v1058
      %v1187 = vpop.f32.mrb[0].mxu0
      %v1188 = vadd.f32 0.0, %v1187
      %v1189 = vpop.f32.mrb[0].mxu0
      %1190 = vmatprep.mubr.f32.mxu0 %v1067
      %1191 = vmatmul.mubr.f32.gmra.mrb[0].mxu0 %v1064
      %v1192 = vpop.f32.mrb[0].mxu0
      %v1193 = vadd.f32 0.0, %v1192
      %v1194 = vpop.f32.mrb[0].mxu0
      %1195 = vmatprep.mubr.f32.mxu0 %v1073
      %1196 = vmatmul.mubr.f32.gmra.mrb[0].mxu0 %v1070
      %v1197 = vpop.f32.mrb[0].mxu0
      %v1198 = vadd.f32 0.0, %v1197
      %v1199 = vpop.f32.mrb[0].mxu0
      %1200 = vmatprep.mubr.f32.mxu0 %v1079
      %1201 = vmatmul.mubr.f32.gmra.mrb[0].mxu0 %v1076
      %v1202 = vpop.f32.mrb[0].mxu0
      %v1203 = vadd.f32 0.0, %v1202
      %v1204 = vpop.f32.mrb[0].mxu0
      %1205 = vdwg.mxu0
      %v1206 = vadd.f32 %v898, %v1188
      %v1207 = vadd.f32 %v899, %v1193
      %v1208 = vadd.f32 %v900, %v1198
      %v1209 = vadd.f32 %v901, %v1203
      %s1210 = scalar_lea.vmem %s2, 768
      %v1211 = vld [vmem:[%s1210] sm:$0xff]
      %v1212 = vld [vmem:[%s1210 + $0x8] sm:$0xff]
      %v1213 = vld [vmem:[%s1210 + $0x10] sm:$0xff]
      %v1214 = vld [vmem:[%s1210 + $0x18] sm:$0xff]
      %v1215 = vld [vmem:[%s1210 + $0x20] sm:$0xff]
      %v1216 = vld [vmem:[%s1210 + $0x28] sm:$0xff]
      %v1217 = vld [vmem:[%s1210 + $0x30] sm:$0xff]
      %v1218 = vld [vmem:[%s1210 + $0x38] sm:$0xff]
      %v1219 = vld [vmem:[%s1210 + $0x40] sm:$0xff]
      %v1220 = vld [vmem:[%s1210 + $0x48] sm:$0xff]
      %v1221 = vld [vmem:[%s1210 + $0x50] sm:$0xff]
      %v1222 = vld [vmem:[%s1210 + $0x58] sm:$0xff]
      %v1223 = vld [vmem:[%s1210 + $0x60] sm:$0xff]
      %v1224 = vld [vmem:[%s1210 + $0x68] sm:$0xff]
      %v1225 = vld [vmem:[%s1210 + $0x70] sm:$0xff]
      %v1226 = vld [vmem:[%s1210 + $0x78] sm:$0xff]
      %v1227 = vld [vmem:[%s1210 + $0x80] sm:$0xff]
      %v1228 = vld [vmem:[%s1210 + $0x88] sm:$0xff]
      %v1229 = vld [vmem:[%s1210 + $0x90] sm:$0xff]
      %v1230 = vld [vmem:[%s1210 + $0x98] sm:$0xff]
      %v1231 = vld [vmem:[%s1210 + $0xa0] sm:$0xff]
      %v1232 = vld [vmem:[%s1210 + $0xa8] sm:$0xff]
      %v1233 = vld [vmem:[%s1210 + $0xb0] sm:$0xff]
      %v1234 = vld [vmem:[%s1210 + $0xb8] sm:$0xff]
      %v1235 = vld [vmem:[%s1210 + $0xc0] sm:$0xff]
      %v1236 = vld [vmem:[%s1210 + $0xc8] sm:$0xff]
      %v1237 = vld [vmem:[%s1210 + $0xd0] sm:$0xff]
      %v1238 = vld [vmem:[%s1210 + $0xd8] sm:$0xff]
      %v1239 = vld [vmem:[%s1210 + $0xe0] sm:$0xff]
      %v1240 = vld [vmem:[%s1210 + $0xe8] sm:$0xff]
      %v1241 = vld [vmem:[%s1210 + $0xf0] sm:$0xff]
      %v1242 = vld [vmem:[%s1210 + $0xf8] sm:$0xff]
      %1243 = vmatprep.subr.mxu0 0.0
      %1244 = vmatpush1.msra.mxu0 %v1211
      %1245 = vmatprep.subr.mxu0 0.0
      %1246 = vmatpush1.msra.mxu0 %v1212
      %1247 = vmatprep.subr.mxu0 0.0
      %1248 = vmatpush1.msra.mxu0 %v1213
      %1249 = vmatprep.subr.mxu0 0.0
      %1250 = vmatpush1.msra.mxu0 %v1214
      %1251 = vmatprep.subr.mxu0 0.0
      %1252 = vmatpush1.msra.mxu0 %v1215
      %1253 = vmatprep.subr.mxu0 0.0
      %1254 = vmatpush1.msra.mxu0 %v1216
      %1255 = vmatprep.subr.mxu0 0.0
      %1256 = vmatpush1.msra.mxu0 %v1217
      %1257 = vmatprep.subr.mxu0 0.0
      %1258 = vmatpush1.msra.mxu0 %v1218
      %1259 = vmatprep.subr.mxu0 0.0
      %1260 = vmatpush1.msra.mxu0 %v1219
      %1261 = vmatprep.subr.mxu0 0.0
      %1262 = vmatpush1.msra.mxu0 %v1220
      %1263 = vmatprep.subr.mxu0 0.0
      %1264 = vmatpush1.msra.mxu0 %v1221
      %1265 = vmatprep.subr.mxu0 0.0
      %1266 = vmatpush1.msra.mxu0 %v1222
      %1267 = vmatprep.subr.mxu0 0.0
      %1268 = vmatpush1.msra.mxu0 %v1223
      %1269 = vmatprep.subr.mxu0 0.0
      %1270 = vmatpush1.msra.mxu0 %v1224
      %1271 = vmatprep.subr.mxu0 0.0
      %1272 = vmatpush1.msra.mxu0 %v1225
      %1273 = vmatprep.subr.mxu0 0.0
      %1274 = vmatpush1.msra.mxu0 %v1226
      %1275 = vmatprep.subr.mxu0 0.0
      %1276 = vmatpush1.msra.mxu0 %v1227
      %1277 = vmatprep.subr.mxu0 0.0
      %1278 = vmatpush1.msra.mxu0 %v1228
      %1279 = vmatprep.subr.mxu0 0.0
      %1280 = vmatpush1.msra.mxu0 %v1229
      %1281 = vmatprep.subr.mxu0 0.0
      %1282 = vmatpush1.msra.mxu0 %v1230
      %1283 = vmatprep.subr.mxu0 0.0
      %1284 = vmatpush1.msra.mxu0 %v1231
      %1285 = vmatprep.subr.mxu0 0.0
      %1286 = vmatpush1.msra.mxu0 %v1232
      %1287 = vmatprep.subr.mxu0 0.0
      %1288 = vmatpush1.msra.mxu0 %v1233
      %1289 = vmatprep.subr.mxu0 0.0
      %1290 = vmatpush1.msra.mxu0 %v1234
      %1291 = vmatprep.subr.mxu0 0.0
      %1292 = vmatpush1.msra.mxu0 %v1235
      %1293 = vmatprep.subr.mxu0 0.0
      %1294 = vmatpush1.msra.mxu0 %v1236
      %1295 = vmatprep.subr.mxu0 0.0
      %1296 = vmatpush1.msra.mxu0 %v1237
      %1297 = vmatprep.subr.mxu0 0.0
      %1298 = vmatpush1.msra.mxu0 %v1238
      %1299 = vmatprep.subr.mxu0 0.0
      %1300 = vmatpush1.msra.mxu0 %v1239
      %1301 = vmatprep.subr.mxu0 0.0
      %1302 = vmatpush1.msra.mxu0 %v1240
      %1303 = vmatprep.subr.mxu0 0.0
      %1304 = vmatpush1.msra.mxu0 %v1241
      %1305 = vmatprep.subr.mxu0 0.0
      %1306 = vmatpush1.msra.mxu0 %v1242
      %1307 = vmatprep.mubr.f32.mxu0 %v1061
      %1308 = vmatmul.mubr.f32.gmra.mrb[0].mxu0 %v1058
      %v1309 = vpop.f32.mrb[0].mxu0
      %v1310 = vadd.f32 0.0, %v1309
      %v1311 = vpop.f32.mrb[0].mxu0
      %1312 = vmatprep.mubr.f32.mxu0 %v1067
      %1313 = vmatmul.mubr.f32.gmra.mrb[0].mxu0 %v1064
      %v1314 = vpop.f32.mrb[0].mxu0
      %v1315 = vadd.f32 0.0, %v1314
      %v1316 = vpop.f32.mrb[0].mxu0
      %1317 = vmatprep.mubr.f32.mxu0 %v1073
      %1318 = vmatmul.mubr.f32.gmra.mrb[0].mxu0 %v1070
      %v1319 = vpop.f32.mrb[0].mxu0
      %v1320 = vadd.f32 0.0, %v1319
      %v1321 = vpop.f32.mrb[0].mxu0
      %1322 = vmatprep.mubr.f32.mxu0 %v1079
      %1323 = vmatmul.mubr.f32.gmra.mrb[0].mxu0 %v1076
      %v1324 = vpop.f32.mrb[0].mxu0
      %v1325 = vadd.f32 0.0, %v1324
      %v1326 = vpop.f32.mrb[0].mxu0
      %1327 = vdwg.mxu0
      %v1328 = vadd.f32 %v1020, %v1310
      %v1329 = vadd.f32 %v1021, %v1315
      %v1330 = vadd.f32 %v1022, %v1320
      %v1331 = vadd.f32 %v1023, %v1325
      %s1332 = sadd.s32 %s221, 2
      %s1333 = smul.u32 %s1332, 4
      %s1334 = smul.addr %s1333, 8
      %s1335 = scalar_lea.vmem %s210, %s1334
      %v1336 = vld [vmem:[%s1335] sm:$0xff]
      %v1337 = vld [vmem:[%s1335 + $0x8] sm:$0xff]
      %v1338 = vld [vmem:[%s1335 + $0x20] sm:$0xff]
      %v1339 = vld [vmem:[%s1335 + $0x28] sm:$0xff]
      %v1340 = vld [vmem:[%s1335 + $0x40] sm:$0xff]
      %v1341 = vld [vmem:[%s1335 + $0x48] sm:$0xff]
      %v1342 = vld [vmem:[%s1335 + $0x60] sm:$0xff]
      %v1343 = vld [vmem:[%s1335 + $0x68] sm:$0xff]
      %s1344 = scalar_lea.vmem %s1, 1024
      %v1345 = vld [vmem:[%s1344] sm:$0xff]
      %v1346 = vld [vmem:[%s1344 + $0x8] sm:$0xff]
      %v1347 = vld [vmem:[%s1344 + $0x10] sm:$0xff]
      %v1348 = vld [vmem:[%s1344 + $0x18] sm:$0xff]
      %v1349 = vld [vmem:[%s1344 + $0x20] sm:$0xff]
      %v1350 = vld [vmem:[%s1344 + $0x28] sm:$0xff]
      %v1351 = vld [vmem:[%s1344 + $0x30] sm:$0xff]
      %v1352 = vld [vmem:[%s1344 + $0x38] sm:$0xff]
      %v1353 = vld [vmem:[%s1344 + $0x40] sm:$0xff]
      %v1354 = vld [vmem:[%s1344 + $0x48] sm:$0xff]
      %v1355 = vld [vmem:[%s1344 + $0x50] sm:$0xff]
      %v1356 = vld [vmem:[%s1344 + $0x58] sm:$0xff]
      %v1357 = vld [vmem:[%s1344 + $0x60] sm:$0xff]
      %v1358 = vld [vmem:[%s1344 + $0x68] sm:$0xff]
      %v1359 = vld [vmem:[%s1344 + $0x70] sm:$0xff]
      %v1360 = vld [vmem:[%s1344 + $0x78] sm:$0xff]
      %v1361 = vld [vmem:[%s1344 + $0x80] sm:$0xff]
      %v1362 = vld [vmem:[%s1344 + $0x88] sm:$0xff]
      %v1363 = vld [vmem:[%s1344 + $0x90] sm:$0xff]
      %v1364 = vld [vmem:[%s1344 + $0x98] sm:$0xff]
      %v1365 = vld [vmem:[%s1344 + $0xa0] sm:$0xff]
      %v1366 = vld [vmem:[%s1344 + $0xa8] sm:$0xff]
      %v1367 = vld [vmem:[%s1344 + $0xb0] sm:$0xff]
      %v1368 = vld [vmem:[%s1344 + $0xb8] sm:$0xff]
      %v1369 = vld [vmem:[%s1344 + $0xc0] sm:$0xff]
      %v1370 = vld [vmem:[%s1344 + $0xc8] sm:$0xff]
      %v1371 = vld [vmem:[%s1344 + $0xd0] sm:$0xff]
      %v1372 = vld [vmem:[%s1344 + $0xd8] sm:$0xff]
      %v1373 = vld [vmem:[%s1344 + $0xe0] sm:$0xff]
      %v1374 = vld [vmem:[%s1344 + $0xe8] sm:$0xff]
      %v1375 = vld [vmem:[%s1344 + $0xf0] sm:$0xff]
      %v1376 = vld [vmem:[%s1344 + $0xf8] sm:$0xff]
      %1377 = vmatprep.subr.mxu0 0.0
      %1378 = vmatpush1.msra.mxu0 %v1345
      %1379 = vmatprep.subr.mxu0 0.0
      %1380 = vmatpush1.msra.mxu0 %v1346
      %1381 = vmatprep.subr.mxu0 0.0
      %1382 = vmatpush1.msra.mxu0 %v1347
      %1383 = vmatprep.subr.mxu0 0.0
      %1384 = vmatpush1.msra.mxu0 %v1348
      %1385 = vmatprep.subr.mxu0 0.0
      %1386 = vmatpush1.msra.mxu0 %v1349
      %1387 = vmatprep.subr.mxu0 0.0
      %1388 = vmatpush1.msra.mxu0 %v1350
      %1389 = vmatprep.subr.mxu0 0.0
      %1390 = vmatpush1.msra.mxu0 %v1351
      %1391 = vmatprep.subr.mxu0 0.0
      %1392 = vmatpush1.msra.mxu0 %v1352
      %1393 = vmatprep.subr.mxu0 0.0
      %1394 = vmatpush1.msra.mxu0 %v1353
      %1395 = vmatprep.subr.mxu0 0.0
      %1396 = vmatpush1.msra.mxu0 %v1354
      %1397 = vmatprep.subr.mxu0 0.0
      %1398 = vmatpush1.msra.mxu0 %v1355
      %1399 = vmatprep.subr.mxu0 0.0
      %1400 = vmatpush1.msra.mxu0 %v1356
      %1401 = vmatprep.subr.mxu0 0.0
      %1402 = vmatpush1.msra.mxu0 %v1357
      %1403 = vmatprep.subr.mxu0 0.0
      %1404 = vmatpush1.msra.mxu0 %v1358
      %1405 = vmatprep.subr.mxu0 0.0
      %1406 = vmatpush1.msra.mxu0 %v1359
      %1407 = vmatprep.subr.mxu0 0.0
      %1408 = vmatpush1.msra.mxu0 %v1360
      %1409 = vmatprep.subr.mxu0 0.0
      %1410 = vmatpush1.msra.mxu0 %v1361
      %1411 = vmatprep.subr.mxu0 0.0
      %1412 = vmatpush1.msra.mxu0 %v1362
      %1413 = vmatprep.subr.mxu0 0.0
      %1414 = vmatpush1.msra.mxu0 %v1363
      %1415 = vmatprep.subr.mxu0 0.0
      %1416 = vmatpush1.msra.mxu0 %v1364
      %1417 = vmatprep.subr.mxu0 0.0
      %1418 = vmatpush1.msra.mxu0 %v1365
      %1419 = vmatprep.subr.mxu0 0.0
      %1420 = vmatpush1.msra.mxu0 %v1366
      %1421 = vmatprep.subr.mxu0 0.0
      %1422 = vmatpush1.msra.mxu0 %v1367
      %1423 = vmatprep.subr.mxu0 0.0
      %1424 = vmatpush1.msra.mxu0 %v1368
      %1425 = vmatprep.subr.mxu0 0.0
      %1426 = vmatpush1.msra.mxu0 %v1369
      %1427 = vmatprep.subr.mxu0 0.0
      %1428 = vmatpush1.msra.mxu0 %v1370
      %1429 = vmatprep.subr.mxu0 0.0
      %1430 = vmatpush1.msra.mxu0 %v1371
      %1431 = vmatprep.subr.mxu0 0.0
      %1432 = vmatpush1.msra.mxu0 %v1372
      %1433 = vmatprep.subr.mxu0 0.0
      %1434 = vmatpush1.msra.mxu0 %v1373
      %1435 = vmatprep.subr.mxu0 0.0
      %1436 = vmatpush1.msra.mxu0 %v1374
      %1437 = vmatprep.subr.mxu0 0.0
      %1438 = vmatpush1.msra.mxu0 %v1375
      %1439 = vmatprep.subr.mxu0 0.0
      %1440 = vmatpush1.msra.mxu0 %v1376
      %1441 = vmatprep.mubr.f32.mxu0 %v1337
      %1442 = vmatmul.mubr.f32.gmra.mrb[0].mxu0 %v1336
      %v1443 = vpop.f32.mrb[0].mxu0
      %v1444 = vadd.f32 0.0, %v1443
      %v1445 = vpop.f32.mrb[0].mxu0
      %1446 = vmatprep.mubr.f32.mxu0 %v1339
      %1447 = vmatmul.mubr.f32.gmra.mrb[0].mxu0 %v1338
      %v1448 = vpop.f32.mrb[0].mxu0
      %v1449 = vadd.f32 0.0, %v1448
      %v1450 = vpop.f32.mrb[0].mxu0
      %1451 = vmatprep.mubr.f32.mxu0 %v1341
      %1452 = vmatmul.mubr.f32.gmra.mrb[0].mxu0 %v1340
      %v1453 = vpop.f32.mrb[0].mxu0
      %v1454 = vadd.f32 0.0, %v1453
      %v1455 = vpop.f32.mrb[0].mxu0
      %1456 = vmatprep.mubr.f32.mxu0 %v1343
      %1457 = vmatmul.mubr.f32.gmra.mrb[0].mxu0 %v1342
      %v1458 = vpop.f32.mrb[0].mxu0
      %v1459 = vadd.f32 0.0, %v1458
      %v1460 = vpop.f32.mrb[0].mxu0
      %1461 = vdwg.mxu0
      %v1462 = vadd.f32 %v1206, %v1444
      %v1463 = vadd.f32 %v1207, %v1449
      %v1464 = vadd.f32 %v1208, %v1454
      %v1465 = vadd.f32 %v1209, %v1459
      %s1466 = scalar_lea.vmem %s2, 1024
      %v1467 = vld [vmem:[%s1466] sm:$0xff]
      %v1468 = vld [vmem:[%s1466 + $0x8] sm:$0xff]
      %v1469 = vld [vmem:[%s1466 + $0x10] sm:$0xff]
      %v1470 = vld [vmem:[%s1466 + $0x18] sm:$0xff]
      %v1471 = vld [vmem:[%s1466 + $0x20] sm:$0xff]
      %v1472 = vld [vmem:[%s1466 + $0x28] sm:$0xff]
      %v1473 = vld [vmem:[%s1466 + $0x30] sm:$0xff]
      %v1474 = vld [vmem:[%s1466 + $0x38] sm:$0xff]
      %v1475 = vld [vmem:[%s1466 + $0x40] sm:$0xff]
      %v1476 = vld [vmem:[%s1466 + $0x48] sm:$0xff]
      %v1477 = vld [vmem:[%s1466 + $0x50] sm:$0xff]
      %v1478 = vld [vmem:[%s1466 + $0x58] sm:$0xff]
      %v1479 = vld [vmem:[%s1466 + $0x60] sm:$0xff]
      %v1480 = vld [vmem:[%s1466 + $0x68] sm:$0xff]
      %v1481 = vld [vmem:[%s1466 + $0x70] sm:$0xff]
      %v1482 = vld [vmem:[%s1466 + $0x78] sm:$0xff]
      %v1483 = vld [vmem:[%s1466 + $0x80] sm:$0xff]
      %v1484 = vld [vmem:[%s1466 + $0x88] sm:$0xff]
      %v1485 = vld [vmem:[%s1466 + $0x90] sm:$0xff]
      %v1486 = vld [vmem:[%s1466 + $0x98] sm:$0xff]
      %v1487 = vld [vmem:[%s1466 + $0xa0] sm:$0xff]
      %v1488 = vld [vmem:[%s1466 + $0xa8] sm:$0xff]
      %v1489 = vld [vmem:[%s1466 + $0xb0] sm:$0xff]
      %v1490 = vld [vmem:[%s1466 + $0xb8] sm:$0xff]
      %v1491 = vld [vmem:[%s1466 + $0xc0] sm:$0xff]
      %v1492 = vld [vmem:[%s1466 + $0xc8] sm:$0xff]
      %v1493 = vld [vmem:[%s1466 + $0xd0] sm:$0xff]
      %v1494 = vld [vmem:[%s1466 + $0xd8] sm:$0xff]
      %v1495 = vld [vmem:[%s1466 + $0xe0] sm:$0xff]
      %v1496 = vld [vmem:[%s1466 + $0xe8] sm:$0xff]
      %v1497 = vld [vmem:[%s1466 + $0xf0] sm:$0xff]
      %v1498 = vld [vmem:[%s1466 + $0xf8] sm:$0xff]
      %1499 = vmatprep.subr.mxu0 0.0
      %1500 = vmatpush1.msra.mxu0 %v1467
      %1501 = vmatprep.subr.mxu0 0.0
      %1502 = vmatpush1.msra.mxu0 %v1468
      %1503 = vmatprep.subr.mxu0 0.0
      %1504 = vmatpush1.msra.mxu0 %v1469
      %1505 = vmatprep.subr.mxu0 0.0
      %1506 = vmatpush1.msra.mxu0 %v1470
      %1507 = vmatprep.subr.mxu0 0.0
      %1508 = vmatpush1.msra.mxu0 %v1471
      %1509 = vmatprep.subr.mxu0 0.0
      %1510 = vmatpush1.msra.mxu0 %v1472
      %1511 = vmatprep.subr.mxu0 0.0
      %1512 = vmatpush1.msra.mxu0 %v1473
      %1513 = vmatprep.subr.mxu0 0.0
      %1514 = vmatpush1.msra.mxu0 %v1474
      %1515 = vmatprep.subr.mxu0 0.0
      %1516 = vmatpush1.msra.mxu0 %v1475
      %1517 = vmatprep.subr.mxu0 0.0
      %1518 = vmatpush1.msra.mxu0 %v1476
      %1519 = vmatprep.subr.mxu0 0.0
      %1520 = vmatpush1.msra.mxu0 %v1477
      %1521 = vmatprep.subr.mxu0 0.0
      %1522 = vmatpush1.msra.mxu0 %v1478
      %1523 = vmatprep.subr.mxu0 0.0
      %1524 = vmatpush1.msra.mxu0 %v1479
      %1525 = vmatprep.subr.mxu0 0.0
      %1526 = vmatpush1.msra.mxu0 %v1480
      %1527 = vmatprep.subr.mxu0 0.0
      %1528 = vmatpush1.msra.mxu0 %v1481
      %1529 = vmatprep.subr.mxu0 0.0
      %1530 = vmatpush1.msra.mxu0 %v1482
      %1531 = vmatprep.subr.mxu0 0.0
      %1532 = vmatpush1.msra.mxu0 %v1483
      %1533 = vmatprep.subr.mxu0 0.0
      %1534 = vmatpush1.msra.mxu0 %v1484
      %1535 = vmatprep.subr.mxu0 0.0
      %1536 = vmatpush1.msra.mxu0 %v1485
      %1537 = vmatprep.subr.mxu0 0.0
      %1538 = vmatpush1.msra.mxu0 %v1486
      %1539 = vmatprep.subr.mxu0 0.0
      %1540 = vmatpush1.msra.mxu0 %v1487
      %1541 = vmatprep.subr.mxu0 0.0
      %1542 = vmatpush1.msra.mxu0 %v1488
      %1543 = vmatprep.subr.mxu0 0.0
      %1544 = vmatpush1.msra.mxu0 %v1489
      %1545 = vmatprep.subr.mxu0 0.0
      %1546 = vmatpush1.msra.mxu0 %v1490
      %1547 = vmatprep.subr.mxu0 0.0
      %1548 = vmatpush1.msra.mxu0 %v1491
      %1549 = vmatprep.subr.mxu0 0.0
      %1550 = vmatpush1.msra.mxu0 %v1492
      %1551 = vmatprep.subr.mxu0 0.0
      %1552 = vmatpush1.msra.mxu0 %v1493
      %1553 = vmatprep.subr.mxu0 0.0
      %1554 = vmatpush1.msra.mxu0 %v1494
      %1555 = vmatprep.subr.mxu0 0.0
      %1556 = vmatpush1.msra.mxu0 %v1495
      %1557 = vmatprep.subr.mxu0 0.0
      %1558 = vmatpush1.msra.mxu0 %v1496
      %1559 = vmatprep.subr.mxu0 0.0
      %1560 = vmatpush1.msra.mxu0 %v1497
      %1561 = vmatprep.subr.mxu0 0.0
      %1562 = vmatpush1.msra.mxu0 %v1498
      %1563 = vmatprep.mubr.f32.mxu0 %v1337
      %1564 = vmatmul.mubr.f32.gmra.mrb[0].mxu0 %v1336
      %v1565 = vpop.f32.mrb[0].mxu0
      %v1566 = vadd.f32 0.0, %v1565
      %v1567 = vpop.f32.mrb[0].mxu0
      %1568 = vmatprep.mubr.f32.mxu0 %v1339
      %1569 = vmatmul.mubr.f32.gmra.mrb[0].mxu0 %v1338
      %v1570 = vpop.f32.mrb[0].mxu0
      %v1571 = vadd.f32 0.0, %v1570
      %v1572 = vpop.f32.mrb[0].mxu0
      %1573 = vmatprep.mubr.f32.mxu0 %v1341
      %1574 = vmatmul.mubr.f32.gmra.mrb[0].mxu0 %v1340
      %v1575 = vpop.f32.mrb[0].mxu0
      %v1576 = vadd.f32 0.0, %v1575
      %v1577 = vpop.f32.mrb[0].mxu0
      %1578 = vmatprep.mubr.f32.mxu0 %v1343
      %1579 = vmatmul.mubr.f32.gmra.mrb[0].mxu0 %v1342
      %v1580 = vpop.f32.mrb[0].mxu0
      %v1581 = vadd.f32 0.0, %v1580
      %v1582 = vpop.f32.mrb[0].mxu0
      %1583 = vdwg.mxu0
      %v1584 = vadd.f32 %v1328, %v1566
      %v1585 = vadd.f32 %v1329, %v1571
      %v1586 = vadd.f32 %v1330, %v1576
      %v1587 = vadd.f32 %v1331, %v1581
      %v1588 = vld [vmem:[%s1335] sm:$0xfe]
      %v1589 = vld [vmem:[%s1335 + $0x8] sm:$0xfe]
      %v1590 = vld [vmem:[%s1335 + $0x10] sm:$0x1]
      %v1591 = vld [vmem:[%s1335 + $0x18] sm:$0x1]
      %v1592 = vld [vmem:[%s1335 + $0x20] sm:$0xfe]
      %v1593 = vld [vmem:[%s1335 + $0x28] sm:$0xfe]
      %v1594 = vld [vmem:[%s1335 + $0x30] sm:$0x1]
      %v1595 = vld [vmem:[%s1335 + $0x38] sm:$0x1]
      %v1596 = vld [vmem:[%s1335 + $0x40] sm:$0xfe]
      %v1597 = vld [vmem:[%s1335 + $0x48] sm:$0xfe]
      %v1598 = vld [vmem:[%s1335 + $0x50] sm:$0x1]
      %v1599 = vld [vmem:[%s1335 + $0x58] sm:$0x1]
      %v1600 = vld [vmem:[%s1335 + $0x60] sm:$0xfe]
      %v1601 = vld [vmem:[%s1335 + $0x68] sm:$0xfe]
      %v1602 = vld [vmem:[%s1335 + $0x70] sm:$0x1]
      %v1603 = vld [vmem:[%s1335 + $0x78] sm:$0x1]
      %v1620 = vrot.slane %v1588, 1
      %v1621 = vrot.slane %v1590, 1
      %v1622 = vsel %vm329, %v1620, %v1621
      %v1623 = vrot.slane %v1589, 1
      %v1624 = vrot.slane %v1591, 1
      %v1625 = vsel %vm329, %v1623, %v1624
      %v1626 = vrot.slane %v1592, 1
      %v1627 = vrot.slane %v1594, 1
      %v1628 = vsel %vm329, %v1626, %v1627
      %v1629 = vrot.slane %v1593, 1
      %v1630 = vrot.slane %v1595, 1
      %v1631 = vsel %vm329, %v1629, %v1630
      %v1632 = vrot.slane %v1596, 1
      %v1633 = vrot.slane %v1598, 1
      %v1634 = vsel %vm329, %v1632, %v1633
      %v1635 = vrot.slane %v1597, 1
      %v1636 = vrot.slane %v1599, 1
      %v1637 = vsel %vm329, %v1635, %v1636
      %v1638 = vrot.slane %v1600, 1
      %v1639 = vrot.slane %v1602, 1
      %v1640 = vsel %vm329, %v1638, %v1639
      %v1641 = vrot.slane %v1601, 1
      %v1642 = vrot.slane %v1603, 1
      %v1643 = vsel %vm329, %v1641, %v1642
      %s1652 = scalar_lea.vmem %s1, 1280
      %v1653 = vld [vmem:[%s1652] sm:$0xff]
      %v1654 = vld [vmem:[%s1652 + $0x8] sm:$0xff]
      %v1655 = vld [vmem:[%s1652 + $0x10] sm:$0xff]
      %v1656 = vld [vmem:[%s1652 + $0x18] sm:$0xff]
      %v1657 = vld [vmem:[%s1652 + $0x20] sm:$0xff]
      %v1658 = vld [vmem:[%s1652 + $0x28] sm:$0xff]
      %v1659 = vld [vmem:[%s1652 + $0x30] sm:$0xff]
      %v1660 = vld [vmem:[%s1652 + $0x38] sm:$0xff]
      %v1661 = vld [vmem:[%s1652 + $0x40] sm:$0xff]
      %v1662 = vld [vmem:[%s1652 + $0x48] sm:$0xff]
      %v1663 = vld [vmem:[%s1652 + $0x50] sm:$0xff]
      %v1664 = vld [vmem:[%s1652 + $0x58] sm:$0xff]
      %v1665 = vld [vmem:[%s1652 + $0x60] sm:$0xff]
      %v1666 = vld [vmem:[%s1652 + $0x68] sm:$0xff]
      %v1667 = vld [vmem:[%s1652 + $0x70] sm:$0xff]
      %v1668 = vld [vmem:[%s1652 + $0x78] sm:$0xff]
      %v1669 = vld [vmem:[%s1652 + $0x80] sm:$0xff]
      %v1670 = vld [vmem:[%s1652 + $0x88] sm:$0xff]
      %v1671 = vld [vmem:[%s1652 + $0x90] sm:$0xff]
      %v1672 = vld [vmem:[%s1652 + $0x98] sm:$0xff]
      %v1673 = vld [vmem:[%s1652 + $0xa0] sm:$0xff]
      %v1674 = vld [vmem:[%s1652 + $0xa8] sm:$0xff]
      %v1675 = vld [vmem:[%s1652 + $0xb0] sm:$0xff]
      %v1676 = vld [vmem:[%s1652 + $0xb8] sm:$0xff]
      %v1677 = vld [vmem:[%s1652 + $0xc0] sm:$0xff]
      %v1678 = vld [vmem:[%s1652 + $0xc8] sm:$0xff]
      %v1679 = vld [vmem:[%s1652 + $0xd0] sm:$0xff]
      %v1680 = vld [vmem:[%s1652 + $0xd8] sm:$0xff]
      %v1681 = vld [vmem:[%s1652 + $0xe0] sm:$0xff]
      %v1682 = vld [vmem:[%s1652 + $0xe8] sm:$0xff]
      %v1683 = vld [vmem:[%s1652 + $0xf0] sm:$0xff]
      %v1684 = vld [vmem:[%s1652 + $0xf8] sm:$0xff]
      %1685 = vmatprep.subr.mxu0 0.0
      %1686 = vmatpush1.msra.mxu0 %v1653
      %1687 = vmatprep.subr.mxu0 0.0
      %1688 = vmatpush1.msra.mxu0 %v1654
      %1689 = vmatprep.subr.mxu0 0.0
      %1690 = vmatpush1.msra.mxu0 %v1655
      %1691 = vmatprep.subr.mxu0 0.0
      %1692 = vmatpush1.msra.mxu0 %v1656
      %1693 = vmatprep.subr.mxu0 0.0
      %1694 = vmatpush1.msra.mxu0 %v1657
      %1695 = vmatprep.subr.mxu0 0.0
      %1696 = vmatpush1.msra.mxu0 %v1658
      %1697 = vmatprep.subr.mxu0 0.0
      %1698 = vmatpush1.msra.mxu0 %v1659
      %1699 = vmatprep.subr.mxu0 0.0
      %1700 = vmatpush1.msra.mxu0 %v1660
      %1701 = vmatprep.subr.mxu0 0.0
      %1702 = vmatpush1.msra.mxu0 %v1661
      %1703 = vmatprep.subr.mxu0 0.0
      %1704 = vmatpush1.msra.mxu0 %v1662
      %1705 = vmatprep.subr.mxu0 0.0
      %1706 = vmatpush1.msra.mxu0 %v1663
      %1707 = vmatprep.subr.mxu0 0.0
      %1708 = vmatpush1.msra.mxu0 %v1664
      %1709 = vmatprep.subr.mxu0 0.0
      %1710 = vmatpush1.msra.mxu0 %v1665
      %1711 = vmatprep.subr.mxu0 0.0
      %1712 = vmatpush1.msra.mxu0 %v1666
      %1713 = vmatprep.subr.mxu0 0.0
      %1714 = vmatpush1.msra.mxu0 %v1667
      %1715 = vmatprep.subr.mxu0 0.0
      %1716 = vmatpush1.msra.mxu0 %v1668
      %1717 = vmatprep.subr.mxu0 0.0
      %1718 = vmatpush1.msra.mxu0 %v1669
      %1719 = vmatprep.subr.mxu0 0.0
      %1720 = vmatpush1.msra.mxu0 %v1670
      %1721 = vmatprep.subr.mxu0 0.0
      %1722 = vmatpush1.msra.mxu0 %v1671
      %1723 = vmatprep.subr.mxu0 0.0
      %1724 = vmatpush1.msra.mxu0 %v1672
      %1725 = vmatprep.subr.mxu0 0.0
      %1726 = vmatpush1.msra.mxu0 %v1673
      %1727 = vmatprep.subr.mxu0 0.0
      %1728 = vmatpush1.msra.mxu0 %v1674
      %1729 = vmatprep.subr.mxu0 0.0
      %1730 = vmatpush1.msra.mxu0 %v1675
      %1731 = vmatprep.subr.mxu0 0.0
      %1732 = vmatpush1.msra.mxu0 %v1676
      %1733 = vmatprep.subr.mxu0 0.0
      %1734 = vmatpush1.msra.mxu0 %v1677
      %1735 = vmatprep.subr.mxu0 0.0
      %1736 = vmatpush1.msra.mxu0 %v1678
      %1737 = vmatprep.subr.mxu0 0.0
      %1738 = vmatpush1.msra.mxu0 %v1679
      %1739 = vmatprep.subr.mxu0 0.0
      %1740 = vmatpush1.msra.mxu0 %v1680
      %1741 = vmatprep.subr.mxu0 0.0
      %1742 = vmatpush1.msra.mxu0 %v1681
      %1743 = vmatprep.subr.mxu0 0.0
      %1744 = vmatpush1.msra.mxu0 %v1682
      %1745 = vmatprep.subr.mxu0 0.0
      %1746 = vmatpush1.msra.mxu0 %v1683
      %1747 = vmatprep.subr.mxu0 0.0
      %1748 = vmatpush1.msra.mxu0 %v1684
      %1749 = vmatprep.mubr.f32.mxu0 %v1625
      %1750 = vmatmul.mubr.f32.gmra.mrb[0].mxu0 %v1622
      %v1751 = vpop.f32.mrb[0].mxu0
      %v1752 = vadd.f32 0.0, %v1751
      %v1753 = vpop.f32.mrb[0].mxu0
      %1754 = vmatprep.mubr.f32.mxu0 %v1631
      %1755 = vmatmul.mubr.f32.gmra.mrb[0].mxu0 %v1628
      %v1756 = vpop.f32.mrb[0].mxu0
      %v1757 = vadd.f32 0.0, %v1756
      %v1758 = vpop.f32.mrb[0].mxu0
      %1759 = vmatprep.mubr.f32.mxu0 %v1637
      %1760 = vmatmul.mubr.f32.gmra.mrb[0].mxu0 %v1634
      %v1761 = vpop.f32.mrb[0].mxu0
      %v1762 = vadd.f32 0.0, %v1761
      %v1763 = vpop.f32.mrb[0].mxu0
      %1764 = vmatprep.mubr.f32.mxu0 %v1643
      %1765 = vmatmul.mubr.f32.gmra.mrb[0].mxu0 %v1640
      %v1766 = vpop.f32.mrb[0].mxu0
      %v1767 = vadd.f32 0.0, %v1766
      %v1768 = vpop.f32.mrb[0].mxu0
      %1769 = vdwg.mxu0
      %v1770 = vadd.f32 %v1462, %v1752
      %v1771 = vadd.f32 %v1463, %v1757
      %v1772 = vadd.f32 %v1464, %v1762
      %v1773 = vadd.f32 %v1465, %v1767
      %s1774 = scalar_lea.vmem %s2, 1280
      %v1775 = vld [vmem:[%s1774] sm:$0xff]
      %v1776 = vld [vmem:[%s1774 + $0x8] sm:$0xff]
      %v1777 = vld [vmem:[%s1774 + $0x10] sm:$0xff]
      %v1778 = vld [vmem:[%s1774 + $0x18] sm:$0xff]
      %v1779 = vld [vmem:[%s1774 + $0x20] sm:$0xff]
      %v1780 = vld [vmem:[%s1774 + $0x28] sm:$0xff]
      %v1781 = vld [vmem:[%s1774 + $0x30] sm:$0xff]
      %v1782 = vld [vmem:[%s1774 + $0x38] sm:$0xff]
      %v1783 = vld [vmem:[%s1774 + $0x40] sm:$0xff]
      %v1784 = vld [vmem:[%s1774 + $0x48] sm:$0xff]
      %v1785 = vld [vmem:[%s1774 + $0x50] sm:$0xff]
      %v1786 = vld [vmem:[%s1774 + $0x58] sm:$0xff]
      %v1787 = vld [vmem:[%s1774 + $0x60] sm:$0xff]
      %v1788 = vld [vmem:[%s1774 + $0x68] sm:$0xff]
      %v1789 = vld [vmem:[%s1774 + $0x70] sm:$0xff]
      %v1790 = vld [vmem:[%s1774 + $0x78] sm:$0xff]
      %v1791 = vld [vmem:[%s1774 + $0x80] sm:$0xff]
      %v1792 = vld [vmem:[%s1774 + $0x88] sm:$0xff]
      %v1793 = vld [vmem:[%s1774 + $0x90] sm:$0xff]
      %v1794 = vld [vmem:[%s1774 + $0x98] sm:$0xff]
      %v1795 = vld [vmem:[%s1774 + $0xa0] sm:$0xff]
      %v1796 = vld [vmem:[%s1774 + $0xa8] sm:$0xff]
      %v1797 = vld [vmem:[%s1774 + $0xb0] sm:$0xff]
      %v1798 = vld [vmem:[%s1774 + $0xb8] sm:$0xff]
      %v1799 = vld [vmem:[%s1774 + $0xc0] sm:$0xff]
      %v1800 = vld [vmem:[%s1774 + $0xc8] sm:$0xff]
      %v1801 = vld [vmem:[%s1774 + $0xd0] sm:$0xff]
      %v1802 = vld [vmem:[%s1774 + $0xd8] sm:$0xff]
      %v1803 = vld [vmem:[%s1774 + $0xe0] sm:$0xff]
      %v1804 = vld [vmem:[%s1774 + $0xe8] sm:$0xff]
      %v1805 = vld [vmem:[%s1774 + $0xf0] sm:$0xff]
      %v1806 = vld [vmem:[%s1774 + $0xf8] sm:$0xff]
      %1807 = vmatprep.subr.mxu0 0.0
      %1808 = vmatpush1.msra.mxu0 %v1775
      %1809 = vmatprep.subr.mxu0 0.0
      %1810 = vmatpush1.msra.mxu0 %v1776
      %1811 = vmatprep.subr.mxu0 0.0
      %1812 = vmatpush1.msra.mxu0 %v1777
      %1813 = vmatprep.subr.mxu0 0.0
      %1814 = vmatpush1.msra.mxu0 %v1778
      %1815 = vmatprep.subr.mxu0 0.0
      %1816 = vmatpush1.msra.mxu0 %v1779
      %1817 = vmatprep.subr.mxu0 0.0
      %1818 = vmatpush1.msra.mxu0 %v1780
      %1819 = vmatprep.subr.mxu0 0.0
      %1820 = vmatpush1.msra.mxu0 %v1781
      %1821 = vmatprep.subr.mxu0 0.0
      %1822 = vmatpush1.msra.mxu0 %v1782
      %1823 = vmatprep.subr.mxu0 0.0
      %1824 = vmatpush1.msra.mxu0 %v1783
      %1825 = vmatprep.subr.mxu0 0.0
      %1826 = vmatpush1.msra.mxu0 %v1784
      %1827 = vmatprep.subr.mxu0 0.0
      %1828 = vmatpush1.msra.mxu0 %v1785
      %1829 = vmatprep.subr.mxu0 0.0
      %1830 = vmatpush1.msra.mxu0 %v1786
      %1831 = vmatprep.subr.mxu0 0.0
      %1832 = vmatpush1.msra.mxu0 %v1787
      %1833 = vmatprep.subr.mxu0 0.0
      %1834 = vmatpush1.msra.mxu0 %v1788
      %1835 = vmatprep.subr.mxu0 0.0
      %1836 = vmatpush1.msra.mxu0 %v1789
      %1837 = vmatprep.subr.mxu0 0.0
      %1838 = vmatpush1.msra.mxu0 %v1790
      %1839 = vmatprep.subr.mxu0 0.0
      %1840 = vmatpush1.msra.mxu0 %v1791
      %1841 = vmatprep.subr.mxu0 0.0
      %1842 = vmatpush1.msra.mxu0 %v1792
      %1843 = vmatprep.subr.mxu0 0.0
      %1844 = vmatpush1.msra.mxu0 %v1793
      %1845 = vmatprep.subr.mxu0 0.0
      %1846 = vmatpush1.msra.mxu0 %v1794
      %1847 = vmatprep.subr.mxu0 0.0
      %1848 = vmatpush1.msra.mxu0 %v1795
      %1849 = vmatprep.subr.mxu0 0.0
      %1850 = vmatpush1.msra.mxu0 %v1796
      %1851 = vmatprep.subr.mxu0 0.0
      %1852 = vmatpush1.msra.mxu0 %v1797
      %1853 = vmatprep.subr.mxu0 0.0
      %1854 = vmatpush1.msra.mxu0 %v1798
      %1855 = vmatprep.subr.mxu0 0.0
      %1856 = vmatpush1.msra.mxu0 %v1799
      %1857 = vmatprep.subr.mxu0 0.0
      %1858 = vmatpush1.msra.mxu0 %v1800
      %1859 = vmatprep.subr.mxu0 0.0
      %1860 = vmatpush1.msra.mxu0 %v1801
      %1861 = vmatprep.subr.mxu0 0.0
      %1862 = vmatpush1.msra.mxu0 %v1802
      %1863 = vmatprep.subr.mxu0 0.0
      %1864 = vmatpush1.msra.mxu0 %v1803
      %1865 = vmatprep.subr.mxu0 0.0
      %1866 = vmatpush1.msra.mxu0 %v1804
      %1867 = vmatprep.subr.mxu0 0.0
      %1868 = vmatpush1.msra.mxu0 %v1805
      %1869 = vmatprep.subr.mxu0 0.0
      %1870 = vmatpush1.msra.mxu0 %v1806
      %1871 = vmatprep.mubr.f32.mxu0 %v1625
      %1872 = vmatmul.mubr.f32.gmra.mrb[0].mxu0 %v1622
      %v1873 = vpop.f32.mrb[0].mxu0
      %v1874 = vadd.f32 0.0, %v1873
      %v1875 = vpop.f32.mrb[0].mxu0
      %1876 = vmatprep.mubr.f32.mxu0 %v1631
      %1877 = vmatmul.mubr.f32.gmra.mrb[0].mxu0 %v1628
      %v1878 = vpop.f32.mrb[0].mxu0
      %v1879 = vadd.f32 0.0, %v1878
      %v1880 = vpop.f32.mrb[0].mxu0
      %1881 = vmatprep.mubr.f32.mxu0 %v1637
      %1882 = vmatmul.mubr.f32.gmra.mrb[0].mxu0 %v1634
      %v1883 = vpop.f32.mrb[0].mxu0
      %v1884 = vadd.f32 0.0, %v1883
      %v1885 = vpop.f32.mrb[0].mxu0
      %1886 = vmatprep.mubr.f32.mxu0 %v1643
      %1887 = vmatmul.mubr.f32.gmra.mrb[0].mxu0 %v1640
      %v1888 = vpop.f32.mrb[0].mxu0
      %v1889 = vadd.f32 0.0, %v1888
      %v1890 = vpop.f32.mrb[0].mxu0
      %1891 = vdwg.mxu0
      %v1892 = vadd.f32 %v1584, %v1874
      %v1893 = vadd.f32 %v1585, %v1879
      %v1894 = vadd.f32 %v1586, %v1884
      %v1895 = vadd.f32 %v1587, %v1889
      %v1896 = vld [vmem:[%s3] sm:$0x1]
      %v1898 = vlaneseq
      %v1899 = vshrl.u32 %v1898, 7
      %v1900 = vsub.s32 0, %v1899
      %v1901 = vrot.slane %v1896, %v1900
      %v1903 = vadd.f32 %v1770, %v1901
      %v1904 = vadd.f32 %v1771, %v1901
      %v1905 = vadd.f32 %v1772, %v1901
      %v1906 = vadd.f32 %v1773, %v1901
      %v1907 = vmax.f32 %v1903, 0.0
      %v1908 = vmax.f32 %v1904, 0.0
      %v1909 = vmax.f32 %v1905, 0.0
      %v1910 = vmax.f32 %v1906, 0.0
      %v1911 = vadd.f32 %v1892, %v1901
      %v1912 = vadd.f32 %v1893, %v1901
      %v1913 = vadd.f32 %v1894, %v1901
      %v1914 = vadd.f32 %v1895, %v1901
      %v1915 = vmax.f32 %v1911, 0.0
      %v1916 = vmax.f32 %v1912, 0.0
      %v1917 = vmax.f32 %v1913, 0.0
      %v1918 = vmax.f32 %v1914, 0.0
      %v1919 = vmax.f32 %v1907, %v1915
      %v1920 = vmax.f32 %v1908, %v1916
      %v1921 = vmax.f32 %v1909, %v1917
      %v1922 = vmax.f32 %v1910, %v1918
      %v1923 = vmax.f32 %v1919, %v1920
      %v1924 = vmax.f32 %v1921, %v1922
      %1925 = vst [vmem:[%s219] sm:$0xff] %v1923
      %1926 = vst [vmem:[%s219 + $0x8] sm:$0xff] %v1924
      %s1927 = smul.u32 2, %s20
      %p1928 = scmp.lt.s32.totalorder %s19, 1
      %s1929 = scalar_select %p1928, %s19, 1
      %p1930 = scmp.lt.s32.totalorder %s1927, 1
      %s1931 = scalar_select %p1930, %s1927, 1
      %s1932 = smul.addr %s1929, 2
      %s1933 = sadd.s32 %s1931, %s1932
      %s1934 = smul.addr %s1933, 8
      %s1935 = scalar_lea.vmem %s4, %s1934
      // Predicated region
      $region37: #{eye_diameter_net.6} parent=35 // pred_check
        %p1936 = pneg %p136
      $region38: #{eye_diameter_net.6} parent=35 // pred_check_branch
        %1938 = sbr.rel (%p1936) target = $region40
      $region39: #{eye_diameter_net.6} parent=35 // pred_region
        %s1939 = smul.u32 2, %s20
      $region40: #{eye_diameter_net.6} parent=35 // pred_fallthru
        _
    $region36: #{eye_diameter_net.6} parent=5 // pred_fallthru
      _
    %p1940 = scmp.le.s32.totalorder 2, %s10
    // Predicated region
    $region41: #{eye_diameter_net.6} parent=5 // pred_check
      %p1941 = pneg %p1940
    $region42: #{eye_diameter_net.6} parent=5 // pred_check_branch
      %1943 = sbr.rel (%p1941) target = $region44
    $region43: #{eye_diameter_net.6} parent=5 // pred_region
      %s1944 = ssub.s32 %s10, 2
      // Predicated region
      $region45: #{eye_diameter_net.6} parent=43 // pred_check
        %p1945 = pneg %p142
      $region46: #{eye_diameter_net.6} parent=43 // pred_check_branch
        %1947 = sbr.rel (%p1945) target = $region48
      $region47: #{eye_diameter_net.6} parent=43 // pred_region
        %s1948 = smul.u32 2, %s22
        %p1949 = scmp.lt.s32.totalorder %s21, 1
        %s1950 = scalar_select %p1949, %s21, 1
        %p1951 = scmp.lt.s32.totalorder %s1948, 1
        %s1952 = scalar_select %p1951, %s1948, 1
        %s1953 = smul.addr %s1950, 2
        %s1954 = sadd.s32 %s1952, %s1953
        %s1955 = smul.addr %s1954, 8
        %s1956 = scalar_lea.vmem %s4, %s1955
      $region48: #{eye_diameter_net.6} parent=43 // pred_fallthru
        _
    $region44: #{eye_diameter_net.6} parent=5 // pred_fallthru
      _
  $region6: #{eye_diameter_net.6} parent=0 // loop_footer
    %s14 = sadd.s32 1, %s10
  $region7: #{eye_diameter_net.6} parent=0 // loop_footer_branch
    %9 = sbr.rel target = $region3
  $region8: #{eye_diameter_net.6} parent=0 // loop_exit
    _

// kernel: eye_diameter_net.7
$region0: #{eye_diameter_net.7}
  #allocation0 [shape = 'u32[]', space=smem, size = 0x4, offset = 0x4, fixed_abs, tag = 'smem constant byte address 0x4 - core index']
  #allocation1 [shape = 'u32[144,128]{1,0:T(1,128)}', space=vmem, size = 0x12000, scoped, tag = 'internal scratch']
  #allocation2 [shape = 'f32[2,256]{1,0:T(2,128)}', space=vmem, size = 0x800, scoped, tag = 'scratch operand']
  %s0 = inlined_call_operand.vmem [shape: f32[2,512], index: 0, kind: input, shape index: {}]
  %s1 = inlined_call_operand.vmem [shape: f32[512,256], index: 1, kind: input, shape index: {}]
  %s2 = inlined_call_operand.vmem [shape: f32[1,256], index: 2, kind: input, shape index: {}]
  %s3 = inlined_call_operand.vmem [shape: f32[256,128], index: 3, kind: input, shape index: {}]
  %s4 = inlined_call_operand.vmem [shape: f32[1,128], index: 4, kind: input, shape index: {}]
  %s5 = inlined_call_operand.hbm [shape: f32[2,128], index: 5, kind: output, shape index: {}]
  %s6 = sld [smem:[#allocation0]]
  $region61: #{eye_diameter_net.7} parent=0
    _
  %s8 = ssub.s32 1, %s6
  %s9 = scalar_select 0, %s8, %s6
  $region1: #{eye_diameter_net.7} parent=0
    #allocation3 [shape = 'u8[1024]{0}', space=vmem, size = 0x400, scoped, tag = 'output window, operand 0, single buffered']
    #allocation4 [shape = 's32[2]{0}', space=sflag, size = 0x8, scoped, tag = 'scoped memory for eye_diameter_net.7']
    %10 = vsyncpa [#allocation4], 0
    loop: start=0, step=1, limit=4
    $region2: #{eye_diameter_net.7} parent=1 // loop_pre_header
      _
    $region3: #{eye_diameter_net.7} parent=1 // loop_header
      %s12 = sphi 0, %s16
      %p13 = scmp.ge.s32.totalorder %s12, 4
      %s22 = sphi 0, %s24
      %s25 = sphi 0, %s22
      %s26 = sphi 0, %s25
      %s42 = sphi 0, %s26
      %s48 = sphi 0, %s50
      %s51 = sphi 0, %s48
      %s52 = sphi 0, %s51
      %s68 = sphi 0, %s52
      %s72 = sphi 0, %s72
      %s74 = sphi 0, %s72
      %s75 = sphi 0, %s74
      %s89 = sphi 0, %s75
      %s93 = sphi 0, %s93
      %s95 = sphi 0, %s93
      %s96 = sphi 0, %s95
      %s110 = sphi 0, %s96
      %s114 = sphi 0, %s114
      %s116 = sphi 0, %s114
      %s117 = sphi 0, %s116
      %s131 = sphi 0, %s117
      %s135 = sphi 0, %s135
      %s137 = sphi 0, %s135
      %s138 = sphi 0, %s137
      %s152 = sphi 0, %s138
    $region4: #{eye_diameter_net.7} parent=1 // loop_header_branch
      %15 = sbr.rel (%p13) target = $region8
    $region5: #{eye_diameter_net.7} parent=1 // loop_body
      %s17 = ssub.s32 %s12, 1
      %s18 = ssub.s32 %s12, 2
      %s19 = sadd.s32 %s12, 1
      %s20 = ssub.s32 %s12, %s19
      %p21 = scmp.eq.s32.totalorder %s20, 0
      %s23 = sadd.s32 %s22, 1
      %s24 = scalar_select %p21, %s22, %s23
      %p27 = pneg %p21
      %p28 = scmp.eq.s32.totalorder %s12, 1
      %p29 = por %p27, %p28
      %p30 = scmp.ne.s32.totalorder %s22, %s25
      %p31 = scmp.eq.s32.totalorder %s12, 0
      %p32 = por %p30, %p31
      %p33 = scmp.ne.s32.totalorder %s22, %s25
      %p34 = scmp.eq.s32.totalorder %s17, 1
      %p35 = por %p33, %p34
      %p36 = scmp.ne.s32.totalorder %s25, %s26
      %p37 = scmp.eq.s32.totalorder %s17, 0
      %p38 = por %p36, %p37
      %p39 = scmp.ne.s32.totalorder %s25, %s26
      %p40 = scmp.eq.s32.totalorder %s18, 1
      %p41 = por %p39, %p40
      %p43 = scmp.ne.s32.totalorder %s26, %s42
      %p44 = scmp.eq.s32.totalorder %s18, 0
      %p45 = por %p43, %p44
      %s46 = ssub.s32 %s12, %s19
      %p47 = scmp.eq.s32.totalorder %s46, 0
      %s49 = sadd.s32 %s48, 1
      %s50 = scalar_select %p47, %s48, %s49
      %p53 = pneg %p47
      %p54 = scmp.eq.s32.totalorder %s12, 1
      %p55 = por %p53, %p54
      %p56 = scmp.ne.s32.totalorder %s48, %s51
      %p57 = scmp.eq.s32.totalorder %s12, 0
      %p58 = por %p56, %p57
      %p59 = scmp.ne.s32.totalorder %s48, %s51
      %p60 = scmp.eq.s32.totalorder %s17, 1
      %p61 = por %p59, %p60
      %p62 = scmp.ne.s32.totalorder %s51, %s52
      %p63 = scmp.eq.s32.totalorder %s17, 0
      %p64 = por %p62, %p63
      %p65 = scmp.ne.s32.totalorder %s51, %s52
      %p66 = scmp.eq.s32.totalorder %s18, 1
      %p67 = por %p65, %p66
      %p69 = scmp.ne.s32.totalorder %s52, %s68
      %p70 = scmp.eq.s32.totalorder %s18, 0
      %p71 = por %p69, %p70
      %s73 = sadd.s32 %s72, 1
      %p76 = scmp.eq.s32.totalorder %s12, 1
      %p77 = scmp.ne.s32.totalorder %s72, %s74
      %p78 = scmp.eq.s32.totalorder %s12, 0
      %p79 = por %p77, %p78
      %p80 = scmp.ne.s32.totalorder %s72, %s74
      %p81 = scmp.eq.s32.totalorder %s17, 1
      %p82 = por %p80, %p81
      %p83 = scmp.ne.s32.totalorder %s74, %s75
      %p84 = scmp.eq.s32.totalorder %s17, 0
      %p85 = por %p83, %p84
      %p86 = scmp.ne.s32.totalorder %s74, %s75
      %p87 = scmp.eq.s32.totalorder %s18, 1
      %p88 = por %p86, %p87
      %p90 = scmp.ne.s32.totalorder %s75, %s89
      %p91 = scmp.eq.s32.totalorder %s18, 0
      %p92 = por %p90, %p91
      %s94 = sadd.s32 %s93, 1
      %p97 = scmp.eq.s32.totalorder %s12, 1
      %p98 = scmp.ne.s32.totalorder %s93, %s95
      %p99 = scmp.eq.s32.totalorder %s12, 0
      %p100 = por %p98, %p99
      %p101 = scmp.ne.s32.totalorder %s93, %s95
      %p102 = scmp.eq.s32.totalorder %s17, 1
      %p103 = por %p101, %p102
      %p104 = scmp.ne.s32.totalorder %s95, %s96
      %p105 = scmp.eq.s32.totalorder %s17, 0
      %p106 = por %p104, %p105
      %p107 = scmp.ne.s32.totalorder %s95, %s96
      %p108 = scmp.eq.s32.totalorder %s18, 1
      %p109 = por %p107, %p108
      %p111 = scmp.ne.s32.totalorder %s96, %s110
      %p112 = scmp.eq.s32.totalorder %s18, 0
      %p113 = por %p111, %p112
      %s115 = sadd.s32 %s114, 1
      %p118 = scmp.eq.s32.totalorder %s12, 1
      %p119 = scmp.ne.s32.totalorder %s114, %s116
      %p120 = scmp.eq.s32.totalorder %s12, 0
      %p121 = por %p119, %p120
      %p122 = scmp.ne.s32.totalorder %s114, %s116
      %p123 = scmp.eq.s32.totalorder %s17, 1
      %p124 = por %p122, %p123
      %p125 = scmp.ne.s32.totalorder %s116, %s117
      %p126 = scmp.eq.s32.totalorder %s17, 0
      %p127 = por %p125, %p126
      %p128 = scmp.ne.s32.totalorder %s116, %s117
      %p129 = scmp.eq.s32.totalorder %s18, 1
      %p130 = por %p128, %p129
      %p132 = scmp.ne.s32.totalorder %s117, %s131
      %p133 = scmp.eq.s32.totalorder %s18, 0
      %p134 = por %p132, %p133
      %s136 = sadd.s32 %s135, 1
      %p139 = scmp.eq.s32.totalorder %s12, 1
      %p140 = scmp.ne.s32.totalorder %s135, %s137
      %p141 = scmp.eq.s32.totalorder %s12, 0
      %p142 = por %p140, %p141
      %p143 = scmp.ne.s32.totalorder %s135, %s137
      %p144 = scmp.eq.s32.totalorder %s17, 1
      %p145 = por %p143, %p144
      %p146 = scmp.ne.s32.totalorder %s137, %s138
      %p147 = scmp.eq.s32.totalorder %s17, 0
      %p148 = por %p146, %p147
      %p149 = scmp.ne.s32.totalorder %s137, %s138
      %p150 = scmp.eq.s32.totalorder %s18, 1
      %p151 = por %p149, %p150
      %p153 = scmp.ne.s32.totalorder %s138, %s152
      %p154 = scmp.eq.s32.totalorder %s18, 0
      %p155 = por %p153, %p154
      %p156 = scmp.le.s32.totalorder 1, %s12
      %p157 = scmp.lt.s32.totalorder %s12, 3
      %p158 = pnand %p156, %p157
      %p159 = pneg %p158
      // Predicated region
      $region9: #{eye_diameter_net.7} parent=5 // pred_check
        _
      $region10: #{eye_diameter_net.7} parent=5 // pred_check_branch
        %161 = sbr.rel (%p158) target = $region12
      $region11: #{eye_diameter_net.7} parent=5 // pred_region
        %s162 = ssub.s32 %s12, 1
        // Predicated region
        $region13: #{eye_diameter_net.7} parent=11 // pred_check
          %p163 = pneg %p85
        $region14: #{eye_diameter_net.7} parent=11 // pred_check_branch
          %165 = sbr.rel (%p163) target = $region16
        $region15: #{eye_diameter_net.7} parent=11 // pred_region
          _
        $region16: #{eye_diameter_net.7} parent=11 // pred_fallthru
          _
        // Predicated region
        $region17: #{eye_diameter_net.7} parent=11 // pred_check
          %p166 = pneg %p106
        $region18: #{eye_diameter_net.7} parent=11 // pred_check_branch
          %168 = sbr.rel (%p166) target = $region20
        $region19: #{eye_diameter_net.7} parent=11 // pred_region
          _
        $region20: #{eye_diameter_net.7} parent=11 // pred_fallthru
          _
        // Predicated region
        $region21: #{eye_diameter_net.7} parent=11 // pred_check
          %p169 = pneg %p127
        $region22: #{eye_diameter_net.7} parent=11 // pred_check_branch
          %171 = sbr.rel (%p169) target = $region24
        $region23: #{eye_diameter_net.7} parent=11 // pred_region
          _
        $region24: #{eye_diameter_net.7} parent=11 // pred_fallthru
          _
      $region12: #{eye_diameter_net.7} parent=5 // pred_fallthru
        _
      %p172 = scmp.lt.s32.totalorder %s12, 2
      // Predicated region
      $region25: #{eye_diameter_net.7} parent=5 // pred_check
        %p173 = pneg %p172
      $region26: #{eye_diameter_net.7} parent=5 // pred_check_branch
        %175 = sbr.rel (%p173) target = $region28
      $region27: #{eye_diameter_net.7} parent=5 // pred_region
        // Predicated region
        $region29: #{eye_diameter_net.7} parent=27 // pred_check
          %p176 = pneg %p32
        $region30: #{eye_diameter_net.7} parent=27 // pred_check_branch
          %178 = sbr.rel (%p176) target = $region32
        $region31: #{eye_diameter_net.7} parent=27 // pred_region
          %s179 = smul.u32 2, %s12
          %p180 = scmp.lt.s32.totalorder %s179, 3
          %s181 = scalar_select %p180, %s179, 3
          %s182 = smul.addr %s181, 2
          %s183 = scalar_lea.vmem %s0, %s182
          %s184 = smul.u32 2, %s12
        $region32: #{eye_diameter_net.7} parent=27 // pred_fallthru
          _
        // Predicated region
        $region33: #{eye_diameter_net.7} parent=27 // pred_check
          %p185 = pneg %p58
        $region34: #{eye_diameter_net.7} parent=27 // pred_check_branch
          %187 = sbr.rel (%p185) target = $region36
        $region35: #{eye_diameter_net.7} parent=27 // pred_region
          %s188 = smul.u32 32, %s12
          %p189 = scmp.lt.s32.totalorder %s188, 63
          %s190 = scalar_select %p189, %s188, 63
          %s191 = smul.addr %s190, 2
          %s192 = smul.addr %s191, 8
          %s193 = scalar_lea.vmem %s1, %s192
          %s194 = smul.u32 32, %s12
        $region36: #{eye_diameter_net.7} parent=27 // pred_fallthru
          _
      $region28: #{eye_diameter_net.7} parent=5 // pred_fallthru
        _
      %p195 = scmp.le.s32.totalorder 1, %s12
      %p196 = scmp.lt.s32.totalorder %s12, 3
      %p197 = pnand %p195, %p196
      %p198 = pneg %p197
      // Predicated region
      $region37: #{eye_diameter_net.7} parent=5 // pred_check
        _
      $region38: #{eye_diameter_net.7} parent=5 // pred_check_branch
        %200 = sbr.rel (%p197) target = $region40
      $region39: #{eye_diameter_net.7} parent=5 // pred_region
        %s201 = ssub.s32 %s12, 1
        %s202 = smul.u32 2, %s17
        %p203 = scmp.lt.s32.totalorder %s202, 3
        %s204 = scalar_select %p203, %s202, 3
        %s205 = smul.addr %s204, 2
        %s206 = scalar_lea.vmem %s0, %s205
        %p207 = pneg %p38
        %p208 = pneg %p35
        %s209 = smul.u32 32, %s17
        %p210 = scmp.lt.s32.totalorder %s209, 63
        %s211 = scalar_select %p210, %s209, 63
        %s212 = smul.addr %s211, 2
        %s213 = smul.addr %s212, 8
        %s214 = scalar_lea.vmem %s1, %s213
        %p215 = pneg %p64
        %p216 = pneg %p61
        %p217 = pneg %p85
        %p218 = pneg %p82
        %p219 = pneg %p106
        %p220 = pneg %p103
        %p221 = pneg %p127
        %p222 = pneg %p124
        %p223 = pneg %p148
        %p224 = pneg %p145
        %s225 = smul.u32 2, %s17
        %p226 = scmp.lt.s32.totalorder %s225, 3
        %s227 = scalar_select %p226, %s225, 3
        %s228 = smul.addr %s227, 2
        %s229 = scalar_lea.vmem %s0, %s228
        %s230 = smul.u32 2, %s17
        %s231 = smul.u32 32, %s17
        %p232 = scmp.lt.s32.totalorder %s231, 63
        %s233 = scalar_select %p232, %s231, 63
        %s234 = smul.addr %s233, 2
        %s235 = smul.addr %s234, 8
        %s236 = scalar_lea.vmem %s1, %s235
        %s237 = smul.u32 32, %s17
        %p238 = scmp.eq.s32.totalorder %s17, 0
        // Predicated region
        $region41: #{eye_diameter_net.7} parent=39 // pred_check
          %p239 = pneg %p238
        $region42: #{eye_diameter_net.7} parent=39 // pred_check_branch
          %241 = sbr.rel (%p239) target = $region44
        $region43: #{eye_diameter_net.7} parent=39 // pred_region
          %242 = vst [vmem:[#allocation2] sm:$0xf] 0.0
        $region44: #{eye_diameter_net.7} parent=39 // pred_fallthru
          _
        %v243 = vld [vmem:[#allocation2] sm:$0xf]
        %v244 = vld [vmem:[%s229] sm:$0xf]
        %v245 = vld [vmem:[%s236] sm:$0xff]
        %v246 = vld [vmem:[%s236 + $0x8] sm:$0xff]
        %v247 = vld [vmem:[%s236 + $0x10] sm:$0xff]
        %v248 = vld [vmem:[%s236 + $0x18] sm:$0xff]
        %v249 = vld [vmem:[%s236 + $0x20] sm:$0xff]
        %v250 = vld [vmem:[%s236 + $0x28] sm:$0xff]
        %v251 = vld [vmem:[%s236 + $0x30] sm:$0xff]
        %v252 = vld [vmem:[%s236 + $0x38] sm:$0xff]
        %v253 = vld [vmem:[%s236 + $0x40] sm:$0xff]
        %v254 = vld [vmem:[%s236 + $0x48] sm:$0xff]
        %v255 = vld [vmem:[%s236 + $0x50] sm:$0xff]
        %v256 = vld [vmem:[%s236 + $0x58] sm:$0xff]
        %v257 = vld [vmem:[%s236 + $0x60] sm:$0xff]
        %v258 = vld [vmem:[%s236 + $0x68] sm:$0xff]
        %v259 = vld [vmem:[%s236 + $0x70] sm:$0xff]
        %v260 = vld [vmem:[%s236 + $0x78] sm:$0xff]
        %v261 = vld [vmem:[%s236 + $0x80] sm:$0xff]
        %v262 = vld [vmem:[%s236 + $0x88] sm:$0xff]
        %v263 = vld [vmem:[%s236 + $0x90] sm:$0xff]
        %v264 = vld [vmem:[%s236 + $0x98] sm:$0xff]
        %v265 = vld [vmem:[%s236 + $0xa0] sm:$0xff]
        %v266 = vld [vmem:[%s236 + $0xa8] sm:$0xff]
        %v267 = vld [vmem:[%s236 + $0xb0] sm:$0xff]
        %v268 = vld [vmem:[%s236 + $0xb8] sm:$0xff]
        %v269 = vld [vmem:[%s236 + $0xc0] sm:$0xff]
        %v270 = vld [vmem:[%s236 + $0xc8] sm:$0xff]
        %v271 = vld [vmem:[%s236 + $0xd0] sm:$0xff]
        %v272 = vld [vmem:[%s236 + $0xd8] sm:$0xff]
        %v273 = vld [vmem:[%s236 + $0xe0] sm:$0xff]
        %v274 = vld [vmem:[%s236 + $0xe8] sm:$0xff]
        %v275 = vld [vmem:[%s236 + $0xf0] sm:$0xff]
        %v276 = vld [vmem:[%s236 + $0xf8] sm:$0xff]
        %v277 = vld [vmem:[%s236 + $0x100] sm:$0xff]
        %v278 = vld [vmem:[%s236 + $0x108] sm:$0xff]
        %v279 = vld [vmem:[%s236 + $0x110] sm:$0xff]
        %v280 = vld [vmem:[%s236 + $0x118] sm:$0xff]
        %v281 = vld [vmem:[%s236 + $0x120] sm:$0xff]
        %v282 = vld [vmem:[%s236 + $0x128] sm:$0xff]
        %v283 = vld [vmem:[%s236 + $0x130] sm:$0xff]
        %v284 = vld [vmem:[%s236 + $0x138] sm:$0xff]
        %v285 = vld [vmem:[%s236 + $0x140] sm:$0xff]
        %v286 = vld [vmem:[%s236 + $0x148] sm:$0xff]
        %v287 = vld [vmem:[%s236 + $0x150] sm:$0xff]
        %v288 = vld [vmem:[%s236 + $0x158] sm:$0xff]
        %v289 = vld [vmem:[%s236 + $0x160] sm:$0xff]
        %v290 = vld [vmem:[%s236 + $0x168] sm:$0xff]
        %v291 = vld [vmem:[%s236 + $0x170] sm:$0xff]
        %v292 = vld [vmem:[%s236 + $0x178] sm:$0xff]
        %v293 = vld [vmem:[%s236 + $0x180] sm:$0xff]
        %v294 = vld [vmem:[%s236 + $0x188] sm:$0xff]
        %v295 = vld [vmem:[%s236 + $0x190] sm:$0xff]
        %v296 = vld [vmem:[%s236 + $0x198] sm:$0xff]
        %v297 = vld [vmem:[%s236 + $0x1a0] sm:$0xff]
        %v298 = vld [vmem:[%s236 + $0x1a8] sm:$0xff]
        %v299 = vld [vmem:[%s236 + $0x1b0] sm:$0xff]
        %v300 = vld [vmem:[%s236 + $0x1b8] sm:$0xff]
        %v301 = vld [vmem:[%s236 + $0x1c0] sm:$0xff]
        %v302 = vld [vmem:[%s236 + $0x1c8] sm:$0xff]
        %v303 = vld [vmem:[%s236 + $0x1d0] sm:$0xff]
        %v304 = vld [vmem:[%s236 + $0x1d8] sm:$0xff]
        %v305 = vld [vmem:[%s236 + $0x1e0] sm:$0xff]
        %v306 = vld [vmem:[%s236 + $0x1e8] sm:$0xff]
        %v307 = vld [vmem:[%s236 + $0x1f0] sm:$0xff]
        %v308 = vld [vmem:[%s236 + $0x1f8] sm:$0xff]
        %v311 = vunpack.c.l.s4 1983009808
        %v312 = vunpack.c.0.s8 %v311
        %v313 = vlaneseq
        %v314 = vshrl.u32 %v313, 7
        %v315 = vsub.s32 %v312, %v314
        %v316 = vrot.slane %v244, %v315
        %v317 = vcombine.high %v316, %v316
        %320 = vmatprep.subr.mxu0 %v246
        %321 = vmatpush1.msra.mxu0 %v245
        %322 = vmatprep.subr.mxu0 %v248
        %323 = vmatpush1.msra.mxu0 %v247
        %324 = vmatprep.subr.mxu0 %v250
        %325 = vmatpush1.msra.mxu0 %v249
        %326 = vmatprep.subr.mxu0 %v252
        %327 = vmatpush1.msra.mxu0 %v251
        %328 = vmatprep.subr.mxu0 %v254
        %329 = vmatpush1.msra.mxu0 %v253
        %330 = vmatprep.subr.mxu0 %v256
        %331 = vmatpush1.msra.mxu0 %v255
        %332 = vmatprep.subr.mxu0 %v258
        %333 = vmatpush1.msra.mxu0 %v257
        %334 = vmatprep.subr.mxu0 %v260
        %335 = vmatpush1.msra.mxu0 %v259
        %336 = vmatprep.subr.mxu0 %v262
        %337 = vmatpush1.msra.mxu0 %v261
        %338 = vmatprep.subr.mxu0 %v264
        %339 = vmatpush1.msra.mxu0 %v263
        %340 = vmatprep.subr.mxu0 %v266
        %341 = vmatpush1.msra.mxu0 %v265
        %342 = vmatprep.subr.mxu0 %v268
        %343 = vmatpush1.msra.mxu0 %v267
        %344 = vmatprep.subr.mxu0 %v270
        %345 = vmatpush1.msra.mxu0 %v269
        %346 = vmatprep.subr.mxu0 %v272
        %347 = vmatpush1.msra.mxu0 %v271
        %348 = vmatprep.subr.mxu0 %v274
        %349 = vmatpush1.msra.mxu0 %v273
        %350 = vmatprep.subr.mxu0 %v276
        %351 = vmatpush1.msra.mxu0 %v275
        %352 = vmatprep.subr.mxu0 %v278
        %353 = vmatpush1.msra.mxu0 %v277
        %354 = vmatprep.subr.mxu0 %v280
        %355 = vmatpush1.msra.mxu0 %v279
        %356 = vmatprep.subr.mxu0 %v282
        %357 = vmatpush1.msra.mxu0 %v281
        %358 = vmatprep.subr.mxu0 %v284
        %359 = vmatpush1.msra.mxu0 %v283
        %360 = vmatprep.subr.mxu0 %v286
        %361 = vmatpush1.msra.mxu0 %v285
        %362 = vmatprep.subr.mxu0 %v288
        %363 = vmatpush1.msra.mxu0 %v287
        %364 = vmatprep.subr.mxu0 %v290
        %365 = vmatpush1.msra.mxu0 %v289
        %366 = vmatprep.subr.mxu0 %v292
        %367 = vmatpush1.msra.mxu0 %v291
        %368 = vmatprep.subr.mxu0 %v294
        %369 = vmatpush1.msra.mxu0 %v293
        %370 = vmatprep.subr.mxu0 %v296
        %371 = vmatpush1.msra.mxu0 %v295
        %372 = vmatprep.subr.mxu0 %v298
        %373 = vmatpush1.msra.mxu0 %v297
        %374 = vmatprep.subr.mxu0 %v300
        %375 = vmatpush1.msra.mxu0 %v299
        %376 = vmatprep.subr.mxu0 %v302
        %377 = vmatpush1.msra.mxu0 %v301
        %378 = vmatprep.subr.mxu0 %v304
        %379 = vmatpush1.msra.mxu0 %v303
        %380 = vmatprep.subr.mxu0 %v306
        %381 = vmatpush1.msra.mxu0 %v305
        %382 = vmatprep.subr.mxu0 %v308
        %383 = vmatpush1.msra.mxu0 %v307
        %384 = vmatprep.mubr.f32.mxu0 %v317
        %385 = vmatmul.mubr.f32.gmra.mrb[0].mxu0 %v316
        %v386 = vpop.f32.mrb[0].mxu0
        %v387 = vadd.f32 0.0, %v386
        %v388 = vpop.f32.mrb[0].mxu0
        %v389 = vadd.f32 0.0, %v388
        %390 = vdwg.mxu0
        %v393 = vcombine.low %v387, %v389
        %v395 = vunpack.c.l.s4 1983009808
        %v396 = vunpack.c.0.s8 %v395
        %v397 = vlaneseq
        %v398 = vshrl.u32 %v397, 7
        %v399 = vsub.s32 %v396, %v398
        %v400 = vrot.slane %v393, %v399
        %v402 = vadd.f32 %v243, %v400
        %403 = vst [vmem:[#allocation2] sm:$0xf] %v402
        %p404 = scmp.eq.s32.totalorder %s17, 1
        // Predicated region
        $region45: #{eye_diameter_net.7} parent=39 // pred_check
          %p405 = pneg %p404
        $region46: #{eye_diameter_net.7} parent=39 // pred_check_branch
          %407 = sbr.rel (%p405) target = $region48
        $region47: #{eye_diameter_net.7} parent=39 // pred_region
          %v408 = vld [vmem:[#allocation2] sm:$0xf]
          %v409 = vld [vmem:[%s2] sm:$0x3]
          %v411 = vlaneseq
          %v412 = vshrl.u32 %v411, 7
          %v413 = vsub.s32 0, %v412
          %v414 = vrot.slane %v409, %v413
          %v415 = vlaneseq
          %v416 = vshrl.u32 %v415, 7
          %v417 = vsub.s32 1, %v416
          %v418 = vrot.slane %v409, %v417
          %v419 = vcombine.low %v414, %v418
          %v421 = vunpack.c.l.s4 1983009808
          %v422 = vunpack.c.0.s8 %v421
          %v423 = vlaneseq
          %v424 = vshrl.u32 %v423, 7
          %v425 = vsub.s32 %v422, %v424
          %v426 = vrot.slane %v419, %v425
          %v428 = vadd.f32 %v408, %v426
          %v429 = vmax.f32 %v428, 0.0
          %v430 = vld [vmem:[%s3] sm:$0xff]
          %v431 = vld [vmem:[%s3 + $0x8] sm:$0xff]
          %v432 = vld [vmem:[%s3 + $0x10] sm:$0xff]
          %v433 = vld [vmem:[%s3 + $0x18] sm:$0xff]
          %v434 = vld [vmem:[%s3 + $0x20] sm:$0xff]
          %v435 = vld [vmem:[%s3 + $0x28] sm:$0xff]
          %v436 = vld [vmem:[%s3 + $0x30] sm:$0xff]
          %v437 = vld [vmem:[%s3 + $0x38] sm:$0xff]
          %v438 = vld [vmem:[%s3 + $0x40] sm:$0xff]
          %v439 = vld [vmem:[%s3 + $0x48] sm:$0xff]
          %v440 = vld [vmem:[%s3 + $0x50] sm:$0xff]
          %v441 = vld [vmem:[%s3 + $0x58] sm:$0xff]
          %v442 = vld [vmem:[%s3 + $0x60] sm:$0xff]
          %v443 = vld [vmem:[%s3 + $0x68] sm:$0xff]
          %v444 = vld [vmem:[%s3 + $0x70] sm:$0xff]
          %v445 = vld [vmem:[%s3 + $0x78] sm:$0xff]
          %v446 = vld [vmem:[%s3 + $0x80] sm:$0xff]
          %v447 = vld [vmem:[%s3 + $0x88] sm:$0xff]
          %v448 = vld [vmem:[%s3 + $0x90] sm:$0xff]
          %v449 = vld [vmem:[%s3 + $0x98] sm:$0xff]
          %v450 = vld [vmem:[%s3 + $0xa0] sm:$0xff]
          %v451 = vld [vmem:[%s3 + $0xa8] sm:$0xff]
          %v452 = vld [vmem:[%s3 + $0xb0] sm:$0xff]
          %v453 = vld [vmem:[%s3 + $0xb8] sm:$0xff]
          %v454 = vld [vmem:[%s3 + $0xc0] sm:$0xff]
          %v455 = vld [vmem:[%s3 + $0xc8] sm:$0xff]
          %v456 = vld [vmem:[%s3 + $0xd0] sm:$0xff]
          %v457 = vld [vmem:[%s3 + $0xd8] sm:$0xff]
          %v458 = vld [vmem:[%s3 + $0xe0] sm:$0xff]
          %v459 = vld [vmem:[%s3 + $0xe8] sm:$0xff]
          %v460 = vld [vmem:[%s3 + $0xf0] sm:$0xff]
          %v461 = vld [vmem:[%s3 + $0xf8] sm:$0xff]
          %v462 = vld [vmem:[%s4] sm:$0x1]
          %v464 = vlaneseq
          %v465 = vshrl.u32 %v464, 7
          %v466 = vsub.s32 0, %v465
          %v467 = vrot.slane %v462, %v466
          %v471 = vunpack.c.l.s4 1983009808
          %v472 = vunpack.c.0.s8 %v471
          %v473 = vlaneseq
          %v474 = vshrl.u32 %v473, 7
          %v475 = vsub.s32 %v472, %v474
          %v476 = vrot.slane %v429, %v475
          %v477 = vcombine.high %v476, %v476
          %480 = vmatprep.subr.mxu0 0.0
          %481 = vmatpush1.msra.mxu0 %v430
          %482 = vmatprep.subr.mxu0 0.0
          %483 = vmatpush1.msra.mxu0 %v431
          %484 = vmatprep.subr.mxu0 0.0
          %485 = vmatpush1.msra.mxu0 %v432
          %486 = vmatprep.subr.mxu0 0.0
          %487 = vmatpush1.msra.mxu0 %v433
          %488 = vmatprep.subr.mxu0 0.0
          %489 = vmatpush1.msra.mxu0 %v434
          %490 = vmatprep.subr.mxu0 0.0
          %491 = vmatpush1.msra.mxu0 %v435
          %492 = vmatprep.subr.mxu0 0.0
          %493 = vmatpush1.msra.mxu0 %v436
          %494 = vmatprep.subr.mxu0 0.0
          %495 = vmatpush1.msra.mxu0 %v437
          %496 = vmatprep.subr.mxu0 0.0
          %497 = vmatpush1.msra.mxu0 %v438
          %498 = vmatprep.subr.mxu0 0.0
          %499 = vmatpush1.msra.mxu0 %v439
          %500 = vmatprep.subr.mxu0 0.0
          %501 = vmatpush1.msra.mxu0 %v440
          %502 = vmatprep.subr.mxu0 0.0
          %503 = vmatpush1.msra.mxu0 %v441
          %504 = vmatprep.subr.mxu0 0.0
          %505 = vmatpush1.msra.mxu0 %v442
          %506 = vmatprep.subr.mxu0 0.0
          %507 = vmatpush1.msra.mxu0 %v443
          %508 = vmatprep.subr.mxu0 0.0
          %509 = vmatpush1.msra.mxu0 %v444
          %510 = vmatprep.subr.mxu0 0.0
          %511 = vmatpush1.msra.mxu0 %v445
          %512 = vmatprep.subr.mxu0 0.0
          %513 = vmatpush1.msra.mxu0 %v446
          %514 = vmatprep.subr.mxu0 0.0
          %515 = vmatpush1.msra.mxu0 %v447
          %516 = vmatprep.subr.mxu0 0.0
          %517 = vmatpush1.msra.mxu0 %v448
          %518 = vmatprep.subr.mxu0 0.0
          %519 = vmatpush1.msra.mxu0 %v449
          %520 = vmatprep.subr.mxu0 0.0
          %521 = vmatpush1.msra.mxu0 %v450
          %522 = vmatprep.subr.mxu0 0.0
          %523 = vmatpush1.msra.mxu0 %v451
          %524 = vmatprep.subr.mxu0 0.0
          %525 = vmatpush1.msra.mxu0 %v452
          %526 = vmatprep.subr.mxu0 0.0
          %527 = vmatpush1.msra.mxu0 %v453
          %528 = vmatprep.subr.mxu0 0.0
          %529 = vmatpush1.msra.mxu0 %v454
          %530 = vmatprep.subr.mxu0 0.0
          %531 = vmatpush1.msra.mxu0 %v455
          %532 = vmatprep.subr.mxu0 0.0
          %533 = vmatpush1.msra.mxu0 %v456
          %534 = vmatprep.subr.mxu0 0.0
          %535 = vmatpush1.msra.mxu0 %v457
          %536 = vmatprep.subr.mxu0 0.0
          %537 = vmatpush1.msra.mxu0 %v458
          %538 = vmatprep.subr.mxu0 0.0
          %539 = vmatpush1.msra.mxu0 %v459
          %540 = vmatprep.subr.mxu0 0.0
          %541 = vmatpush1.msra.mxu0 %v460
          %542 = vmatprep.subr.mxu0 0.0
          %543 = vmatpush1.msra.mxu0 %v461
          %544 = vmatprep.mubr.f32.mxu0 %v477
          %545 = vmatmul.mubr.f32.gmra.mrb[0].mxu0 %v476
          %v546 = vpop.f32.mrb[0].mxu0
          %v547 = vadd.f32 %v467, %v546
          %v548 = vpop.f32.mrb[0].mxu0
          %549 = vdwg.mxu0
          %550 = vst [vmem:[#allocation3] sm:$0x3] %v547
        $region48: #{eye_diameter_net.7} parent=39 // pred_fallthru
          _
        // Predicated region
        $region49: #{eye_diameter_net.7} parent=39 // pred_check
          %p551 = pneg %p145
        $region50: #{eye_diameter_net.7} parent=39 // pred_check_branch
          %553 = sbr.rel (%p551) target = $region52
        $region51: #{eye_diameter_net.7} parent=39 // pred_region
          %s555 = ssub.s32 32, 32
          %556 = vsyncadd [#allocation4], %s555
          %s558 = sshll.u32 [#allocation3], 4
          %s559 = int_to_ptr.vmem [resolvable:$true] %s558
          %561 = dma.vmem_to_hbm [thread:$0]  %s559, 32, %s5, [#allocation4]
        $region52: #{eye_diameter_net.7} parent=39 // pred_fallthru
          _
        // Predicated region
        $region53: #{eye_diameter_net.7} parent=39 // pred_check
          %p562 = pneg %p145
        $region54: #{eye_diameter_net.7} parent=39 // pred_check_branch
          %564 = sbr.rel (%p562) target = $region56
        $region55: #{eye_diameter_net.7} parent=39 // pred_region
          %565 = dma.done [#allocation4], 32
        $region56: #{eye_diameter_net.7} parent=39 // pred_fallthru
          _
      $region40: #{eye_diameter_net.7} parent=5 // pred_fallthru
        _
      %p566 = scmp.le.s32.totalorder 2, %s12
      // Predicated region
      $region57: #{eye_diameter_net.7} parent=5 // pred_check
        %p567 = pneg %p566
      $region58: #{eye_diameter_net.7} parent=5 // pred_check_branch
        %569 = sbr.rel (%p567) target = $region60
      $region59: #{eye_diameter_net.7} parent=5 // pred_region
        %s570 = ssub.s32 %s12, 2
      $region60: #{eye_diameter_net.7} parent=5 // pred_fallthru
        _
    $region6: #{eye_diameter_net.7} parent=1 // loop_footer
      %s16 = sadd.s32 1, %s12
    $region7: #{eye_diameter_net.7} parent=1 // loop_footer_branch
      %11 = sbr.rel target = $region3
    $region8: #{eye_diameter_net.7} parent=1 // loop_exit
      _
    %571 = vsyncpa [#allocation4], 1
    %s572 = scalar_lea.sflag [#allocation4], 1
    %573 = vsyncpa %s572, 1

</llo_original>
